<compile_context>
chip_gen: v7x
topology: tpu7x:2x2x1
jax: 0.10.0
libtpu: 0.0.40
codegen_flags: <defaults>
</compile_context>

<pallas_src>
import jax
import jax.numpy as jnp
from jax import lax
from jax.experimental import pallas as pl
from jax.experimental.pallas import tpu as pltpu

NEG_SLOPE = 0.01          # nn.LeakyReLU default
K_MAX = 15                # largest branch kernel size; k=3/7 are embedded into 15 taps
PAD = 8                   # left/right zero pad in the scratch buffers (>= 7, 8-aligned)
C1, C2, C3 = 8, 16, 32    # per-branch channel widths
L_IN = 64                 # input length: 3 stride-2 blocks -> 8 = AvgPool1d(8) window


def _leaky(x):
    return jnp.where(x > 0, x, NEG_SLOPE * x)


def _same_conv(pad_ref, L, cin, w1_ref, b1_ref):
    """'same' conv (15 fused taps) + LeakyReLU over a zero-padded VMEM buffer.

    pad_ref: (N, L + 2*PAD, cin) with the data at [:, PAD:PAD+L, :].
    Returns (N*L, cout) in f32.
    """
    N = pad_ref.shape[0]
    acc = None
    for j in range(K_MAX):                       # static unrolled tap loop
        lo = j + PAD - (K_MAX - 1) // 2          # = j + 1
        xs = pad_ref[:, lo:lo + L, :].reshape(N * L, cin)
        if cin == 1:
            # single shared input channel: rank-1 update done on the VPU
            contrib = xs * w1_ref[j]             # (N*L,1) * (1,cout) broadcast
        else:
            contrib = jnp.dot(xs, w1_ref[j], preferred_element_type=jnp.float32)
        acc = contrib if acc is None else acc + contrib
    return _leaky(acc + b1_ref[...])             # bias added once for the whole batch


def _down2(h, L, N, w2_ref, b2_ref):
    """Stride-2, kernel-2 conv + LeakyReLU. h: (N*L, C) -> (N*L//2, C).

    Even/odd row selection is done with small iota-built 0/1 matrices on the MXU
    (MXU work is free here) instead of strided sublane reads.
    """
    M = N * L
    Mh = M // 2
    r = lax.broadcasted_iota(jnp.int32, (Mh, M), 0)
    c = lax.broadcasted_iota(jnp.int32, (Mh, M), 1)
    s_even = (c == 2 * r).astype(jnp.float32)
    s_odd = (c == 2 * r + 1).astype(jnp.float32)
    h_even = jnp.dot(s_even, h, preferred_element_type=jnp.float32)
    h_odd = jnp.dot(s_odd, h, preferred_element_type=jnp.float32)
    y = (jnp.dot(h_even, w2_ref[0], preferred_element_type=jnp.float32)
         + jnp.dot(h_odd, w2_ref[1], preferred_element_type=jnp.float32)
         + b2_ref[...])
    return _leaky(y)


# ---------------------------------------------------------------------------
# Fully fused kernel: 3 blocks (branch-fused) + AvgPool1d(8) + Linear(96,96) + Linear(96,1)
# ---------------------------------------------------------------------------
def cnn_kernel(x_ref,
               w11_ref, b11_ref, w21_ref, b21_ref,
               w12_ref, b12_ref, w22_ref, b22_ref,
               w13_ref, b13_ref, w23_ref, b23_ref,
               wh_ref, bh_ref, wo_ref, bo_ref,
               out_ref,
               pad1_ref, pad2_ref, pad3_ref):
    N = x_ref.shape[0]
    L1, L2, L3, LF = L_IN, L_IN // 2, L_IN // 4, L_IN // 8
    CF1, CF2 = 3 * C1, 3 * C2

    # ---- block 1 of all three branches (single shared input channel) ----
    pad1_ref[...] = jnp.zeros(pad1_ref.shape, jnp.float32)
    pad1_ref[:, PAD:PAD + L1, :] = x_ref[...]
    h = _same_conv(pad1_ref, L1, 1, w11_ref, b11_ref)        # (N*64, 24)
    a = _down2(h, L1, N, w21_ref, b21_ref)                   # (N*32, 24)

    # ---- block 2 ----
    pad2_ref[...] = jnp.zeros(pad2_ref.shape, jnp.float32)
    for n in range(N):                                       # N is tiny & static
        pad2_ref[n, PAD:PAD + L2, :] = a[n * L2:(n + 1) * L2, :]
    h = _same_conv(pad2_ref, L2, CF1, w12_ref, b12_ref)      # (N*32, 48)
    a = _down2(h, L2, N, w22_ref, b22_ref)                   # (N*16, 48)

    # ---- block 3 ----
    pad3_ref[...] = jnp.zeros(pad3_ref.shape, jnp.float32)
    for n in range(N):
        pad3_ref[n, PAD:PAD + L3, :] = a[n * L3:(n + 1) * L3, :]
    h = _same_conv(pad3_ref, L3, CF2, w13_ref, b13_ref)      # (N*16, 96)
    a = _down2(h, L3, N, w23_ref, b23_ref)                   # (N*8, 96)

    # ---- head: concat is already lane-contiguous; AvgPool1d(8) via a tiny matmul ----
    r = lax.broadcasted_iota(jnp.int32, (N, N * LF), 0)
    c = lax.broadcasted_iota(jnp.int32, (N, N * LF), 1)
    pool = ((c >= r * LF) & (c < (r + 1) * LF)).astype(jnp.float32) * (1.0 / LF)
    feat = jnp.dot(pool, a, preferred_element_type=jnp.float32)                  # (N, 96)
    hid = jnp.dot(feat, wh_ref[...], preferred_element_type=jnp.float32) + bh_ref[...]
    out_ref[...] = (jnp.dot(hid, wo_ref[...], preferred_element_type=jnp.float32)
                    + bo_ref[...])


# ---------------------------------------------------------------------------
# Parameters: per-branch torch-like params, then fused (branch-concatenated) weights
# ---------------------------------------------------------------------------
def _uniform(key, shape, bound):
    return jax.random.uniform(key, shape, jnp.float32, -bound, bound)


def init_params(key):
    channels = [1, C1, C2, C3]
    keys = iter(jax.random.split(key, 64))
    params = {}
    for ksize, prefix in ((3, "k3"), (7, "k7"), (15, "k15")):
        for i in range(1, 4):
            in_c, out_c = channels[i - 1], channels[i]
            b1 = 1.0 / (in_c * ksize) ** 0.5
            b2 = 1.0 / (out_c * 2) ** 0.5
            params[f"{prefix}_block{i}"] = {
                "w1": _uniform(next(keys), (ksize, in_c, out_c), b1),  # (k, Cin, Cout)
                "b1": _uniform(next(keys), (out_c,), b1),
                "w2": _uniform(next(keys), (2, out_c, out_c), b2),     # (2, Cout, Cout)
                "b2": _uniform(next(keys), (out_c,), b2),
            }
    hb = 1.0 / 96 ** 0.5
    params["wh"] = _uniform(next(keys), (96, 96), hb)  # Linear(96,96) stored (in, out)
    params["bh"] = _uniform(next(keys), (96,), hb)
    params["wo"] = _uniform(next(keys), (96, 1), hb)   # Linear(96,1) stored (in, out)
    params["bo"] = _uniform(next(keys), (1,), hb)
    return params


def fuse_params(params):
    """Fold the three kernel-size branches of every block into one weight set.

    Branch order is (k3, k7, k15), matching torch.cat((out_3, out_7, out_15), dim=1)
    and the row order of linear_hidden.  Done once, outside the hot path.
    NOTE: real torch Conv1d/Linear weights would need (out,in[,k]) -> (k,in,out)/(in,out)
    transposes before this step.
    """
    cins = [1, C1, C2]
    couts = [C1, C2, C3]
    branches = ((3, "k3"), (7, "k7"), (15, "k15"))
    fused = {}
    for blk in (1, 2, 3):
        cin_b, cout_b = cins[blk - 1], couts[blk - 1]
        cin_f = cin_b if blk == 1 else 3 * cin_b      # block 1 shares the single input channel
        cout_f = 3 * cout_b
        w1 = jnp.zeros((K_MAX, cin_f, cout_f), jnp.float32)
        w2 = jnp.zeros((2, cout_f, cout_f), jnp.float32)
        b1 = jnp.zeros((cout_f,), jnp.float32)
        b2 = jnp.zeros((cout_f,), jnp.float32)
        for b, (ksize, prefix) in enumerate(branches):
            p = params[f"{prefix}_block{blk}"]
            t0 = (K_MAX - ksize) // 2                 # centred embedding into 15 taps
            ci0 = 0 if blk == 1 else b * cin_b
            co0 = b * cout_b
            w1 = w1.at[t0:t0 + ksize, ci0:ci0 + cin_b, co0:co0 + cout_b].set(p["w1"])
            w2 = w2.at[:, co0:co0 + cout_b, co0:co0 + cout_b].set(p["w2"])
            b1 = b1.at[co0:co0 + cout_b].set(p["b1"])
            b2 = b2.at[co0:co0 + cout_b].set(p["b2"])
        fused[f"w1_{blk}"] = w1
        fused[f"b1_{blk}"] = b1.reshape(1, cout_f)
        fused[f"w2_{blk}"] = w2
        fused[f"b2_{blk}"] = b2.reshape(1, cout_f)
    fused["wh"] = params["wh"]
    fused["bh"] = params["bh"].reshape(1, 96)
    fused["wo"] = params["wo"]
    fused["bo"] = params["bo"].reshape(1, 1)
    return fused


# ---------------------------------------------------------------------------
# Forward
# ---------------------------------------------------------------------------
def cnn_forward(fused, x_ncw):
    """x_ncw: (N, 1, 64) float32, PyTorch NCW layout.  Returns (mean, std), each (N, 1)."""
    N, cin, L = x_ncw.shape
    assert cin == 1 and L == L_IN
    x = jnp.transpose(x_ncw, (0, 2, 1)).astype(jnp.float32)   # (N, 64, 1)

    out = pl.pallas_call(
        cnn_kernel,
        out_shape=jax.ShapeDtypeStruct((N, 1), jnp.float32),
        in_specs=[pl.BlockSpec(memory_space=pltpu.MemorySpace.VMEM)] * 17,
        out_specs=pl.BlockSpec(memory_space=pltpu.MemorySpace.VMEM),
        scratch_shapes=[
            pltpu.VMEM((N, L_IN + 2 * PAD, 1), jnp.float32),          # padded block-1 input
            pltpu.VMEM((N, L_IN // 2 + 2 * PAD, 3 * C1), jnp.float32),  # padded block-2 input
            pltpu.VMEM((N, L_IN // 4 + 2 * PAD, 3 * C2), jnp.float32),  # padded block-3 input
        ],
    )(x,
      fused["w1_1"], fused["b1_1"], fused["w2_1"], fused["b2_1"],
      fused["w1_2"], fused["b1_2"], fused["w2_2"], fused["b2_2"],
      fused["w1_3"], fused["b1_3"], fused["w2_3"], fused["b2_3"],
      fused["wh"], fused["bh"], fused["wo"], fused["bo"])

    # The torch module applies the same deterministic layers twice; mean == std.
    return out, out


if __name__ == "__main__":
    root = jax.random.PRNGKey(0)
    pkey, xkey = jax.random.split(root)
    params = init_params(pkey)
    fused = fuse_params(params)          # branch fusion done once, outside the hot path

    # batch=2, 1 channel, length 64 (three stride-2 blocks -> 8, the AvgPool1d window)
    x = jax.random.normal(xkey, (2, 1, L_IN), jnp.float32)

    fwd = jax.jit(cnn_forward)
    mean, std = fwd(fused, x)
    jax.block_until_ready((mean, std))
    assert mean.shape == (2, 1) and std.shape == (2, 1)
    print("KERNEL_OK")
</pallas_src>

<mosaic_0001>
module attributes {stable_mosaic.version = 11 : i64} {
  func.func @cnn_kernel(%arg0: memref<2x64x1xf32, #tpu.memory_space<vmem>>, %arg1: memref<15x1x24xf32, #tpu.memory_space<vmem>>, %arg2: memref<1x24xf32, #tpu.memory_space<vmem>>, %arg3: memref<2x24x24xf32, #tpu.memory_space<vmem>>, %arg4: memref<1x24xf32, #tpu.memory_space<vmem>>, %arg5: memref<15x24x48xf32, #tpu.memory_space<vmem>>, %arg6: memref<1x48xf32, #tpu.memory_space<vmem>>, %arg7: memref<2x48x48xf32, #tpu.memory_space<vmem>>, %arg8: memref<1x48xf32, #tpu.memory_space<vmem>>, %arg9: memref<15x48x96xf32, #tpu.memory_space<vmem>>, %arg10: memref<1x96xf32, #tpu.memory_space<vmem>>, %arg11: memref<2x96x96xf32, #tpu.memory_space<vmem>>, %arg12: memref<1x96xf32, #tpu.memory_space<vmem>>, %arg13: memref<96x96xf32, #tpu.memory_space<vmem>>, %arg14: memref<1x96xf32, #tpu.memory_space<vmem>>, %arg15: memref<96x1xf32, #tpu.memory_space<vmem>>, %arg16: memref<1x1xf32, #tpu.memory_space<vmem>>, %arg17: memref<2x1xf32, #tpu.memory_space<vmem>>, %arg18: memref<2x80x1xf32, #tpu.memory_space<vmem>>, %arg19: memref<2x48x24xf32, #tpu.memory_space<vmem>>, %arg20: memref<2x32x48xf32, #tpu.memory_space<vmem>>) attributes {dimension_semantics = [], scalar_prefetch = 0 : i64, scratch_operands = 3 : i64, tpu.core_type = #tpu.core_type<tc>} {
    %cst = arith.constant 0.000000e+00 : f32
    %0 = vector.broadcast %cst : f32 to vector<2x80x1xf32>
    %c0 = arith.constant 0 : index
    %c0_0 = arith.constant 0 : index
    %c0_1 = arith.constant 0 : index
    %1 = vector.load %arg18[%c0, %c0_0, %c0_1] : memref<2x80x1xf32, #tpu.memory_space<vmem>>, vector<2x80x1xf32>
    tpu.vector_store %arg18[%c0, %c0_0, %c0_1], %0 {strides = array<i32>} : memref<2x80x1xf32, #tpu.memory_space<vmem>>, vector<2x80x1xf32>,
    %c0_2 = arith.constant 0 : index
    %c0_3 = arith.constant 0 : index
    %c0_4 = arith.constant 0 : index
    %2 = vector.load %arg0[%c0_2, %c0_3, %c0_4] : memref<2x64x1xf32, #tpu.memory_space<vmem>>, vector<2x64x1xf32>
    %c0_5 = arith.constant 0 : index
    %c8 = arith.constant 8 : index
    %c0_6 = arith.constant 0 : index
    %3 = vector.load %arg18[%c0_5, %c8, %c0_6] : memref<2x80x1xf32, #tpu.memory_space<vmem>>, vector<2x64x1xf32>
    tpu.vector_store %arg18[%c0_5, %c8, %c0_6], %2 {strides = array<i32>} : memref<2x80x1xf32, #tpu.memory_space<vmem>>, vector<2x64x1xf32>,
    %c0_7 = arith.constant 0 : index
    %c1 = arith.constant 1 : index
    %c0_8 = arith.constant 0 : index
    %4 = vector.load %arg18[%c0_7, %c1, %c0_8] : memref<2x80x1xf32, #tpu.memory_space<vmem>>, vector<2x64x1xf32>
    %5 = vector.shape_cast %4 : vector<2x64x1xf32> to vector<128x1xf32>
    %c0_9 = arith.constant 0 : index
    %c0_10 = arith.constant 0 : index
    %c0_11 = arith.constant 0 : index
    %6 = vector.load %arg1[%c0_9, %c0_10, %c0_11] : memref<15x1x24xf32, #tpu.memory_space<vmem>>, vector<1x1x24xf32>
    %7 = vector.shape_cast %6 : vector<1x1x24xf32> to vector<1x24xf32>
    %8 = vector.broadcast %5 : vector<128x1xf32> to vector<128x24xf32>
    %9 = vector.broadcast %7 : vector<1x24xf32> to vector<128x24xf32>
    %10 = arith.mulf %8, %9 : vector<128x24xf32>
    %c0_12 = arith.constant 0 : index
    %c2 = arith.constant 2 : index
    %c0_13 = arith.constant 0 : index
    %11 = vector.load %arg18[%c0_12, %c2, %c0_13] : memref<2x80x1xf32, #tpu.memory_space<vmem>>, vector<2x64x1xf32>
    %12 = vector.shape_cast %11 : vector<2x64x1xf32> to vector<128x1xf32>
    %c1_14 = arith.constant 1 : index
    %c0_15 = arith.constant 0 : index
    %c0_16 = arith.constant 0 : index
    %13 = vector.load %arg1[%c1_14, %c0_15, %c0_16] : memref<15x1x24xf32, #tpu.memory_space<vmem>>, vector<1x1x24xf32>
    %14 = vector.shape_cast %13 : vector<1x1x24xf32> to vector<1x24xf32>
    %15 = vector.broadcast %12 : vector<128x1xf32> to vector<128x24xf32>
    %16 = vector.broadcast %14 : vector<1x24xf32> to vector<128x24xf32>
    %17 = arith.mulf %15, %16 : vector<128x24xf32>
    %18 = arith.addf %10, %17 : vector<128x24xf32>
    %c0_17 = arith.constant 0 : index
    %c3 = arith.constant 3 : index
    %c0_18 = arith.constant 0 : index
    %19 = vector.load %arg18[%c0_17, %c3, %c0_18] : memref<2x80x1xf32, #tpu.memory_space<vmem>>, vector<2x64x1xf32>
    %20 = vector.shape_cast %19 : vector<2x64x1xf32> to vector<128x1xf32>
    %c2_19 = arith.constant 2 : index
    %c0_20 = arith.constant 0 : index
    %c0_21 = arith.constant 0 : index
    %21 = vector.load %arg1[%c2_19, %c0_20, %c0_21] : memref<15x1x24xf32, #tpu.memory_space<vmem>>, vector<1x1x24xf32>
    %22 = vector.shape_cast %21 : vector<1x1x24xf32> to vector<1x24xf32>
    %23 = vector.broadcast %20 : vector<128x1xf32> to vector<128x24xf32>
    %24 = vector.broadcast %22 : vector<1x24xf32> to vector<128x24xf32>
    %25 = arith.mulf %23, %24 : vector<128x24xf32>
    %26 = arith.addf %18, %25 : vector<128x24xf32>
    %c0_22 = arith.constant 0 : index
    %c4 = arith.constant 4 : index
    %c0_23 = arith.constant 0 : index
    %27 = vector.load %arg18[%c0_22, %c4, %c0_23] : memref<2x80x1xf32, #tpu.memory_space<vmem>>, vector<2x64x1xf32>
    %28 = vector.shape_cast %27 : vector<2x64x1xf32> to vector<128x1xf32>
    %c3_24 = arith.constant 3 : index
    %c0_25 = arith.constant 0 : index
    %c0_26 = arith.constant 0 : index
    %29 = vector.load %arg1[%c3_24, %c0_25, %c0_26] : memref<15x1x24xf32, #tpu.memory_space<vmem>>, vector<1x1x24xf32>
    %30 = vector.shape_cast %29 : vector<1x1x24xf32> to vector<1x24xf32>
    %31 = vector.broadcast %28 : vector<128x1xf32> to vector<128x24xf32>
    %32 = vector.broadcast %30 : vector<1x24xf32> to vector<128x24xf32>
    %33 = arith.mulf %31, %32 : vector<128x24xf32>
    %34 = arith.addf %26, %33 : vector<128x24xf32>
    %c0_27 = arith.constant 0 : index
    %c5 = arith.constant 5 : index
    %c0_28 = arith.constant 0 : index
    %35 = vector.load %arg18[%c0_27, %c5, %c0_28] : memref<2x80x1xf32, #tpu.memory_space<vmem>>, vector<2x64x1xf32>
    %36 = vector.shape_cast %35 : vector<2x64x1xf32> to vector<128x1xf32>
    %c4_29 = arith.constant 4 : index
    %c0_30 = arith.constant 0 : index
    %c0_31 = arith.constant 0 : index
    %37 = vector.load %arg1[%c4_29, %c0_30, %c0_31] : memref<15x1x24xf32, #tpu.memory_space<vmem>>, vector<1x1x24xf32>
    %38 = vector.shape_cast %37 : vector<1x1x24xf32> to vector<1x24xf32>
    %39 = vector.broadcast %36 : vector<128x1xf32> to vector<128x24xf32>
    %40 = vector.broadcast %38 : vector<1x24xf32> to vector<128x24xf32>
    %41 = arith.mulf %39, %40 : vector<128x24xf32>
    %42 = arith.addf %34, %41 : vector<128x24xf32>
    %c0_32 = arith.constant 0 : index
    %c6 = arith.constant 6 : index
    %c0_33 = arith.constant 0 : index
    %43 = vector.load %arg18[%c0_32, %c6, %c0_33] : memref<2x80x1xf32, #tpu.memory_space<vmem>>, vector<2x64x1xf32>
    %44 = vector.shape_cast %43 : vector<2x64x1xf32> to vector<128x1xf32>
    %c5_34 = arith.constant 5 : index
    %c0_35 = arith.constant 0 : index
    %c0_36 = arith.constant 0 : index
    %45 = vector.load %arg1[%c5_34, %c0_35, %c0_36] : memref<15x1x24xf32, #tpu.memory_space<vmem>>, vector<1x1x24xf32>
    %46 = vector.shape_cast %45 : vector<1x1x24xf32> to vector<1x24xf32>
    %47 = vector.broadcast %44 : vector<128x1xf32> to vector<128x24xf32>
    %48 = vector.broadcast %46 : vector<1x24xf32> to vector<128x24xf32>
    %49 = arith.mulf %47, %48 : vector<128x24xf32>
    %50 = arith.addf %42, %49 : vector<128x24xf32>
    %c0_37 = arith.constant 0 : index
    %c7 = arith.constant 7 : index
    %c0_38 = arith.constant 0 : index
    %51 = vector.load %arg18[%c0_37, %c7, %c0_38] : memref<2x80x1xf32, #tpu.memory_space<vmem>>, vector<2x64x1xf32>
    %52 = vector.shape_cast %51 : vector<2x64x1xf32> to vector<128x1xf32>
    %c6_39 = arith.constant 6 : index
    %c0_40 = arith.constant 0 : index
    %c0_41 = arith.constant 0 : index
    %53 = vector.load %arg1[%c6_39, %c0_40, %c0_41] : memref<15x1x24xf32, #tpu.memory_space<vmem>>, vector<1x1x24xf32>
    %54 = vector.shape_cast %53 : vector<1x1x24xf32> to vector<1x24xf32>
    %55 = vector.broadcast %52 : vector<128x1xf32> to vector<128x24xf32>
    %56 = vector.broadcast %54 : vector<1x24xf32> to vector<128x24xf32>
    %57 = arith.mulf %55, %56 : vector<128x24xf32>
    %58 = arith.addf %50, %57 : vector<128x24xf32>
    %c0_42 = arith.constant 0 : index
    %c8_43 = arith.constant 8 : index
    %c0_44 = arith.constant 0 : index
    %59 = vector.load %arg18[%c0_42, %c8_43, %c0_44] : memref<2x80x1xf32, #tpu.memory_space<vmem>>, vector<2x64x1xf32>
    %60 = vector.shape_cast %59 : vector<2x64x1xf32> to vector<128x1xf32>
    %c7_45 = arith.constant 7 : index
    %c0_46 = arith.constant 0 : index
    %c0_47 = arith.constant 0 : index
    %61 = vector.load %arg1[%c7_45, %c0_46, %c0_47] : memref<15x1x24xf32, #tpu.memory_space<vmem>>, vector<1x1x24xf32>
    %62 = vector.shape_cast %61 : vector<1x1x24xf32> to vector<1x24xf32>
    %63 = vector.broadcast %60 : vector<128x1xf32> to vector<128x24xf32>
    %64 = vector.broadcast %62 : vector<1x24xf32> to vector<128x24xf32>
    %65 = arith.mulf %63, %64 : vector<128x24xf32>
    %66 = arith.addf %58, %65 : vector<128x24xf32>
    %c0_48 = arith.constant 0 : index
    %c9 = arith.constant 9 : index
    %c0_49 = arith.constant 0 : index
    %67 = vector.load %arg18[%c0_48, %c9, %c0_49] : memref<2x80x1xf32, #tpu.memory_space<vmem>>, vector<2x64x1xf32>
    %68 = vector.shape_cast %67 : vector<2x64x1xf32> to vector<128x1xf32>
    %c8_50 = arith.constant 8 : index
    %c0_51 = arith.constant 0 : index
    %c0_52 = arith.constant 0 : index
    %69 = vector.load %arg1[%c8_50, %c0_51, %c0_52] : memref<15x1x24xf32, #tpu.memory_space<vmem>>, vector<1x1x24xf32>
    %70 = vector.shape_cast %69 : vector<1x1x24xf32> to vector<1x24xf32>
    %71 = vector.broadcast %68 : vector<128x1xf32> to vector<128x24xf32>
    %72 = vector.broadcast %70 : vector<1x24xf32> to vector<128x24xf32>
    %73 = arith.mulf %71, %72 : vector<128x24xf32>
    %74 = arith.addf %66, %73 : vector<128x24xf32>
    %c0_53 = arith.constant 0 : index
    %c10 = arith.constant 10 : index
    %c0_54 = arith.constant 0 : index
    %75 = vector.load %arg18[%c0_53, %c10, %c0_54] : memref<2x80x1xf32, #tpu.memory_space<vmem>>, vector<2x64x1xf32>
    %76 = vector.shape_cast %75 : vector<2x64x1xf32> to vector<128x1xf32>
    %c9_55 = arith.constant 9 : index
    %c0_56 = arith.constant 0 : index
    %c0_57 = arith.constant 0 : index
    %77 = vector.load %arg1[%c9_55, %c0_56, %c0_57] : memref<15x1x24xf32, #tpu.memory_space<vmem>>, vector<1x1x24xf32>
    %78 = vector.shape_cast %77 : vector<1x1x24xf32> to vector<1x24xf32>
    %79 = vector.broadcast %76 : vector<128x1xf32> to vector<128x24xf32>
    %80 = vector.broadcast %78 : vector<1x24xf32> to vector<128x24xf32>
    %81 = arith.mulf %79, %80 : vector<128x24xf32>
    %82 = arith.addf %74, %81 : vector<128x24xf32>
    %c0_58 = arith.constant 0 : index
    %c11 = arith.constant 11 : index
    %c0_59 = arith.constant 0 : index
    %83 = vector.load %arg18[%c0_58, %c11, %c0_59] : memref<2x80x1xf32, #tpu.memory_space<vmem>>, vector<2x64x1xf32>
    %84 = vector.shape_cast %83 : vector<2x64x1xf32> to vector<128x1xf32>
    %c10_60 = arith.constant 10 : index
    %c0_61 = arith.constant 0 : index
    %c0_62 = arith.constant 0 : index
    %85 = vector.load %arg1[%c10_60, %c0_61, %c0_62] : memref<15x1x24xf32, #tpu.memory_space<vmem>>, vector<1x1x24xf32>
    %86 = vector.shape_cast %85 : vector<1x1x24xf32> to vector<1x24xf32>
    %87 = vector.broadcast %84 : vector<128x1xf32> to vector<128x24xf32>
    %88 = vector.broadcast %86 : vector<1x24xf32> to vector<128x24xf32>
    %89 = arith.mulf %87, %88 : vector<128x24xf32>
    %90 = arith.addf %82, %89 : vector<128x24xf32>
    %c0_63 = arith.constant 0 : index
    %c12 = arith.constant 12 : index
    %c0_64 = arith.constant 0 : index
    %91 = vector.load %arg18[%c0_63, %c12, %c0_64] : memref<2x80x1xf32, #tpu.memory_space<vmem>>, vector<2x64x1xf32>
    %92 = vector.shape_cast %91 : vector<2x64x1xf32> to vector<128x1xf32>
    %c11_65 = arith.constant 11 : index
    %c0_66 = arith.constant 0 : index
    %c0_67 = arith.constant 0 : index
    %93 = vector.load %arg1[%c11_65, %c0_66, %c0_67] : memref<15x1x24xf32, #tpu.memory_space<vmem>>, vector<1x1x24xf32>
    %94 = vector.shape_cast %93 : vector<1x1x24xf32> to vector<1x24xf32>
    %95 = vector.broadcast %92 : vector<128x1xf32> to vector<128x24xf32>
    %96 = vector.broadcast %94 : vector<1x24xf32> to vector<128x24xf32>
    %97 = arith.mulf %95, %96 : vector<128x24xf32>
    %98 = arith.addf %90, %97 : vector<128x24xf32>
    %c0_68 = arith.constant 0 : index
    %c13 = arith.constant 13 : index
    %c0_69 = arith.constant 0 : index
    %99 = vector.load %arg18[%c0_68, %c13, %c0_69] : memref<2x80x1xf32, #tpu.memory_space<vmem>>, vector<2x64x1xf32>
    %100 = vector.shape_cast %99 : vector<2x64x1xf32> to vector<128x1xf32>
    %c12_70 = arith.constant 12 : index
    %c0_71 = arith.constant 0 : index
    %c0_72 = arith.constant 0 : index
    %101 = vector.load %arg1[%c12_70, %c0_71, %c0_72] : memref<15x1x24xf32, #tpu.memory_space<vmem>>, vector<1x1x24xf32>
    %102 = vector.shape_cast %101 : vector<1x1x24xf32> to vector<1x24xf32>
    %103 = vector.broadcast %100 : vector<128x1xf32> to vector<128x24xf32>
    %104 = vector.broadcast %102 : vector<1x24xf32> to vector<128x24xf32>
    %105 = arith.mulf %103, %104 : vector<128x24xf32>
    %106 = arith.addf %98, %105 : vector<128x24xf32>
    %c0_73 = arith.constant 0 : index
    %c14 = arith.constant 14 : index
    %c0_74 = arith.constant 0 : index
    %107 = vector.load %arg18[%c0_73, %c14, %c0_74] : memref<2x80x1xf32, #tpu.memory_space<vmem>>, vector<2x64x1xf32>
    %108 = vector.shape_cast %107 : vector<2x64x1xf32> to vector<128x1xf32>
    %c13_75 = arith.constant 13 : index
    %c0_76 = arith.constant 0 : index
    %c0_77 = arith.constant 0 : index
    %109 = vector.load %arg1[%c13_75, %c0_76, %c0_77] : memref<15x1x24xf32, #tpu.memory_space<vmem>>, vector<1x1x24xf32>
    %110 = vector.shape_cast %109 : vector<1x1x24xf32> to vector<1x24xf32>
    %111 = vector.broadcast %108 : vector<128x1xf32> to vector<128x24xf32>
    %112 = vector.broadcast %110 : vector<1x24xf32> to vector<128x24xf32>
    %113 = arith.mulf %111, %112 : vector<128x24xf32>
    %114 = arith.addf %106, %113 : vector<128x24xf32>
    %c0_78 = arith.constant 0 : index
    %c15 = arith.constant 15 : index
    %c0_79 = arith.constant 0 : index
    %115 = vector.load %arg18[%c0_78, %c15, %c0_79] : memref<2x80x1xf32, #tpu.memory_space<vmem>>, vector<2x64x1xf32>
    %116 = vector.shape_cast %115 : vector<2x64x1xf32> to vector<128x1xf32>
    %c14_80 = arith.constant 14 : index
    %c0_81 = arith.constant 0 : index
    %c0_82 = arith.constant 0 : index
    %117 = vector.load %arg1[%c14_80, %c0_81, %c0_82] : memref<15x1x24xf32, #tpu.memory_space<vmem>>, vector<1x1x24xf32>
    %118 = vector.shape_cast %117 : vector<1x1x24xf32> to vector<1x24xf32>
    %119 = vector.broadcast %116 : vector<128x1xf32> to vector<128x24xf32>
    %120 = vector.broadcast %118 : vector<1x24xf32> to vector<128x24xf32>
    %121 = arith.mulf %119, %120 : vector<128x24xf32>
    %122 = arith.addf %114, %121 : vector<128x24xf32>
    %c0_83 = arith.constant 0 : index
    %c0_84 = arith.constant 0 : index
    %123 = vector.load %arg2[%c0_83, %c0_84] : memref<1x24xf32, #tpu.memory_space<vmem>>, vector<1x24xf32>
    %124 = vector.broadcast %123 : vector<1x24xf32> to vector<128x24xf32>
    %125 = arith.addf %122, %124 : vector<128x24xf32>
    %cst_85 = arith.constant 0.000000e+00 : f32
    %126 = vector.broadcast %cst_85 : f32 to vector<128x24xf32>
    %127 = arith.cmpf ogt, %125, %126 : vector<128x24xf32>
    %cst_86 = arith.constant 0.00999999977 : f32
    %128 = vector.broadcast %cst_86 : f32 to vector<128x24xf32>
    %129 = arith.mulf %128, %125 : vector<128x24xf32>
    %130 = arith.select %127, %125, %129 : vector<128x24xi1>, vector<128x24xf32>
    %131 = tpu.iota {dimensions = array<i32: 0>} : vector<64x128xi32>
    %132 = tpu.iota {dimensions = array<i32: 1>} : vector<64x128xi32>
    %c2_i32 = arith.constant 2 : i32
    %133 = vector.broadcast %c2_i32 : i32 to vector<64x128xi32>
    %134 = arith.muli %133, %131 : vector<64x128xi32>
    %135 = arith.cmpi eq, %132, %134 : vector<64x128xi32>
    %136 = arith.extui %135 : vector<64x128xi1> to vector<64x128xi32>
    %137 = arith.sitofp %136 : vector<64x128xi32> to vector<64x128xf32>
    %c2_i32_87 = arith.constant 2 : i32
    %138 = vector.broadcast %c2_i32_87 : i32 to vector<64x128xi32>
    %139 = arith.muli %138, %131 : vector<64x128xi32>
    %c1_i32 = arith.constant 1 : i32
    %140 = vector.broadcast %c1_i32 : i32 to vector<64x128xi32>
    %141 = arith.addi %139, %140 : vector<64x128xi32>
    %142 = arith.cmpi eq, %132, %141 : vector<64x128xi32>
    %143 = arith.extui %142 : vector<64x128xi1> to vector<64x128xi32>
    %144 = arith.sitofp %143 : vector<64x128xi32> to vector<64x128xf32>
    %cst_88 = arith.constant dense<0.000000e+00> : vector<64x24xf32>
    %145 = tpu.matmul %137, %130, %cst_88 {dimension_numbers = #tpu.dot_dimension_numbers<[1], [0], [0], [1], [0, 0, 1, 1], [], []>} : vector<64x128xf32>, vector<128x24xf32>, vector<64x24xf32> -> vector<64x24xf32>
    %cst_89 = arith.constant dense<0.000000e+00> : vector<64x24xf32>
    %146 = tpu.matmul %144, %130, %cst_89 {dimension_numbers = #tpu.dot_dimension_numbers<[1], [0], [0], [1], [0, 0, 1, 1], [], []>} : vector<64x128xf32>, vector<128x24xf32>, vector<64x24xf32> -> vector<64x24xf32>
    %c0_90 = arith.constant 0 : index
    %c0_91 = arith.constant 0 : index
    %c0_92 = arith.constant 0 : index
    %147 = vector.load %arg3[%c0_90, %c0_91, %c0_92] : memref<2x24x24xf32, #tpu.memory_space<vmem>>, vector<1x24x24xf32>
    %148 = vector.shape_cast %147 : vector<1x24x24xf32> to vector<24x24xf32>
    %cst_93 = arith.constant dense<0.000000e+00> : vector<64x24xf32>
    %149 = tpu.matmul %145, %148, %cst_93 {dimension_numbers = #tpu.dot_dimension_numbers<[1], [0], [0], [1], [0, 0, 1, 1], [], []>} : vector<64x24xf32>, vector<24x24xf32>, vector<64x24xf32> -> vector<64x24xf32>
    %c1_94 = arith.constant 1 : index
    %c0_95 = arith.constant 0 : index
    %c0_96 = arith.constant 0 : index
    %150 = vector.load %arg3[%c1_94, %c0_95, %c0_96] : memref<2x24x24xf32, #tpu.memory_space<vmem>>, vector<1x24x24xf32>
    %151 = vector.shape_cast %150 : vector<1x24x24xf32> to vector<24x24xf32>
    %cst_97 = arith.constant dense<0.000000e+00> : vector<64x24xf32>
    %152 = tpu.matmul %146, %151, %cst_97 {dimension_numbers = #tpu.dot_dimension_numbers<[1], [0], [0], [1], [0, 0, 1, 1], [], []>} : vector<64x24xf32>, vector<24x24xf32>, vector<64x24xf32> -> vector<64x24xf32>
    %153 = arith.addf %149, %152 : vector<64x24xf32>
    %c0_98 = arith.constant 0 : index
    %c0_99 = arith.constant 0 : index
    %154 = vector.load %arg4[%c0_98, %c0_99] : memref<1x24xf32, #tpu.memory_space<vmem>>, vector<1x24xf32>
    %155 = vector.broadcast %154 : vector<1x24xf32> to vector<64x24xf32>
    %156 = arith.addf %153, %155 : vector<64x24xf32>
    %cst_100 = arith.constant 0.000000e+00 : f32
    %157 = vector.broadcast %cst_100 : f32 to vector<64x24xf32>
    %158 = arith.cmpf ogt, %156, %157 : vector<64x24xf32>
    %cst_101 = arith.constant 0.00999999977 : f32
    %159 = vector.broadcast %cst_101 : f32 to vector<64x24xf32>
    %160 = arith.mulf %159, %156 : vector<64x24xf32>
    %161 = arith.select %158, %156, %160 : vector<64x24xi1>, vector<64x24xf32>
    %cst_102 = arith.constant 0.000000e+00 : f32
    %162 = vector.broadcast %cst_102 : f32 to vector<2x48x24xf32>
    %c0_103 = arith.constant 0 : index
    %c0_104 = arith.constant 0 : index
    %c0_105 = arith.constant 0 : index
    %163 = vector.load %arg19[%c0_103, %c0_104, %c0_105] : memref<2x48x24xf32, #tpu.memory_space<vmem>>, vector<2x48x24xf32>
    tpu.vector_store %arg19[%c0_103, %c0_104, %c0_105], %162 {strides = array<i32>} : memref<2x48x24xf32, #tpu.memory_space<vmem>>, vector<2x48x24xf32>,
    %164 = vector.extract_strided_slice %161 {offsets = [0, 0], sizes = [32, 24], strides = [1, 1]} : vector<64x24xf32> to vector<32x24xf32>
    %c0_106 = arith.constant 0 : index
    %c8_107 = arith.constant 8 : index
    %c0_108 = arith.constant 0 : index
    %165 = vector.load %arg19[%c0_106, %c8_107, %c0_108] : memref<2x48x24xf32, #tpu.memory_space<vmem>>, vector<1x32x24xf32>
    %166 = vector.shape_cast %165 : vector<1x32x24xf32> to vector<32x24xf32>
    %167 = vector.shape_cast %164 : vector<32x24xf32> to vector<1x32x24xf32>
    tpu.vector_store %arg19[%c0_106, %c8_107, %c0_108], %167 {strides = array<i32>} : memref<2x48x24xf32, #tpu.memory_space<vmem>>, vector<1x32x24xf32>,
    %168 = vector.extract_strided_slice %161 {offsets = [32, 0], sizes = [32, 24], strides = [1, 1]} : vector<64x24xf32> to vector<32x24xf32>
    %c1_109 = arith.constant 1 : index
    %c8_110 = arith.constant 8 : index
    %c0_111 = arith.constant 0 : index
    %169 = vector.load %arg19[%c1_109, %c8_110, %c0_111] : memref<2x48x24xf32, #tpu.memory_space<vmem>>, vector<1x32x24xf32>
    %170 = vector.shape_cast %169 : vector<1x32x24xf32> to vector<32x24xf32>
    %171 = vector.shape_cast %168 : vector<32x24xf32> to vector<1x32x24xf32>
    tpu.vector_store %arg19[%c1_109, %c8_110, %c0_111], %171 {strides = array<i32>} : memref<2x48x24xf32, #tpu.memory_space<vmem>>, vector<1x32x24xf32>,
    %c0_112 = arith.constant 0 : index
    %c1_113 = arith.constant 1 : index
    %c0_114 = arith.constant 0 : index
    %172 = vector.load %arg19[%c0_112, %c1_113, %c0_114] : memref<2x48x24xf32, #tpu.memory_space<vmem>>, vector<2x32x24xf32>
    %173 = vector.shape_cast %172 : vector<2x32x24xf32> to vector<64x24xf32>
    %c0_115 = arith.constant 0 : index
    %c0_116 = arith.constant 0 : index
    %c0_117 = arith.constant 0 : index
    %174 = vector.load %arg5[%c0_115, %c0_116, %c0_117] : memref<15x24x48xf32, #tpu.memory_space<vmem>>, vector<1x24x48xf32>
    %175 = vector.shape_cast %174 : vector<1x24x48xf32> to vector<24x48xf32>
    %cst_118 = arith.constant dense<0.000000e+00> : vector<64x48xf32>
    %176 = tpu.matmul %173, %175, %cst_118 {dimension_numbers = #tpu.dot_dimension_numbers<[1], [0], [0], [1], [0, 0, 1, 1], [], []>} : vector<64x24xf32>, vector<24x48xf32>, vector<64x48xf32> -> vector<64x48xf32>
    %c0_119 = arith.constant 0 : index
    %c2_120 = arith.constant 2 : index
    %c0_121 = arith.constant 0 : index
    %177 = vector.load %arg19[%c0_119, %c2_120, %c0_121] : memref<2x48x24xf32, #tpu.memory_space<vmem>>, vector<2x32x24xf32>
    %178 = vector.shape_cast %177 : vector<2x32x24xf32> to vector<64x24xf32>
    %c1_122 = arith.constant 1 : index
    %c0_123 = arith.constant 0 : index
    %c0_124 = arith.constant 0 : index
    %179 = vector.load %arg5[%c1_122, %c0_123, %c0_124] : memref<15x24x48xf32, #tpu.memory_space<vmem>>, vector<1x24x48xf32>
    %180 = vector.shape_cast %179 : vector<1x24x48xf32> to vector<24x48xf32>
    %cst_125 = arith.constant dense<0.000000e+00> : vector<64x48xf32>
    %181 = tpu.matmul %178, %180, %cst_125 {dimension_numbers = #tpu.dot_dimension_numbers<[1], [0], [0], [1], [0, 0, 1, 1], [], []>} : vector<64x24xf32>, vector<24x48xf32>, vector<64x48xf32> -> vector<64x48xf32>
    %182 = arith.addf %176, %181 : vector<64x48xf32>
    %c0_126 = arith.constant 0 : index
    %c3_127 = arith.constant 3 : index
    %c0_128 = arith.constant 0 : index
    %183 = vector.load %arg19[%c0_126, %c3_127, %c0_128] : memref<2x48x24xf32, #tpu.memory_space<vmem>>, vector<2x32x24xf32>
    %184 = vector.shape_cast %183 : vector<2x32x24xf32> to vector<64x24xf32>
    %c2_129 = arith.constant 2 : index
    %c0_130 = arith.constant 0 : index
    %c0_131 = arith.constant 0 : index
    %185 = vector.load %arg5[%c2_129, %c0_130, %c0_131] : memref<15x24x48xf32, #tpu.memory_space<vmem>>, vector<1x24x48xf32>
    %186 = vector.shape_cast %185 : vector<1x24x48xf32> to vector<24x48xf32>
    %cst_132 = arith.constant dense<0.000000e+00> : vector<64x48xf32>
    %187 = tpu.matmul %184, %186, %cst_132 {dimension_numbers = #tpu.dot_dimension_numbers<[1], [0], [0], [1], [0, 0, 1, 1], [], []>} : vector<64x24xf32>, vector<24x48xf32>, vector<64x48xf32> -> vector<64x48xf32>
    %188 = arith.addf %182, %187 : vector<64x48xf32>
    %c0_133 = arith.constant 0 : index
    %c4_134 = arith.constant 4 : index
    %c0_135 = arith.constant 0 : index
    %189 = vector.load %arg19[%c0_133, %c4_134, %c0_135] : memref<2x48x24xf32, #tpu.memory_space<vmem>>, vector<2x32x24xf32>
    %190 = vector.shape_cast %189 : vector<2x32x24xf32> to vector<64x24xf32>
    %c3_136 = arith.constant 3 : index
    %c0_137 = arith.constant 0 : index
    %c0_138 = arith.constant 0 : index
    %191 = vector.load %arg5[%c3_136, %c0_137, %c0_138] : memref<15x24x48xf32, #tpu.memory_space<vmem>>, vector<1x24x48xf32>
    %192 = vector.shape_cast %191 : vector<1x24x48xf32> to vector<24x48xf32>
    %cst_139 = arith.constant dense<0.000000e+00> : vector<64x48xf32>
    %193 = tpu.matmul %190, %192, %cst_139 {dimension_numbers = #tpu.dot_dimension_numbers<[1], [0], [0], [1], [0, 0, 1, 1], [], []>} : vector<64x24xf32>, vector<24x48xf32>, vector<64x48xf32> -> vector<64x48xf32>
    %194 = arith.addf %188, %193 : vector<64x48xf32>
    %c0_140 = arith.constant 0 : index
    %c5_141 = arith.constant 5 : index
    %c0_142 = arith.constant 0 : index
    %195 = vector.load %arg19[%c0_140, %c5_141, %c0_142] : memref<2x48x24xf32, #tpu.memory_space<vmem>>, vector<2x32x24xf32>
    %196 = vector.shape_cast %195 : vector<2x32x24xf32> to vector<64x24xf32>
    %c4_143 = arith.constant 4 : index
    %c0_144 = arith.constant 0 : index
    %c0_145 = arith.constant 0 : index
    %197 = vector.load %arg5[%c4_143, %c0_144, %c0_145] : memref<15x24x48xf32, #tpu.memory_space<vmem>>, vector<1x24x48xf32>
    %198 = vector.shape_cast %197 : vector<1x24x48xf32> to vector<24x48xf32>
    %cst_146 = arith.constant dense<0.000000e+00> : vector<64x48xf32>
    %199 = tpu.matmul %196, %198, %cst_146 {dimension_numbers = #tpu.dot_dimension_numbers<[1], [0], [0], [1], [0, 0, 1, 1], [], []>} : vector<64x24xf32>, vector<24x48xf32>, vector<64x48xf32> -> vector<64x48xf32>
    %200 = arith.addf %194, %199 : vector<64x48xf32>
    %c0_147 = arith.constant 0 : index
    %c6_148 = arith.constant 6 : index
    %c0_149 = arith.constant 0 : index
    %201 = vector.load %arg19[%c0_147, %c6_148, %c0_149] : memref<2x48x24xf32, #tpu.memory_space<vmem>>, vector<2x32x24xf32>
    %202 = vector.shape_cast %201 : vector<2x32x24xf32> to vector<64x24xf32>
    %c5_150 = arith.constant 5 : index
    %c0_151 = arith.constant 0 : index
    %c0_152 = arith.constant 0 : index
    %203 = vector.load %arg5[%c5_150, %c0_151, %c0_152] : memref<15x24x48xf32, #tpu.memory_space<vmem>>, vector<1x24x48xf32>
    %204 = vector.shape_cast %203 : vector<1x24x48xf32> to vector<24x48xf32>
    %cst_153 = arith.constant dense<0.000000e+00> : vector<64x48xf32>
    %205 = tpu.matmul %202, %204, %cst_153 {dimension_numbers = #tpu.dot_dimension_numbers<[1], [0], [0], [1], [0, 0, 1, 1], [], []>} : vector<64x24xf32>, vector<24x48xf32>, vector<64x48xf32> -> vector<64x48xf32>
    %206 = arith.addf %200, %205 : vector<64x48xf32>
    %c0_154 = arith.constant 0 : index
    %c7_155 = arith.constant 7 : index
    %c0_156 = arith.constant 0 : index
    %207 = vector.load %arg19[%c0_154, %c7_155, %c0_156] : memref<2x48x24xf32, #tpu.memory_space<vmem>>, vector<2x32x24xf32>
    %208 = vector.shape_cast %207 : vector<2x32x24xf32> to vector<64x24xf32>
    %c6_157 = arith.constant 6 : index
    %c0_158 = arith.constant 0 : index
    %c0_159 = arith.constant 0 : index
    %209 = vector.load %arg5[%c6_157, %c0_158, %c0_159] : memref<15x24x48xf32, #tpu.memory_space<vmem>>, vector<1x24x48xf32>
    %210 = vector.shape_cast %209 : vector<1x24x48xf32> to vector<24x48xf32>
    %cst_160 = arith.constant dense<0.000000e+00> : vector<64x48xf32>
    %211 = tpu.matmul %208, %210, %cst_160 {dimension_numbers = #tpu.dot_dimension_numbers<[1], [0], [0], [1], [0, 0, 1, 1], [], []>} : vector<64x24xf32>, vector<24x48xf32>, vector<64x48xf32> -> vector<64x48xf32>
    %212 = arith.addf %206, %211 : vector<64x48xf32>
    %c0_161 = arith.constant 0 : index
    %c8_162 = arith.constant 8 : index
    %c0_163 = arith.constant 0 : index
    %213 = vector.load %arg19[%c0_161, %c8_162, %c0_163] : memref<2x48x24xf32, #tpu.memory_space<vmem>>, vector<2x32x24xf32>
    %214 = vector.shape_cast %213 : vector<2x32x24xf32> to vector<64x24xf32>
    %c7_164 = arith.constant 7 : index
    %c0_165 = arith.constant 0 : index
    %c0_166 = arith.constant 0 : index
    %215 = vector.load %arg5[%c7_164, %c0_165, %c0_166] : memref<15x24x48xf32, #tpu.memory_space<vmem>>, vector<1x24x48xf32>
    %216 = vector.shape_cast %215 : vector<1x24x48xf32> to vector<24x48xf32>
    %cst_167 = arith.constant dense<0.000000e+00> : vector<64x48xf32>
    %217 = tpu.matmul %214, %216, %cst_167 {dimension_numbers = #tpu.dot_dimension_numbers<[1], [0], [0], [1], [0, 0, 1, 1], [], []>} : vector<64x24xf32>, vector<24x48xf32>, vector<64x48xf32> -> vector<64x48xf32>
    %218 = arith.addf %212, %217 : vector<64x48xf32>
    %c0_168 = arith.constant 0 : index
    %c9_169 = arith.constant 9 : index
    %c0_170 = arith.constant 0 : index
    %219 = vector.load %arg19[%c0_168, %c9_169, %c0_170] : memref<2x48x24xf32, #tpu.memory_space<vmem>>, vector<2x32x24xf32>
    %220 = vector.shape_cast %219 : vector<2x32x24xf32> to vector<64x24xf32>
    %c8_171 = arith.constant 8 : index
    %c0_172 = arith.constant 0 : index
    %c0_173 = arith.constant 0 : index
    %221 = vector.load %arg5[%c8_171, %c0_172, %c0_173] : memref<15x24x48xf32, #tpu.memory_space<vmem>>, vector<1x24x48xf32>
    %222 = vector.shape_cast %221 : vector<1x24x48xf32> to vector<24x48xf32>
    %cst_174 = arith.constant dense<0.000000e+00> : vector<64x48xf32>
    %223 = tpu.matmul %220, %222, %cst_174 {dimension_numbers = #tpu.dot_dimension_numbers<[1], [0], [0], [1], [0, 0, 1, 1], [], []>} : vector<64x24xf32>, vector<24x48xf32>, vector<64x48xf32> -> vector<64x48xf32>
    %224 = arith.addf %218, %223 : vector<64x48xf32>
    %c0_175 = arith.constant 0 : index
    %c10_176 = arith.constant 10 : index
    %c0_177 = arith.constant 0 : index
    %225 = vector.load %arg19[%c0_175, %c10_176, %c0_177] : memref<2x48x24xf32, #tpu.memory_space<vmem>>, vector<2x32x24xf32>
    %226 = vector.shape_cast %225 : vector<2x32x24xf32> to vector<64x24xf32>
    %c9_178 = arith.constant 9 : index
    %c0_179 = arith.constant 0 : index
    %c0_180 = arith.constant 0 : index
    %227 = vector.load %arg5[%c9_178, %c0_179, %c0_180] : memref<15x24x48xf32, #tpu.memory_space<vmem>>, vector<1x24x48xf32>
    %228 = vector.shape_cast %227 : vector<1x24x48xf32> to vector<24x48xf32>
    %cst_181 = arith.constant dense<0.000000e+00> : vector<64x48xf32>
    %229 = tpu.matmul %226, %228, %cst_181 {dimension_numbers = #tpu.dot_dimension_numbers<[1], [0], [0], [1], [0, 0, 1, 1], [], []>} : vector<64x24xf32>, vector<24x48xf32>, vector<64x48xf32> -> vector<64x48xf32>
    %230 = arith.addf %224, %229 : vector<64x48xf32>
    %c0_182 = arith.constant 0 : index
    %c11_183 = arith.constant 11 : index
    %c0_184 = arith.constant 0 : index
    %231 = vector.load %arg19[%c0_182, %c11_183, %c0_184] : memref<2x48x24xf32, #tpu.memory_space<vmem>>, vector<2x32x24xf32>
    %232 = vector.shape_cast %231 : vector<2x32x24xf32> to vector<64x24xf32>
    %c10_185 = arith.constant 10 : index
    %c0_186 = arith.constant 0 : index
    %c0_187 = arith.constant 0 : index
    %233 = vector.load %arg5[%c10_185, %c0_186, %c0_187] : memref<15x24x48xf32, #tpu.memory_space<vmem>>, vector<1x24x48xf32>
    %234 = vector.shape_cast %233 : vector<1x24x48xf32> to vector<24x48xf32>
    %cst_188 = arith.constant dense<0.000000e+00> : vector<64x48xf32>
    %235 = tpu.matmul %232, %234, %cst_188 {dimension_numbers = #tpu.dot_dimension_numbers<[1], [0], [0], [1], [0, 0, 1, 1], [], []>} : vector<64x24xf32>, vector<24x48xf32>, vector<64x48xf32> -> vector<64x48xf32>
    %236 = arith.addf %230, %235 : vector<64x48xf32>
    %c0_189 = arith.constant 0 : index
    %c12_190 = arith.constant 12 : index
    %c0_191 = arith.constant 0 : index
    %237 = vector.load %arg19[%c0_189, %c12_190, %c0_191] : memref<2x48x24xf32, #tpu.memory_space<vmem>>, vector<2x32x24xf32>
    %238 = vector.shape_cast %237 : vector<2x32x24xf32> to vector<64x24xf32>
    %c11_192 = arith.constant 11 : index
    %c0_193 = arith.constant 0 : index
    %c0_194 = arith.constant 0 : index
    %239 = vector.load %arg5[%c11_192, %c0_193, %c0_194] : memref<15x24x48xf32, #tpu.memory_space<vmem>>, vector<1x24x48xf32>
    %240 = vector.shape_cast %239 : vector<1x24x48xf32> to vector<24x48xf32>
    %cst_195 = arith.constant dense<0.000000e+00> : vector<64x48xf32>
    %241 = tpu.matmul %238, %240, %cst_195 {dimension_numbers = #tpu.dot_dimension_numbers<[1], [0], [0], [1], [0, 0, 1, 1], [], []>} : vector<64x24xf32>, vector<24x48xf32>, vector<64x48xf32> -> vector<64x48xf32>
    %242 = arith.addf %236, %241 : vector<64x48xf32>
    %c0_196 = arith.constant 0 : index
    %c13_197 = arith.constant 13 : index
    %c0_198 = arith.constant 0 : index
    %243 = vector.load %arg19[%c0_196, %c13_197, %c0_198] : memref<2x48x24xf32, #tpu.memory_space<vmem>>, vector<2x32x24xf32>
    %244 = vector.shape_cast %243 : vector<2x32x24xf32> to vector<64x24xf32>
    %c12_199 = arith.constant 12 : index
    %c0_200 = arith.constant 0 : index
    %c0_201 = arith.constant 0 : index
    %245 = vector.load %arg5[%c12_199, %c0_200, %c0_201] : memref<15x24x48xf32, #tpu.memory_space<vmem>>, vector<1x24x48xf32>
    %246 = vector.shape_cast %245 : vector<1x24x48xf32> to vector<24x48xf32>
    %cst_202 = arith.constant dense<0.000000e+00> : vector<64x48xf32>
    %247 = tpu.matmul %244, %246, %cst_202 {dimension_numbers = #tpu.dot_dimension_numbers<[1], [0], [0], [1], [0, 0, 1, 1], [], []>} : vector<64x24xf32>, vector<24x48xf32>, vector<64x48xf32> -> vector<64x48xf32>
    %248 = arith.addf %242, %247 : vector<64x48xf32>
    %c0_203 = arith.constant 0 : index
    %c14_204 = arith.constant 14 : index
    %c0_205 = arith.constant 0 : index
    %249 = vector.load %arg19[%c0_203, %c14_204, %c0_205] : memref<2x48x24xf32, #tpu.memory_space<vmem>>, vector<2x32x24xf32>
    %250 = vector.shape_cast %249 : vector<2x32x24xf32> to vector<64x24xf32>
    %c13_206 = arith.constant 13 : index
    %c0_207 = arith.constant 0 : index
    %c0_208 = arith.constant 0 : index
    %251 = vector.load %arg5[%c13_206, %c0_207, %c0_208] : memref<15x24x48xf32, #tpu.memory_space<vmem>>, vector<1x24x48xf32>
    %252 = vector.shape_cast %251 : vector<1x24x48xf32> to vector<24x48xf32>
    %cst_209 = arith.constant dense<0.000000e+00> : vector<64x48xf32>
    %253 = tpu.matmul %250, %252, %cst_209 {dimension_numbers = #tpu.dot_dimension_numbers<[1], [0], [0], [1], [0, 0, 1, 1], [], []>} : vector<64x24xf32>, vector<24x48xf32>, vector<64x48xf32> -> vector<64x48xf32>
    %254 = arith.addf %248, %253 : vector<64x48xf32>
    %c0_210 = arith.constant 0 : index
    %c15_211 = arith.constant 15 : index
    %c0_212 = arith.constant 0 : index
    %255 = vector.load %arg19[%c0_210, %c15_211, %c0_212] : memref<2x48x24xf32, #tpu.memory_space<vmem>>, vector<2x32x24xf32>
    %256 = vector.shape_cast %255 : vector<2x32x24xf32> to vector<64x24xf32>
    %c14_213 = arith.constant 14 : index
    %c0_214 = arith.constant 0 : index
    %c0_215 = arith.constant 0 : index
    %257 = vector.load %arg5[%c14_213, %c0_214, %c0_215] : memref<15x24x48xf32, #tpu.memory_space<vmem>>, vector<1x24x48xf32>
    %258 = vector.shape_cast %257 : vector<1x24x48xf32> to vector<24x48xf32>
    %cst_216 = arith.constant dense<0.000000e+00> : vector<64x48xf32>
    %259 = tpu.matmul %256, %258, %cst_216 {dimension_numbers = #tpu.dot_dimension_numbers<[1], [0], [0], [1], [0, 0, 1, 1], [], []>} : vector<64x24xf32>, vector<24x48xf32>, vector<64x48xf32> -> vector<64x48xf32>
    %260 = arith.addf %254, %259 : vector<64x48xf32>
    %c0_217 = arith.constant 0 : index
    %c0_218 = arith.constant 0 : index
    %261 = vector.load %arg6[%c0_217, %c0_218] : memref<1x48xf32, #tpu.memory_space<vmem>>, vector<1x48xf32>
    %262 = vector.broadcast %261 : vector<1x48xf32> to vector<64x48xf32>
    %263 = arith.addf %260, %262 : vector<64x48xf32>
    %cst_219 = arith.constant 0.000000e+00 : f32
    %264 = vector.broadcast %cst_219 : f32 to vector<64x48xf32>
    %265 = arith.cmpf ogt, %263, %264 : vector<64x48xf32>
    %cst_220 = arith.constant 0.00999999977 : f32
    %266 = vector.broadcast %cst_220 : f32 to vector<64x48xf32>
    %267 = arith.mulf %266, %263 : vector<64x48xf32>
    %268 = arith.select %265, %263, %267 : vector<64x48xi1>, vector<64x48xf32>
    %269 = tpu.iota {dimensions = array<i32: 0>} : vector<32x64xi32>
    %270 = tpu.iota {dimensions = array<i32: 1>} : vector<32x64xi32>
    %c2_i32_221 = arith.constant 2 : i32
    %271 = vector.broadcast %c2_i32_221 : i32 to vector<32x64xi32>
    %272 = arith.muli %271, %269 : vector<32x64xi32>
    %273 = arith.cmpi eq, %270, %272 : vector<32x64xi32>
    %274 = arith.extui %273 : vector<32x64xi1> to vector<32x64xi32>
    %275 = arith.sitofp %274 : vector<32x64xi32> to vector<32x64xf32>
    %c2_i32_222 = arith.constant 2 : i32
    %276 = vector.broadcast %c2_i32_222 : i32 to vector<32x64xi32>
    %277 = arith.muli %276, %269 : vector<32x64xi32>
    %c1_i32_223 = arith.constant 1 : i32
    %278 = vector.broadcast %c1_i32_223 : i32 to vector<32x64xi32>
    %279 = arith.addi %277, %278 : vector<32x64xi32>
    %280 = arith.cmpi eq, %270, %279 : vector<32x64xi32>
    %281 = arith.extui %280 : vector<32x64xi1> to vector<32x64xi32>
    %282 = arith.sitofp %281 : vector<32x64xi32> to vector<32x64xf32>
    %cst_224 = arith.constant dense<0.000000e+00> : vector<32x48xf32>
    %283 = tpu.matmul %275, %268, %cst_224 {dimension_numbers = #tpu.dot_dimension_numbers<[1], [0], [0], [1], [0, 0, 1, 1], [], []>} : vector<32x64xf32>, vector<64x48xf32>, vector<32x48xf32> -> vector<32x48xf32>
    %cst_225 = arith.constant dense<0.000000e+00> : vector<32x48xf32>
    %284 = tpu.matmul %282, %268, %cst_225 {dimension_numbers = #tpu.dot_dimension_numbers<[1], [0], [0], [1], [0, 0, 1, 1], [], []>} : vector<32x64xf32>, vector<64x48xf32>, vector<32x48xf32> -> vector<32x48xf32>
    %c0_226 = arith.constant 0 : index
    %c0_227 = arith.constant 0 : index
    %c0_228 = arith.constant 0 : index
    %285 = vector.load %arg7[%c0_226, %c0_227, %c0_228] : memref<2x48x48xf32, #tpu.memory_space<vmem>>, vector<1x48x48xf32>
    %286 = vector.shape_cast %285 : vector<1x48x48xf32> to vector<48x48xf32>
    %cst_229 = arith.constant dense<0.000000e+00> : vector<32x48xf32>
    %287 = tpu.matmul %283, %286, %cst_229 {dimension_numbers = #tpu.dot_dimension_numbers<[1], [0], [0], [1], [0, 0, 1, 1], [], []>} : vector<32x48xf32>, vector<48x48xf32>, vector<32x48xf32> -> vector<32x48xf32>
    %c1_230 = arith.constant 1 : index
    %c0_231 = arith.constant 0 : index
    %c0_232 = arith.constant 0 : index
    %288 = vector.load %arg7[%c1_230, %c0_231, %c0_232] : memref<2x48x48xf32, #tpu.memory_space<vmem>>, vector<1x48x48xf32>
    %289 = vector.shape_cast %288 : vector<1x48x48xf32> to vector<48x48xf32>
    %cst_233 = arith.constant dense<0.000000e+00> : vector<32x48xf32>
    %290 = tpu.matmul %284, %289, %cst_233 {dimension_numbers = #tpu.dot_dimension_numbers<[1], [0], [0], [1], [0, 0, 1, 1], [], []>} : vector<32x48xf32>, vector<48x48xf32>, vector<32x48xf32> -> vector<32x48xf32>
    %291 = arith.addf %287, %290 : vector<32x48xf32>
    %c0_234 = arith.constant 0 : index
    %c0_235 = arith.constant 0 : index
    %292 = vector.load %arg8[%c0_234, %c0_235] : memref<1x48xf32, #tpu.memory_space<vmem>>, vector<1x48xf32>
    %293 = vector.broadcast %292 : vector<1x48xf32> to vector<32x48xf32>
    %294 = arith.addf %291, %293 : vector<32x48xf32>
    %cst_236 = arith.constant 0.000000e+00 : f32
    %295 = vector.broadcast %cst_236 : f32 to vector<32x48xf32>
    %296 = arith.cmpf ogt, %294, %295 : vector<32x48xf32>
    %cst_237 = arith.constant 0.00999999977 : f32
    %297 = vector.broadcast %cst_237 : f32 to vector<32x48xf32>
    %298 = arith.mulf %297, %294 : vector<32x48xf32>
    %299 = arith.select %296, %294, %298 : vector<32x48xi1>, vector<32x48xf32>
    %cst_238 = arith.constant 0.000000e+00 : f32
    %300 = vector.broadcast %cst_238 : f32 to vector<2x32x48xf32>
    %c0_239 = arith.constant 0 : index
    %c0_240 = arith.constant 0 : index
    %c0_241 = arith.constant 0 : index
    %301 = vector.load %arg20[%c0_239, %c0_240, %c0_241] : memref<2x32x48xf32, #tpu.memory_space<vmem>>, vector<2x32x48xf32>
    tpu.vector_store %arg20[%c0_239, %c0_240, %c0_241], %300 {strides = array<i32>} : memref<2x32x48xf32, #tpu.memory_space<vmem>>, vector<2x32x48xf32>,
    %302 = vector.extract_strided_slice %299 {offsets = [0, 0], sizes = [16, 48], strides = [1, 1]} : vector<32x48xf32> to vector<16x48xf32>
    %c0_242 = arith.constant 0 : index
    %c8_243 = arith.constant 8 : index
    %c0_244 = arith.constant 0 : index
    %303 = vector.load %arg20[%c0_242, %c8_243, %c0_244] : memref<2x32x48xf32, #tpu.memory_space<vmem>>, vector<1x16x48xf32>
    %304 = vector.shape_cast %303 : vector<1x16x48xf32> to vector<16x48xf32>
    %305 = vector.shape_cast %302 : vector<16x48xf32> to vector<1x16x48xf32>
    tpu.vector_store %arg20[%c0_242, %c8_243, %c0_244], %305 {strides = array<i32>} : memref<2x32x48xf32, #tpu.memory_space<vmem>>, vector<1x16x48xf32>,
    %306 = vector.extract_strided_slice %299 {offsets = [16, 0], sizes = [16, 48], strides = [1, 1]} : vector<32x48xf32> to vector<16x48xf32>
    %c1_245 = arith.constant 1 : index
    %c8_246 = arith.constant 8 : index
    %c0_247 = arith.constant 0 : index
    %307 = vector.load %arg20[%c1_245, %c8_246, %c0_247] : memref<2x32x48xf32, #tpu.memory_space<vmem>>, vector<1x16x48xf32>
    %308 = vector.shape_cast %307 : vector<1x16x48xf32> to vector<16x48xf32>
    %309 = vector.shape_cast %306 : vector<16x48xf32> to vector<1x16x48xf32>
    tpu.vector_store %arg20[%c1_245, %c8_246, %c0_247], %309 {strides = array<i32>} : memref<2x32x48xf32, #tpu.memory_space<vmem>>, vector<1x16x48xf32>,
    %c0_248 = arith.constant 0 : index
    %c1_249 = arith.constant 1 : index
    %c0_250 = arith.constant 0 : index
    %310 = vector.load %arg20[%c0_248, %c1_249, %c0_250] : memref<2x32x48xf32, #tpu.memory_space<vmem>>, vector<2x16x48xf32>
    %311 = vector.shape_cast %310 : vector<2x16x48xf32> to vector<32x48xf32>
    %c0_251 = arith.constant 0 : index
    %c0_252 = arith.constant 0 : index
    %c0_253 = arith.constant 0 : index
    %312 = vector.load %arg9[%c0_251, %c0_252, %c0_253] : memref<15x48x96xf32, #tpu.memory_space<vmem>>, vector<1x48x96xf32>
    %313 = vector.shape_cast %312 : vector<1x48x96xf32> to vector<48x96xf32>
    %cst_254 = arith.constant dense<0.000000e+00> : vector<32x96xf32>
    %314 = tpu.matmul %311, %313, %cst_254 {dimension_numbers = #tpu.dot_dimension_numbers<[1], [0], [0], [1], [0, 0, 1, 1], [], []>} : vector<32x48xf32>, vector<48x96xf32>, vector<32x96xf32> -> vector<32x96xf32>
    %c0_255 = arith.constant 0 : index
    %c2_256 = arith.constant 2 : index
    %c0_257 = arith.constant 0 : index
    %315 = vector.load %arg20[%c0_255, %c2_256, %c0_257] : memref<2x32x48xf32, #tpu.memory_space<vmem>>, vector<2x16x48xf32>
    %316 = vector.shape_cast %315 : vector<2x16x48xf32> to vector<32x48xf32>
    %c1_258 = arith.constant 1 : index
    %c0_259 = arith.constant 0 : index
    %c0_260 = arith.constant 0 : index
    %317 = vector.load %arg9[%c1_258, %c0_259, %c0_260] : memref<15x48x96xf32, #tpu.memory_space<vmem>>, vector<1x48x96xf32>
    %318 = vector.shape_cast %317 : vector<1x48x96xf32> to vector<48x96xf32>
    %cst_261 = arith.constant dense<0.000000e+00> : vector<32x96xf32>
    %319 = tpu.matmul %316, %318, %cst_261 {dimension_numbers = #tpu.dot_dimension_numbers<[1], [0], [0], [1], [0, 0, 1, 1], [], []>} : vector<32x48xf32>, vector<48x96xf32>, vector<32x96xf32> -> vector<32x96xf32>
    %320 = arith.addf %314, %319 : vector<32x96xf32>
    %c0_262 = arith.constant 0 : index
    %c3_263 = arith.constant 3 : index
    %c0_264 = arith.constant 0 : index
    %321 = vector.load %arg20[%c0_262, %c3_263, %c0_264] : memref<2x32x48xf32, #tpu.memory_space<vmem>>, vector<2x16x48xf32>
    %322 = vector.shape_cast %321 : vector<2x16x48xf32> to vector<32x48xf32>
    %c2_265 = arith.constant 2 : index
    %c0_266 = arith.constant 0 : index
    %c0_267 = arith.constant 0 : index
    %323 = vector.load %arg9[%c2_265, %c0_266, %c0_267] : memref<15x48x96xf32, #tpu.memory_space<vmem>>, vector<1x48x96xf32>
    %324 = vector.shape_cast %323 : vector<1x48x96xf32> to vector<48x96xf32>
    %cst_268 = arith.constant dense<0.000000e+00> : vector<32x96xf32>
    %325 = tpu.matmul %322, %324, %cst_268 {dimension_numbers = #tpu.dot_dimension_numbers<[1], [0], [0], [1], [0, 0, 1, 1], [], []>} : vector<32x48xf32>, vector<48x96xf32>, vector<32x96xf32> -> vector<32x96xf32>
    %326 = arith.addf %320, %325 : vector<32x96xf32>
    %c0_269 = arith.constant 0 : index
    %c4_270 = arith.constant 4 : index
    %c0_271 = arith.constant 0 : index
    %327 = vector.load %arg20[%c0_269, %c4_270, %c0_271] : memref<2x32x48xf32, #tpu.memory_space<vmem>>, vector<2x16x48xf32>
    %328 = vector.shape_cast %327 : vector<2x16x48xf32> to vector<32x48xf32>
    %c3_272 = arith.constant 3 : index
    %c0_273 = arith.constant 0 : index
    %c0_274 = arith.constant 0 : index
    %329 = vector.load %arg9[%c3_272, %c0_273, %c0_274] : memref<15x48x96xf32, #tpu.memory_space<vmem>>, vector<1x48x96xf32>
    %330 = vector.shape_cast %329 : vector<1x48x96xf32> to vector<48x96xf32>
    %cst_275 = arith.constant dense<0.000000e+00> : vector<32x96xf32>
    %331 = tpu.matmul %328, %330, %cst_275 {dimension_numbers = #tpu.dot_dimension_numbers<[1], [0], [0], [1], [0, 0, 1, 1], [], []>} : vector<32x48xf32>, vector<48x96xf32>, vector<32x96xf32> -> vector<32x96xf32>
    %332 = arith.addf %326, %331 : vector<32x96xf32>
    %c0_276 = arith.constant 0 : index
    %c5_277 = arith.constant 5 : index
    %c0_278 = arith.constant 0 : index
    %333 = vector.load %arg20[%c0_276, %c5_277, %c0_278] : memref<2x32x48xf32, #tpu.memory_space<vmem>>, vector<2x16x48xf32>
    %334 = vector.shape_cast %333 : vector<2x16x48xf32> to vector<32x48xf32>
    %c4_279 = arith.constant 4 : index
    %c0_280 = arith.constant 0 : index
    %c0_281 = arith.constant 0 : index
    %335 = vector.load %arg9[%c4_279, %c0_280, %c0_281] : memref<15x48x96xf32, #tpu.memory_space<vmem>>, vector<1x48x96xf32>
    %336 = vector.shape_cast %335 : vector<1x48x96xf32> to vector<48x96xf32>
    %cst_282 = arith.constant dense<0.000000e+00> : vector<32x96xf32>
    %337 = tpu.matmul %334, %336, %cst_282 {dimension_numbers = #tpu.dot_dimension_numbers<[1], [0], [0], [1], [0, 0, 1, 1], [], []>} : vector<32x48xf32>, vector<48x96xf32>, vector<32x96xf32> -> vector<32x96xf32>
    %338 = arith.addf %332, %337 : vector<32x96xf32>
    %c0_283 = arith.constant 0 : index
    %c6_284 = arith.constant 6 : index
    %c0_285 = arith.constant 0 : index
    %339 = vector.load %arg20[%c0_283, %c6_284, %c0_285] : memref<2x32x48xf32, #tpu.memory_space<vmem>>, vector<2x16x48xf32>
    %340 = vector.shape_cast %339 : vector<2x16x48xf32> to vector<32x48xf32>
    %c5_286 = arith.constant 5 : index
    %c0_287 = arith.constant 0 : index
    %c0_288 = arith.constant 0 : index
    %341 = vector.load %arg9[%c5_286, %c0_287, %c0_288] : memref<15x48x96xf32, #tpu.memory_space<vmem>>, vector<1x48x96xf32>
    %342 = vector.shape_cast %341 : vector<1x48x96xf32> to vector<48x96xf32>
    %cst_289 = arith.constant dense<0.000000e+00> : vector<32x96xf32>
    %343 = tpu.matmul %340, %342, %cst_289 {dimension_numbers = #tpu.dot_dimension_numbers<[1], [0], [0], [1], [0, 0, 1, 1], [], []>} : vector<32x48xf32>, vector<48x96xf32>, vector<32x96xf32> -> vector<32x96xf32>
    %344 = arith.addf %338, %343 : vector<32x96xf32>
    %c0_290 = arith.constant 0 : index
    %c7_291 = arith.constant 7 : index
    %c0_292 = arith.constant 0 : index
    %345 = vector.load %arg20[%c0_290, %c7_291, %c0_292] : memref<2x32x48xf32, #tpu.memory_space<vmem>>, vector<2x16x48xf32>
    %346 = vector.shape_cast %345 : vector<2x16x48xf32> to vector<32x48xf32>
    %c6_293 = arith.constant 6 : index
    %c0_294 = arith.constant 0 : index
    %c0_295 = arith.constant 0 : index
    %347 = vector.load %arg9[%c6_293, %c0_294, %c0_295] : memref<15x48x96xf32, #tpu.memory_space<vmem>>, vector<1x48x96xf32>
    %348 = vector.shape_cast %347 : vector<1x48x96xf32> to vector<48x96xf32>
    %cst_296 = arith.constant dense<0.000000e+00> : vector<32x96xf32>
    %349 = tpu.matmul %346, %348, %cst_296 {dimension_numbers = #tpu.dot_dimension_numbers<[1], [0], [0], [1], [0, 0, 1, 1], [], []>} : vector<32x48xf32>, vector<48x96xf32>, vector<32x96xf32> -> vector<32x96xf32>
    %350 = arith.addf %344, %349 : vector<32x96xf32>
    %c0_297 = arith.constant 0 : index
    %c8_298 = arith.constant 8 : index
    %c0_299 = arith.constant 0 : index
    %351 = vector.load %arg20[%c0_297, %c8_298, %c0_299] : memref<2x32x48xf32, #tpu.memory_space<vmem>>, vector<2x16x48xf32>
    %352 = vector.shape_cast %351 : vector<2x16x48xf32> to vector<32x48xf32>
    %c7_300 = arith.constant 7 : index
    %c0_301 = arith.constant 0 : index
    %c0_302 = arith.constant 0 : index
    %353 = vector.load %arg9[%c7_300, %c0_301, %c0_302] : memref<15x48x96xf32, #tpu.memory_space<vmem>>, vector<1x48x96xf32>
    %354 = vector.shape_cast %353 : vector<1x48x96xf32> to vector<48x96xf32>
    %cst_303 = arith.constant dense<0.000000e+00> : vector<32x96xf32>
    %355 = tpu.matmul %352, %354, %cst_303 {dimension_numbers = #tpu.dot_dimension_numbers<[1], [0], [0], [1], [0, 0, 1, 1], [], []>} : vector<32x48xf32>, vector<48x96xf32>, vector<32x96xf32> -> vector<32x96xf32>
    %356 = arith.addf %350, %355 : vector<32x96xf32>
    %c0_304 = arith.constant 0 : index
    %c9_305 = arith.constant 9 : index
    %c0_306 = arith.constant 0 : index
    %357 = vector.load %arg20[%c0_304, %c9_305, %c0_306] : memref<2x32x48xf32, #tpu.memory_space<vmem>>, vector<2x16x48xf32>
    %358 = vector.shape_cast %357 : vector<2x16x48xf32> to vector<32x48xf32>
    %c8_307 = arith.constant 8 : index
    %c0_308 = arith.constant 0 : index
    %c0_309 = arith.constant 0 : index
    %359 = vector.load %arg9[%c8_307, %c0_308, %c0_309] : memref<15x48x96xf32, #tpu.memory_space<vmem>>, vector<1x48x96xf32>
    %360 = vector.shape_cast %359 : vector<1x48x96xf32> to vector<48x96xf32>
    %cst_310 = arith.constant dense<0.000000e+00> : vector<32x96xf32>
    %361 = tpu.matmul %358, %360, %cst_310 {dimension_numbers = #tpu.dot_dimension_numbers<[1], [0], [0], [1], [0, 0, 1, 1], [], []>} : vector<32x48xf32>, vector<48x96xf32>, vector<32x96xf32> -> vector<32x96xf32>
    %362 = arith.addf %356, %361 : vector<32x96xf32>
    %c0_311 = arith.constant 0 : index
    %c10_312 = arith.constant 10 : index
    %c0_313 = arith.constant 0 : index
    %363 = vector.load %arg20[%c0_311, %c10_312, %c0_313] : memref<2x32x48xf32, #tpu.memory_space<vmem>>, vector<2x16x48xf32>
    %364 = vector.shape_cast %363 : vector<2x16x48xf32> to vector<32x48xf32>
    %c9_314 = arith.constant 9 : index
    %c0_315 = arith.constant 0 : index
    %c0_316 = arith.constant 0 : index
    %365 = vector.load %arg9[%c9_314, %c0_315, %c0_316] : memref<15x48x96xf32, #tpu.memory_space<vmem>>, vector<1x48x96xf32>
    %366 = vector.shape_cast %365 : vector<1x48x96xf32> to vector<48x96xf32>
    %cst_317 = arith.constant dense<0.000000e+00> : vector<32x96xf32>
    %367 = tpu.matmul %364, %366, %cst_317 {dimension_numbers = #tpu.dot_dimension_numbers<[1], [0], [0], [1], [0, 0, 1, 1], [], []>} : vector<32x48xf32>, vector<48x96xf32>, vector<32x96xf32> -> vector<32x96xf32>
    %368 = arith.addf %362, %367 : vector<32x96xf32>
    %c0_318 = arith.constant 0 : index
    %c11_319 = arith.constant 11 : index
    %c0_320 = arith.constant 0 : index
    %369 = vector.load %arg20[%c0_318, %c11_319, %c0_320] : memref<2x32x48xf32, #tpu.memory_space<vmem>>, vector<2x16x48xf32>
    %370 = vector.shape_cast %369 : vector<2x16x48xf32> to vector<32x48xf32>
    %c10_321 = arith.constant 10 : index
    %c0_322 = arith.constant 0 : index
    %c0_323 = arith.constant 0 : index
    %371 = vector.load %arg9[%c10_321, %c0_322, %c0_323] : memref<15x48x96xf32, #tpu.memory_space<vmem>>, vector<1x48x96xf32>
    %372 = vector.shape_cast %371 : vector<1x48x96xf32> to vector<48x96xf32>
    %cst_324 = arith.constant dense<0.000000e+00> : vector<32x96xf32>
    %373 = tpu.matmul %370, %372, %cst_324 {dimension_numbers = #tpu.dot_dimension_numbers<[1], [0], [0], [1], [0, 0, 1, 1], [], []>} : vector<32x48xf32>, vector<48x96xf32>, vector<32x96xf32> -> vector<32x96xf32>
    %374 = arith.addf %368, %373 : vector<32x96xf32>
    %c0_325 = arith.constant 0 : index
    %c12_326 = arith.constant 12 : index
    %c0_327 = arith.constant 0 : index
    %375 = vector.load %arg20[%c0_325, %c12_326, %c0_327] : memref<2x32x48xf32, #tpu.memory_space<vmem>>, vector<2x16x48xf32>
    %376 = vector.shape_cast %375 : vector<2x16x48xf32> to vector<32x48xf32>
    %c11_328 = arith.constant 11 : index
    %c0_329 = arith.constant 0 : index
    %c0_330 = arith.constant 0 : index
    %377 = vector.load %arg9[%c11_328, %c0_329, %c0_330] : memref<15x48x96xf32, #tpu.memory_space<vmem>>, vector<1x48x96xf32>
    %378 = vector.shape_cast %377 : vector<1x48x96xf32> to vector<48x96xf32>
    %cst_331 = arith.constant dense<0.000000e+00> : vector<32x96xf32>
    %379 = tpu.matmul %376, %378, %cst_331 {dimension_numbers = #tpu.dot_dimension_numbers<[1], [0], [0], [1], [0, 0, 1, 1], [], []>} : vector<32x48xf32>, vector<48x96xf32>, vector<32x96xf32> -> vector<32x96xf32>
    %380 = arith.addf %374, %379 : vector<32x96xf32>
    %c0_332 = arith.constant 0 : index
    %c13_333 = arith.constant 13 : index
    %c0_334 = arith.constant 0 : index
    %381 = vector.load %arg20[%c0_332, %c13_333, %c0_334] : memref<2x32x48xf32, #tpu.memory_space<vmem>>, vector<2x16x48xf32>
    %382 = vector.shape_cast %381 : vector<2x16x48xf32> to vector<32x48xf32>
    %c12_335 = arith.constant 12 : index
    %c0_336 = arith.constant 0 : index
    %c0_337 = arith.constant 0 : index
    %383 = vector.load %arg9[%c12_335, %c0_336, %c0_337] : memref<15x48x96xf32, #tpu.memory_space<vmem>>, vector<1x48x96xf32>
    %384 = vector.shape_cast %383 : vector<1x48x96xf32> to vector<48x96xf32>
    %cst_338 = arith.constant dense<0.000000e+00> : vector<32x96xf32>
    %385 = tpu.matmul %382, %384, %cst_338 {dimension_numbers = #tpu.dot_dimension_numbers<[1], [0], [0], [1], [0, 0, 1, 1], [], []>} : vector<32x48xf32>, vector<48x96xf32>, vector<32x96xf32> -> vector<32x96xf32>
    %386 = arith.addf %380, %385 : vector<32x96xf32>
    %c0_339 = arith.constant 0 : index
    %c14_340 = arith.constant 14 : index
    %c0_341 = arith.constant 0 : index
    %387 = vector.load %arg20[%c0_339, %c14_340, %c0_341] : memref<2x32x48xf32, #tpu.memory_space<vmem>>, vector<2x16x48xf32>
    %388 = vector.shape_cast %387 : vector<2x16x48xf32> to vector<32x48xf32>
    %c13_342 = arith.constant 13 : index
    %c0_343 = arith.constant 0 : index
    %c0_344 = arith.constant 0 : index
    %389 = vector.load %arg9[%c13_342, %c0_343, %c0_344] : memref<15x48x96xf32, #tpu.memory_space<vmem>>, vector<1x48x96xf32>
    %390 = vector.shape_cast %389 : vector<1x48x96xf32> to vector<48x96xf32>
    %cst_345 = arith.constant dense<0.000000e+00> : vector<32x96xf32>
    %391 = tpu.matmul %388, %390, %cst_345 {dimension_numbers = #tpu.dot_dimension_numbers<[1], [0], [0], [1], [0, 0, 1, 1], [], []>} : vector<32x48xf32>, vector<48x96xf32>, vector<32x96xf32> -> vector<32x96xf32>
    %392 = arith.addf %386, %391 : vector<32x96xf32>
    %c0_346 = arith.constant 0 : index
    %c15_347 = arith.constant 15 : index
    %c0_348 = arith.constant 0 : index
    %393 = vector.load %arg20[%c0_346, %c15_347, %c0_348] : memref<2x32x48xf32, #tpu.memory_space<vmem>>, vector<2x16x48xf32>
    %394 = vector.shape_cast %393 : vector<2x16x48xf32> to vector<32x48xf32>
    %c14_349 = arith.constant 14 : index
    %c0_350 = arith.constant 0 : index
    %c0_351 = arith.constant 0 : index
    %395 = vector.load %arg9[%c14_349, %c0_350, %c0_351] : memref<15x48x96xf32, #tpu.memory_space<vmem>>, vector<1x48x96xf32>
    %396 = vector.shape_cast %395 : vector<1x48x96xf32> to vector<48x96xf32>
    %cst_352 = arith.constant dense<0.000000e+00> : vector<32x96xf32>
    %397 = tpu.matmul %394, %396, %cst_352 {dimension_numbers = #tpu.dot_dimension_numbers<[1], [0], [0], [1], [0, 0, 1, 1], [], []>} : vector<32x48xf32>, vector<48x96xf32>, vector<32x96xf32> -> vector<32x96xf32>
    %398 = arith.addf %392, %397 : vector<32x96xf32>
    %c0_353 = arith.constant 0 : index
    %c0_354 = arith.constant 0 : index
    %399 = vector.load %arg10[%c0_353, %c0_354] : memref<1x96xf32, #tpu.memory_space<vmem>>, vector<1x96xf32>
    %400 = vector.broadcast %399 : vector<1x96xf32> to vector<32x96xf32>
    %401 = arith.addf %398, %400 : vector<32x96xf32>
    %cst_355 = arith.constant 0.000000e+00 : f32
    %402 = vector.broadcast %cst_355 : f32 to vector<32x96xf32>
    %403 = arith.cmpf ogt, %401, %402 : vector<32x96xf32>
    %cst_356 = arith.constant 0.00999999977 : f32
    %404 = vector.broadcast %cst_356 : f32 to vector<32x96xf32>
    %405 = arith.mulf %404, %401 : vector<32x96xf32>
    %406 = arith.select %403, %401, %405 : vector<32x96xi1>, vector<32x96xf32>
    %407 = tpu.iota {dimensions = array<i32: 0>} : vector<16x32xi32>
    %408 = tpu.iota {dimensions = array<i32: 1>} : vector<16x32xi32>
    %c2_i32_357 = arith.constant 2 : i32
    %409 = vector.broadcast %c2_i32_357 : i32 to vector<16x32xi32>
    %410 = arith.muli %409, %407 : vector<16x32xi32>
    %411 = arith.cmpi eq, %408, %410 : vector<16x32xi32>
    %412 = arith.extui %411 : vector<16x32xi1> to vector<16x32xi32>
    %413 = arith.sitofp %412 : vector<16x32xi32> to vector<16x32xf32>
    %c2_i32_358 = arith.constant 2 : i32
    %414 = vector.broadcast %c2_i32_358 : i32 to vector<16x32xi32>
    %415 = arith.muli %414, %407 : vector<16x32xi32>
    %c1_i32_359 = arith.constant 1 : i32
    %416 = vector.broadcast %c1_i32_359 : i32 to vector<16x32xi32>
    %417 = arith.addi %415, %416 : vector<16x32xi32>
    %418 = arith.cmpi eq, %408, %417 : vector<16x32xi32>
    %419 = arith.extui %418 : vector<16x32xi1> to vector<16x32xi32>
    %420 = arith.sitofp %419 : vector<16x32xi32> to vector<16x32xf32>
    %cst_360 = arith.constant dense<0.000000e+00> : vector<16x96xf32>
    %421 = tpu.matmul %413, %406, %cst_360 {dimension_numbers = #tpu.dot_dimension_numbers<[1], [0], [0], [1], [0, 0, 1, 1], [], []>} : vector<16x32xf32>, vector<32x96xf32>, vector<16x96xf32> -> vector<16x96xf32>
    %cst_361 = arith.constant dense<0.000000e+00> : vector<16x96xf32>
    %422 = tpu.matmul %420, %406, %cst_361 {dimension_numbers = #tpu.dot_dimension_numbers<[1], [0], [0], [1], [0, 0, 1, 1], [], []>} : vector<16x32xf32>, vector<32x96xf32>, vector<16x96xf32> -> vector<16x96xf32>
    %c0_362 = arith.constant 0 : index
    %c0_363 = arith.constant 0 : index
    %c0_364 = arith.constant 0 : index
    %423 = vector.load %arg11[%c0_362, %c0_363, %c0_364] : memref<2x96x96xf32, #tpu.memory_space<vmem>>, vector<1x96x96xf32>
    %424 = vector.shape_cast %423 : vector<1x96x96xf32> to vector<96x96xf32>
    %cst_365 = arith.constant dense<0.000000e+00> : vector<16x96xf32>
    %425 = tpu.matmul %421, %424, %cst_365 {dimension_numbers = #tpu.dot_dimension_numbers<[1], [0], [0], [1], [0, 0, 1, 1], [], []>} : vector<16x96xf32>, vector<96x96xf32>, vector<16x96xf32> -> vector<16x96xf32>
    %c1_366 = arith.constant 1 : index
    %c0_367 = arith.constant 0 : index
    %c0_368 = arith.constant 0 : index
    %426 = vector.load %arg11[%c1_366, %c0_367, %c0_368] : memref<2x96x96xf32, #tpu.memory_space<vmem>>, vector<1x96x96xf32>
    %427 = vector.shape_cast %426 : vector<1x96x96xf32> to vector<96x96xf32>
    %cst_369 = arith.constant dense<0.000000e+00> : vector<16x96xf32>
    %428 = tpu.matmul %422, %427, %cst_369 {dimension_numbers = #tpu.dot_dimension_numbers<[1], [0], [0], [1], [0, 0, 1, 1], [], []>} : vector<16x96xf32>, vector<96x96xf32>, vector<16x96xf32> -> vector<16x96xf32>
    %429 = arith.addf %425, %428 : vector<16x96xf32>
    %c0_370 = arith.constant 0 : index
    %c0_371 = arith.constant 0 : index
    %430 = vector.load %arg12[%c0_370, %c0_371] : memref<1x96xf32, #tpu.memory_space<vmem>>, vector<1x96xf32>
    %431 = vector.broadcast %430 : vector<1x96xf32> to vector<16x96xf32>
    %432 = arith.addf %429, %431 : vector<16x96xf32>
    %cst_372 = arith.constant 0.000000e+00 : f32
    %433 = vector.broadcast %cst_372 : f32 to vector<16x96xf32>
    %434 = arith.cmpf ogt, %432, %433 : vector<16x96xf32>
    %cst_373 = arith.constant 0.00999999977 : f32
    %435 = vector.broadcast %cst_373 : f32 to vector<16x96xf32>
    %436 = arith.mulf %435, %432 : vector<16x96xf32>
    %437 = arith.select %434, %432, %436 : vector<16x96xi1>, vector<16x96xf32>
    %438 = tpu.iota {dimensions = array<i32: 0>} : vector<2x16xi32>
    %439 = tpu.iota {dimensions = array<i32: 1>} : vector<2x16xi32>
    %c8_i32 = arith.constant 8 : i32
    %440 = vector.broadcast %c8_i32 : i32 to vector<2x16xi32>
    %441 = arith.muli %438, %440 : vector<2x16xi32>
    %442 = arith.cmpi sge, %439, %441 : vector<2x16xi32>
    %c1_i32_374 = arith.constant 1 : i32
    %443 = vector.broadcast %c1_i32_374 : i32 to vector<2x16xi32>
    %444 = arith.addi %438, %443 : vector<2x16xi32>
    %c8_i32_375 = arith.constant 8 : i32
    %445 = vector.broadcast %c8_i32_375 : i32 to vector<2x16xi32>
    %446 = arith.muli %444, %445 : vector<2x16xi32>
    %447 = arith.cmpi slt, %439, %446 : vector<2x16xi32>
    %448 = arith.andi %442, %447 : vector<2x16xi1>
    %449 = arith.extui %448 : vector<2x16xi1> to vector<2x16xi32>
    %450 = arith.sitofp %449 : vector<2x16xi32> to vector<2x16xf32>
    %cst_376 = arith.constant 1.250000e-01 : f32
    %451 = vector.broadcast %cst_376 : f32 to vector<2x16xf32>
    %452 = arith.mulf %450, %451 : vector<2x16xf32>
    %cst_377 = arith.constant dense<0.000000e+00> : vector<2x96xf32>
    %453 = tpu.matmul %452, %437, %cst_377 {dimension_numbers = #tpu.dot_dimension_numbers<[1], [0], [0], [1], [0, 0, 1, 1], [], []>} : vector<2x16xf32>, vector<16x96xf32>, vector<2x96xf32> -> vector<2x96xf32>
    %c0_378 = arith.constant 0 : index
    %c0_379 = arith.constant 0 : index
    %454 = vector.load %arg13[%c0_378, %c0_379] : memref<96x96xf32, #tpu.memory_space<vmem>>, vector<96x96xf32>
    %cst_380 = arith.constant dense<0.000000e+00> : vector<2x96xf32>
    %455 = tpu.matmul %453, %454, %cst_380 {dimension_numbers = #tpu.dot_dimension_numbers<[1], [0], [0], [1], [0, 0, 1, 1], [], []>} : vector<2x96xf32>, vector<96x96xf32>, vector<2x96xf32> -> vector<2x96xf32>
    %c0_381 = arith.constant 0 : index
    %c0_382 = arith.constant 0 : index
    %456 = vector.load %arg14[%c0_381, %c0_382] : memref<1x96xf32, #tpu.memory_space<vmem>>, vector<1x96xf32>
    %457 = vector.broadcast %456 : vector<1x96xf32> to vector<2x96xf32>
    %458 = arith.addf %455, %457 : vector<2x96xf32>
    %c0_383 = arith.constant 0 : index
    %c0_384 = arith.constant 0 : index
    %459 = vector.load %arg15[%c0_383, %c0_384] : memref<96x1xf32, #tpu.memory_space<vmem>>, vector<96x1xf32>
    %cst_385 = arith.constant dense<0.000000e+00> : vector<2x1xf32>
    %460 = tpu.matmul %458, %459, %cst_385 {dimension_numbers = #tpu.dot_dimension_numbers<[1], [0], [0], [1], [0, 0, 1, 1], [], []>} : vector<2x96xf32>, vector<96x1xf32>, vector<2x1xf32> -> vector<2x1xf32>
    %c0_386 = arith.constant 0 : index
    %c0_387 = arith.constant 0 : index
    %461 = vector.load %arg16[%c0_386, %c0_387] : memref<1x1xf32, #tpu.memory_space<vmem>>, vector<1x1xf32>
    %462 = vector.broadcast %461 : vector<1x1xf32> to vector<2x1xf32>
    %463 = arith.addf %460, %462 : vector<2x1xf32>
    %c0_388 = arith.constant 0 : index
    %c0_389 = arith.constant 0 : index
    %464 = vector.load %arg17[%c0_388, %c0_389] : memref<2x1xf32, #tpu.memory_space<vmem>>, vector<2x1xf32>
    tpu.vector_store %arg17[%c0_388, %c0_389], %463 {strides = array<i32>} : memref<2x1xf32, #tpu.memory_space<vmem>>, vector<2x1xf32>,
    return
  }
}

</mosaic_0001>

<llo_original>
// kernel: cnn_forward.1
$region0: #{cnn_forward.1}
  #allocation0 [shape = 'u32[]', space=smem, size = 0x4, offset = 0x4, fixed_abs, tag = 'smem constant byte address 0x4 - core index']
  #allocation1 [shape = 'u32[144,128]{1,0:T(1,128)}', space=vmem, size = 0x12000, scoped, tag = 'internal scratch']
  #allocation2 [shape = 'f32[2,80,1]{2,1,0:T(8,128)}', space=vmem, size = 0x14000, scoped, tag = 'scratch operand']
  #allocation3 [shape = 'f32[2,48,24]{2,1,0:T(8,128)}', space=vmem, size = 0xc000, scoped, tag = 'scratch operand']
  #allocation4 [shape = 'f32[2,32,48]{2,1,0:T(8,128)}', space=vmem, size = 0x8000, scoped, tag = 'scratch operand']
  #allocation5 [shape = 'f32[1,1]{1,0:T(1,128)S(1)}', space=vmem, size = 0x200, scoped, tag = 'scoped memory for cnn_forward.1']
  %s0 = inlined_call_operand.vmem [shape: f32[2,64,1], index: 0, kind: input, shape index: {}]
  %s1 = inlined_call_operand.vmem [shape: f32[15,1,24], index: 1, kind: input, shape index: {}]
  %s2 = inlined_call_operand.vmem [shape: f32[1,24], index: 2, kind: input, shape index: {}]
  %s3 = inlined_call_operand.vmem [shape: f32[2,24,24], index: 3, kind: input, shape index: {}]
  %s4 = inlined_call_operand.vmem [shape: f32[1,24], index: 4, kind: input, shape index: {}]
  %s5 = inlined_call_operand.hbm [shape: f32[15,24,48], index: 5, kind: input, shape index: {}]
  %s6 = inlined_call_operand.vmem [shape: f32[1,48], index: 6, kind: input, shape index: {}]
  %s7 = inlined_call_operand.hbm [shape: f32[2,48,48], index: 7, kind: input, shape index: {}]
  %s8 = inlined_call_operand.vmem [shape: f32[1,48], index: 8, kind: input, shape index: {}]
  %s9 = inlined_call_operand.hbm [shape: f32[15,48,96], index: 9, kind: input, shape index: {}]
  %s10 = inlined_call_operand.vmem [shape: f32[1,96], index: 10, kind: input, shape index: {}]
  %s11 = inlined_call_operand.vmem [shape: f32[2,96,96], index: 11, kind: input, shape index: {}]
  %s12 = inlined_call_operand.vmem [shape: f32[1,96], index: 12, kind: input, shape index: {}]
  %s13 = inlined_call_operand.hbm [shape: f32[96,96], index: 13, kind: input, shape index: {}]
  %s14 = inlined_call_operand.vmem [shape: f32[1,96], index: 14, kind: input, shape index: {}]
  %s15 = inlined_call_operand.vmem [shape: f32[96,1], index: 15, kind: input, shape index: {}]
  %s16 = inlined_call_operand.<no memory space> [shape: f32[1,1], index: 16, kind: input, shape index: {}]
  %s17 = inlined_call_operand.vmem [shape: f32[2,1], index: 17, kind: output, shape index: {}]
  %s18 = sld [smem:[#allocation0]]
  $region94: #{cnn_forward.1} parent=0
    _
  %s20 = ssub.s32 1, %s18
  %s21 = scalar_select 0, %s20, %s18
  %v22 = vstv %s16
  %23 = vst [vmem:[#allocation5] sm:$0x1] %v22
  $region1: #{cnn_forward.1} parent=0
    #allocation6 [shape = 'u8[184320]{0}', space=vmem, size = 0x2d000, scoped, tag = 'input window, operand 5, single buffered']
    #allocation7 [shape = 's32[1]{0}', space=sflag, size = 0x4, scoped, tag = 'scoped memory for cnn_forward.1']
    #allocation8 [shape = 'u8[49152]{0}', space=vmem, size = 0xc000, scoped, tag = 'input window, operand 7, single buffered']
    #allocation9 [shape = 's32[1]{0}', space=sflag, size = 0x4, scoped, tag = 'scoped memory for cnn_forward.1']
    #allocation10 [shape = 'u8[368640]{0}', space=vmem, size = 0x5a000, scoped, tag = 'input window, operand 9, single buffered']
    #allocation11 [shape = 'u8[49152]{0}', space=vmem, size = 0xc000, scoped, tag = 'input window, operand 13, single buffered']
    #allocation12 [shape = 's32[1]{0}', space=sflag, size = 0x4, scoped, tag = 'scoped memory for cnn_forward.1']
    %24 = vsyncpa [#allocation7], 0
    %25 = vsyncpa [#allocation9], 0
    %26 = vsyncpa [#allocation12], 0
    // Predicated region
    $region2: #{cnn_forward.1} parent=1 // pred_check
      _
    $region3: #{cnn_forward.1} parent=1 // pred_check_branch
      %28 = sbr.rel (0) target = $region5
    $region4: #{cnn_forward.1} parent=1 // pred_region
      _
    $region5: #{cnn_forward.1} parent=1 // pred_fallthru
      _
    // Predicated region
    $region6: #{cnn_forward.1} parent=1 // pred_check
      _
    $region7: #{cnn_forward.1} parent=1 // pred_check_branch
      %30 = sbr.rel (0) target = $region9
    $region8: #{cnn_forward.1} parent=1 // pred_region
      _
    $region9: #{cnn_forward.1} parent=1 // pred_fallthru
      _
    // Predicated region
    $region10: #{cnn_forward.1} parent=1 // pred_check
      _
    $region11: #{cnn_forward.1} parent=1 // pred_check_branch
      %32 = sbr.rel (0) target = $region13
    $region12: #{cnn_forward.1} parent=1 // pred_region
      _
    $region13: #{cnn_forward.1} parent=1 // pred_fallthru
      _
    // Predicated region
    $region14: #{cnn_forward.1} parent=1 // pred_check
      _
    $region15: #{cnn_forward.1} parent=1 // pred_check_branch
      %34 = sbr.rel (0) target = $region17
    $region16: #{cnn_forward.1} parent=1 // pred_region
      _
    $region17: #{cnn_forward.1} parent=1 // pred_fallthru
      _
    // Predicated region
    $region18: #{cnn_forward.1} parent=1 // pred_check
      _
    $region19: #{cnn_forward.1} parent=1 // pred_check_branch
      %36 = sbr.rel (0) target = $region21
    $region20: #{cnn_forward.1} parent=1 // pred_region
      _
    $region21: #{cnn_forward.1} parent=1 // pred_fallthru
      _
    // Predicated region
    $region22: #{cnn_forward.1} parent=1 // pred_check
      _
    $region23: #{cnn_forward.1} parent=1 // pred_check_branch
      %38 = sbr.rel (0) target = $region25
    $region24: #{cnn_forward.1} parent=1 // pred_region
      %s40 = ssub.s32 5760, 5760
      %41 = vsyncadd [#allocation7], %s40
      %s42 = sshll.u32 [#allocation6], 4
      %s43 = int_to_ptr.vmem [resolvable:$true] %s42
      %48 = dma.hbm_to_vmem [thread:$0]  %s5, 5760, %s43, [#allocation7], 128, 128, 8
    $region25: #{cnn_forward.1} parent=1 // pred_fallthru
      _
    // Predicated region
    $region26: #{cnn_forward.1} parent=1 // pred_check
      _
    $region27: #{cnn_forward.1} parent=1 // pred_check_branch
      %50 = sbr.rel (0) target = $region29
    $region28: #{cnn_forward.1} parent=1 // pred_region
      _
    $region29: #{cnn_forward.1} parent=1 // pred_fallthru
      _
    // Predicated region
    $region30: #{cnn_forward.1} parent=1 // pred_check
      _
    $region31: #{cnn_forward.1} parent=1 // pred_check_branch
      %52 = sbr.rel (0) target = $region33
    $region32: #{cnn_forward.1} parent=1 // pred_region
      %s54 = ssub.s32 1536, 1536
      %55 = vsyncadd [#allocation9], %s54
      %s56 = sshll.u32 [#allocation8], 4
      %s57 = int_to_ptr.vmem [resolvable:$true] %s56
      %62 = dma.hbm_to_vmem [thread:$0]  %s7, 1536, %s57, [#allocation9], 128, 128, 8
    $region33: #{cnn_forward.1} parent=1 // pred_fallthru
      _
    // Predicated region
    $region34: #{cnn_forward.1} parent=1 // pred_check
      _
    $region35: #{cnn_forward.1} parent=1 // pred_check_branch
      %64 = sbr.rel (0) target = $region37
    $region36: #{cnn_forward.1} parent=1 // pred_region
      _
    $region37: #{cnn_forward.1} parent=1 // pred_fallthru
      _
    // Predicated region
    $region38: #{cnn_forward.1} parent=1 // pred_check
      _
    $region39: #{cnn_forward.1} parent=1 // pred_check_branch
      %66 = sbr.rel (0) target = $region41
    $region40: #{cnn_forward.1} parent=1 // pred_region
      %s68 = ssub.s32 11520, 11520
      %69 = vsyncadd [#allocation9], %s68
      %s70 = sshll.u32 [#allocation10], 4
      %s71 = int_to_ptr.vmem [resolvable:$true] %s70
      %76 = dma.hbm_to_vmem [thread:$0]  %s9, 11520, %s71, [#allocation9], 128, 128, 8
    $region41: #{cnn_forward.1} parent=1 // pred_fallthru
      _
    // Predicated region
    $region42: #{cnn_forward.1} parent=1 // pred_check
      _
    $region43: #{cnn_forward.1} parent=1 // pred_check_branch
      %78 = sbr.rel (0) target = $region45
    $region44: #{cnn_forward.1} parent=1 // pred_region
      _
    $region45: #{cnn_forward.1} parent=1 // pred_fallthru
      _
    // Predicated region
    $region46: #{cnn_forward.1} parent=1 // pred_check
      _
    $region47: #{cnn_forward.1} parent=1 // pred_check_branch
      %80 = sbr.rel (0) target = $region49
    $region48: #{cnn_forward.1} parent=1 // pred_region
      _
    $region49: #{cnn_forward.1} parent=1 // pred_fallthru
      _
    // Predicated region
    $region50: #{cnn_forward.1} parent=1 // pred_check
      _
    $region51: #{cnn_forward.1} parent=1 // pred_check_branch
      %82 = sbr.rel (0) target = $region53
    $region52: #{cnn_forward.1} parent=1 // pred_region
      _
    $region53: #{cnn_forward.1} parent=1 // pred_fallthru
      _
    // Predicated region
    $region54: #{cnn_forward.1} parent=1 // pred_check
      _
    $region55: #{cnn_forward.1} parent=1 // pred_check_branch
      %84 = sbr.rel (0) target = $region57
    $region56: #{cnn_forward.1} parent=1 // pred_region
      %s86 = ssub.s32 1536, 1536
      %87 = vsyncadd [#allocation12], %s86
      %s88 = sshll.u32 [#allocation11], 4
      %s89 = int_to_ptr.vmem [resolvable:$true] %s88
      %94 = dma.hbm_to_vmem [thread:$0]  %s13, 1536, %s89, [#allocation12], 128, 128, 8
    $region57: #{cnn_forward.1} parent=1 // pred_fallthru
      _
    // Predicated region
    $region58: #{cnn_forward.1} parent=1 // pred_check
      _
    $region59: #{cnn_forward.1} parent=1 // pred_check_branch
      %96 = sbr.rel (0) target = $region61
    $region60: #{cnn_forward.1} parent=1 // pred_region
      _
    $region61: #{cnn_forward.1} parent=1 // pred_fallthru
      _
    // Predicated region
    $region62: #{cnn_forward.1} parent=1 // pred_check
      _
    $region63: #{cnn_forward.1} parent=1 // pred_check_branch
      %98 = sbr.rel (0) target = $region65
    $region64: #{cnn_forward.1} parent=1 // pred_region
      _
    $region65: #{cnn_forward.1} parent=1 // pred_fallthru
      _
    // Predicated region
    $region66: #{cnn_forward.1} parent=1 // pred_check
      _
    $region67: #{cnn_forward.1} parent=1 // pred_check_branch
      %100 = sbr.rel (0) target = $region69
    $region68: #{cnn_forward.1} parent=1 // pred_region
      _
    $region69: #{cnn_forward.1} parent=1 // pred_fallthru
      _
    // Predicated region
    $region70: #{cnn_forward.1} parent=1 // pred_check
      _
    $region71: #{cnn_forward.1} parent=1 // pred_check_branch
      %102 = sbr.rel (0) target = $region73
    $region72: #{cnn_forward.1} parent=1 // pred_region
      %103 = dma.done [#allocation7], 5760
    $region73: #{cnn_forward.1} parent=1 // pred_fallthru
      _
    // Predicated region
    $region74: #{cnn_forward.1} parent=1 // pred_check
      _
    $region75: #{cnn_forward.1} parent=1 // pred_check_branch
      %105 = sbr.rel (0) target = $region77
    $region76: #{cnn_forward.1} parent=1 // pred_region
      %106 = dma.done [#allocation9], 1536
    $region77: #{cnn_forward.1} parent=1 // pred_fallthru
      _
    // Predicated region
    $region78: #{cnn_forward.1} parent=1 // pred_check
      _
    $region79: #{cnn_forward.1} parent=1 // pred_check_branch
      %108 = sbr.rel (0) target = $region81
    $region80: #{cnn_forward.1} parent=1 // pred_region
      %109 = dma.done [#allocation9], 11520
    $region81: #{cnn_forward.1} parent=1 // pred_fallthru
      _
    // Predicated region
    $region82: #{cnn_forward.1} parent=1 // pred_check
      _
    $region83: #{cnn_forward.1} parent=1 // pred_check_branch
      %111 = sbr.rel (0) target = $region85
    $region84: #{cnn_forward.1} parent=1 // pred_region
      %112 = dma.done [#allocation12], 1536
    $region85: #{cnn_forward.1} parent=1 // pred_fallthru
      _
    %vm113 = vcmask 7168
    %114 = vst.msk [vmem:[#allocation2] sm:$0xff] %vm113, 0.0
    %115 = vst.msk [vmem:[#allocation2 + $0x8] sm:$0xff] %vm113, 0.0
    %116 = vst.msk [vmem:[#allocation2 + $0x10] sm:$0xff] %vm113, 0.0
    %117 = vst.msk [vmem:[#allocation2 + $0x18] sm:$0xff] %vm113, 0.0
    %118 = vst.msk [vmem:[#allocation2 + $0x20] sm:$0xff] %vm113, 0.0
    %119 = vst.msk [vmem:[#allocation2 + $0x28] sm:$0xff] %vm113, 0.0
    %120 = vst.msk [vmem:[#allocation2 + $0x30] sm:$0xff] %vm113, 0.0
    %121 = vst.msk [vmem:[#allocation2 + $0x38] sm:$0xff] %vm113, 0.0
    %122 = vst.msk [vmem:[#allocation2 + $0x40] sm:$0xff] %vm113, 0.0
    %123 = vst.msk [vmem:[#allocation2 + $0x48] sm:$0xff] %vm113, 0.0
    %124 = vst.msk [vmem:[#allocation2 + $0x50] sm:$0xff] %vm113, 0.0
    %125 = vst.msk [vmem:[#allocation2 + $0x58] sm:$0xff] %vm113, 0.0
    %126 = vst.msk [vmem:[#allocation2 + $0x60] sm:$0xff] %vm113, 0.0
    %127 = vst.msk [vmem:[#allocation2 + $0x68] sm:$0xff] %vm113, 0.0
    %128 = vst.msk [vmem:[#allocation2 + $0x70] sm:$0xff] %vm113, 0.0
    %129 = vst.msk [vmem:[#allocation2 + $0x78] sm:$0xff] %vm113, 0.0
    %130 = vst.msk [vmem:[#allocation2 + $0x80] sm:$0xff] %vm113, 0.0
    %131 = vst.msk [vmem:[#allocation2 + $0x88] sm:$0xff] %vm113, 0.0
    %132 = vst.msk [vmem:[#allocation2 + $0x90] sm:$0xff] %vm113, 0.0
    %133 = vst.msk [vmem:[#allocation2 + $0x98] sm:$0xff] %vm113, 0.0
    %v134 = vld [vmem:[%s0] sm:$0xff]
    %v135 = vld [vmem:[%s0 + $0x8] sm:$0xff]
    %v136 = vld [vmem:[%s0 + $0x10] sm:$0xff]
    %v137 = vld [vmem:[%s0 + $0x18] sm:$0xff]
    %v138 = vld [vmem:[%s0 + $0x20] sm:$0xff]
    %v139 = vld [vmem:[%s0 + $0x28] sm:$0xff]
    %v140 = vld [vmem:[%s0 + $0x30] sm:$0xff]
    %v141 = vld [vmem:[%s0 + $0x38] sm:$0xff]
    %v142 = vld [vmem:[%s0 + $0x40] sm:$0xff]
    %v143 = vld [vmem:[%s0 + $0x48] sm:$0xff]
    %v144 = vld [vmem:[%s0 + $0x50] sm:$0xff]
    %v145 = vld [vmem:[%s0 + $0x58] sm:$0xff]
    %v146 = vld [vmem:[%s0 + $0x60] sm:$0xff]
    %v147 = vld [vmem:[%s0 + $0x68] sm:$0xff]
    %v148 = vld [vmem:[%s0 + $0x70] sm:$0xff]
    %v149 = vld [vmem:[%s0 + $0x78] sm:$0xff]
    %150 = vst.msk [vmem:[#allocation2 + $0x8] sm:$0xff] %vm113, %v134
    %151 = vst.msk [vmem:[#allocation2 + $0x10] sm:$0xff] %vm113, %v135
    %152 = vst.msk [vmem:[#allocation2 + $0x18] sm:$0xff] %vm113, %v136
    %153 = vst.msk [vmem:[#allocation2 + $0x20] sm:$0xff] %vm113, %v137
    %154 = vst.msk [vmem:[#allocation2 + $0x28] sm:$0xff] %vm113, %v138
    %155 = vst.msk [vmem:[#allocation2 + $0x30] sm:$0xff] %vm113, %v139
    %156 = vst.msk [vmem:[#allocation2 + $0x38] sm:$0xff] %vm113, %v140
    %157 = vst.msk [vmem:[#allocation2 + $0x40] sm:$0xff] %vm113, %v141
    %158 = vst.msk [vmem:[#allocation2 + $0x58] sm:$0xff] %vm113, %v142
    %159 = vst.msk [vmem:[#allocation2 + $0x60] sm:$0xff] %vm113, %v143
    %160 = vst.msk [vmem:[#allocation2 + $0x68] sm:$0xff] %vm113, %v144
    %161 = vst.msk [vmem:[#allocation2 + $0x70] sm:$0xff] %vm113, %v145
    %162 = vst.msk [vmem:[#allocation2 + $0x78] sm:$0xff] %vm113, %v146
    %163 = vst.msk [vmem:[#allocation2 + $0x80] sm:$0xff] %vm113, %v147
    %164 = vst.msk [vmem:[#allocation2 + $0x88] sm:$0xff] %vm113, %v148
    %165 = vst.msk [vmem:[#allocation2 + $0x90] sm:$0xff] %vm113, %v149
    %v166 = vld [vmem:[#allocation2 + $0x1] sm:$0xff]
    %v167 = vld [vmem:[#allocation2 + $0x9] sm:$0xff]
    %v168 = vld [vmem:[#allocation2 + $0x11] sm:$0xff]
    %v169 = vld [vmem:[#allocation2 + $0x19] sm:$0xff]
    %v170 = vld [vmem:[#allocation2 + $0x21] sm:$0xff]
    %v171 = vld [vmem:[#allocation2 + $0x29] sm:$0xff]
    %v172 = vld [vmem:[#allocation2 + $0x31] sm:$0xff]
    %v173 = vld [vmem:[#allocation2 + $0x39] sm:$0xff]
    %v174 = vld [vmem:[#allocation2 + $0x51] sm:$0xff]
    %v175 = vld [vmem:[#allocation2 + $0x59] sm:$0xff]
    %v176 = vld [vmem:[#allocation2 + $0x61] sm:$0xff]
    %v177 = vld [vmem:[#allocation2 + $0x69] sm:$0xff]
    %v178 = vld [vmem:[#allocation2 + $0x71] sm:$0xff]
    %v179 = vld [vmem:[#allocation2 + $0x79] sm:$0xff]
    %v180 = vld [vmem:[#allocation2 + $0x81] sm:$0xff]
    %v181 = vld [vmem:[#allocation2 + $0x89] sm:$0xff]
    %v182 = vld [vmem:[%s1] sm:$0x1]
    %184 = vset.pattern.permute.xlu0 0
    %185 = vperm.xlu0 %184, %v166
    %v186 = vpop.permute.xlu0 %185
    %189 = vset.pattern.permute.xlu0 0
    %190 = vperm.xlu0 %189, %v167
    %v191 = vpop.permute.xlu0 %190
    %194 = vset.pattern.permute.xlu0 0
    %195 = vperm.xlu0 %194, %v168
    %v196 = vpop.permute.xlu0 %195
    %199 = vset.pattern.permute.xlu0 0
    %200 = vperm.xlu0 %199, %v169
    %v201 = vpop.permute.xlu0 %200
    %204 = vset.pattern.permute.xlu0 0
    %205 = vperm.xlu0 %204, %v170
    %v206 = vpop.permute.xlu0 %205
    %209 = vset.pattern.permute.xlu0 0
    %210 = vperm.xlu0 %209, %v171
    %v211 = vpop.permute.xlu0 %210
    %214 = vset.pattern.permute.xlu0 0
    %215 = vperm.xlu0 %214, %v172
    %v216 = vpop.permute.xlu0 %215
    %219 = vset.pattern.permute.xlu0 0
    %220 = vperm.xlu0 %219, %v173
    %v221 = vpop.permute.xlu0 %220
    %224 = vset.pattern.permute.xlu0 0
    %225 = vperm.xlu0 %224, %v174
    %v226 = vpop.permute.xlu0 %225
    %229 = vset.pattern.permute.xlu0 0
    %230 = vperm.xlu0 %229, %v175
    %v231 = vpop.permute.xlu0 %230
    %234 = vset.pattern.permute.xlu0 0
    %235 = vperm.xlu0 %234, %v176
    %v236 = vpop.permute.xlu0 %235
    %239 = vset.pattern.permute.xlu0 0
    %240 = vperm.xlu0 %239, %v177
    %v241 = vpop.permute.xlu0 %240
    %244 = vset.pattern.permute.xlu0 0
    %245 = vperm.xlu0 %244, %v178
    %v246 = vpop.permute.xlu0 %245
    %249 = vset.pattern.permute.xlu0 0
    %250 = vperm.xlu0 %249, %v179
    %v251 = vpop.permute.xlu0 %250
    %254 = vset.pattern.permute.xlu0 0
    %255 = vperm.xlu0 %254, %v180
    %v256 = vpop.permute.xlu0 %255
    %259 = vset.pattern.permute.xlu0 0
    %260 = vperm.xlu0 %259, %v181
    %v261 = vpop.permute.xlu0 %260
    %v264 = vlaneseq
    %v265 = vshrl.u32 %v264, 7
    %v266 = vsub.s32 0, %v265
    %v267 = vrot.slane %v182, %v266
    %v269 = vmul.f32 %v186, %v267
    %v270 = vmul.f32 %v191, %v267
    %v271 = vmul.f32 %v196, %v267
    %v272 = vmul.f32 %v201, %v267
    %v273 = vmul.f32 %v206, %v267
    %v274 = vmul.f32 %v211, %v267
    %v275 = vmul.f32 %v216, %v267
    %v276 = vmul.f32 %v221, %v267
    %v277 = vmul.f32 %v226, %v267
    %v278 = vmul.f32 %v231, %v267
    %v279 = vmul.f32 %v236, %v267
    %v280 = vmul.f32 %v241, %v267
    %v281 = vmul.f32 %v246, %v267
    %v282 = vmul.f32 %v251, %v267
    %v283 = vmul.f32 %v256, %v267
    %v284 = vmul.f32 %v261, %v267
    %v285 = vld [vmem:[#allocation2 + $0x2] sm:$0xff]
    %v286 = vld [vmem:[#allocation2 + $0xa] sm:$0xff]
    %v287 = vld [vmem:[#allocation2 + $0x12] sm:$0xff]
    %v288 = vld [vmem:[#allocation2 + $0x1a] sm:$0xff]
    %v289 = vld [vmem:[#allocation2 + $0x22] sm:$0xff]
    %v290 = vld [vmem:[#allocation2 + $0x2a] sm:$0xff]
    %v291 = vld [vmem:[#allocation2 + $0x32] sm:$0xff]
    %v292 = vld [vmem:[#allocation2 + $0x3a] sm:$0xff]
    %v293 = vld [vmem:[#allocation2 + $0x52] sm:$0xff]
    %v294 = vld [vmem:[#allocation2 + $0x5a] sm:$0xff]
    %v295 = vld [vmem:[#allocation2 + $0x62] sm:$0xff]
    %v296 = vld [vmem:[#allocation2 + $0x6a] sm:$0xff]
    %v297 = vld [vmem:[#allocation2 + $0x72] sm:$0xff]
    %v298 = vld [vmem:[#allocation2 + $0x7a] sm:$0xff]
    %v299 = vld [vmem:[#allocation2 + $0x82] sm:$0xff]
    %v300 = vld [vmem:[#allocation2 + $0x8a] sm:$0xff]
    %s301 = scalar_lea.vmem %s1, 1
    %v302 = vld [vmem:[%s301] sm:$0x1]
    %304 = vset.pattern.permute.xlu0 0
    %305 = vperm.xlu0 %304, %v285
    %v306 = vpop.permute.xlu0 %305
    %309 = vset.pattern.permute.xlu0 0
    %310 = vperm.xlu0 %309, %v286
    %v311 = vpop.permute.xlu0 %310
    %314 = vset.pattern.permute.xlu0 0
    %315 = vperm.xlu0 %314, %v287
    %v316 = vpop.permute.xlu0 %315
    %319 = vset.pattern.permute.xlu0 0
    %320 = vperm.xlu0 %319, %v288
    %v321 = vpop.permute.xlu0 %320
    %324 = vset.pattern.permute.xlu0 0
    %325 = vperm.xlu0 %324, %v289
    %v326 = vpop.permute.xlu0 %325
    %329 = vset.pattern.permute.xlu0 0
    %330 = vperm.xlu0 %329, %v290
    %v331 = vpop.permute.xlu0 %330
    %334 = vset.pattern.permute.xlu0 0
    %335 = vperm.xlu0 %334, %v291
    %v336 = vpop.permute.xlu0 %335
    %339 = vset.pattern.permute.xlu0 0
    %340 = vperm.xlu0 %339, %v292
    %v341 = vpop.permute.xlu0 %340
    %344 = vset.pattern.permute.xlu0 0
    %345 = vperm.xlu0 %344, %v293
    %v346 = vpop.permute.xlu0 %345
    %349 = vset.pattern.permute.xlu0 0
    %350 = vperm.xlu0 %349, %v294
    %v351 = vpop.permute.xlu0 %350
    %354 = vset.pattern.permute.xlu0 0
    %355 = vperm.xlu0 %354, %v295
    %v356 = vpop.permute.xlu0 %355
    %359 = vset.pattern.permute.xlu0 0
    %360 = vperm.xlu0 %359, %v296
    %v361 = vpop.permute.xlu0 %360
    %364 = vset.pattern.permute.xlu0 0
    %365 = vperm.xlu0 %364, %v297
    %v366 = vpop.permute.xlu0 %365
    %369 = vset.pattern.permute.xlu0 0
    %370 = vperm.xlu0 %369, %v298
    %v371 = vpop.permute.xlu0 %370
    %374 = vset.pattern.permute.xlu0 0
    %375 = vperm.xlu0 %374, %v299
    %v376 = vpop.permute.xlu0 %375
    %379 = vset.pattern.permute.xlu0 0
    %380 = vperm.xlu0 %379, %v300
    %v381 = vpop.permute.xlu0 %380
    %v384 = vlaneseq
    %v385 = vshrl.u32 %v384, 7
    %v386 = vsub.s32 0, %v385
    %v387 = vrot.slane %v302, %v386
    %v389 = vmul.f32 %v306, %v387
    %v390 = vmul.f32 %v311, %v387
    %v391 = vmul.f32 %v316, %v387
    %v392 = vmul.f32 %v321, %v387
    %v393 = vmul.f32 %v326, %v387
    %v394 = vmul.f32 %v331, %v387
    %v395 = vmul.f32 %v336, %v387
    %v396 = vmul.f32 %v341, %v387
    %v397 = vmul.f32 %v346, %v387
    %v398 = vmul.f32 %v351, %v387
    %v399 = vmul.f32 %v356, %v387
    %v400 = vmul.f32 %v361, %v387
    %v401 = vmul.f32 %v366, %v387
    %v402 = vmul.f32 %v371, %v387
    %v403 = vmul.f32 %v376, %v387
    %v404 = vmul.f32 %v381, %v387
    %v405 = vadd.f32 %v269, %v389
    %v406 = vadd.f32 %v270, %v390
    %v407 = vadd.f32 %v271, %v391
    %v408 = vadd.f32 %v272, %v392
    %v409 = vadd.f32 %v273, %v393
    %v410 = vadd.f32 %v274, %v394
    %v411 = vadd.f32 %v275, %v395
    %v412 = vadd.f32 %v276, %v396
    %v413 = vadd.f32 %v277, %v397
    %v414 = vadd.f32 %v278, %v398
    %v415 = vadd.f32 %v279, %v399
    %v416 = vadd.f32 %v280, %v400
    %v417 = vadd.f32 %v281, %v401
    %v418 = vadd.f32 %v282, %v402
    %v419 = vadd.f32 %v283, %v403
    %v420 = vadd.f32 %v284, %v404
    %v421 = vld [vmem:[#allocation2 + $0x3] sm:$0xff]
    %v422 = vld [vmem:[#allocation2 + $0xb] sm:$0xff]
    %v423 = vld [vmem:[#allocation2 + $0x13] sm:$0xff]
    %v424 = vld [vmem:[#allocation2 + $0x1b] sm:$0xff]
    %v425 = vld [vmem:[#allocation2 + $0x23] sm:$0xff]
    %v426 = vld [vmem:[#allocation2 + $0x2b] sm:$0xff]
    %v427 = vld [vmem:[#allocation2 + $0x33] sm:$0xff]
    %v428 = vld [vmem:[#allocation2 + $0x3b] sm:$0xff]
    %v429 = vld [vmem:[#allocation2 + $0x53] sm:$0xff]
    %v430 = vld [vmem:[#allocation2 + $0x5b] sm:$0xff]
    %v431 = vld [vmem:[#allocation2 + $0x63] sm:$0xff]
    %v432 = vld [vmem:[#allocation2 + $0x6b] sm:$0xff]
    %v433 = vld [vmem:[#allocation2 + $0x73] sm:$0xff]
    %v434 = vld [vmem:[#allocation2 + $0x7b] sm:$0xff]
    %v435 = vld [vmem:[#allocation2 + $0x83] sm:$0xff]
    %v436 = vld [vmem:[#allocation2 + $0x8b] sm:$0xff]
    %s437 = scalar_lea.vmem %s1, 2
    %v438 = vld [vmem:[%s437] sm:$0x1]
    %440 = vset.pattern.permute.xlu0 0
    %441 = vperm.xlu0 %440, %v421
    %v442 = vpop.permute.xlu0 %441
    %445 = vset.pattern.permute.xlu0 0
    %446 = vperm.xlu0 %445, %v422
    %v447 = vpop.permute.xlu0 %446
    %450 = vset.pattern.permute.xlu0 0
    %451 = vperm.xlu0 %450, %v423
    %v452 = vpop.permute.xlu0 %451
    %455 = vset.pattern.permute.xlu0 0
    %456 = vperm.xlu0 %455, %v424
    %v457 = vpop.permute.xlu0 %456
    %460 = vset.pattern.permute.xlu0 0
    %461 = vperm.xlu0 %460, %v425
    %v462 = vpop.permute.xlu0 %461
    %465 = vset.pattern.permute.xlu0 0
    %466 = vperm.xlu0 %465, %v426
    %v467 = vpop.permute.xlu0 %466
    %470 = vset.pattern.permute.xlu0 0
    %471 = vperm.xlu0 %470, %v427
    %v472 = vpop.permute.xlu0 %471
    %475 = vset.pattern.permute.xlu0 0
    %476 = vperm.xlu0 %475, %v428
    %v477 = vpop.permute.xlu0 %476
    %480 = vset.pattern.permute.xlu0 0
    %481 = vperm.xlu0 %480, %v429
    %v482 = vpop.permute.xlu0 %481
    %485 = vset.pattern.permute.xlu0 0
    %486 = vperm.xlu0 %485, %v430
    %v487 = vpop.permute.xlu0 %486
    %490 = vset.pattern.permute.xlu0 0
    %491 = vperm.xlu0 %490, %v431
    %v492 = vpop.permute.xlu0 %491
    %495 = vset.pattern.permute.xlu0 0
    %496 = vperm.xlu0 %495, %v432
    %v497 = vpop.permute.xlu0 %496
    %500 = vset.pattern.permute.xlu0 0
    %501 = vperm.xlu0 %500, %v433
    %v502 = vpop.permute.xlu0 %501
    %505 = vset.pattern.permute.xlu0 0
    %506 = vperm.xlu0 %505, %v434
    %v507 = vpop.permute.xlu0 %506
    %510 = vset.pattern.permute.xlu0 0
    %511 = vperm.xlu0 %510, %v435
    %v512 = vpop.permute.xlu0 %511
    %515 = vset.pattern.permute.xlu0 0
    %516 = vperm.xlu0 %515, %v436
    %v517 = vpop.permute.xlu0 %516
    %v520 = vlaneseq
    %v521 = vshrl.u32 %v520, 7
    %v522 = vsub.s32 0, %v521
    %v523 = vrot.slane %v438, %v522
    %v525 = vmul.f32 %v442, %v523
    %v526 = vmul.f32 %v447, %v523
    %v527 = vmul.f32 %v452, %v523
    %v528 = vmul.f32 %v457, %v523
    %v529 = vmul.f32 %v462, %v523
    %v530 = vmul.f32 %v467, %v523
    %v531 = vmul.f32 %v472, %v523
    %v532 = vmul.f32 %v477, %v523
    %v533 = vmul.f32 %v482, %v523
    %v534 = vmul.f32 %v487, %v523
    %v535 = vmul.f32 %v492, %v523
    %v536 = vmul.f32 %v497, %v523
    %v537 = vmul.f32 %v502, %v523
    %v538 = vmul.f32 %v507, %v523
    %v539 = vmul.f32 %v512, %v523
    %v540 = vmul.f32 %v517, %v523
    %v541 = vadd.f32 %v405, %v525
    %v542 = vadd.f32 %v406, %v526
    %v543 = vadd.f32 %v407, %v527
    %v544 = vadd.f32 %v408, %v528
    %v545 = vadd.f32 %v409, %v529
    %v546 = vadd.f32 %v410, %v530
    %v547 = vadd.f32 %v411, %v531
    %v548 = vadd.f32 %v412, %v532
    %v549 = vadd.f32 %v413, %v533
    %v550 = vadd.f32 %v414, %v534
    %v551 = vadd.f32 %v415, %v535
    %v552 = vadd.f32 %v416, %v536
    %v553 = vadd.f32 %v417, %v537
    %v554 = vadd.f32 %v418, %v538
    %v555 = vadd.f32 %v419, %v539
    %v556 = vadd.f32 %v420, %v540
    %v557 = vld [vmem:[#allocation2 + $0x4] sm:$0xff]
    %v558 = vld [vmem:[#allocation2 + $0xc] sm:$0xff]
    %v559 = vld [vmem:[#allocation2 + $0x14] sm:$0xff]
    %v560 = vld [vmem:[#allocation2 + $0x1c] sm:$0xff]
    %v561 = vld [vmem:[#allocation2 + $0x24] sm:$0xff]
    %v562 = vld [vmem:[#allocation2 + $0x2c] sm:$0xff]
    %v563 = vld [vmem:[#allocation2 + $0x34] sm:$0xff]
    %v564 = vld [vmem:[#allocation2 + $0x3c] sm:$0xff]
    %v565 = vld [vmem:[#allocation2 + $0x54] sm:$0xff]
    %v566 = vld [vmem:[#allocation2 + $0x5c] sm:$0xff]
    %v567 = vld [vmem:[#allocation2 + $0x64] sm:$0xff]
    %v568 = vld [vmem:[#allocation2 + $0x6c] sm:$0xff]
    %v569 = vld [vmem:[#allocation2 + $0x74] sm:$0xff]
    %v570 = vld [vmem:[#allocation2 + $0x7c] sm:$0xff]
    %v571 = vld [vmem:[#allocation2 + $0x84] sm:$0xff]
    %v572 = vld [vmem:[#allocation2 + $0x8c] sm:$0xff]
    %s573 = scalar_lea.vmem %s1, 3
    %v574 = vld [vmem:[%s573] sm:$0x1]
    %576 = vset.pattern.permute.xlu0 0
    %577 = vperm.xlu0 %576, %v557
    %v578 = vpop.permute.xlu0 %577
    %581 = vset.pattern.permute.xlu0 0
    %582 = vperm.xlu0 %581, %v558
    %v583 = vpop.permute.xlu0 %582
    %586 = vset.pattern.permute.xlu0 0
    %587 = vperm.xlu0 %586, %v559
    %v588 = vpop.permute.xlu0 %587
    %591 = vset.pattern.permute.xlu0 0
    %592 = vperm.xlu0 %591, %v560
    %v593 = vpop.permute.xlu0 %592
    %596 = vset.pattern.permute.xlu0 0
    %597 = vperm.xlu0 %596, %v561
    %v598 = vpop.permute.xlu0 %597
    %601 = vset.pattern.permute.xlu0 0
    %602 = vperm.xlu0 %601, %v562
    %v603 = vpop.permute.xlu0 %602
    %606 = vset.pattern.permute.xlu0 0
    %607 = vperm.xlu0 %606, %v563
    %v608 = vpop.permute.xlu0 %607
    %611 = vset.pattern.permute.xlu0 0
    %612 = vperm.xlu0 %611, %v564
    %v613 = vpop.permute.xlu0 %612
    %616 = vset.pattern.permute.xlu0 0
    %617 = vperm.xlu0 %616, %v565
    %v618 = vpop.permute.xlu0 %617
    %621 = vset.pattern.permute.xlu0 0
    %622 = vperm.xlu0 %621, %v566
    %v623 = vpop.permute.xlu0 %622
    %626 = vset.pattern.permute.xlu0 0
    %627 = vperm.xlu0 %626, %v567
    %v628 = vpop.permute.xlu0 %627
    %631 = vset.pattern.permute.xlu0 0
    %632 = vperm.xlu0 %631, %v568
    %v633 = vpop.permute.xlu0 %632
    %636 = vset.pattern.permute.xlu0 0
    %637 = vperm.xlu0 %636, %v569
    %v638 = vpop.permute.xlu0 %637
    %641 = vset.pattern.permute.xlu0 0
    %642 = vperm.xlu0 %641, %v570
    %v643 = vpop.permute.xlu0 %642
    %646 = vset.pattern.permute.xlu0 0
    %647 = vperm.xlu0 %646, %v571
    %v648 = vpop.permute.xlu0 %647
    %651 = vset.pattern.permute.xlu0 0
    %652 = vperm.xlu0 %651, %v572
    %v653 = vpop.permute.xlu0 %652
    %v656 = vlaneseq
    %v657 = vshrl.u32 %v656, 7
    %v658 = vsub.s32 0, %v657
    %v659 = vrot.slane %v574, %v658
    %v661 = vmul.f32 %v578, %v659
    %v662 = vmul.f32 %v583, %v659
    %v663 = vmul.f32 %v588, %v659
    %v664 = vmul.f32 %v593, %v659
    %v665 = vmul.f32 %v598, %v659
    %v666 = vmul.f32 %v603, %v659
    %v667 = vmul.f32 %v608, %v659
    %v668 = vmul.f32 %v613, %v659
    %v669 = vmul.f32 %v618, %v659
    %v670 = vmul.f32 %v623, %v659
    %v671 = vmul.f32 %v628, %v659
    %v672 = vmul.f32 %v633, %v659
    %v673 = vmul.f32 %v638, %v659
    %v674 = vmul.f32 %v643, %v659
    %v675 = vmul.f32 %v648, %v659
    %v676 = vmul.f32 %v653, %v659
    %v677 = vadd.f32 %v541, %v661
    %v678 = vadd.f32 %v542, %v662
    %v679 = vadd.f32 %v543, %v663
    %v680 = vadd.f32 %v544, %v664
    %v681 = vadd.f32 %v545, %v665
    %v682 = vadd.f32 %v546, %v666
    %v683 = vadd.f32 %v547, %v667
    %v684 = vadd.f32 %v548, %v668
    %v685 = vadd.f32 %v549, %v669
    %v686 = vadd.f32 %v550, %v670
    %v687 = vadd.f32 %v551, %v671
    %v688 = vadd.f32 %v552, %v672
    %v689 = vadd.f32 %v553, %v673
    %v690 = vadd.f32 %v554, %v674
    %v691 = vadd.f32 %v555, %v675
    %v692 = vadd.f32 %v556, %v676
    %v693 = vld [vmem:[#allocation2 + $0x5] sm:$0xff]
    %v694 = vld [vmem:[#allocation2 + $0xd] sm:$0xff]
    %v695 = vld [vmem:[#allocation2 + $0x15] sm:$0xff]
    %v696 = vld [vmem:[#allocation2 + $0x1d] sm:$0xff]
    %v697 = vld [vmem:[#allocation2 + $0x25] sm:$0xff]
    %v698 = vld [vmem:[#allocation2 + $0x2d] sm:$0xff]
    %v699 = vld [vmem:[#allocation2 + $0x35] sm:$0xff]
    %v700 = vld [vmem:[#allocation2 + $0x3d] sm:$0xff]
    %v701 = vld [vmem:[#allocation2 + $0x55] sm:$0xff]
    %v702 = vld [vmem:[#allocation2 + $0x5d] sm:$0xff]
    %v703 = vld [vmem:[#allocation2 + $0x65] sm:$0xff]
    %v704 = vld [vmem:[#allocation2 + $0x6d] sm:$0xff]
    %v705 = vld [vmem:[#allocation2 + $0x75] sm:$0xff]
    %v706 = vld [vmem:[#allocation2 + $0x7d] sm:$0xff]
    %v707 = vld [vmem:[#allocation2 + $0x85] sm:$0xff]
    %v708 = vld [vmem:[#allocation2 + $0x8d] sm:$0xff]
    %s709 = scalar_lea.vmem %s1, 4
    %v710 = vld [vmem:[%s709] sm:$0x1]
    %712 = vset.pattern.permute.xlu0 0
    %713 = vperm.xlu0 %712, %v693
    %v714 = vpop.permute.xlu0 %713
    %717 = vset.pattern.permute.xlu0 0
    %718 = vperm.xlu0 %717, %v694
    %v719 = vpop.permute.xlu0 %718
    %722 = vset.pattern.permute.xlu0 0
    %723 = vperm.xlu0 %722, %v695
    %v724 = vpop.permute.xlu0 %723
    %727 = vset.pattern.permute.xlu0 0
    %728 = vperm.xlu0 %727, %v696
    %v729 = vpop.permute.xlu0 %728
    %732 = vset.pattern.permute.xlu0 0
    %733 = vperm.xlu0 %732, %v697
    %v734 = vpop.permute.xlu0 %733
    %737 = vset.pattern.permute.xlu0 0
    %738 = vperm.xlu0 %737, %v698
    %v739 = vpop.permute.xlu0 %738
    %742 = vset.pattern.permute.xlu0 0
    %743 = vperm.xlu0 %742, %v699
    %v744 = vpop.permute.xlu0 %743
    %747 = vset.pattern.permute.xlu0 0
    %748 = vperm.xlu0 %747, %v700
    %v749 = vpop.permute.xlu0 %748
    %752 = vset.pattern.permute.xlu0 0
    %753 = vperm.xlu0 %752, %v701
    %v754 = vpop.permute.xlu0 %753
    %757 = vset.pattern.permute.xlu0 0
    %758 = vperm.xlu0 %757, %v702
    %v759 = vpop.permute.xlu0 %758
    %762 = vset.pattern.permute.xlu0 0
    %763 = vperm.xlu0 %762, %v703
    %v764 = vpop.permute.xlu0 %763
    %767 = vset.pattern.permute.xlu0 0
    %768 = vperm.xlu0 %767, %v704
    %v769 = vpop.permute.xlu0 %768
    %772 = vset.pattern.permute.xlu0 0
    %773 = vperm.xlu0 %772, %v705
    %v774 = vpop.permute.xlu0 %773
    %777 = vset.pattern.permute.xlu0 0
    %778 = vperm.xlu0 %777, %v706
    %v779 = vpop.permute.xlu0 %778
    %782 = vset.pattern.permute.xlu0 0
    %783 = vperm.xlu0 %782, %v707
    %v784 = vpop.permute.xlu0 %783
    %787 = vset.pattern.permute.xlu0 0
    %788 = vperm.xlu0 %787, %v708
    %v789 = vpop.permute.xlu0 %788
    %v792 = vlaneseq
    %v793 = vshrl.u32 %v792, 7
    %v794 = vsub.s32 0, %v793
    %v795 = vrot.slane %v710, %v794
    %v797 = vmul.f32 %v714, %v795
    %v798 = vmul.f32 %v719, %v795
    %v799 = vmul.f32 %v724, %v795
    %v800 = vmul.f32 %v729, %v795
    %v801 = vmul.f32 %v734, %v795
    %v802 = vmul.f32 %v739, %v795
    %v803 = vmul.f32 %v744, %v795
    %v804 = vmul.f32 %v749, %v795
    %v805 = vmul.f32 %v754, %v795
    %v806 = vmul.f32 %v759, %v795
    %v807 = vmul.f32 %v764, %v795
    %v808 = vmul.f32 %v769, %v795
    %v809 = vmul.f32 %v774, %v795
    %v810 = vmul.f32 %v779, %v795
    %v811 = vmul.f32 %v784, %v795
    %v812 = vmul.f32 %v789, %v795
    %v813 = vadd.f32 %v677, %v797
    %v814 = vadd.f32 %v678, %v798
    %v815 = vadd.f32 %v679, %v799
    %v816 = vadd.f32 %v680, %v800
    %v817 = vadd.f32 %v681, %v801
    %v818 = vadd.f32 %v682, %v802
    %v819 = vadd.f32 %v683, %v803
    %v820 = vadd.f32 %v684, %v804
    %v821 = vadd.f32 %v685, %v805
    %v822 = vadd.f32 %v686, %v806
    %v823 = vadd.f32 %v687, %v807
    %v824 = vadd.f32 %v688, %v808
    %v825 = vadd.f32 %v689, %v809
    %v826 = vadd.f32 %v690, %v810
    %v827 = vadd.f32 %v691, %v811
    %v828 = vadd.f32 %v692, %v812
    %v829 = vld [vmem:[#allocation2 + $0x6] sm:$0xff]
    %v830 = vld [vmem:[#allocation2 + $0xe] sm:$0xff]
    %v831 = vld [vmem:[#allocation2 + $0x16] sm:$0xff]
    %v832 = vld [vmem:[#allocation2 + $0x1e] sm:$0xff]
    %v833 = vld [vmem:[#allocation2 + $0x26] sm:$0xff]
    %v834 = vld [vmem:[#allocation2 + $0x2e] sm:$0xff]
    %v835 = vld [vmem:[#allocation2 + $0x36] sm:$0xff]
    %v836 = vld [vmem:[#allocation2 + $0x3e] sm:$0xff]
    %v837 = vld [vmem:[#allocation2 + $0x56] sm:$0xff]
    %v838 = vld [vmem:[#allocation2 + $0x5e] sm:$0xff]
    %v839 = vld [vmem:[#allocation2 + $0x66] sm:$0xff]
    %v840 = vld [vmem:[#allocation2 + $0x6e] sm:$0xff]
    %v841 = vld [vmem:[#allocation2 + $0x76] sm:$0xff]
    %v842 = vld [vmem:[#allocation2 + $0x7e] sm:$0xff]
    %v843 = vld [vmem:[#allocation2 + $0x86] sm:$0xff]
    %v844 = vld [vmem:[#allocation2 + $0x8e] sm:$0xff]
    %s845 = scalar_lea.vmem %s1, 5
    %v846 = vld [vmem:[%s845] sm:$0x1]
    %848 = vset.pattern.permute.xlu0 0
    %849 = vperm.xlu0 %848, %v829
    %v850 = vpop.permute.xlu0 %849
    %853 = vset.pattern.permute.xlu0 0
    %854 = vperm.xlu0 %853, %v830
    %v855 = vpop.permute.xlu0 %854
    %858 = vset.pattern.permute.xlu0 0
    %859 = vperm.xlu0 %858, %v831
    %v860 = vpop.permute.xlu0 %859
    %863 = vset.pattern.permute.xlu0 0
    %864 = vperm.xlu0 %863, %v832
    %v865 = vpop.permute.xlu0 %864
    %868 = vset.pattern.permute.xlu0 0
    %869 = vperm.xlu0 %868, %v833
    %v870 = vpop.permute.xlu0 %869
    %873 = vset.pattern.permute.xlu0 0
    %874 = vperm.xlu0 %873, %v834
    %v875 = vpop.permute.xlu0 %874
    %878 = vset.pattern.permute.xlu0 0
    %879 = vperm.xlu0 %878, %v835
    %v880 = vpop.permute.xlu0 %879
    %883 = vset.pattern.permute.xlu0 0
    %884 = vperm.xlu0 %883, %v836
    %v885 = vpop.permute.xlu0 %884
    %888 = vset.pattern.permute.xlu0 0
    %889 = vperm.xlu0 %888, %v837
    %v890 = vpop.permute.xlu0 %889
    %893 = vset.pattern.permute.xlu0 0
    %894 = vperm.xlu0 %893, %v838
    %v895 = vpop.permute.xlu0 %894
    %898 = vset.pattern.permute.xlu0 0
    %899 = vperm.xlu0 %898, %v839
    %v900 = vpop.permute.xlu0 %899
    %903 = vset.pattern.permute.xlu0 0
    %904 = vperm.xlu0 %903, %v840
    %v905 = vpop.permute.xlu0 %904
    %908 = vset.pattern.permute.xlu0 0
    %909 = vperm.xlu0 %908, %v841
    %v910 = vpop.permute.xlu0 %909
    %913 = vset.pattern.permute.xlu0 0
    %914 = vperm.xlu0 %913, %v842
    %v915 = vpop.permute.xlu0 %914
    %918 = vset.pattern.permute.xlu0 0
    %919 = vperm.xlu0 %918, %v843
    %v920 = vpop.permute.xlu0 %919
    %923 = vset.pattern.permute.xlu0 0
    %924 = vperm.xlu0 %923, %v844
    %v925 = vpop.permute.xlu0 %924
    %v928 = vlaneseq
    %v929 = vshrl.u32 %v928, 7
    %v930 = vsub.s32 0, %v929
    %v931 = vrot.slane %v846, %v930
    %v933 = vmul.f32 %v850, %v931
    %v934 = vmul.f32 %v855, %v931
    %v935 = vmul.f32 %v860, %v931
    %v936 = vmul.f32 %v865, %v931
    %v937 = vmul.f32 %v870, %v931
    %v938 = vmul.f32 %v875, %v931
    %v939 = vmul.f32 %v880, %v931
    %v940 = vmul.f32 %v885, %v931
    %v941 = vmul.f32 %v890, %v931
    %v942 = vmul.f32 %v895, %v931
    %v943 = vmul.f32 %v900, %v931
    %v944 = vmul.f32 %v905, %v931
    %v945 = vmul.f32 %v910, %v931
    %v946 = vmul.f32 %v915, %v931
    %v947 = vmul.f32 %v920, %v931
    %v948 = vmul.f32 %v925, %v931
    %v949 = vadd.f32 %v813, %v933
    %v950 = vadd.f32 %v814, %v934
    %v951 = vadd.f32 %v815, %v935
    %v952 = vadd.f32 %v816, %v936
    %v953 = vadd.f32 %v817, %v937
    %v954 = vadd.f32 %v818, %v938
    %v955 = vadd.f32 %v819, %v939
    %v956 = vadd.f32 %v820, %v940
    %v957 = vadd.f32 %v821, %v941
    %v958 = vadd.f32 %v822, %v942
    %v959 = vadd.f32 %v823, %v943
    %v960 = vadd.f32 %v824, %v944
    %v961 = vadd.f32 %v825, %v945
    %v962 = vadd.f32 %v826, %v946
    %v963 = vadd.f32 %v827, %v947
    %v964 = vadd.f32 %v828, %v948
    %v965 = vld [vmem:[#allocation2 + $0x7] sm:$0xff]
    %v966 = vld [vmem:[#allocation2 + $0xf] sm:$0xff]
    %v967 = vld [vmem:[#allocation2 + $0x17] sm:$0xff]
    %v968 = vld [vmem:[#allocation2 + $0x1f] sm:$0xff]
    %v969 = vld [vmem:[#allocation2 + $0x27] sm:$0xff]
    %v970 = vld [vmem:[#allocation2 + $0x2f] sm:$0xff]
    %v971 = vld [vmem:[#allocation2 + $0x37] sm:$0xff]
    %v972 = vld [vmem:[#allocation2 + $0x3f] sm:$0xff]
    %v973 = vld [vmem:[#allocation2 + $0x57] sm:$0xff]
    %v974 = vld [vmem:[#allocation2 + $0x5f] sm:$0xff]
    %v975 = vld [vmem:[#allocation2 + $0x67] sm:$0xff]
    %v976 = vld [vmem:[#allocation2 + $0x6f] sm:$0xff]
    %v977 = vld [vmem:[#allocation2 + $0x77] sm:$0xff]
    %v978 = vld [vmem:[#allocation2 + $0x7f] sm:$0xff]
    %v979 = vld [vmem:[#allocation2 + $0x87] sm:$0xff]
    %v980 = vld [vmem:[#allocation2 + $0x8f] sm:$0xff]
    %s981 = scalar_lea.vmem %s1, 6
    %v982 = vld [vmem:[%s981] sm:$0x1]
    %984 = vset.pattern.permute.xlu0 0
    %985 = vperm.xlu0 %984, %v965
    %v986 = vpop.permute.xlu0 %985
    %989 = vset.pattern.permute.xlu0 0
    %990 = vperm.xlu0 %989, %v966
    %v991 = vpop.permute.xlu0 %990
    %994 = vset.pattern.permute.xlu0 0
    %995 = vperm.xlu0 %994, %v967
    %v996 = vpop.permute.xlu0 %995
    %999 = vset.pattern.permute.xlu0 0
    %1000 = vperm.xlu0 %999, %v968
    %v1001 = vpop.permute.xlu0 %1000
    %1004 = vset.pattern.permute.xlu0 0
    %1005 = vperm.xlu0 %1004, %v969
    %v1006 = vpop.permute.xlu0 %1005
    %1009 = vset.pattern.permute.xlu0 0
    %1010 = vperm.xlu0 %1009, %v970
    %v1011 = vpop.permute.xlu0 %1010
    %1014 = vset.pattern.permute.xlu0 0
    %1015 = vperm.xlu0 %1014, %v971
    %v1016 = vpop.permute.xlu0 %1015
    %1019 = vset.pattern.permute.xlu0 0
    %1020 = vperm.xlu0 %1019, %v972
    %v1021 = vpop.permute.xlu0 %1020
    %1024 = vset.pattern.permute.xlu0 0
    %1025 = vperm.xlu0 %1024, %v973
    %v1026 = vpop.permute.xlu0 %1025
    %1029 = vset.pattern.permute.xlu0 0
    %1030 = vperm.xlu0 %1029, %v974
    %v1031 = vpop.permute.xlu0 %1030
    %1034 = vset.pattern.permute.xlu0 0
    %1035 = vperm.xlu0 %1034, %v975
    %v1036 = vpop.permute.xlu0 %1035
    %1039 = vset.pattern.permute.xlu0 0
    %1040 = vperm.xlu0 %1039, %v976
    %v1041 = vpop.permute.xlu0 %1040
    %1044 = vset.pattern.permute.xlu0 0
    %1045 = vperm.xlu0 %1044, %v977
    %v1046 = vpop.permute.xlu0 %1045
    %1049 = vset.pattern.permute.xlu0 0
    %1050 = vperm.xlu0 %1049, %v978
    %v1051 = vpop.permute.xlu0 %1050
    %1054 = vset.pattern.permute.xlu0 0
    %1055 = vperm.xlu0 %1054, %v979
    %v1056 = vpop.permute.xlu0 %1055
    %1059 = vset.pattern.permute.xlu0 0
    %1060 = vperm.xlu0 %1059, %v980
    %v1061 = vpop.permute.xlu0 %1060
    %v1064 = vlaneseq
    %v1065 = vshrl.u32 %v1064, 7
    %v1066 = vsub.s32 0, %v1065
    %v1067 = vrot.slane %v982, %v1066
    %v1069 = vmul.f32 %v986, %v1067
    %v1070 = vmul.f32 %v991, %v1067
    %v1071 = vmul.f32 %v996, %v1067
    %v1072 = vmul.f32 %v1001, %v1067
    %v1073 = vmul.f32 %v1006, %v1067
    %v1074 = vmul.f32 %v1011, %v1067
    %v1075 = vmul.f32 %v1016, %v1067
    %v1076 = vmul.f32 %v1021, %v1067
    %v1077 = vmul.f32 %v1026, %v1067
    %v1078 = vmul.f32 %v1031, %v1067
    %v1079 = vmul.f32 %v1036, %v1067
    %v1080 = vmul.f32 %v1041, %v1067
    %v1081 = vmul.f32 %v1046, %v1067
    %v1082 = vmul.f32 %v1051, %v1067
    %v1083 = vmul.f32 %v1056, %v1067
    %v1084 = vmul.f32 %v1061, %v1067
    %v1085 = vadd.f32 %v949, %v1069
    %v1086 = vadd.f32 %v950, %v1070
    %v1087 = vadd.f32 %v951, %v1071
    %v1088 = vadd.f32 %v952, %v1072
    %v1089 = vadd.f32 %v953, %v1073
    %v1090 = vadd.f32 %v954, %v1074
    %v1091 = vadd.f32 %v955, %v1075
    %v1092 = vadd.f32 %v956, %v1076
    %v1093 = vadd.f32 %v957, %v1077
    %v1094 = vadd.f32 %v958, %v1078
    %v1095 = vadd.f32 %v959, %v1079
    %v1096 = vadd.f32 %v960, %v1080
    %v1097 = vadd.f32 %v961, %v1081
    %v1098 = vadd.f32 %v962, %v1082
    %v1099 = vadd.f32 %v963, %v1083
    %v1100 = vadd.f32 %v964, %v1084
    %v1101 = vld [vmem:[#allocation2 + $0x8] sm:$0xff]
    %v1102 = vld [vmem:[#allocation2 + $0x10] sm:$0xff]
    %v1103 = vld [vmem:[#allocation2 + $0x18] sm:$0xff]
    %v1104 = vld [vmem:[#allocation2 + $0x20] sm:$0xff]
    %v1105 = vld [vmem:[#allocation2 + $0x28] sm:$0xff]
    %v1106 = vld [vmem:[#allocation2 + $0x30] sm:$0xff]
    %v1107 = vld [vmem:[#allocation2 + $0x38] sm:$0xff]
    %v1108 = vld [vmem:[#allocation2 + $0x40] sm:$0xff]
    %v1109 = vld [vmem:[#allocation2 + $0x58] sm:$0xff]
    %v1110 = vld [vmem:[#allocation2 + $0x60] sm:$0xff]
    %v1111 = vld [vmem:[#allocation2 + $0x68] sm:$0xff]
    %v1112 = vld [vmem:[#allocation2 + $0x70] sm:$0xff]
    %v1113 = vld [vmem:[#allocation2 + $0x78] sm:$0xff]
    %v1114 = vld [vmem:[#allocation2 + $0x80] sm:$0xff]
    %v1115 = vld [vmem:[#allocation2 + $0x88] sm:$0xff]
    %v1116 = vld [vmem:[#allocation2 + $0x90] sm:$0xff]
    %s1117 = scalar_lea.vmem %s1, 7
    %v1118 = vld [vmem:[%s1117] sm:$0x1]
    %1120 = vset.pattern.permute.xlu0 0
    %1121 = vperm.xlu0 %1120, %v1101
    %v1122 = vpop.permute.xlu0 %1121
    %1125 = vset.pattern.permute.xlu0 0
    %1126 = vperm.xlu0 %1125, %v1102
    %v1127 = vpop.permute.xlu0 %1126
    %1130 = vset.pattern.permute.xlu0 0
    %1131 = vperm.xlu0 %1130, %v1103
    %v1132 = vpop.permute.xlu0 %1131
    %1135 = vset.pattern.permute.xlu0 0
    %1136 = vperm.xlu0 %1135, %v1104
    %v1137 = vpop.permute.xlu0 %1136
    %1140 = vset.pattern.permute.xlu0 0
    %1141 = vperm.xlu0 %1140, %v1105
    %v1142 = vpop.permute.xlu0 %1141
    %1145 = vset.pattern.permute.xlu0 0
    %1146 = vperm.xlu0 %1145, %v1106
    %v1147 = vpop.permute.xlu0 %1146
    %1150 = vset.pattern.permute.xlu0 0
    %1151 = vperm.xlu0 %1150, %v1107
    %v1152 = vpop.permute.xlu0 %1151
    %1155 = vset.pattern.permute.xlu0 0
    %1156 = vperm.xlu0 %1155, %v1108
    %v1157 = vpop.permute.xlu0 %1156
    %1160 = vset.pattern.permute.xlu0 0
    %1161 = vperm.xlu0 %1160, %v1109
    %v1162 = vpop.permute.xlu0 %1161
    %1165 = vset.pattern.permute.xlu0 0
    %1166 = vperm.xlu0 %1165, %v1110
    %v1167 = vpop.permute.xlu0 %1166
    %1170 = vset.pattern.permute.xlu0 0
    %1171 = vperm.xlu0 %1170, %v1111
    %v1172 = vpop.permute.xlu0 %1171
    %1175 = vset.pattern.permute.xlu0 0
    %1176 = vperm.xlu0 %1175, %v1112
    %v1177 = vpop.permute.xlu0 %1176
    %1180 = vset.pattern.permute.xlu0 0
    %1181 = vperm.xlu0 %1180, %v1113
    %v1182 = vpop.permute.xlu0 %1181
    %1185 = vset.pattern.permute.xlu0 0
    %1186 = vperm.xlu0 %1185, %v1114
    %v1187 = vpop.permute.xlu0 %1186
    %1190 = vset.pattern.permute.xlu0 0
    %1191 = vperm.xlu0 %1190, %v1115
    %v1192 = vpop.permute.xlu0 %1191
    %1195 = vset.pattern.permute.xlu0 0
    %1196 = vperm.xlu0 %1195, %v1116
    %v1197 = vpop.permute.xlu0 %1196
    %v1200 = vlaneseq
    %v1201 = vshrl.u32 %v1200, 7
    %v1202 = vsub.s32 0, %v1201
    %v1203 = vrot.slane %v1118, %v1202
    %v1205 = vmul.f32 %v1122, %v1203
    %v1206 = vmul.f32 %v1127, %v1203
    %v1207 = vmul.f32 %v1132, %v1203
    %v1208 = vmul.f32 %v1137, %v1203
    %v1209 = vmul.f32 %v1142, %v1203
    %v1210 = vmul.f32 %v1147, %v1203
    %v1211 = vmul.f32 %v1152, %v1203
    %v1212 = vmul.f32 %v1157, %v1203
    %v1213 = vmul.f32 %v1162, %v1203
    %v1214 = vmul.f32 %v1167, %v1203
    %v1215 = vmul.f32 %v1172, %v1203
    %v1216 = vmul.f32 %v1177, %v1203
    %v1217 = vmul.f32 %v1182, %v1203
    %v1218 = vmul.f32 %v1187, %v1203
    %v1219 = vmul.f32 %v1192, %v1203
    %v1220 = vmul.f32 %v1197, %v1203
    %v1221 = vadd.f32 %v1085, %v1205
    %v1222 = vadd.f32 %v1086, %v1206
    %v1223 = vadd.f32 %v1087, %v1207
    %v1224 = vadd.f32 %v1088, %v1208
    %v1225 = vadd.f32 %v1089, %v1209
    %v1226 = vadd.f32 %v1090, %v1210
    %v1227 = vadd.f32 %v1091, %v1211
    %v1228 = vadd.f32 %v1092, %v1212
    %v1229 = vadd.f32 %v1093, %v1213
    %v1230 = vadd.f32 %v1094, %v1214
    %v1231 = vadd.f32 %v1095, %v1215
    %v1232 = vadd.f32 %v1096, %v1216
    %v1233 = vadd.f32 %v1097, %v1217
    %v1234 = vadd.f32 %v1098, %v1218
    %v1235 = vadd.f32 %v1099, %v1219
    %v1236 = vadd.f32 %v1100, %v1220
    %v1237 = vld [vmem:[#allocation2 + $0x9] sm:$0xff]
    %v1238 = vld [vmem:[#allocation2 + $0x11] sm:$0xff]
    %v1239 = vld [vmem:[#allocation2 + $0x19] sm:$0xff]
    %v1240 = vld [vmem:[#allocation2 + $0x21] sm:$0xff]
    %v1241 = vld [vmem:[#allocation2 + $0x29] sm:$0xff]
    %v1242 = vld [vmem:[#allocation2 + $0x31] sm:$0xff]
    %v1243 = vld [vmem:[#allocation2 + $0x39] sm:$0xff]
    %v1244 = vld [vmem:[#allocation2 + $0x41] sm:$0xff]
    %v1245 = vld [vmem:[#allocation2 + $0x59] sm:$0xff]
    %v1246 = vld [vmem:[#allocation2 + $0x61] sm:$0xff]
    %v1247 = vld [vmem:[#allocation2 + $0x69] sm:$0xff]
    %v1248 = vld [vmem:[#allocation2 + $0x71] sm:$0xff]
    %v1249 = vld [vmem:[#allocation2 + $0x79] sm:$0xff]
    %v1250 = vld [vmem:[#allocation2 + $0x81] sm:$0xff]
    %v1251 = vld [vmem:[#allocation2 + $0x89] sm:$0xff]
    %v1252 = vld [vmem:[#allocation2 + $0x91] sm:$0xff]
    %s1253 = scalar_lea.vmem %s1, 8
    %v1254 = vld [vmem:[%s1253] sm:$0x1]
    %1256 = vset.pattern.permute.xlu0 0
    %1257 = vperm.xlu0 %1256, %v1237
    %v1258 = vpop.permute.xlu0 %1257
    %1261 = vset.pattern.permute.xlu0 0
    %1262 = vperm.xlu0 %1261, %v1238
    %v1263 = vpop.permute.xlu0 %1262
    %1266 = vset.pattern.permute.xlu0 0
    %1267 = vperm.xlu0 %1266, %v1239
    %v1268 = vpop.permute.xlu0 %1267
    %1271 = vset.pattern.permute.xlu0 0
    %1272 = vperm.xlu0 %1271, %v1240
    %v1273 = vpop.permute.xlu0 %1272
    %1276 = vset.pattern.permute.xlu0 0
    %1277 = vperm.xlu0 %1276, %v1241
    %v1278 = vpop.permute.xlu0 %1277
    %1281 = vset.pattern.permute.xlu0 0
    %1282 = vperm.xlu0 %1281, %v1242
    %v1283 = vpop.permute.xlu0 %1282
    %1286 = vset.pattern.permute.xlu0 0
    %1287 = vperm.xlu0 %1286, %v1243
    %v1288 = vpop.permute.xlu0 %1287
    %1291 = vset.pattern.permute.xlu0 0
    %1292 = vperm.xlu0 %1291, %v1244
    %v1293 = vpop.permute.xlu0 %1292
    %1296 = vset.pattern.permute.xlu0 0
    %1297 = vperm.xlu0 %1296, %v1245
    %v1298 = vpop.permute.xlu0 %1297
    %1301 = vset.pattern.permute.xlu0 0
    %1302 = vperm.xlu0 %1301, %v1246
    %v1303 = vpop.permute.xlu0 %1302
    %1306 = vset.pattern.permute.xlu0 0
    %1307 = vperm.xlu0 %1306, %v1247
    %v1308 = vpop.permute.xlu0 %1307
    %1311 = vset.pattern.permute.xlu0 0
    %1312 = vperm.xlu0 %1311, %v1248
    %v1313 = vpop.permute.xlu0 %1312
    %1316 = vset.pattern.permute.xlu0 0
    %1317 = vperm.xlu0 %1316, %v1249
    %v1318 = vpop.permute.xlu0 %1317
    %1321 = vset.pattern.permute.xlu0 0
    %1322 = vperm.xlu0 %1321, %v1250
    %v1323 = vpop.permute.xlu0 %1322
    %1326 = vset.pattern.permute.xlu0 0
    %1327 = vperm.xlu0 %1326, %v1251
    %v1328 = vpop.permute.xlu0 %1327
    %1331 = vset.pattern.permute.xlu0 0
    %1332 = vperm.xlu0 %1331, %v1252
    %v1333 = vpop.permute.xlu0 %1332
    %v1336 = vlaneseq
    %v1337 = vshrl.u32 %v1336, 7
    %v1338 = vsub.s32 0, %v1337
    %v1339 = vrot.slane %v1254, %v1338
    %v1341 = vmul.f32 %v1258, %v1339
    %v1342 = vmul.f32 %v1263, %v1339
    %v1343 = vmul.f32 %v1268, %v1339
    %v1344 = vmul.f32 %v1273, %v1339
    %v1345 = vmul.f32 %v1278, %v1339
    %v1346 = vmul.f32 %v1283, %v1339
    %v1347 = vmul.f32 %v1288, %v1339
    %v1348 = vmul.f32 %v1293, %v1339
    %v1349 = vmul.f32 %v1298, %v1339
    %v1350 = vmul.f32 %v1303, %v1339
    %v1351 = vmul.f32 %v1308, %v1339
    %v1352 = vmul.f32 %v1313, %v1339
    %v1353 = vmul.f32 %v1318, %v1339
    %v1354 = vmul.f32 %v1323, %v1339
    %v1355 = vmul.f32 %v1328, %v1339
    %v1356 = vmul.f32 %v1333, %v1339
    %v1357 = vadd.f32 %v1221, %v1341
    %v1358 = vadd.f32 %v1222, %v1342
    %v1359 = vadd.f32 %v1223, %v1343
    %v1360 = vadd.f32 %v1224, %v1344
    %v1361 = vadd.f32 %v1225, %v1345
    %v1362 = vadd.f32 %v1226, %v1346
    %v1363 = vadd.f32 %v1227, %v1347
    %v1364 = vadd.f32 %v1228, %v1348
    %v1365 = vadd.f32 %v1229, %v1349
    %v1366 = vadd.f32 %v1230, %v1350
    %v1367 = vadd.f32 %v1231, %v1351
    %v1368 = vadd.f32 %v1232, %v1352
    %v1369 = vadd.f32 %v1233, %v1353
    %v1370 = vadd.f32 %v1234, %v1354
    %v1371 = vadd.f32 %v1235, %v1355
    %v1372 = vadd.f32 %v1236, %v1356
    %v1373 = vld [vmem:[#allocation2 + $0xa] sm:$0xff]
    %v1374 = vld [vmem:[#allocation2 + $0x12] sm:$0xff]
    %v1375 = vld [vmem:[#allocation2 + $0x1a] sm:$0xff]
    %v1376 = vld [vmem:[#allocation2 + $0x22] sm:$0xff]
    %v1377 = vld [vmem:[#allocation2 + $0x2a] sm:$0xff]
    %v1378 = vld [vmem:[#allocation2 + $0x32] sm:$0xff]
    %v1379 = vld [vmem:[#allocation2 + $0x3a] sm:$0xff]
    %v1380 = vld [vmem:[#allocation2 + $0x42] sm:$0xff]
    %v1381 = vld [vmem:[#allocation2 + $0x5a] sm:$0xff]
    %v1382 = vld [vmem:[#allocation2 + $0x62] sm:$0xff]
    %v1383 = vld [vmem:[#allocation2 + $0x6a] sm:$0xff]
    %v1384 = vld [vmem:[#allocation2 + $0x72] sm:$0xff]
    %v1385 = vld [vmem:[#allocation2 + $0x7a] sm:$0xff]
    %v1386 = vld [vmem:[#allocation2 + $0x82] sm:$0xff]
    %v1387 = vld [vmem:[#allocation2 + $0x8a] sm:$0xff]
    %v1388 = vld [vmem:[#allocation2 + $0x92] sm:$0xff]
    %s1389 = scalar_lea.vmem %s1, 9
    %v1390 = vld [vmem:[%s1389] sm:$0x1]
    %1392 = vset.pattern.permute.xlu0 0
    %1393 = vperm.xlu0 %1392, %v1373
    %v1394 = vpop.permute.xlu0 %1393
    %1397 = vset.pattern.permute.xlu0 0
    %1398 = vperm.xlu0 %1397, %v1374
    %v1399 = vpop.permute.xlu0 %1398
    %1402 = vset.pattern.permute.xlu0 0
    %1403 = vperm.xlu0 %1402, %v1375
    %v1404 = vpop.permute.xlu0 %1403
    %1407 = vset.pattern.permute.xlu0 0
    %1408 = vperm.xlu0 %1407, %v1376
    %v1409 = vpop.permute.xlu0 %1408
    %1412 = vset.pattern.permute.xlu0 0
    %1413 = vperm.xlu0 %1412, %v1377
    %v1414 = vpop.permute.xlu0 %1413
    %1417 = vset.pattern.permute.xlu0 0
    %1418 = vperm.xlu0 %1417, %v1378
    %v1419 = vpop.permute.xlu0 %1418
    %1422 = vset.pattern.permute.xlu0 0
    %1423 = vperm.xlu0 %1422, %v1379
    %v1424 = vpop.permute.xlu0 %1423
    %1427 = vset.pattern.permute.xlu0 0
    %1428 = vperm.xlu0 %1427, %v1380
    %v1429 = vpop.permute.xlu0 %1428
    %1432 = vset.pattern.permute.xlu0 0
    %1433 = vperm.xlu0 %1432, %v1381
    %v1434 = vpop.permute.xlu0 %1433
    %1437 = vset.pattern.permute.xlu0 0
    %1438 = vperm.xlu0 %1437, %v1382
    %v1439 = vpop.permute.xlu0 %1438
    %1442 = vset.pattern.permute.xlu0 0
    %1443 = vperm.xlu0 %1442, %v1383
    %v1444 = vpop.permute.xlu0 %1443
    %1447 = vset.pattern.permute.xlu0 0
    %1448 = vperm.xlu0 %1447, %v1384
    %v1449 = vpop.permute.xlu0 %1448
    %1452 = vset.pattern.permute.xlu0 0
    %1453 = vperm.xlu0 %1452, %v1385
    %v1454 = vpop.permute.xlu0 %1453
    %1457 = vset.pattern.permute.xlu0 0
    %1458 = vperm.xlu0 %1457, %v1386
    %v1459 = vpop.permute.xlu0 %1458
    %1462 = vset.pattern.permute.xlu0 0
    %1463 = vperm.xlu0 %1462, %v1387
    %v1464 = vpop.permute.xlu0 %1463
    %1467 = vset.pattern.permute.xlu0 0
    %1468 = vperm.xlu0 %1467, %v1388
    %v1469 = vpop.permute.xlu0 %1468
    %v1472 = vlaneseq
    %v1473 = vshrl.u32 %v1472, 7
    %v1474 = vsub.s32 0, %v1473
    %v1475 = vrot.slane %v1390, %v1474
    %v1477 = vmul.f32 %v1394, %v1475
    %v1478 = vmul.f32 %v1399, %v1475
    %v1479 = vmul.f32 %v1404, %v1475
    %v1480 = vmul.f32 %v1409, %v1475
    %v1481 = vmul.f32 %v1414, %v1475
    %v1482 = vmul.f32 %v1419, %v1475
    %v1483 = vmul.f32 %v1424, %v1475
    %v1484 = vmul.f32 %v1429, %v1475
    %v1485 = vmul.f32 %v1434, %v1475
    %v1486 = vmul.f32 %v1439, %v1475
    %v1487 = vmul.f32 %v1444, %v1475
    %v1488 = vmul.f32 %v1449, %v1475
    %v1489 = vmul.f32 %v1454, %v1475
    %v1490 = vmul.f32 %v1459, %v1475
    %v1491 = vmul.f32 %v1464, %v1475
    %v1492 = vmul.f32 %v1469, %v1475
    %v1493 = vadd.f32 %v1357, %v1477
    %v1494 = vadd.f32 %v1358, %v1478
    %v1495 = vadd.f32 %v1359, %v1479
    %v1496 = vadd.f32 %v1360, %v1480
    %v1497 = vadd.f32 %v1361, %v1481
    %v1498 = vadd.f32 %v1362, %v1482
    %v1499 = vadd.f32 %v1363, %v1483
    %v1500 = vadd.f32 %v1364, %v1484
    %v1501 = vadd.f32 %v1365, %v1485
    %v1502 = vadd.f32 %v1366, %v1486
    %v1503 = vadd.f32 %v1367, %v1487
    %v1504 = vadd.f32 %v1368, %v1488
    %v1505 = vadd.f32 %v1369, %v1489
    %v1506 = vadd.f32 %v1370, %v1490
    %v1507 = vadd.f32 %v1371, %v1491
    %v1508 = vadd.f32 %v1372, %v1492
    %v1509 = vld [vmem:[#allocation2 + $0xb] sm:$0xff]
    %v1510 = vld [vmem:[#allocation2 + $0x13] sm:$0xff]
    %v1511 = vld [vmem:[#allocation2 + $0x1b] sm:$0xff]
    %v1512 = vld [vmem:[#allocation2 + $0x23] sm:$0xff]
    %v1513 = vld [vmem:[#allocation2 + $0x2b] sm:$0xff]
    %v1514 = vld [vmem:[#allocation2 + $0x33] sm:$0xff]
    %v1515 = vld [vmem:[#allocation2 + $0x3b] sm:$0xff]
    %v1516 = vld [vmem:[#allocation2 + $0x43] sm:$0xff]
    %v1517 = vld [vmem:[#allocation2 + $0x5b] sm:$0xff]
    %v1518 = vld [vmem:[#allocation2 + $0x63] sm:$0xff]
    %v1519 = vld [vmem:[#allocation2 + $0x6b] sm:$0xff]
    %v1520 = vld [vmem:[#allocation2 + $0x73] sm:$0xff]
    %v1521 = vld [vmem:[#allocation2 + $0x7b] sm:$0xff]
    %v1522 = vld [vmem:[#allocation2 + $0x83] sm:$0xff]
    %v1523 = vld [vmem:[#allocation2 + $0x8b] sm:$0xff]
    %v1524 = vld [vmem:[#allocation2 + $0x93] sm:$0xff]
    %s1525 = scalar_lea.vmem %s1, 10
    %v1526 = vld [vmem:[%s1525] sm:$0x1]
    %1528 = vset.pattern.permute.xlu0 0
    %1529 = vperm.xlu0 %1528, %v1509
    %v1530 = vpop.permute.xlu0 %1529
    %1533 = vset.pattern.permute.xlu0 0
    %1534 = vperm.xlu0 %1533, %v1510
    %v1535 = vpop.permute.xlu0 %1534
    %1538 = vset.pattern.permute.xlu0 0
    %1539 = vperm.xlu0 %1538, %v1511
    %v1540 = vpop.permute.xlu0 %1539
    %1543 = vset.pattern.permute.xlu0 0
    %1544 = vperm.xlu0 %1543, %v1512
    %v1545 = vpop.permute.xlu0 %1544
    %1548 = vset.pattern.permute.xlu0 0
    %1549 = vperm.xlu0 %1548, %v1513
    %v1550 = vpop.permute.xlu0 %1549
    %1553 = vset.pattern.permute.xlu0 0
    %1554 = vperm.xlu0 %1553, %v1514
    %v1555 = vpop.permute.xlu0 %1554
    %1558 = vset.pattern.permute.xlu0 0
    %1559 = vperm.xlu0 %1558, %v1515
    %v1560 = vpop.permute.xlu0 %1559
    %1563 = vset.pattern.permute.xlu0 0
    %1564 = vperm.xlu0 %1563, %v1516
    %v1565 = vpop.permute.xlu0 %1564
    %1568 = vset.pattern.permute.xlu0 0
    %1569 = vperm.xlu0 %1568, %v1517
    %v1570 = vpop.permute.xlu0 %1569
    %1573 = vset.pattern.permute.xlu0 0
    %1574 = vperm.xlu0 %1573, %v1518
    %v1575 = vpop.permute.xlu0 %1574
    %1578 = vset.pattern.permute.xlu0 0
    %1579 = vperm.xlu0 %1578, %v1519
    %v1580 = vpop.permute.xlu0 %1579
    %1583 = vset.pattern.permute.xlu0 0
    %1584 = vperm.xlu0 %1583, %v1520
    %v1585 = vpop.permute.xlu0 %1584
    %1588 = vset.pattern.permute.xlu0 0
    %1589 = vperm.xlu0 %1588, %v1521
    %v1590 = vpop.permute.xlu0 %1589
    %1593 = vset.pattern.permute.xlu0 0
    %1594 = vperm.xlu0 %1593, %v1522
    %v1595 = vpop.permute.xlu0 %1594
    %1598 = vset.pattern.permute.xlu0 0
    %1599 = vperm.xlu0 %1598, %v1523
    %v1600 = vpop.permute.xlu0 %1599
    %1603 = vset.pattern.permute.xlu0 0
    %1604 = vperm.xlu0 %1603, %v1524
    %v1605 = vpop.permute.xlu0 %1604
    %v1608 = vlaneseq
    %v1609 = vshrl.u32 %v1608, 7
    %v1610 = vsub.s32 0, %v1609
    %v1611 = vrot.slane %v1526, %v1610
    %v1613 = vmul.f32 %v1530, %v1611
    %v1614 = vmul.f32 %v1535, %v1611
    %v1615 = vmul.f32 %v1540, %v1611
    %v1616 = vmul.f32 %v1545, %v1611
    %v1617 = vmul.f32 %v1550, %v1611
    %v1618 = vmul.f32 %v1555, %v1611
    %v1619 = vmul.f32 %v1560, %v1611
    %v1620 = vmul.f32 %v1565, %v1611
    %v1621 = vmul.f32 %v1570, %v1611
    %v1622 = vmul.f32 %v1575, %v1611
    %v1623 = vmul.f32 %v1580, %v1611
    %v1624 = vmul.f32 %v1585, %v1611
    %v1625 = vmul.f32 %v1590, %v1611
    %v1626 = vmul.f32 %v1595, %v1611
    %v1627 = vmul.f32 %v1600, %v1611
    %v1628 = vmul.f32 %v1605, %v1611
    %v1629 = vadd.f32 %v1493, %v1613
    %v1630 = vadd.f32 %v1494, %v1614
    %v1631 = vadd.f32 %v1495, %v1615
    %v1632 = vadd.f32 %v1496, %v1616
    %v1633 = vadd.f32 %v1497, %v1617
    %v1634 = vadd.f32 %v1498, %v1618
    %v1635 = vadd.f32 %v1499, %v1619
    %v1636 = vadd.f32 %v1500, %v1620
    %v1637 = vadd.f32 %v1501, %v1621
    %v1638 = vadd.f32 %v1502, %v1622
    %v1639 = vadd.f32 %v1503, %v1623
    %v1640 = vadd.f32 %v1504, %v1624
    %v1641 = vadd.f32 %v1505, %v1625
    %v1642 = vadd.f32 %v1506, %v1626
    %v1643 = vadd.f32 %v1507, %v1627
    %v1644 = vadd.f32 %v1508, %v1628
    %v1645 = vld [vmem:[#allocation2 + $0xc] sm:$0xff]
    %v1646 = vld [vmem:[#allocation2 + $0x14] sm:$0xff]
    %v1647 = vld [vmem:[#allocation2 + $0x1c] sm:$0xff]
    %v1648 = vld [vmem:[#allocation2 + $0x24] sm:$0xff]
    %v1649 = vld [vmem:[#allocation2 + $0x2c] sm:$0xff]
    %v1650 = vld [vmem:[#allocation2 + $0x34] sm:$0xff]
    %v1651 = vld [vmem:[#allocation2 + $0x3c] sm:$0xff]
    %v1652 = vld [vmem:[#allocation2 + $0x44] sm:$0xff]
    %v1653 = vld [vmem:[#allocation2 + $0x5c] sm:$0xff]
    %v1654 = vld [vmem:[#allocation2 + $0x64] sm:$0xff]
    %v1655 = vld [vmem:[#allocation2 + $0x6c] sm:$0xff]
    %v1656 = vld [vmem:[#allocation2 + $0x74] sm:$0xff]
    %v1657 = vld [vmem:[#allocation2 + $0x7c] sm:$0xff]
    %v1658 = vld [vmem:[#allocation2 + $0x84] sm:$0xff]
    %v1659 = vld [vmem:[#allocation2 + $0x8c] sm:$0xff]
    %v1660 = vld [vmem:[#allocation2 + $0x94] sm:$0xff]
    %s1661 = scalar_lea.vmem %s1, 11
    %v1662 = vld [vmem:[%s1661] sm:$0x1]
    %1664 = vset.pattern.permute.xlu0 0
    %1665 = vperm.xlu0 %1664, %v1645
    %v1666 = vpop.permute.xlu0 %1665
    %1669 = vset.pattern.permute.xlu0 0
    %1670 = vperm.xlu0 %1669, %v1646
    %v1671 = vpop.permute.xlu0 %1670
    %1674 = vset.pattern.permute.xlu0 0
    %1675 = vperm.xlu0 %1674, %v1647
    %v1676 = vpop.permute.xlu0 %1675
    %1679 = vset.pattern.permute.xlu0 0
    %1680 = vperm.xlu0 %1679, %v1648
    %v1681 = vpop.permute.xlu0 %1680
    %1684 = vset.pattern.permute.xlu0 0
    %1685 = vperm.xlu0 %1684, %v1649
    %v1686 = vpop.permute.xlu0 %1685
    %1689 = vset.pattern.permute.xlu0 0
    %1690 = vperm.xlu0 %1689, %v1650
    %v1691 = vpop.permute.xlu0 %1690
    %1694 = vset.pattern.permute.xlu0 0
    %1695 = vperm.xlu0 %1694, %v1651
    %v1696 = vpop.permute.xlu0 %1695
    %1699 = vset.pattern.permute.xlu0 0
    %1700 = vperm.xlu0 %1699, %v1652
    %v1701 = vpop.permute.xlu0 %1700
    %1704 = vset.pattern.permute.xlu0 0
    %1705 = vperm.xlu0 %1704, %v1653
    %v1706 = vpop.permute.xlu0 %1705
    %1709 = vset.pattern.permute.xlu0 0
    %1710 = vperm.xlu0 %1709, %v1654
    %v1711 = vpop.permute.xlu0 %1710
    %1714 = vset.pattern.permute.xlu0 0
    %1715 = vperm.xlu0 %1714, %v1655
    %v1716 = vpop.permute.xlu0 %1715
    %1719 = vset.pattern.permute.xlu0 0
    %1720 = vperm.xlu0 %1719, %v1656
    %v1721 = vpop.permute.xlu0 %1720
    %1724 = vset.pattern.permute.xlu0 0
    %1725 = vperm.xlu0 %1724, %v1657
    %v1726 = vpop.permute.xlu0 %1725
    %1729 = vset.pattern.permute.xlu0 0
    %1730 = vperm.xlu0 %1729, %v1658
    %v1731 = vpop.permute.xlu0 %1730
    %1734 = vset.pattern.permute.xlu0 0
    %1735 = vperm.xlu0 %1734, %v1659
    %v1736 = vpop.permute.xlu0 %1735
    %1739 = vset.pattern.permute.xlu0 0
    %1740 = vperm.xlu0 %1739, %v1660
    %v1741 = vpop.permute.xlu0 %1740
    %v1744 = vlaneseq
    %v1745 = vshrl.u32 %v1744, 7
    %v1746 = vsub.s32 0, %v1745
    %v1747 = vrot.slane %v1662, %v1746
    %v1749 = vmul.f32 %v1666, %v1747
    %v1750 = vmul.f32 %v1671, %v1747
    %v1751 = vmul.f32 %v1676, %v1747
    %v1752 = vmul.f32 %v1681, %v1747
    %v1753 = vmul.f32 %v1686, %v1747
    %v1754 = vmul.f32 %v1691, %v1747
    %v1755 = vmul.f32 %v1696, %v1747
    %v1756 = vmul.f32 %v1701, %v1747
    %v1757 = vmul.f32 %v1706, %v1747
    %v1758 = vmul.f32 %v1711, %v1747
    %v1759 = vmul.f32 %v1716, %v1747
    %v1760 = vmul.f32 %v1721, %v1747
    %v1761 = vmul.f32 %v1726, %v1747
    %v1762 = vmul.f32 %v1731, %v1747
    %v1763 = vmul.f32 %v1736, %v1747
    %v1764 = vmul.f32 %v1741, %v1747
    %v1765 = vadd.f32 %v1629, %v1749
    %v1766 = vadd.f32 %v1630, %v1750
    %v1767 = vadd.f32 %v1631, %v1751
    %v1768 = vadd.f32 %v1632, %v1752
    %v1769 = vadd.f32 %v1633, %v1753
    %v1770 = vadd.f32 %v1634, %v1754
    %v1771 = vadd.f32 %v1635, %v1755
    %v1772 = vadd.f32 %v1636, %v1756
    %v1773 = vadd.f32 %v1637, %v1757
    %v1774 = vadd.f32 %v1638, %v1758
    %v1775 = vadd.f32 %v1639, %v1759
    %v1776 = vadd.f32 %v1640, %v1760
    %v1777 = vadd.f32 %v1641, %v1761
    %v1778 = vadd.f32 %v1642, %v1762
    %v1779 = vadd.f32 %v1643, %v1763
    %v1780 = vadd.f32 %v1644, %v1764
    %v1781 = vld [vmem:[#allocation2 + $0xd] sm:$0xff]
    %v1782 = vld [vmem:[#allocation2 + $0x15] sm:$0xff]
    %v1783 = vld [vmem:[#allocation2 + $0x1d] sm:$0xff]
    %v1784 = vld [vmem:[#allocation2 + $0x25] sm:$0xff]
    %v1785 = vld [vmem:[#allocation2 + $0x2d] sm:$0xff]
    %v1786 = vld [vmem:[#allocation2 + $0x35] sm:$0xff]
    %v1787 = vld [vmem:[#allocation2 + $0x3d] sm:$0xff]
    %v1788 = vld [vmem:[#allocation2 + $0x45] sm:$0xff]
    %v1789 = vld [vmem:[#allocation2 + $0x5d] sm:$0xff]
    %v1790 = vld [vmem:[#allocation2 + $0x65] sm:$0xff]
    %v1791 = vld [vmem:[#allocation2 + $0x6d] sm:$0xff]
    %v1792 = vld [vmem:[#allocation2 + $0x75] sm:$0xff]
    %v1793 = vld [vmem:[#allocation2 + $0x7d] sm:$0xff]
    %v1794 = vld [vmem:[#allocation2 + $0x85] sm:$0xff]
    %v1795 = vld [vmem:[#allocation2 + $0x8d] sm:$0xff]
    %v1796 = vld [vmem:[#allocation2 + $0x95] sm:$0xff]
    %s1797 = scalar_lea.vmem %s1, 12
    %v1798 = vld [vmem:[%s1797] sm:$0x1]
    %1800 = vset.pattern.permute.xlu0 0
    %1801 = vperm.xlu0 %1800, %v1781
    %v1802 = vpop.permute.xlu0 %1801
    %1805 = vset.pattern.permute.xlu0 0
    %1806 = vperm.xlu0 %1805, %v1782
    %v1807 = vpop.permute.xlu0 %1806
    %1810 = vset.pattern.permute.xlu0 0
    %1811 = vperm.xlu0 %1810, %v1783
    %v1812 = vpop.permute.xlu0 %1811
    %1815 = vset.pattern.permute.xlu0 0
    %1816 = vperm.xlu0 %1815, %v1784
    %v1817 = vpop.permute.xlu0 %1816
    %1820 = vset.pattern.permute.xlu0 0
    %1821 = vperm.xlu0 %1820, %v1785
    %v1822 = vpop.permute.xlu0 %1821
    %1825 = vset.pattern.permute.xlu0 0
    %1826 = vperm.xlu0 %1825, %v1786
    %v1827 = vpop.permute.xlu0 %1826
    %1830 = vset.pattern.permute.xlu0 0
    %1831 = vperm.xlu0 %1830, %v1787
    %v1832 = vpop.permute.xlu0 %1831
    %1835 = vset.pattern.permute.xlu0 0
    %1836 = vperm.xlu0 %1835, %v1788
    %v1837 = vpop.permute.xlu0 %1836
    %1840 = vset.pattern.permute.xlu0 0
    %1841 = vperm.xlu0 %1840, %v1789
    %v1842 = vpop.permute.xlu0 %1841
    %1845 = vset.pattern.permute.xlu0 0
    %1846 = vperm.xlu0 %1845, %v1790
    %v1847 = vpop.permute.xlu0 %1846
    %1850 = vset.pattern.permute.xlu0 0
    %1851 = vperm.xlu0 %1850, %v1791
    %v1852 = vpop.permute.xlu0 %1851
    %1855 = vset.pattern.permute.xlu0 0
    %1856 = vperm.xlu0 %1855, %v1792
    %v1857 = vpop.permute.xlu0 %1856
    %1860 = vset.pattern.permute.xlu0 0
    %1861 = vperm.xlu0 %1860, %v1793
    %v1862 = vpop.permute.xlu0 %1861
    %1865 = vset.pattern.permute.xlu0 0
    %1866 = vperm.xlu0 %1865, %v1794
    %v1867 = vpop.permute.xlu0 %1866
    %1870 = vset.pattern.permute.xlu0 0
    %1871 = vperm.xlu0 %1870, %v1795
    %v1872 = vpop.permute.xlu0 %1871
    %1875 = vset.pattern.permute.xlu0 0
    %1876 = vperm.xlu0 %1875, %v1796
    %v1877 = vpop.permute.xlu0 %1876
    %v1880 = vlaneseq
    %v1881 = vshrl.u32 %v1880, 7
    %v1882 = vsub.s32 0, %v1881
    %v1883 = vrot.slane %v1798, %v1882
    %v1885 = vmul.f32 %v1802, %v1883
    %v1886 = vmul.f32 %v1807, %v1883
    %v1887 = vmul.f32 %v1812, %v1883
    %v1888 = vmul.f32 %v1817, %v1883
    %v1889 = vmul.f32 %v1822, %v1883
    %v1890 = vmul.f32 %v1827, %v1883
    %v1891 = vmul.f32 %v1832, %v1883
    %v1892 = vmul.f32 %v1837, %v1883
    %v1893 = vmul.f32 %v1842, %v1883
    %v1894 = vmul.f32 %v1847, %v1883
    %v1895 = vmul.f32 %v1852, %v1883
    %v1896 = vmul.f32 %v1857, %v1883
    %v1897 = vmul.f32 %v1862, %v1883
    %v1898 = vmul.f32 %v1867, %v1883
    %v1899 = vmul.f32 %v1872, %v1883
    %v1900 = vmul.f32 %v1877, %v1883
    %v1901 = vadd.f32 %v1765, %v1885
    %v1902 = vadd.f32 %v1766, %v1886
    %v1903 = vadd.f32 %v1767, %v1887
    %v1904 = vadd.f32 %v1768, %v1888
    %v1905 = vadd.f32 %v1769, %v1889
    %v1906 = vadd.f32 %v1770, %v1890
    %v1907 = vadd.f32 %v1771, %v1891
    %v1908 = vadd.f32 %v1772, %v1892
    %v1909 = vadd.f32 %v1773, %v1893
    %v1910 = vadd.f32 %v1774, %v1894
    %v1911 = vadd.f32 %v1775, %v1895
    %v1912 = vadd.f32 %v1776, %v1896
    %v1913 = vadd.f32 %v1777, %v1897
    %v1914 = vadd.f32 %v1778, %v1898
    %v1915 = vadd.f32 %v1779, %v1899
    %v1916 = vadd.f32 %v1780, %v1900
    %v1917 = vld [vmem:[#allocation2 + $0xe] sm:$0xff]
    %v1918 = vld [vmem:[#allocation2 + $0x16] sm:$0xff]
    %v1919 = vld [vmem:[#allocation2 + $0x1e] sm:$0xff]
    %v1920 = vld [vmem:[#allocation2 + $0x26] sm:$0xff]
    %v1921 = vld [vmem:[#allocation2 + $0x2e] sm:$0xff]
    %v1922 = vld [vmem:[#allocation2 + $0x36] sm:$0xff]
    %v1923 = vld [vmem:[#allocation2 + $0x3e] sm:$0xff]
    %v1924 = vld [vmem:[#allocation2 + $0x46] sm:$0xff]
    %v1925 = vld [vmem:[#allocation2 + $0x5e] sm:$0xff]
    %v1926 = vld [vmem:[#allocation2 + $0x66] sm:$0xff]
    %v1927 = vld [vmem:[#allocation2 + $0x6e] sm:$0xff]
    %v1928 = vld [vmem:[#allocation2 + $0x76] sm:$0xff]
    %v1929 = vld [vmem:[#allocation2 + $0x7e] sm:$0xff]
    %v1930 = vld [vmem:[#allocation2 + $0x86] sm:$0xff]
    %v1931 = vld [vmem:[#allocation2 + $0x8e] sm:$0xff]
    %v1932 = vld [vmem:[#allocation2 + $0x96] sm:$0xff]
    %s1933 = scalar_lea.vmem %s1, 13
    %v1934 = vld [vmem:[%s1933] sm:$0x1]
    %1936 = vset.pattern.permute.xlu0 0
    %1937 = vperm.xlu0 %1936, %v1917
    %v1938 = vpop.permute.xlu0 %1937
    %1941 = vset.pattern.permute.xlu0 0
    %1942 = vperm.xlu0 %1941, %v1918
    %v1943 = vpop.permute.xlu0 %1942
    %1946 = vset.pattern.permute.xlu0 0
    %1947 = vperm.xlu0 %1946, %v1919
    %v1948 = vpop.permute.xlu0 %1947
    %1951 = vset.pattern.permute.xlu0 0
    %1952 = vperm.xlu0 %1951, %v1920
    %v1953 = vpop.permute.xlu0 %1952
    %1956 = vset.pattern.permute.xlu0 0
    %1957 = vperm.xlu0 %1956, %v1921
    %v1958 = vpop.permute.xlu0 %1957
    %1961 = vset.pattern.permute.xlu0 0
    %1962 = vperm.xlu0 %1961, %v1922
    %v1963 = vpop.permute.xlu0 %1962
    %1966 = vset.pattern.permute.xlu0 0
    %1967 = vperm.xlu0 %1966, %v1923
    %v1968 = vpop.permute.xlu0 %1967
    %1971 = vset.pattern.permute.xlu0 0
    %1972 = vperm.xlu0 %1971, %v1924
    %v1973 = vpop.permute.xlu0 %1972
    %1976 = vset.pattern.permute.xlu0 0
    %1977 = vperm.xlu0 %1976, %v1925
    %v1978 = vpop.permute.xlu0 %1977
    %1981 = vset.pattern.permute.xlu0 0
    %1982 = vperm.xlu0 %1981, %v1926
    %v1983 = vpop.permute.xlu0 %1982
    %1986 = vset.pattern.permute.xlu0 0
    %1987 = vperm.xlu0 %1986, %v1927
    %v1988 = vpop.permute.xlu0 %1987
    %1991 = vset.pattern.permute.xlu0 0
    %1992 = vperm.xlu0 %1991, %v1928
    %v1993 = vpop.permute.xlu0 %1992
    %1996 = vset.pattern.permute.xlu0 0
    %1997 = vperm.xlu0 %1996, %v1929
    %v1998 = vpop.permute.xlu0 %1997
    %2001 = vset.pattern.permute.xlu0 0
    %2002 = vperm.xlu0 %2001, %v1930
    %v2003 = vpop.permute.xlu0 %2002
    %2006 = vset.pattern.permute.xlu0 0
    %2007 = vperm.xlu0 %2006, %v1931
    %v2008 = vpop.permute.xlu0 %2007
    %2011 = vset.pattern.permute.xlu0 0
    %2012 = vperm.xlu0 %2011, %v1932
    %v2013 = vpop.permute.xlu0 %2012
    %v2016 = vlaneseq
    %v2017 = vshrl.u32 %v2016, 7
    %v2018 = vsub.s32 0, %v2017
    %v2019 = vrot.slane %v1934, %v2018
    %v2021 = vmul.f32 %v1938, %v2019
    %v2022 = vmul.f32 %v1943, %v2019
    %v2023 = vmul.f32 %v1948, %v2019
    %v2024 = vmul.f32 %v1953, %v2019
    %v2025 = vmul.f32 %v1958, %v2019
    %v2026 = vmul.f32 %v1963, %v2019
    %v2027 = vmul.f32 %v1968, %v2019
    %v2028 = vmul.f32 %v1973, %v2019
    %v2029 = vmul.f32 %v1978, %v2019
    %v2030 = vmul.f32 %v1983, %v2019
    %v2031 = vmul.f32 %v1988, %v2019
    %v2032 = vmul.f32 %v1993, %v2019
    %v2033 = vmul.f32 %v1998, %v2019
    %v2034 = vmul.f32 %v2003, %v2019
    %v2035 = vmul.f32 %v2008, %v2019
    %v2036 = vmul.f32 %v2013, %v2019
    %v2037 = vadd.f32 %v1901, %v2021
    %v2038 = vadd.f32 %v1902, %v2022
    %v2039 = vadd.f32 %v1903, %v2023
    %v2040 = vadd.f32 %v1904, %v2024
    %v2041 = vadd.f32 %v1905, %v2025
    %v2042 = vadd.f32 %v1906, %v2026
    %v2043 = vadd.f32 %v1907, %v2027
    %v2044 = vadd.f32 %v1908, %v2028
    %v2045 = vadd.f32 %v1909, %v2029
    %v2046 = vadd.f32 %v1910, %v2030
    %v2047 = vadd.f32 %v1911, %v2031
    %v2048 = vadd.f32 %v1912, %v2032
    %v2049 = vadd.f32 %v1913, %v2033
    %v2050 = vadd.f32 %v1914, %v2034
    %v2051 = vadd.f32 %v1915, %v2035
    %v2052 = vadd.f32 %v1916, %v2036
    %v2053 = vld [vmem:[#allocation2 + $0xf] sm:$0xff]
    %v2054 = vld [vmem:[#allocation2 + $0x17] sm:$0xff]
    %v2055 = vld [vmem:[#allocation2 + $0x1f] sm:$0xff]
    %v2056 = vld [vmem:[#allocation2 + $0x27] sm:$0xff]
    %v2057 = vld [vmem:[#allocation2 + $0x2f] sm:$0xff]
    %v2058 = vld [vmem:[#allocation2 + $0x37] sm:$0xff]
    %v2059 = vld [vmem:[#allocation2 + $0x3f] sm:$0xff]
    %v2060 = vld [vmem:[#allocation2 + $0x47] sm:$0xff]
    %v2061 = vld [vmem:[#allocation2 + $0x5f] sm:$0xff]
    %v2062 = vld [vmem:[#allocation2 + $0x67] sm:$0xff]
    %v2063 = vld [vmem:[#allocation2 + $0x6f] sm:$0xff]
    %v2064 = vld [vmem:[#allocation2 + $0x77] sm:$0xff]
    %v2065 = vld [vmem:[#allocation2 + $0x7f] sm:$0xff]
    %v2066 = vld [vmem:[#allocation2 + $0x87] sm:$0xff]
    %v2067 = vld [vmem:[#allocation2 + $0x8f] sm:$0xff]
    %v2068 = vld [vmem:[#allocation2 + $0x97] sm:$0xff]
    %s2069 = scalar_lea.vmem %s1, 14
    %v2070 = vld [vmem:[%s2069] sm:$0x1]
    %2072 = vset.pattern.permute.xlu0 0
    %2073 = vperm.xlu0 %2072, %v2053
    %v2074 = vpop.permute.xlu0 %2073
    %2077 = vset.pattern.permute.xlu0 0
    %2078 = vperm.xlu0 %2077, %v2054
    %v2079 = vpop.permute.xlu0 %2078
    %2082 = vset.pattern.permute.xlu0 0
    %2083 = vperm.xlu0 %2082, %v2055
    %v2084 = vpop.permute.xlu0 %2083
    %2087 = vset.pattern.permute.xlu0 0
    %2088 = vperm.xlu0 %2087, %v2056
    %v2089 = vpop.permute.xlu0 %2088
    %2092 = vset.pattern.permute.xlu0 0
    %2093 = vperm.xlu0 %2092, %v2057
    %v2094 = vpop.permute.xlu0 %2093
    %2097 = vset.pattern.permute.xlu0 0
    %2098 = vperm.xlu0 %2097, %v2058
    %v2099 = vpop.permute.xlu0 %2098
    %2102 = vset.pattern.permute.xlu0 0
    %2103 = vperm.xlu0 %2102, %v2059
    %v2104 = vpop.permute.xlu0 %2103
    %2107 = vset.pattern.permute.xlu0 0
    %2108 = vperm.xlu0 %2107, %v2060
    %v2109 = vpop.permute.xlu0 %2108
    %2112 = vset.pattern.permute.xlu0 0
    %2113 = vperm.xlu0 %2112, %v2061
    %v2114 = vpop.permute.xlu0 %2113
    %2117 = vset.pattern.permute.xlu0 0
    %2118 = vperm.xlu0 %2117, %v2062
    %v2119 = vpop.permute.xlu0 %2118
    %2122 = vset.pattern.permute.xlu0 0
    %2123 = vperm.xlu0 %2122, %v2063
    %v2124 = vpop.permute.xlu0 %2123
    %2127 = vset.pattern.permute.xlu0 0
    %2128 = vperm.xlu0 %2127, %v2064
    %v2129 = vpop.permute.xlu0 %2128
    %2132 = vset.pattern.permute.xlu0 0
    %2133 = vperm.xlu0 %2132, %v2065
    %v2134 = vpop.permute.xlu0 %2133
    %2137 = vset.pattern.permute.xlu0 0
    %2138 = vperm.xlu0 %2137, %v2066
    %v2139 = vpop.permute.xlu0 %2138
    %2142 = vset.pattern.permute.xlu0 0
    %2143 = vperm.xlu0 %2142, %v2067
    %v2144 = vpop.permute.xlu0 %2143
    %2147 = vset.pattern.permute.xlu0 0
    %2148 = vperm.xlu0 %2147, %v2068
    %v2149 = vpop.permute.xlu0 %2148
    %v2152 = vlaneseq
    %v2153 = vshrl.u32 %v2152, 7
    %v2154 = vsub.s32 0, %v2153
    %v2155 = vrot.slane %v2070, %v2154
    %v2157 = vmul.f32 %v2074, %v2155
    %v2158 = vmul.f32 %v2079, %v2155
    %v2159 = vmul.f32 %v2084, %v2155
    %v2160 = vmul.f32 %v2089, %v2155
    %v2161 = vmul.f32 %v2094, %v2155
    %v2162 = vmul.f32 %v2099, %v2155
    %v2163 = vmul.f32 %v2104, %v2155
    %v2164 = vmul.f32 %v2109, %v2155
    %v2165 = vmul.f32 %v2114, %v2155
    %v2166 = vmul.f32 %v2119, %v2155
    %v2167 = vmul.f32 %v2124, %v2155
    %v2168 = vmul.f32 %v2129, %v2155
    %v2169 = vmul.f32 %v2134, %v2155
    %v2170 = vmul.f32 %v2139, %v2155
    %v2171 = vmul.f32 %v2144, %v2155
    %v2172 = vmul.f32 %v2149, %v2155
    %v2173 = vadd.f32 %v2037, %v2157
    %v2174 = vadd.f32 %v2038, %v2158
    %v2175 = vadd.f32 %v2039, %v2159
    %v2176 = vadd.f32 %v2040, %v2160
    %v2177 = vadd.f32 %v2041, %v2161
    %v2178 = vadd.f32 %v2042, %v2162
    %v2179 = vadd.f32 %v2043, %v2163
    %v2180 = vadd.f32 %v2044, %v2164
    %v2181 = vadd.f32 %v2045, %v2165
    %v2182 = vadd.f32 %v2046, %v2166
    %v2183 = vadd.f32 %v2047, %v2167
    %v2184 = vadd.f32 %v2048, %v2168
    %v2185 = vadd.f32 %v2049, %v2169
    %v2186 = vadd.f32 %v2050, %v2170
    %v2187 = vadd.f32 %v2051, %v2171
    %v2188 = vadd.f32 %v2052, %v2172
    %v2189 = vld [vmem:[%s2] sm:$0x1]
    %v2191 = vlaneseq
    %v2192 = vshrl.u32 %v2191, 7
    %v2193 = vsub.s32 0, %v2192
    %v2194 = vrot.slane %v2189, %v2193
    %v2196 = vadd.f32 %v2173, %v2194
    %v2197 = vadd.f32 %v2174, %v2194
    %v2198 = vadd.f32 %v2175, %v2194
    %v2199 = vadd.f32 %v2176, %v2194
    %v2200 = vadd.f32 %v2177, %v2194
    %v2201 = vadd.f32 %v2178, %v2194
    %v2202 = vadd.f32 %v2179, %v2194
    %v2203 = vadd.f32 %v2180, %v2194
    %v2204 = vadd.f32 %v2181, %v2194
    %v2205 = vadd.f32 %v2182, %v2194
    %v2206 = vadd.f32 %v2183, %v2194
    %v2207 = vadd.f32 %v2184, %v2194
    %v2208 = vadd.f32 %v2185, %v2194
    %v2209 = vadd.f32 %v2186, %v2194
    %v2210 = vadd.f32 %v2187, %v2194
    %v2211 = vadd.f32 %v2188, %v2194
    %vm2212 = vcmp.gt.f32.partialorder %v2196, 0.0
    %vm2213 = vcmp.gt.f32.partialorder %v2197, 0.0
    %vm2214 = vcmp.gt.f32.partialorder %v2198, 0.0
    %vm2215 = vcmp.gt.f32.partialorder %v2199, 0.0
    %vm2216 = vcmp.gt.f32.partialorder %v2200, 0.0
    %vm2217 = vcmp.gt.f32.partialorder %v2201, 0.0
    %vm2218 = vcmp.gt.f32.partialorder %v2202, 0.0
    %vm2219 = vcmp.gt.f32.partialorder %v2203, 0.0
    %vm2220 = vcmp.gt.f32.partialorder %v2204, 0.0
    %vm2221 = vcmp.gt.f32.partialorder %v2205, 0.0
    %vm2222 = vcmp.gt.f32.partialorder %v2206, 0.0
    %vm2223 = vcmp.gt.f32.partialorder %v2207, 0.0
    %vm2224 = vcmp.gt.f32.partialorder %v2208, 0.0
    %vm2225 = vcmp.gt.f32.partialorder %v2209, 0.0
    %vm2226 = vcmp.gt.f32.partialorder %v2210, 0.0
    %vm2227 = vcmp.gt.f32.partialorder %v2211, 0.0
    %v2228 = vmul.f32 %v2196, 0.01
    %v2229 = vmul.f32 %v2197, 0.01
    %v2230 = vmul.f32 %v2198, 0.01
    %v2231 = vmul.f32 %v2199, 0.01
    %v2232 = vmul.f32 %v2200, 0.01
    %v2233 = vmul.f32 %v2201, 0.01
    %v2234 = vmul.f32 %v2202, 0.01
    %v2235 = vmul.f32 %v2203, 0.01
    %v2236 = vmul.f32 %v2204, 0.01
    %v2237 = vmul.f32 %v2205, 0.01
    %v2238 = vmul.f32 %v2206, 0.01
    %v2239 = vmul.f32 %v2207, 0.01
    %v2240 = vmul.f32 %v2208, 0.01
    %v2241 = vmul.f32 %v2209, 0.01
    %v2242 = vmul.f32 %v2210, 0.01
    %v2243 = vmul.f32 %v2211, 0.01
    %v2244 = vsel %vm2212, %v2196, %v2228
    %v2245 = vsel %vm2213, %v2197, %v2229
    %v2246 = vsel %vm2214, %v2198, %v2230
    %v2247 = vsel %vm2215, %v2199, %v2231
    %v2248 = vsel %vm2216, %v2200, %v2232
    %v2249 = vsel %vm2217, %v2201, %v2233
    %v2250 = vsel %vm2218, %v2202, %v2234
    %v2251 = vsel %vm2219, %v2203, %v2235
    %v2252 = vsel %vm2220, %v2204, %v2236
    %v2253 = vsel %vm2221, %v2205, %v2237
    %v2254 = vsel %vm2222, %v2206, %v2238
    %v2255 = vsel %vm2223, %v2207, %v2239
    %v2256 = vsel %vm2224, %v2208, %v2240
    %v2257 = vsel %vm2225, %v2209, %v2241
    %v2258 = vsel %vm2226, %v2210, %v2242
    %v2259 = vsel %vm2227, %v2211, %v2243
    %v2260 = vlaneseq
    %v2261 = vshrl.u32 %v2260, 7
    %v2262 = vadd.s32 %v2261, 8
    %v2263 = vadd.s32 %v2261, 16
    %v2264 = vadd.s32 %v2261, 24
    %v2265 = vadd.s32 %v2261, 32
    %v2266 = vadd.s32 %v2261, 40
    %v2267 = vadd.s32 %v2261, 48
    %v2268 = vadd.s32 %v2261, 56
    %v2269 = vlaneseq
    %v2270 = vand.u32 %v2269, 127
    %v2271 = vmul.u32 %v2261, 2
    %v2272 = vmul.u32 %v2262, 2
    %v2273 = vmul.u32 %v2263, 2
    %v2274 = vmul.u32 %v2264, 2
    %v2275 = vmul.u32 %v2265, 2
    %v2276 = vmul.u32 %v2266, 2
    %v2277 = vmul.u32 %v2267, 2
    %v2278 = vmul.u32 %v2268, 2
    %vm2279 = vcmp.eq.s32.totalorder %v2270, %v2271
    %vm2280 = vcmp.eq.s32.totalorder %v2270, %v2272
    %vm2281 = vcmp.eq.s32.totalorder %v2270, %v2273
    %vm2282 = vcmp.eq.s32.totalorder %v2270, %v2274
    %vm2283 = vcmp.eq.s32.totalorder %v2270, %v2275
    %vm2284 = vcmp.eq.s32.totalorder %v2270, %v2276
    %vm2285 = vcmp.eq.s32.totalorder %v2270, %v2277
    %vm2286 = vcmp.eq.s32.totalorder %v2270, %v2278
    %v2287 = vsel %vm2279, 1, 0
    %v2288 = vsel %vm2280, 1, 0
    %v2289 = vsel %vm2281, 1, 0
    %v2290 = vsel %vm2282, 1, 0
    %v2291 = vsel %vm2283, 1, 0
    %v2292 = vsel %vm2284, 1, 0
    %v2293 = vsel %vm2285, 1, 0
    %v2294 = vsel %vm2286, 1, 0
    %v2295 = vcvt.s32.f32 %v2287
    %v2296 = vcvt.s32.f32 %v2288
    %v2297 = vcvt.s32.f32 %v2289
    %v2298 = vcvt.s32.f32 %v2290
    %v2299 = vcvt.s32.f32 %v2291
    %v2300 = vcvt.s32.f32 %v2292
    %v2301 = vcvt.s32.f32 %v2293
    %v2302 = vcvt.s32.f32 %v2294
    %v2303 = vadd.s32 %v2271, 1
    %v2304 = vadd.s32 %v2272, 1
    %v2305 = vadd.s32 %v2273, 1
    %v2306 = vadd.s32 %v2274, 1
    %v2307 = vadd.s32 %v2275, 1
    %v2308 = vadd.s32 %v2276, 1
    %v2309 = vadd.s32 %v2277, 1
    %v2310 = vadd.s32 %v2278, 1
    %vm2311 = vcmp.eq.s32.totalorder %v2270, %v2303
    %vm2312 = vcmp.eq.s32.totalorder %v2270, %v2304
    %vm2313 = vcmp.eq.s32.totalorder %v2270, %v2305
    %vm2314 = vcmp.eq.s32.totalorder %v2270, %v2306
    %vm2315 = vcmp.eq.s32.totalorder %v2270, %v2307
    %vm2316 = vcmp.eq.s32.totalorder %v2270, %v2308
    %vm2317 = vcmp.eq.s32.totalorder %v2270, %v2309
    %vm2318 = vcmp.eq.s32.totalorder %v2270, %v2310
    %v2319 = vsel %vm2311, 1, 0
    %v2320 = vsel %vm2312, 1, 0
    %v2321 = vsel %vm2313, 1, 0
    %v2322 = vsel %vm2314, 1, 0
    %v2323 = vsel %vm2315, 1, 0
    %v2324 = vsel %vm2316, 1, 0
    %v2325 = vsel %vm2317, 1, 0
    %v2326 = vsel %vm2318, 1, 0
    %v2327 = vcvt.s32.f32 %v2319
    %v2328 = vcvt.s32.f32 %v2320
    %v2329 = vcvt.s32.f32 %v2321
    %v2330 = vcvt.s32.f32 %v2322
    %v2331 = vcvt.s32.f32 %v2323
    %v2332 = vcvt.s32.f32 %v2324
    %v2333 = vcvt.s32.f32 %v2325
    %v2334 = vcvt.s32.f32 %v2326
    %2335 = vmatprep.subr.mxu0 0.0
    %2336 = vmatpush1.msra.mxu0 %v2244
    %2337 = vmatprep.subr.mxu0 0.0
    %2338 = vmatpush1.msra.mxu0 %v2245
    %2339 = vmatprep.subr.mxu0 0.0
    %2340 = vmatpush1.msra.mxu0 %v2246
    %2341 = vmatprep.subr.mxu0 0.0
    %2342 = vmatpush1.msra.mxu0 %v2247
    %2343 = vmatprep.subr.mxu0 0.0
    %2344 = vmatpush1.msra.mxu0 %v2248
    %2345 = vmatprep.subr.mxu0 0.0
    %2346 = vmatpush1.msra.mxu0 %v2249
    %2347 = vmatprep.subr.mxu0 0.0
    %2348 = vmatpush1.msra.mxu0 %v2250
    %2349 = vmatprep.subr.mxu0 0.0
    %2350 = vmatpush1.msra.mxu0 %v2251
    %2351 = vmatprep.subr.mxu0 0.0
    %2352 = vmatpush1.msra.mxu0 %v2252
    %2353 = vmatprep.subr.mxu0 0.0
    %2354 = vmatpush1.msra.mxu0 %v2253
    %2355 = vmatprep.subr.mxu0 0.0
    %2356 = vmatpush1.msra.mxu0 %v2254
    %2357 = vmatprep.subr.mxu0 0.0
    %2358 = vmatpush1.msra.mxu0 %v2255
    %2359 = vmatprep.subr.mxu0 0.0
    %2360 = vmatpush1.msra.mxu0 %v2256
    %2361 = vmatprep.subr.mxu0 0.0
    %2362 = vmatpush1.msra.mxu0 %v2257
    %2363 = vmatprep.subr.mxu0 0.0
    %2364 = vmatpush1.msra.mxu0 %v2258
    %2365 = vmatprep.subr.mxu0 0.0
    %2366 = vmatpush1.msra.mxu0 %v2259
    %2367 = vmatprep.subr.mxu0 0.0
    %2368 = vmatpush1.msra.mxu0 0.0
    %2369 = vmatprep.subr.mxu0 0.0
    %2370 = vmatpush1.msra.mxu0 0.0
    %2371 = vmatprep.subr.mxu0 0.0
    %2372 = vmatpush1.msra.mxu0 0.0
    %2373 = vmatprep.subr.mxu0 0.0
    %2374 = vmatpush1.msra.mxu0 0.0
    %2375 = vmatprep.subr.mxu0 0.0
    %2376 = vmatpush1.msra.mxu0 0.0
    %2377 = vmatprep.subr.mxu0 0.0
    %2378 = vmatpush1.msra.mxu0 0.0
    %2379 = vmatprep.subr.mxu0 0.0
    %2380 = vmatpush1.msra.mxu0 0.0
    %2381 = vmatprep.subr.mxu0 0.0
    %2382 = vmatpush1.msra.mxu0 0.0
    %2383 = vmatprep.subr.mxu0 0.0
    %2384 = vmatpush1.msra.mxu0 0.0
    %2385 = vmatprep.subr.mxu0 0.0
    %2386 = vmatpush1.msra.mxu0 0.0
    %2387 = vmatprep.subr.mxu0 0.0
    %2388 = vmatpush1.msra.mxu0 0.0
    %2389 = vmatprep.subr.mxu0 0.0
    %2390 = vmatpush1.msra.mxu0 0.0
    %2391 = vmatprep.subr.mxu0 0.0
    %2392 = vmatpush1.msra.mxu0 0.0
    %2393 = vmatprep.subr.mxu0 0.0
    %2394 = vmatpush1.msra.mxu0 0.0
    %2395 = vmatprep.subr.mxu0 0.0
    %2396 = vmatpush1.msra.mxu0 0.0
    %2397 = vmatprep.subr.mxu0 0.0
    %2398 = vmatpush1.msra.mxu0 0.0
    %2399 = vmatprep.mubr.f32.mxu0 0.0
    %2400 = vmatmul.mubr.f32.gmra.mrb[0].mxu0 %v2295
    %v2401 = vpop.f32.mrb[0].mxu0
    %v2402 = vadd.f32 0.0, %v2401
    %v2403 = vpop.f32.mrb[0].mxu0
    %2404 = vmatprep.mubr.f32.mxu0 0.0
    %2405 = vmatmul.mubr.f32.gmra.mrb[0].mxu0 %v2296
    %v2406 = vpop.f32.mrb[0].mxu0
    %v2407 = vadd.f32 0.0, %v2406
    %v2408 = vpop.f32.mrb[0].mxu0
    %2409 = vmatprep.mubr.f32.mxu0 0.0
    %2410 = vmatmul.mubr.f32.gmra.mrb[0].mxu0 %v2297
    %v2411 = vpop.f32.mrb[0].mxu0
    %v2412 = vadd.f32 0.0, %v2411
    %v2413 = vpop.f32.mrb[0].mxu0
    %2414 = vmatprep.mubr.f32.mxu0 0.0
    %2415 = vmatmul.mubr.f32.gmra.mrb[0].mxu0 %v2298
    %v2416 = vpop.f32.mrb[0].mxu0
    %v2417 = vadd.f32 0.0, %v2416
    %v2418 = vpop.f32.mrb[0].mxu0
    %2419 = vmatprep.mubr.f32.mxu0 0.0
    %2420 = vmatmul.mubr.f32.gmra.mrb[0].mxu0 %v2299
    %v2421 = vpop.f32.mrb[0].mxu0
    %v2422 = vadd.f32 0.0, %v2421
    %v2423 = vpop.f32.mrb[0].mxu0
    %2424 = vmatprep.mubr.f32.mxu0 0.0
    %2425 = vmatmul.mubr.f32.gmra.mrb[0].mxu0 %v2300
    %v2426 = vpop.f32.mrb[0].mxu0
    %v2427 = vadd.f32 0.0, %v2426
    %v2428 = vpop.f32.mrb[0].mxu0
    %2429 = vmatprep.mubr.f32.mxu0 0.0
    %2430 = vmatmul.mubr.f32.gmra.mrb[0].mxu0 %v2301
    %v2431 = vpop.f32.mrb[0].mxu0
    %v2432 = vadd.f32 0.0, %v2431
    %v2433 = vpop.f32.mrb[0].mxu0
    %2434 = vmatprep.mubr.f32.mxu0 0.0
    %2435 = vmatmul.mubr.f32.gmra.mrb[0].mxu0 %v2302
    %v2436 = vpop.f32.mrb[0].mxu0
    %v2437 = vadd.f32 0.0, %v2436
    %v2438 = vpop.f32.mrb[0].mxu0
    %2439 = vdwg.mxu0
    %2440 = vmatprep.subr.mxu0 0.0
    %2441 = vmatpush1.msra.mxu0 %v2244
    %2442 = vmatprep.subr.mxu0 0.0
    %2443 = vmatpush1.msra.mxu0 %v2245
    %2444 = vmatprep.subr.mxu0 0.0
    %2445 = vmatpush1.msra.mxu0 %v2246
    %2446 = vmatprep.subr.mxu0 0.0
    %2447 = vmatpush1.msra.mxu0 %v2247
    %2448 = vmatprep.subr.mxu0 0.0
    %2449 = vmatpush1.msra.mxu0 %v2248
    %2450 = vmatprep.subr.mxu0 0.0
    %2451 = vmatpush1.msra.mxu0 %v2249
    %2452 = vmatprep.subr.mxu0 0.0
    %2453 = vmatpush1.msra.mxu0 %v2250
    %2454 = vmatprep.subr.mxu0 0.0
    %2455 = vmatpush1.msra.mxu0 %v2251
    %2456 = vmatprep.subr.mxu0 0.0
    %2457 = vmatpush1.msra.mxu0 %v2252
    %2458 = vmatprep.subr.mxu0 0.0
    %2459 = vmatpush1.msra.mxu0 %v2253
    %2460 = vmatprep.subr.mxu0 0.0
    %2461 = vmatpush1.msra.mxu0 %v2254
    %2462 = vmatprep.subr.mxu0 0.0
    %2463 = vmatpush1.msra.mxu0 %v2255
    %2464 = vmatprep.subr.mxu0 0.0
    %2465 = vmatpush1.msra.mxu0 %v2256
    %2466 = vmatprep.subr.mxu0 0.0
    %2467 = vmatpush1.msra.mxu0 %v2257
    %2468 = vmatprep.subr.mxu0 0.0
    %2469 = vmatpush1.msra.mxu0 %v2258
    %2470 = vmatprep.subr.mxu0 0.0
    %2471 = vmatpush1.msra.mxu0 %v2259
    %2472 = vmatprep.subr.mxu0 0.0
    %2473 = vmatpush1.msra.mxu0 0.0
    %2474 = vmatprep.subr.mxu0 0.0
    %2475 = vmatpush1.msra.mxu0 0.0
    %2476 = vmatprep.subr.mxu0 0.0
    %2477 = vmatpush1.msra.mxu0 0.0
    %2478 = vmatprep.subr.mxu0 0.0
    %2479 = vmatpush1.msra.mxu0 0.0
    %2480 = vmatprep.subr.mxu0 0.0
    %2481 = vmatpush1.msra.mxu0 0.0
    %2482 = vmatprep.subr.mxu0 0.0
    %2483 = vmatpush1.msra.mxu0 0.0
    %2484 = vmatprep.subr.mxu0 0.0
    %2485 = vmatpush1.msra.mxu0 0.0
    %2486 = vmatprep.subr.mxu0 0.0
    %2487 = vmatpush1.msra.mxu0 0.0
    %2488 = vmatprep.subr.mxu0 0.0
    %2489 = vmatpush1.msra.mxu0 0.0
    %2490 = vmatprep.subr.mxu0 0.0
    %2491 = vmatpush1.msra.mxu0 0.0
    %2492 = vmatprep.subr.mxu0 0.0
    %2493 = vmatpush1.msra.mxu0 0.0
    %2494 = vmatprep.subr.mxu0 0.0
    %2495 = vmatpush1.msra.mxu0 0.0
    %2496 = vmatprep.subr.mxu0 0.0
    %2497 = vmatpush1.msra.mxu0 0.0
    %2498 = vmatprep.subr.mxu0 0.0
    %2499 = vmatpush1.msra.mxu0 0.0
    %2500 = vmatprep.subr.mxu0 0.0
    %2501 = vmatpush1.msra.mxu0 0.0
    %2502 = vmatprep.subr.mxu0 0.0
    %2503 = vmatpush1.msra.mxu0 0.0
    %2504 = vmatprep.mubr.f32.mxu0 0.0
    %2505 = vmatmul.mubr.f32.gmra.mrb[0].mxu0 %v2327
    %v2506 = vpop.f32.mrb[0].mxu0
    %v2507 = vadd.f32 0.0, %v2506
    %v2508 = vpop.f32.mrb[0].mxu0
    %2509 = vmatprep.mubr.f32.mxu0 0.0
    %2510 = vmatmul.mubr.f32.gmra.mrb[0].mxu0 %v2328
    %v2511 = vpop.f32.mrb[0].mxu0
    %v2512 = vadd.f32 0.0, %v2511
    %v2513 = vpop.f32.mrb[0].mxu0
    %2514 = vmatprep.mubr.f32.mxu0 0.0
    %2515 = vmatmul.mubr.f32.gmra.mrb[0].mxu0 %v2329
    %v2516 = vpop.f32.mrb[0].mxu0
    %v2517 = vadd.f32 0.0, %v2516
    %v2518 = vpop.f32.mrb[0].mxu0
    %2519 = vmatprep.mubr.f32.mxu0 0.0
    %2520 = vmatmul.mubr.f32.gmra.mrb[0].mxu0 %v2330
    %v2521 = vpop.f32.mrb[0].mxu0
    %v2522 = vadd.f32 0.0, %v2521
    %v2523 = vpop.f32.mrb[0].mxu0
    %2524 = vmatprep.mubr.f32.mxu0 0.0
    %2525 = vmatmul.mubr.f32.gmra.mrb[0].mxu0 %v2331
    %v2526 = vpop.f32.mrb[0].mxu0
    %v2527 = vadd.f32 0.0, %v2526
    %v2528 = vpop.f32.mrb[0].mxu0
    %2529 = vmatprep.mubr.f32.mxu0 0.0
    %2530 = vmatmul.mubr.f32.gmra.mrb[0].mxu0 %v2332
    %v2531 = vpop.f32.mrb[0].mxu0
    %v2532 = vadd.f32 0.0, %v2531
    %v2533 = vpop.f32.mrb[0].mxu0
    %2534 = vmatprep.mubr.f32.mxu0 0.0
    %2535 = vmatmul.mubr.f32.gmra.mrb[0].mxu0 %v2333
    %v2536 = vpop.f32.mrb[0].mxu0
    %v2537 = vadd.f32 0.0, %v2536
    %v2538 = vpop.f32.mrb[0].mxu0
    %2539 = vmatprep.mubr.f32.mxu0 0.0
    %2540 = vmatmul.mubr.f32.gmra.mrb[0].mxu0 %v2334
    %v2541 = vpop.f32.mrb[0].mxu0
    %v2542 = vadd.f32 0.0, %v2541
    %v2543 = vpop.f32.mrb[0].mxu0
    %2544 = vdwg.mxu0
    %v2545 = vld [vmem:[%s3] sm:$0xff]
    %v2546 = vld [vmem:[%s3 + $0x8] sm:$0xff]
    %v2547 = vld [vmem:[%s3 + $0x10] sm:$0xff]
    %s2548 = scalar_lea.vmem %s3, 24
    %v2549 = vld [vmem:[%s2548] sm:$0xff]
    %v2550 = vld [vmem:[%s2548 + $0x8] sm:$0xff]
    %v2551 = vld [vmem:[%s2548 + $0x10] sm:$0xff]
    %vm2552 = vcmask 195584
    %v2554 = vsel %vm2552, %v2507, 0
    %v2557 = vsel %vm2552, %v2512, 0
    %v2560 = vsel %vm2552, %v2517, 0
    %v2563 = vsel %vm2552, %v2522, 0
    %v2566 = vsel %vm2552, %v2527, 0
    %v2569 = vsel %vm2552, %v2532, 0
    %v2572 = vsel %vm2552, %v2537, 0
    %v2575 = vsel %vm2552, %v2542, 0
    %2577 = vmatprep.subr.mxu0 0.0
    %2578 = vmatpush1.msra.mxu0 %v2549
    %2579 = vmatprep.subr.mxu0 0.0
    %2580 = vmatpush1.msra.mxu0 %v2550
    %2581 = vmatprep.subr.mxu0 0.0
    %2582 = vmatpush1.msra.mxu0 %v2551
    %2583 = vmatprep.subr.mxu0 0.0
    %2584 = vmatpush1.msra.mxu0 0.0
    %2585 = vmatprep.subr.mxu0 0.0
    %2586 = vmatpush1.msra.mxu0 0.0
    %2587 = vmatprep.subr.mxu0 0.0
    %2588 = vmatpush1.msra.mxu0 0.0
    %2589 = vmatprep.subr.mxu0 0.0
    %2590 = vmatpush1.msra.mxu0 0.0
    %2591 = vmatprep.subr.mxu0 0.0
    %2592 = vmatpush1.msra.mxu0 0.0
    %2593 = vmatprep.subr.mxu0 0.0
    %2594 = vmatpush1.msra.mxu0 0.0
    %2595 = vmatprep.subr.mxu0 0.0
    %2596 = vmatpush1.msra.mxu0 0.0
    %2597 = vmatprep.subr.mxu0 0.0
    %2598 = vmatpush1.msra.mxu0 0.0
    %2599 = vmatprep.subr.mxu0 0.0
    %2600 = vmatpush1.msra.mxu0 0.0
    %2601 = vmatprep.subr.mxu0 0.0
    %2602 = vmatpush1.msra.mxu0 0.0
    %2603 = vmatprep.subr.mxu0 0.0
    %2604 = vmatpush1.msra.mxu0 0.0
    %2605 = vmatprep.subr.mxu0 0.0
    %2606 = vmatpush1.msra.mxu0 0.0
    %2607 = vmatprep.subr.mxu0 0.0
    %2608 = vmatpush1.msra.mxu0 0.0
    %2609 = vmatprep.subr.mxu0 0.0
    %2610 = vmatpush1.msra.mxu0 0.0
    %2611 = vmatprep.subr.mxu0 0.0
    %2612 = vmatpush1.msra.mxu0 0.0
    %2613 = vmatprep.subr.mxu0 0.0
    %2614 = vmatpush1.msra.mxu0 0.0
    %2615 = vmatprep.subr.mxu0 0.0
    %2616 = vmatpush1.msra.mxu0 0.0
    %2617 = vmatprep.subr.mxu0 0.0
    %2618 = vmatpush1.msra.mxu0 0.0
    %2619 = vmatprep.subr.mxu0 0.0
    %2620 = vmatpush1.msra.mxu0 0.0
    %2621 = vmatprep.subr.mxu0 0.0
    %2622 = vmatpush1.msra.mxu0 0.0
    %2623 = vmatprep.subr.mxu0 0.0
    %2624 = vmatpush1.msra.mxu0 0.0
    %2625 = vmatprep.subr.mxu0 0.0
    %2626 = vmatpush1.msra.mxu0 0.0
    %2627 = vmatprep.subr.mxu0 0.0
    %2628 = vmatpush1.msra.mxu0 0.0
    %2629 = vmatprep.subr.mxu0 0.0
    %2630 = vmatpush1.msra.mxu0 0.0
    %2631 = vmatprep.subr.mxu0 0.0
    %2632 = vmatpush1.msra.mxu0 0.0
    %2633 = vmatprep.subr.mxu0 0.0
    %2634 = vmatpush1.msra.mxu0 0.0
    %2635 = vmatprep.subr.mxu0 0.0
    %2636 = vmatpush1.msra.mxu0 0.0
    %2637 = vmatprep.subr.mxu0 0.0
    %2638 = vmatpush1.msra.mxu0 0.0
    %2639 = vmatprep.subr.mxu0 0.0
    %2640 = vmatpush1.msra.mxu0 0.0
    %2641 = vmatprep.mubr.f32.mxu0 0.0
    %2642 = vmatmul.mubr.f32.gmra.mrb[0].mxu0 %v2554
    %v2643 = vpop.f32.mrb[0].mxu0
    %v2644 = vadd.f32 0.0, %v2643
    %v2645 = vpop.f32.mrb[0].mxu0
    %2646 = vmatprep.mubr.f32.mxu0 0.0
    %2647 = vmatmul.mubr.f32.gmra.mrb[0].mxu0 %v2557
    %v2648 = vpop.f32.mrb[0].mxu0
    %v2649 = vadd.f32 0.0, %v2648
    %v2650 = vpop.f32.mrb[0].mxu0
    %2651 = vmatprep.mubr.f32.mxu0 0.0
    %2652 = vmatmul.mubr.f32.gmra.mrb[0].mxu0 %v2560
    %v2653 = vpop.f32.mrb[0].mxu0
    %v2654 = vadd.f32 0.0, %v2653
    %v2655 = vpop.f32.mrb[0].mxu0
    %2656 = vmatprep.mubr.f32.mxu0 0.0
    %2657 = vmatmul.mubr.f32.gmra.mrb[0].mxu0 %v2563
    %v2658 = vpop.f32.mrb[0].mxu0
    %v2659 = vadd.f32 0.0, %v2658
    %v2660 = vpop.f32.mrb[0].mxu0
    %2661 = vmatprep.mubr.f32.mxu0 0.0
    %2662 = vmatmul.mubr.f32.gmra.mrb[0].mxu0 %v2566
    %v2663 = vpop.f32.mrb[0].mxu0
    %v2664 = vadd.f32 0.0, %v2663
    %v2665 = vpop.f32.mrb[0].mxu0
    %2666 = vmatprep.mubr.f32.mxu0 0.0
    %2667 = vmatmul.mubr.f32.gmra.mrb[0].mxu0 %v2569
    %v2668 = vpop.f32.mrb[0].mxu0
    %v2669 = vadd.f32 0.0, %v2668
    %v2670 = vpop.f32.mrb[0].mxu0
    %2671 = vmatprep.mubr.f32.mxu0 0.0
    %2672 = vmatmul.mubr.f32.gmra.mrb[0].mxu0 %v2572
    %v2673 = vpop.f32.mrb[0].mxu0
    %v2674 = vadd.f32 0.0, %v2673
    %v2675 = vpop.f32.mrb[0].mxu0
    %2676 = vmatprep.mubr.f32.mxu0 0.0
    %2677 = vmatmul.mubr.f32.gmra.mrb[0].mxu0 %v2575
    %v2678 = vpop.f32.mrb[0].mxu0
    %v2679 = vadd.f32 0.0, %v2678
    %v2680 = vpop.f32.mrb[0].mxu0
    %2681 = vdwg.mxu0
    %v2683 = vsel %vm2552, %v2402, 0
    %v2686 = vsel %vm2552, %v2407, 0
    %v2689 = vsel %vm2552, %v2412, 0
    %v2692 = vsel %vm2552, %v2417, 0
    %v2695 = vsel %vm2552, %v2422, 0
    %v2698 = vsel %vm2552, %v2427, 0
    %v2701 = vsel %vm2552, %v2432, 0
    %v2704 = vsel %vm2552, %v2437, 0
    %2706 = vmatprep.subr.mxu0 0.0
    %2707 = vmatpush1.msra.mxu0 %v2545
    %2708 = vmatprep.subr.mxu0 0.0
    %2709 = vmatpush1.msra.mxu0 %v2546
    %2710 = vmatprep.subr.mxu0 0.0
    %2711 = vmatpush1.msra.mxu0 %v2547
    %2712 = vmatprep.subr.mxu0 0.0
    %2713 = vmatpush1.msra.mxu0 0.0
    %2714 = vmatprep.subr.mxu0 0.0
    %2715 = vmatpush1.msra.mxu0 0.0
    %2716 = vmatprep.subr.mxu0 0.0
    %2717 = vmatpush1.msra.mxu0 0.0
    %2718 = vmatprep.subr.mxu0 0.0
    %2719 = vmatpush1.msra.mxu0 0.0
    %2720 = vmatprep.subr.mxu0 0.0
    %2721 = vmatpush1.msra.mxu0 0.0
    %2722 = vmatprep.subr.mxu0 0.0
    %2723 = vmatpush1.msra.mxu0 0.0
    %2724 = vmatprep.subr.mxu0 0.0
    %2725 = vmatpush1.msra.mxu0 0.0
    %2726 = vmatprep.subr.mxu0 0.0
    %2727 = vmatpush1.msra.mxu0 0.0
    %2728 = vmatprep.subr.mxu0 0.0
    %2729 = vmatpush1.msra.mxu0 0.0
    %2730 = vmatprep.subr.mxu0 0.0
    %2731 = vmatpush1.msra.mxu0 0.0
    %2732 = vmatprep.subr.mxu0 0.0
    %2733 = vmatpush1.msra.mxu0 0.0
    %2734 = vmatprep.subr.mxu0 0.0
    %2735 = vmatpush1.msra.mxu0 0.0
    %2736 = vmatprep.subr.mxu0 0.0
    %2737 = vmatpush1.msra.mxu0 0.0
    %2738 = vmatprep.subr.mxu0 0.0
    %2739 = vmatpush1.msra.mxu0 0.0
    %2740 = vmatprep.subr.mxu0 0.0
    %2741 = vmatpush1.msra.mxu0 0.0
    %2742 = vmatprep.subr.mxu0 0.0
    %2743 = vmatpush1.msra.mxu0 0.0
    %2744 = vmatprep.subr.mxu0 0.0
    %2745 = vmatpush1.msra.mxu0 0.0
    %2746 = vmatprep.subr.mxu0 0.0
    %2747 = vmatpush1.msra.mxu0 0.0
    %2748 = vmatprep.subr.mxu0 0.0
    %2749 = vmatpush1.msra.mxu0 0.0
    %2750 = vmatprep.subr.mxu0 0.0
    %2751 = vmatpush1.msra.mxu0 0.0
    %2752 = vmatprep.subr.mxu0 0.0
    %2753 = vmatpush1.msra.mxu0 0.0
    %2754 = vmatprep.subr.mxu0 0.0
    %2755 = vmatpush1.msra.mxu0 0.0
    %2756 = vmatprep.subr.mxu0 0.0
    %2757 = vmatpush1.msra.mxu0 0.0
    %2758 = vmatprep.subr.mxu0 0.0
    %2759 = vmatpush1.msra.mxu0 0.0
    %2760 = vmatprep.subr.mxu0 0.0
    %2761 = vmatpush1.msra.mxu0 0.0
    %2762 = vmatprep.subr.mxu0 0.0
    %2763 = vmatpush1.msra.mxu0 0.0
    %2764 = vmatprep.subr.mxu0 0.0
    %2765 = vmatpush1.msra.mxu0 0.0
    %2766 = vmatprep.subr.mxu0 0.0
    %2767 = vmatpush1.msra.mxu0 0.0
    %2768 = vmatprep.subr.mxu0 0.0
    %2769 = vmatpush1.msra.mxu0 0.0
    %2770 = vmatprep.mubr.f32.mxu0 0.0
    %2771 = vmatmul.mubr.f32.gmra.mrb[0].mxu0 %v2683
    %v2772 = vpop.f32.mrb[0].mxu0
    %v2773 = vadd.f32 %v2644, %v2772
    %v2774 = vpop.f32.mrb[0].mxu0
    %2775 = vmatprep.mubr.f32.mxu0 0.0
    %2776 = vmatmul.mubr.f32.gmra.mrb[0].mxu0 %v2686
    %v2777 = vpop.f32.mrb[0].mxu0
    %v2778 = vadd.f32 %v2649, %v2777
    %v2779 = vpop.f32.mrb[0].mxu0
    %2780 = vmatprep.mubr.f32.mxu0 0.0
    %2781 = vmatmul.mubr.f32.gmra.mrb[0].mxu0 %v2689
    %v2782 = vpop.f32.mrb[0].mxu0
    %v2783 = vadd.f32 %v2654, %v2782
    %v2784 = vpop.f32.mrb[0].mxu0
    %2785 = vmatprep.mubr.f32.mxu0 0.0
    %2786 = vmatmul.mubr.f32.gmra.mrb[0].mxu0 %v2692
    %v2787 = vpop.f32.mrb[0].mxu0
    %v2788 = vadd.f32 %v2659, %v2787
    %v2789 = vpop.f32.mrb[0].mxu0
    %2790 = vmatprep.mubr.f32.mxu0 0.0
    %2791 = vmatmul.mubr.f32.gmra.mrb[0].mxu0 %v2695
    %v2792 = vpop.f32.mrb[0].mxu0
    %v2793 = vadd.f32 %v2664, %v2792
    %v2794 = vpop.f32.mrb[0].mxu0
    %2795 = vmatprep.mubr.f32.mxu0 0.0
    %2796 = vmatmul.mubr.f32.gmra.mrb[0].mxu0 %v2698
    %v2797 = vpop.f32.mrb[0].mxu0
    %v2798 = vadd.f32 %v2669, %v2797
    %v2799 = vpop.f32.mrb[0].mxu0
    %2800 = vmatprep.mubr.f32.mxu0 0.0
    %2801 = vmatmul.mubr.f32.gmra.mrb[0].mxu0 %v2701
    %v2802 = vpop.f32.mrb[0].mxu0
    %v2803 = vadd.f32 %v2674, %v2802
    %v2804 = vpop.f32.mrb[0].mxu0
    %2805 = vmatprep.mubr.f32.mxu0 0.0
    %2806 = vmatmul.mubr.f32.gmra.mrb[0].mxu0 %v2704
    %v2807 = vpop.f32.mrb[0].mxu0
    %v2808 = vadd.f32 %v2679, %v2807
    %v2809 = vpop.f32.mrb[0].mxu0
    %2810 = vdwg.mxu0
    %v2811 = vld [vmem:[%s4] sm:$0x1]
    %v2813 = vlaneseq
    %v2814 = vshrl.u32 %v2813, 7
    %v2815 = vsub.s32 0, %v2814
    %v2816 = vrot.slane %v2811, %v2815
    %v2818 = vadd.f32 %v2773, %v2816
    %v2819 = vadd.f32 %v2778, %v2816
    %v2820 = vadd.f32 %v2783, %v2816
    %v2821 = vadd.f32 %v2788, %v2816
    %v2822 = vadd.f32 %v2793, %v2816
    %v2823 = vadd.f32 %v2798, %v2816
    %v2824 = vadd.f32 %v2803, %v2816
    %v2825 = vadd.f32 %v2808, %v2816
    %vm2826 = vcmp.gt.f32.partialorder %v2818, 0.0
    %vm2827 = vcmp.gt.f32.partialorder %v2819, 0.0
    %vm2828 = vcmp.gt.f32.partialorder %v2820, 0.0
    %vm2829 = vcmp.gt.f32.partialorder %v2821, 0.0
    %vm2830 = vcmp.gt.f32.partialorder %v2822, 0.0
    %vm2831 = vcmp.gt.f32.partialorder %v2823, 0.0
    %vm2832 = vcmp.gt.f32.partialorder %v2824, 0.0
    %vm2833 = vcmp.gt.f32.partialorder %v2825, 0.0
    %v2834 = vmul.f32 %v2818, 0.01
    %v2835 = vmul.f32 %v2819, 0.01
    %v2836 = vmul.f32 %v2820, 0.01
    %v2837 = vmul.f32 %v2821, 0.01
    %v2838 = vmul.f32 %v2822, 0.01
    %v2839 = vmul.f32 %v2823, 0.01
    %v2840 = vmul.f32 %v2824, 0.01
    %v2841 = vmul.f32 %v2825, 0.01
    %v2842 = vsel %vm2826, %v2818, %v2834
    %v2843 = vsel %vm2827, %v2819, %v2835
    %v2844 = vsel %vm2828, %v2820, %v2836
    %v2845 = vsel %vm2829, %v2821, %v2837
    %v2846 = vsel %vm2830, %v2822, %v2838
    %v2847 = vsel %vm2831, %v2823, %v2839
    %v2848 = vsel %vm2832, %v2824, %v2840
    %v2849 = vsel %vm2833, %v2825, %v2841
    %2850 = vst.msk [vmem:[#allocation3] sm:$0xff] %vm2552, 0.0
    %2851 = vst.msk [vmem:[#allocation3 + $0x8] sm:$0xff] %vm2552, 0.0
    %2852 = vst.msk [vmem:[#allocation3 + $0x10] sm:$0xff] %vm2552, 0.0
    %2853 = vst.msk [vmem:[#allocation3 + $0x18] sm:$0xff] %vm2552, 0.0
    %2854 = vst.msk [vmem:[#allocation3 + $0x20] sm:$0xff] %vm2552, 0.0
    %2855 = vst.msk [vmem:[#allocation3 + $0x28] sm:$0xff] %vm2552, 0.0
    %2856 = vst.msk [vmem:[#allocation3 + $0x30] sm:$0xff] %vm2552, 0.0
    %2857 = vst.msk [vmem:[#allocation3 + $0x38] sm:$0xff] %vm2552, 0.0
    %2858 = vst.msk [vmem:[#allocation3 + $0x40] sm:$0xff] %vm2552, 0.0
    %2859 = vst.msk [vmem:[#allocation3 + $0x48] sm:$0xff] %vm2552, 0.0
    %2860 = vst.msk [vmem:[#allocation3 + $0x50] sm:$0xff] %vm2552, 0.0
    %2861 = vst.msk [vmem:[#allocation3 + $0x58] sm:$0xff] %vm2552, 0.0
    %2862 = vst.msk [vmem:[#allocation3 + $0x8] sm:$0xff] %vm2552, %v2842
    %2863 = vst.msk [vmem:[#allocation3 + $0x10] sm:$0xff] %vm2552, %v2843
    %2864 = vst.msk [vmem:[#allocation3 + $0x18] sm:$0xff] %vm2552, %v2844
    %2865 = vst.msk [vmem:[#allocation3 + $0x20] sm:$0xff] %vm2552, %v2845
    %s2866 = scalar_lea.vmem [#allocation3], 48
    %2867 = vst.msk [vmem:[%s2866 + $0x8] sm:$0xff] %vm2552, %v2846
    %2868 = vst.msk [vmem:[%s2866 + $0x10] sm:$0xff] %vm2552, %v2847
    %2869 = vst.msk [vmem:[%s2866 + $0x18] sm:$0xff] %vm2552, %v2848
    %2870 = vst.msk [vmem:[%s2866 + $0x20] sm:$0xff] %vm2552, %v2849
    %v2871 = vld [vmem:[#allocation3 + $0x1] sm:$0xff]
    %v2872 = vld [vmem:[#allocation3 + $0x9] sm:$0xff]
    %v2873 = vld [vmem:[#allocation3 + $0x11] sm:$0xff]
    %v2874 = vld [vmem:[#allocation3 + $0x19] sm:$0xff]
    %v2875 = vld [vmem:[#allocation3 + $0x31] sm:$0xff]
    %v2876 = vld [vmem:[#allocation3 + $0x39] sm:$0xff]
    %v2877 = vld [vmem:[#allocation3 + $0x41] sm:$0xff]
    %v2878 = vld [vmem:[#allocation3 + $0x49] sm:$0xff]
    %v2879 = vld [vmem:[#allocation6] sm:$0xff]
    %v2880 = vld [vmem:[#allocation6 + $0x8] sm:$0xff]
    %v2881 = vld [vmem:[#allocation6 + $0x10] sm:$0xff]
    %v2882 = vld [vmem:[#allocation3 + $0x2] sm:$0xff]
    %v2883 = vld [vmem:[#allocation3 + $0xa] sm:$0xff]
    %v2884 = vld [vmem:[#allocation3 + $0x12] sm:$0xff]
    %v2885 = vld [vmem:[#allocation3 + $0x1a] sm:$0xff]
    %v2886 = vld [vmem:[#allocation3 + $0x32] sm:$0xff]
    %v2887 = vld [vmem:[#allocation3 + $0x3a] sm:$0xff]
    %v2888 = vld [vmem:[#allocation3 + $0x42] sm:$0xff]
    %v2889 = vld [vmem:[#allocation3 + $0x4a] sm:$0xff]
    %s2890 = scalar_lea.vmem [#allocation6], 24
    %v2891 = vld [vmem:[%s2890] sm:$0xff]
    %v2892 = vld [vmem:[%s2890 + $0x8] sm:$0xff]
    %v2893 = vld [vmem:[%s2890 + $0x10] sm:$0xff]
    %v2895 = vsel %vm2552, %v2882, 0
    %v2898 = vsel %vm2552, %v2883, 0
    %v2901 = vsel %vm2552, %v2884, 0
    %v2904 = vsel %vm2552, %v2885, 0
    %v2907 = vsel %vm2552, %v2886, 0
    %v2910 = vsel %vm2552, %v2887, 0
    %v2913 = vsel %vm2552, %v2888, 0
    %v2916 = vsel %vm2552, %v2889, 0
    %2918 = vmatprep.subr.mxu0 0.0
    %2919 = vmatpush1.msra.mxu0 %v2891
    %2920 = vmatprep.subr.mxu0 0.0
    %2921 = vmatpush1.msra.mxu0 %v2892
    %2922 = vmatprep.subr.mxu0 0.0
    %2923 = vmatpush1.msra.mxu0 %v2893
    %2924 = vmatprep.subr.mxu0 0.0
    %2925 = vmatpush1.msra.mxu0 0.0
    %2926 = vmatprep.subr.mxu0 0.0
    %2927 = vmatpush1.msra.mxu0 0.0
    %2928 = vmatprep.subr.mxu0 0.0
    %2929 = vmatpush1.msra.mxu0 0.0
    %2930 = vmatprep.subr.mxu0 0.0
    %2931 = vmatpush1.msra.mxu0 0.0
    %2932 = vmatprep.subr.mxu0 0.0
    %2933 = vmatpush1.msra.mxu0 0.0
    %2934 = vmatprep.subr.mxu0 0.0
    %2935 = vmatpush1.msra.mxu0 0.0
    %2936 = vmatprep.subr.mxu0 0.0
    %2937 = vmatpush1.msra.mxu0 0.0
    %2938 = vmatprep.subr.mxu0 0.0
    %2939 = vmatpush1.msra.mxu0 0.0
    %2940 = vmatprep.subr.mxu0 0.0
    %2941 = vmatpush1.msra.mxu0 0.0
    %2942 = vmatprep.subr.mxu0 0.0
    %2943 = vmatpush1.msra.mxu0 0.0
    %2944 = vmatprep.subr.mxu0 0.0
    %2945 = vmatpush1.msra.mxu0 0.0
    %2946 = vmatprep.subr.mxu0 0.0
    %2947 = vmatpush1.msra.mxu0 0.0
    %2948 = vmatprep.subr.mxu0 0.0
    %2949 = vmatpush1.msra.mxu0 0.0
    %2950 = vmatprep.subr.mxu0 0.0
    %2951 = vmatpush1.msra.mxu0 0.0
    %2952 = vmatprep.subr.mxu0 0.0
    %2953 = vmatpush1.msra.mxu0 0.0
    %2954 = vmatprep.subr.mxu0 0.0
    %2955 = vmatpush1.msra.mxu0 0.0
    %2956 = vmatprep.subr.mxu0 0.0
    %2957 = vmatpush1.msra.mxu0 0.0
    %2958 = vmatprep.subr.mxu0 0.0
    %2959 = vmatpush1.msra.mxu0 0.0
    %2960 = vmatprep.subr.mxu0 0.0
    %2961 = vmatpush1.msra.mxu0 0.0
    %2962 = vmatprep.subr.mxu0 0.0
    %2963 = vmatpush1.msra.mxu0 0.0
    %2964 = vmatprep.subr.mxu0 0.0
    %2965 = vmatpush1.msra.mxu0 0.0
    %2966 = vmatprep.subr.mxu0 0.0
    %2967 = vmatpush1.msra.mxu0 0.0
    %2968 = vmatprep.subr.mxu0 0.0
    %2969 = vmatpush1.msra.mxu0 0.0
    %2970 = vmatprep.subr.mxu0 0.0
    %2971 = vmatpush1.msra.mxu0 0.0
    %2972 = vmatprep.subr.mxu0 0.0
    %2973 = vmatpush1.msra.mxu0 0.0
    %2974 = vmatprep.subr.mxu0 0.0
    %2975 = vmatpush1.msra.mxu0 0.0
    %2976 = vmatprep.subr.mxu0 0.0
    %2977 = vmatpush1.msra.mxu0 0.0
    %2978 = vmatprep.subr.mxu0 0.0
    %2979 = vmatpush1.msra.mxu0 0.0
    %2980 = vmatprep.subr.mxu0 0.0
    %2981 = vmatpush1.msra.mxu0 0.0
    %2982 = vmatprep.mubr.f32.mxu0 0.0
    %2983 = vmatmul.mubr.f32.gmra.mrb[0].mxu0 %v2895
    %v2984 = vpop.f32.mrb[0].mxu0
    %v2985 = vadd.f32 0.0, %v2984
    %v2986 = vpop.f32.mrb[0].mxu0
    %2987 = vmatprep.mubr.f32.mxu0 0.0
    %2988 = vmatmul.mubr.f32.gmra.mrb[0].mxu0 %v2898
    %v2989 = vpop.f32.mrb[0].mxu0
    %v2990 = vadd.f32 0.0, %v2989
    %v2991 = vpop.f32.mrb[0].mxu0
    %2992 = vmatprep.mubr.f32.mxu0 0.0
    %2993 = vmatmul.mubr.f32.gmra.mrb[0].mxu0 %v2901
    %v2994 = vpop.f32.mrb[0].mxu0
    %v2995 = vadd.f32 0.0, %v2994
    %v2996 = vpop.f32.mrb[0].mxu0
    %2997 = vmatprep.mubr.f32.mxu0 0.0
    %2998 = vmatmul.mubr.f32.gmra.mrb[0].mxu0 %v2904
    %v2999 = vpop.f32.mrb[0].mxu0
    %v3000 = vadd.f32 0.0, %v2999
    %v3001 = vpop.f32.mrb[0].mxu0
    %3002 = vmatprep.mubr.f32.mxu0 0.0
    %3003 = vmatmul.mubr.f32.gmra.mrb[0].mxu0 %v2907
    %v3004 = vpop.f32.mrb[0].mxu0
    %v3005 = vadd.f32 0.0, %v3004
    %v3006 = vpop.f32.mrb[0].mxu0
    %3007 = vmatprep.mubr.f32.mxu0 0.0
    %3008 = vmatmul.mubr.f32.gmra.mrb[0].mxu0 %v2910
    %v3009 = vpop.f32.mrb[0].mxu0
    %v3010 = vadd.f32 0.0, %v3009
    %v3011 = vpop.f32.mrb[0].mxu0
    %3012 = vmatprep.mubr.f32.mxu0 0.0
    %3013 = vmatmul.mubr.f32.gmra.mrb[0].mxu0 %v2913
    %v3014 = vpop.f32.mrb[0].mxu0
    %v3015 = vadd.f32 0.0, %v3014
    %v3016 = vpop.f32.mrb[0].mxu0
    %3017 = vmatprep.mubr.f32.mxu0 0.0
    %3018 = vmatmul.mubr.f32.gmra.mrb[0].mxu0 %v2916
    %v3019 = vpop.f32.mrb[0].mxu0
    %v3020 = vadd.f32 0.0, %v3019
    %v3021 = vpop.f32.mrb[0].mxu0
    %3022 = vdwg.mxu0
    %v3024 = vsel %vm2552, %v2871, 0
    %v3027 = vsel %vm2552, %v2872, 0
    %v3030 = vsel %vm2552, %v2873, 0
    %v3033 = vsel %vm2552, %v2874, 0
    %v3036 = vsel %vm2552, %v2875, 0
    %v3039 = vsel %vm2552, %v2876, 0
    %v3042 = vsel %vm2552, %v2877, 0
    %v3045 = vsel %vm2552, %v2878, 0
    %3047 = vmatprep.subr.mxu0 0.0
    %3048 = vmatpush1.msra.mxu0 %v2879
    %3049 = vmatprep.subr.mxu0 0.0
    %3050 = vmatpush1.msra.mxu0 %v2880
    %3051 = vmatprep.subr.mxu0 0.0
    %3052 = vmatpush1.msra.mxu0 %v2881
    %3053 = vmatprep.subr.mxu0 0.0
    %3054 = vmatpush1.msra.mxu0 0.0
    %3055 = vmatprep.subr.mxu0 0.0
    %3056 = vmatpush1.msra.mxu0 0.0
    %3057 = vmatprep.subr.mxu0 0.0
    %3058 = vmatpush1.msra.mxu0 0.0
    %3059 = vmatprep.subr.mxu0 0.0
    %3060 = vmatpush1.msra.mxu0 0.0
    %3061 = vmatprep.subr.mxu0 0.0
    %3062 = vmatpush1.msra.mxu0 0.0
    %3063 = vmatprep.subr.mxu0 0.0
    %3064 = vmatpush1.msra.mxu0 0.0
    %3065 = vmatprep.subr.mxu0 0.0
    %3066 = vmatpush1.msra.mxu0 0.0
    %3067 = vmatprep.subr.mxu0 0.0
    %3068 = vmatpush1.msra.mxu0 0.0
    %3069 = vmatprep.subr.mxu0 0.0
    %3070 = vmatpush1.msra.mxu0 0.0
    %3071 = vmatprep.subr.mxu0 0.0
    %3072 = vmatpush1.msra.mxu0 0.0
    %3073 = vmatprep.subr.mxu0 0.0
    %3074 = vmatpush1.msra.mxu0 0.0
    %3075 = vmatprep.subr.mxu0 0.0
    %3076 = vmatpush1.msra.mxu0 0.0
    %3077 = vmatprep.subr.mxu0 0.0
    %3078 = vmatpush1.msra.mxu0 0.0
    %3079 = vmatprep.subr.mxu0 0.0
    %3080 = vmatpush1.msra.mxu0 0.0
    %3081 = vmatprep.subr.mxu0 0.0
    %3082 = vmatpush1.msra.mxu0 0.0
    %3083 = vmatprep.subr.mxu0 0.0
    %3084 = vmatpush1.msra.mxu0 0.0
    %3085 = vmatprep.subr.mxu0 0.0
    %3086 = vmatpush1.msra.mxu0 0.0
    %3087 = vmatprep.subr.mxu0 0.0
    %3088 = vmatpush1.msra.mxu0 0.0
    %3089 = vmatprep.subr.mxu0 0.0
    %3090 = vmatpush1.msra.mxu0 0.0
    %3091 = vmatprep.subr.mxu0 0.0
    %3092 = vmatpush1.msra.mxu0 0.0
    %3093 = vmatprep.subr.mxu0 0.0
    %3094 = vmatpush1.msra.mxu0 0.0
    %3095 = vmatprep.subr.mxu0 0.0
    %3096 = vmatpush1.msra.mxu0 0.0
    %3097 = vmatprep.subr.mxu0 0.0
    %3098 = vmatpush1.msra.mxu0 0.0
    %3099 = vmatprep.subr.mxu0 0.0
    %3100 = vmatpush1.msra.mxu0 0.0
    %3101 = vmatprep.subr.mxu0 0.0
    %3102 = vmatpush1.msra.mxu0 0.0
    %3103 = vmatprep.subr.mxu0 0.0
    %3104 = vmatpush1.msra.mxu0 0.0
    %3105 = vmatprep.subr.mxu0 0.0
    %3106 = vmatpush1.msra.mxu0 0.0
    %3107 = vmatprep.subr.mxu0 0.0
    %3108 = vmatpush1.msra.mxu0 0.0
    %3109 = vmatprep.subr.mxu0 0.0
    %3110 = vmatpush1.msra.mxu0 0.0
    %3111 = vmatprep.mubr.f32.mxu0 0.0
    %3112 = vmatmul.mubr.f32.gmra.mrb[0].mxu0 %v3024
    %v3113 = vpop.f32.mrb[0].mxu0
    %v3114 = vadd.f32 %v2985, %v3113
    %v3115 = vpop.f32.mrb[0].mxu0
    %3116 = vmatprep.mubr.f32.mxu0 0.0
    %3117 = vmatmul.mubr.f32.gmra.mrb[0].mxu0 %v3027
    %v3118 = vpop.f32.mrb[0].mxu0
    %v3119 = vadd.f32 %v2990, %v3118
    %v3120 = vpop.f32.mrb[0].mxu0
    %3121 = vmatprep.mubr.f32.mxu0 0.0
    %3122 = vmatmul.mubr.f32.gmra.mrb[0].mxu0 %v3030
    %v3123 = vpop.f32.mrb[0].mxu0
    %v3124 = vadd.f32 %v2995, %v3123
    %v3125 = vpop.f32.mrb[0].mxu0
    %3126 = vmatprep.mubr.f32.mxu0 0.0
    %3127 = vmatmul.mubr.f32.gmra.mrb[0].mxu0 %v3033
    %v3128 = vpop.f32.mrb[0].mxu0
    %v3129 = vadd.f32 %v3000, %v3128
    %v3130 = vpop.f32.mrb[0].mxu0
    %3131 = vmatprep.mubr.f32.mxu0 0.0
    %3132 = vmatmul.mubr.f32.gmra.mrb[0].mxu0 %v3036
    %v3133 = vpop.f32.mrb[0].mxu0
    %v3134 = vadd.f32 %v3005, %v3133
    %v3135 = vpop.f32.mrb[0].mxu0
    %3136 = vmatprep.mubr.f32.mxu0 0.0
    %3137 = vmatmul.mubr.f32.gmra.mrb[0].mxu0 %v3039
    %v3138 = vpop.f32.mrb[0].mxu0
    %v3139 = vadd.f32 %v3010, %v3138
    %v3140 = vpop.f32.mrb[0].mxu0
    %3141 = vmatprep.mubr.f32.mxu0 0.0
    %3142 = vmatmul.mubr.f32.gmra.mrb[0].mxu0 %v3042
    %v3143 = vpop.f32.mrb[0].mxu0
    %v3144 = vadd.f32 %v3015, %v3143
    %v3145 = vpop.f32.mrb[0].mxu0
    %3146 = vmatprep.mubr.f32.mxu0 0.0
    %3147 = vmatmul.mubr.f32.gmra.mrb[0].mxu0 %v3045
    %v3148 = vpop.f32.mrb[0].mxu0
    %v3149 = vadd.f32 %v3020, %v3148
    %v3150 = vpop.f32.mrb[0].mxu0
    %3151 = vdwg.mxu0
    %v3152 = vld [vmem:[#allocation3 + $0x3] sm:$0xff]
    %v3153 = vld [vmem:[#allocation3 + $0xb] sm:$0xff]
    %v3154 = vld [vmem:[#allocation3 + $0x13] sm:$0xff]
    %v3155 = vld [vmem:[#allocation3 + $0x1b] sm:$0xff]
    %v3156 = vld [vmem:[#allocation3 + $0x33] sm:$0xff]
    %v3157 = vld [vmem:[#allocation3 + $0x3b] sm:$0xff]
    %v3158 = vld [vmem:[#allocation3 + $0x43] sm:$0xff]
    %v3159 = vld [vmem:[#allocation3 + $0x4b] sm:$0xff]
    %s3160 = scalar_lea.vmem [#allocation6], 48
    %v3161 = vld [vmem:[%s3160] sm:$0xff]
    %v3162 = vld [vmem:[%s3160 + $0x8] sm:$0xff]
    %v3163 = vld [vmem:[%s3160 + $0x10] sm:$0xff]
    %v3165 = vsel %vm2552, %v3152, 0
    %v3168 = vsel %vm2552, %v3153, 0
    %v3171 = vsel %vm2552, %v3154, 0
    %v3174 = vsel %vm2552, %v3155, 0
    %v3177 = vsel %vm2552, %v3156, 0
    %v3180 = vsel %vm2552, %v3157, 0
    %v3183 = vsel %vm2552, %v3158, 0
    %v3186 = vsel %vm2552, %v3159, 0
    %3188 = vmatprep.subr.mxu0 0.0
    %3189 = vmatpush1.msra.mxu0 %v3161
    %3190 = vmatprep.subr.mxu0 0.0
    %3191 = vmatpush1.msra.mxu0 %v3162
    %3192 = vmatprep.subr.mxu0 0.0
    %3193 = vmatpush1.msra.mxu0 %v3163
    %3194 = vmatprep.subr.mxu0 0.0
    %3195 = vmatpush1.msra.mxu0 0.0
    %3196 = vmatprep.subr.mxu0 0.0
    %3197 = vmatpush1.msra.mxu0 0.0
    %3198 = vmatprep.subr.mxu0 0.0
    %3199 = vmatpush1.msra.mxu0 0.0
    %3200 = vmatprep.subr.mxu0 0.0
    %3201 = vmatpush1.msra.mxu0 0.0
    %3202 = vmatprep.subr.mxu0 0.0
    %3203 = vmatpush1.msra.mxu0 0.0
    %3204 = vmatprep.subr.mxu0 0.0
    %3205 = vmatpush1.msra.mxu0 0.0
    %3206 = vmatprep.subr.mxu0 0.0
    %3207 = vmatpush1.msra.mxu0 0.0
    %3208 = vmatprep.subr.mxu0 0.0
    %3209 = vmatpush1.msra.mxu0 0.0
    %3210 = vmatprep.subr.mxu0 0.0
    %3211 = vmatpush1.msra.mxu0 0.0
    %3212 = vmatprep.subr.mxu0 0.0
    %3213 = vmatpush1.msra.mxu0 0.0
    %3214 = vmatprep.subr.mxu0 0.0
    %3215 = vmatpush1.msra.mxu0 0.0
    %3216 = vmatprep.subr.mxu0 0.0
    %3217 = vmatpush1.msra.mxu0 0.0
    %3218 = vmatprep.subr.mxu0 0.0
    %3219 = vmatpush1.msra.mxu0 0.0
    %3220 = vmatprep.subr.mxu0 0.0
    %3221 = vmatpush1.msra.mxu0 0.0
    %3222 = vmatprep.subr.mxu0 0.0
    %3223 = vmatpush1.msra.mxu0 0.0
    %3224 = vmatprep.subr.mxu0 0.0
    %3225 = vmatpush1.msra.mxu0 0.0
    %3226 = vmatprep.subr.mxu0 0.0
    %3227 = vmatpush1.msra.mxu0 0.0
    %3228 = vmatprep.subr.mxu0 0.0
    %3229 = vmatpush1.msra.mxu0 0.0
    %3230 = vmatprep.subr.mxu0 0.0
    %3231 = vmatpush1.msra.mxu0 0.0
    %3232 = vmatprep.subr.mxu0 0.0
    %3233 = vmatpush1.msra.mxu0 0.0
    %3234 = vmatprep.subr.mxu0 0.0
    %3235 = vmatpush1.msra.mxu0 0.0
    %3236 = vmatprep.subr.mxu0 0.0
    %3237 = vmatpush1.msra.mxu0 0.0
    %3238 = vmatprep.subr.mxu0 0.0
    %3239 = vmatpush1.msra.mxu0 0.0
    %3240 = vmatprep.subr.mxu0 0.0
    %3241 = vmatpush1.msra.mxu0 0.0
    %3242 = vmatprep.subr.mxu0 0.0
    %3243 = vmatpush1.msra.mxu0 0.0
    %3244 = vmatprep.subr.mxu0 0.0
    %3245 = vmatpush1.msra.mxu0 0.0
    %3246 = vmatprep.subr.mxu0 0.0
    %3247 = vmatpush1.msra.mxu0 0.0
    %3248 = vmatprep.subr.mxu0 0.0
    %3249 = vmatpush1.msra.mxu0 0.0
    %3250 = vmatprep.subr.mxu0 0.0
    %3251 = vmatpush1.msra.mxu0 0.0
    %3252 = vmatprep.mubr.f32.mxu0 0.0
    %3253 = vmatmul.mubr.f32.gmra.mrb[0].mxu0 %v3165
    %v3254 = vpop.f32.mrb[0].mxu0
    %v3255 = vadd.f32 0.0, %v3254
    %v3256 = vpop.f32.mrb[0].mxu0
    %3257 = vmatprep.mubr.f32.mxu0 0.0
    %3258 = vmatmul.mubr.f32.gmra.mrb[0].mxu0 %v3168
    %v3259 = vpop.f32.mrb[0].mxu0
    %v3260 = vadd.f32 0.0, %v3259
    %v3261 = vpop.f32.mrb[0].mxu0
    %3262 = vmatprep.mubr.f32.mxu0 0.0
    %3263 = vmatmul.mubr.f32.gmra.mrb[0].mxu0 %v3171
    %v3264 = vpop.f32.mrb[0].mxu0
    %v3265 = vadd.f32 0.0, %v3264
    %v3266 = vpop.f32.mrb[0].mxu0
    %3267 = vmatprep.mubr.f32.mxu0 0.0
    %3268 = vmatmul.mubr.f32.gmra.mrb[0].mxu0 %v3174
    %v3269 = vpop.f32.mrb[0].mxu0
    %v3270 = vadd.f32 0.0, %v3269
    %v3271 = vpop.f32.mrb[0].mxu0
    %3272 = vmatprep.mubr.f32.mxu0 0.0
    %3273 = vmatmul.mubr.f32.gmra.mrb[0].mxu0 %v3177
    %v3274 = vpop.f32.mrb[0].mxu0
    %v3275 = vadd.f32 0.0, %v3274
    %v3276 = vpop.f32.mrb[0].mxu0
    %3277 = vmatprep.mubr.f32.mxu0 0.0
    %3278 = vmatmul.mubr.f32.gmra.mrb[0].mxu0 %v3180
    %v3279 = vpop.f32.mrb[0].mxu0
    %v3280 = vadd.f32 0.0, %v3279
    %v3281 = vpop.f32.mrb[0].mxu0
    %3282 = vmatprep.mubr.f32.mxu0 0.0
    %3283 = vmatmul.mubr.f32.gmra.mrb[0].mxu0 %v3183
    %v3284 = vpop.f32.mrb[0].mxu0
    %v3285 = vadd.f32 0.0, %v3284
    %v3286 = vpop.f32.mrb[0].mxu0
    %3287 = vmatprep.mubr.f32.mxu0 0.0
    %3288 = vmatmul.mubr.f32.gmra.mrb[0].mxu0 %v3186
    %v3289 = vpop.f32.mrb[0].mxu0
    %v3290 = vadd.f32 0.0, %v3289
    %v3291 = vpop.f32.mrb[0].mxu0
    %3292 = vdwg.mxu0
    %v3293 = vadd.f32 %v3114, %v3255
    %v3294 = vadd.f32 %v3119, %v3260
    %v3295 = vadd.f32 %v3124, %v3265
    %v3296 = vadd.f32 %v3129, %v3270
    %v3297 = vadd.f32 %v3134, %v3275
    %v3298 = vadd.f32 %v3139, %v3280
    %v3299 = vadd.f32 %v3144, %v3285
    %v3300 = vadd.f32 %v3149, %v3290
    %v3301 = vld [vmem:[#allocation3 + $0x4] sm:$0xff]
    %v3302 = vld [vmem:[#allocation3 + $0xc] sm:$0xff]
    %v3303 = vld [vmem:[#allocation3 + $0x14] sm:$0xff]
    %v3304 = vld [vmem:[#allocation3 + $0x1c] sm:$0xff]
    %v3305 = vld [vmem:[#allocation3 + $0x34] sm:$0xff]
    %v3306 = vld [vmem:[#allocation3 + $0x3c] sm:$0xff]
    %v3307 = vld [vmem:[#allocation3 + $0x44] sm:$0xff]
    %v3308 = vld [vmem:[#allocation3 + $0x4c] sm:$0xff]
    %s3309 = scalar_lea.vmem [#allocation6], 72
    %v3310 = vld [vmem:[%s3309] sm:$0xff]
    %v3311 = vld [vmem:[%s3309 + $0x8] sm:$0xff]
    %v3312 = vld [vmem:[%s3309 + $0x10] sm:$0xff]
    %v3314 = vsel %vm2552, %v3301, 0
    %v3317 = vsel %vm2552, %v3302, 0
    %v3320 = vsel %vm2552, %v3303, 0
    %v3323 = vsel %vm2552, %v3304, 0
    %v3326 = vsel %vm2552, %v3305, 0
    %v3329 = vsel %vm2552, %v3306, 0
    %v3332 = vsel %vm2552, %v3307, 0
    %v3335 = vsel %vm2552, %v3308, 0
    %3337 = vmatprep.subr.mxu0 0.0
    %3338 = vmatpush1.msra.mxu0 %v3310
    %3339 = vmatprep.subr.mxu0 0.0
    %3340 = vmatpush1.msra.mxu0 %v3311
    %3341 = vmatprep.subr.mxu0 0.0
    %3342 = vmatpush1.msra.mxu0 %v3312
    %3343 = vmatprep.subr.mxu0 0.0
    %3344 = vmatpush1.msra.mxu0 0.0
    %3345 = vmatprep.subr.mxu0 0.0
    %3346 = vmatpush1.msra.mxu0 0.0
    %3347 = vmatprep.subr.mxu0 0.0
    %3348 = vmatpush1.msra.mxu0 0.0
    %3349 = vmatprep.subr.mxu0 0.0
    %3350 = vmatpush1.msra.mxu0 0.0
    %3351 = vmatprep.subr.mxu0 0.0
    %3352 = vmatpush1.msra.mxu0 0.0
    %3353 = vmatprep.subr.mxu0 0.0
    %3354 = vmatpush1.msra.mxu0 0.0
    %3355 = vmatprep.subr.mxu0 0.0
    %3356 = vmatpush1.msra.mxu0 0.0
    %3357 = vmatprep.subr.mxu0 0.0
    %3358 = vmatpush1.msra.mxu0 0.0
    %3359 = vmatprep.subr.mxu0 0.0
    %3360 = vmatpush1.msra.mxu0 0.0
    %3361 = vmatprep.subr.mxu0 0.0
    %3362 = vmatpush1.msra.mxu0 0.0
    %3363 = vmatprep.subr.mxu0 0.0
    %3364 = vmatpush1.msra.mxu0 0.0
    %3365 = vmatprep.subr.mxu0 0.0
    %3366 = vmatpush1.msra.mxu0 0.0
    %3367 = vmatprep.subr.mxu0 0.0
    %3368 = vmatpush1.msra.mxu0 0.0
    %3369 = vmatprep.subr.mxu0 0.0
    %3370 = vmatpush1.msra.mxu0 0.0
    %3371 = vmatprep.subr.mxu0 0.0
    %3372 = vmatpush1.msra.mxu0 0.0
    %3373 = vmatprep.subr.mxu0 0.0
    %3374 = vmatpush1.msra.mxu0 0.0
    %3375 = vmatprep.subr.mxu0 0.0
    %3376 = vmatpush1.msra.mxu0 0.0
    %3377 = vmatprep.subr.mxu0 0.0
    %3378 = vmatpush1.msra.mxu0 0.0
    %3379 = vmatprep.subr.mxu0 0.0
    %3380 = vmatpush1.msra.mxu0 0.0
    %3381 = vmatprep.subr.mxu0 0.0
    %3382 = vmatpush1.msra.mxu0 0.0
    %3383 = vmatprep.subr.mxu0 0.0
    %3384 = vmatpush1.msra.mxu0 0.0
    %3385 = vmatprep.subr.mxu0 0.0
    %3386 = vmatpush1.msra.mxu0 0.0
    %3387 = vmatprep.subr.mxu0 0.0
    %3388 = vmatpush1.msra.mxu0 0.0
    %3389 = vmatprep.subr.mxu0 0.0
    %3390 = vmatpush1.msra.mxu0 0.0
    %3391 = vmatprep.subr.mxu0 0.0
    %3392 = vmatpush1.msra.mxu0 0.0
    %3393 = vmatprep.subr.mxu0 0.0
    %3394 = vmatpush1.msra.mxu0 0.0
    %3395 = vmatprep.subr.mxu0 0.0
    %3396 = vmatpush1.msra.mxu0 0.0
    %3397 = vmatprep.subr.mxu0 0.0
    %3398 = vmatpush1.msra.mxu0 0.0
    %3399 = vmatprep.subr.mxu0 0.0
    %3400 = vmatpush1.msra.mxu0 0.0
    %3401 = vmatprep.mubr.f32.mxu0 0.0
    %3402 = vmatmul.mubr.f32.gmra.mrb[0].mxu0 %v3314
    %v3403 = vpop.f32.mrb[0].mxu0
    %v3404 = vadd.f32 0.0, %v3403
    %v3405 = vpop.f32.mrb[0].mxu0
    %3406 = vmatprep.mubr.f32.mxu0 0.0
    %3407 = vmatmul.mubr.f32.gmra.mrb[0].mxu0 %v3317
    %v3408 = vpop.f32.mrb[0].mxu0
    %v3409 = vadd.f32 0.0, %v3408
    %v3410 = vpop.f32.mrb[0].mxu0
    %3411 = vmatprep.mubr.f32.mxu0 0.0
    %3412 = vmatmul.mubr.f32.gmra.mrb[0].mxu0 %v3320
    %v3413 = vpop.f32.mrb[0].mxu0
    %v3414 = vadd.f32 0.0, %v3413
    %v3415 = vpop.f32.mrb[0].mxu0
    %3416 = vmatprep.mubr.f32.mxu0 0.0
    %3417 = vmatmul.mubr.f32.gmra.mrb[0].mxu0 %v3323
    %v3418 = vpop.f32.mrb[0].mxu0
    %v3419 = vadd.f32 0.0, %v3418
    %v3420 = vpop.f32.mrb[0].mxu0
    %3421 = vmatprep.mubr.f32.mxu0 0.0
    %3422 = vmatmul.mubr.f32.gmra.mrb[0].mxu0 %v3326
    %v3423 = vpop.f32.mrb[0].mxu0
    %v3424 = vadd.f32 0.0, %v3423
    %v3425 = vpop.f32.mrb[0].mxu0
    %3426 = vmatprep.mubr.f32.mxu0 0.0
    %3427 = vmatmul.mubr.f32.gmra.mrb[0].mxu0 %v3329
    %v3428 = vpop.f32.mrb[0].mxu0
    %v3429 = vadd.f32 0.0, %v3428
    %v3430 = vpop.f32.mrb[0].mxu0
    %3431 = vmatprep.mubr.f32.mxu0 0.0
    %3432 = vmatmul.mubr.f32.gmra.mrb[0].mxu0 %v3332
    %v3433 = vpop.f32.mrb[0].mxu0
    %v3434 = vadd.f32 0.0, %v3433
    %v3435 = vpop.f32.mrb[0].mxu0
    %3436 = vmatprep.mubr.f32.mxu0 0.0
    %3437 = vmatmul.mubr.f32.gmra.mrb[0].mxu0 %v3335
    %v3438 = vpop.f32.mrb[0].mxu0
    %v3439 = vadd.f32 0.0, %v3438
    %v3440 = vpop.f32.mrb[0].mxu0
    %3441 = vdwg.mxu0
    %v3442 = vadd.f32 %v3293, %v3404
    %v3443 = vadd.f32 %v3294, %v3409
    %v3444 = vadd.f32 %v3295, %v3414
    %v3445 = vadd.f32 %v3296, %v3419
    %v3446 = vadd.f32 %v3297, %v3424
    %v3447 = vadd.f32 %v3298, %v3429
    %v3448 = vadd.f32 %v3299, %v3434
    %v3449 = vadd.f32 %v3300, %v3439
    %v3450 = vld [vmem:[#allocation3 + $0x5] sm:$0xff]
    %v3451 = vld [vmem:[#allocation3 + $0xd] sm:$0xff]
    %v3452 = vld [vmem:[#allocation3 + $0x15] sm:$0xff]
    %v3453 = vld [vmem:[#allocation3 + $0x1d] sm:$0xff]
    %v3454 = vld [vmem:[#allocation3 + $0x35] sm:$0xff]
    %v3455 = vld [vmem:[#allocation3 + $0x3d] sm:$0xff]
    %v3456 = vld [vmem:[#allocation3 + $0x45] sm:$0xff]
    %v3457 = vld [vmem:[#allocation3 + $0x4d] sm:$0xff]
    %s3458 = scalar_lea.vmem [#allocation6], 96
    %v3459 = vld [vmem:[%s3458] sm:$0xff]
    %v3460 = vld [vmem:[%s3458 + $0x8] sm:$0xff]
    %v3461 = vld [vmem:[%s3458 + $0x10] sm:$0xff]
    %v3463 = vsel %vm2552, %v3450, 0
    %v3466 = vsel %vm2552, %v3451, 0
    %v3469 = vsel %vm2552, %v3452, 0
    %v3472 = vsel %vm2552, %v3453, 0
    %v3475 = vsel %vm2552, %v3454, 0
    %v3478 = vsel %vm2552, %v3455, 0
    %v3481 = vsel %vm2552, %v3456, 0
    %v3484 = vsel %vm2552, %v3457, 0
    %3486 = vmatprep.subr.mxu0 0.0
    %3487 = vmatpush1.msra.mxu0 %v3459
    %3488 = vmatprep.subr.mxu0 0.0
    %3489 = vmatpush1.msra.mxu0 %v3460
    %3490 = vmatprep.subr.mxu0 0.0
    %3491 = vmatpush1.msra.mxu0 %v3461
    %3492 = vmatprep.subr.mxu0 0.0
    %3493 = vmatpush1.msra.mxu0 0.0
    %3494 = vmatprep.subr.mxu0 0.0
    %3495 = vmatpush1.msra.mxu0 0.0
    %3496 = vmatprep.subr.mxu0 0.0
    %3497 = vmatpush1.msra.mxu0 0.0
    %3498 = vmatprep.subr.mxu0 0.0
    %3499 = vmatpush1.msra.mxu0 0.0
    %3500 = vmatprep.subr.mxu0 0.0
    %3501 = vmatpush1.msra.mxu0 0.0
    %3502 = vmatprep.subr.mxu0 0.0
    %3503 = vmatpush1.msra.mxu0 0.0
    %3504 = vmatprep.subr.mxu0 0.0
    %3505 = vmatpush1.msra.mxu0 0.0
    %3506 = vmatprep.subr.mxu0 0.0
    %3507 = vmatpush1.msra.mxu0 0.0
    %3508 = vmatprep.subr.mxu0 0.0
    %3509 = vmatpush1.msra.mxu0 0.0
    %3510 = vmatprep.subr.mxu0 0.0
    %3511 = vmatpush1.msra.mxu0 0.0
    %3512 = vmatprep.subr.mxu0 0.0
    %3513 = vmatpush1.msra.mxu0 0.0
    %3514 = vmatprep.subr.mxu0 0.0
    %3515 = vmatpush1.msra.mxu0 0.0
    %3516 = vmatprep.subr.mxu0 0.0
    %3517 = vmatpush1.msra.mxu0 0.0
    %3518 = vmatprep.subr.mxu0 0.0
    %3519 = vmatpush1.msra.mxu0 0.0
    %3520 = vmatprep.subr.mxu0 0.0
    %3521 = vmatpush1.msra.mxu0 0.0
    %3522 = vmatprep.subr.mxu0 0.0
    %3523 = vmatpush1.msra.mxu0 0.0
    %3524 = vmatprep.subr.mxu0 0.0
    %3525 = vmatpush1.msra.mxu0 0.0
    %3526 = vmatprep.subr.mxu0 0.0
    %3527 = vmatpush1.msra.mxu0 0.0
    %3528 = vmatprep.subr.mxu0 0.0
    %3529 = vmatpush1.msra.mxu0 0.0
    %3530 = vmatprep.subr.mxu0 0.0
    %3531 = vmatpush1.msra.mxu0 0.0
    %3532 = vmatprep.subr.mxu0 0.0
    %3533 = vmatpush1.msra.mxu0 0.0
    %3534 = vmatprep.subr.mxu0 0.0
    %3535 = vmatpush1.msra.mxu0 0.0
    %3536 = vmatprep.subr.mxu0 0.0
    %3537 = vmatpush1.msra.mxu0 0.0
    %3538 = vmatprep.subr.mxu0 0.0
    %3539 = vmatpush1.msra.mxu0 0.0
    %3540 = vmatprep.subr.mxu0 0.0
    %3541 = vmatpush1.msra.mxu0 0.0
    %3542 = vmatprep.subr.mxu0 0.0
    %3543 = vmatpush1.msra.mxu0 0.0
    %3544 = vmatprep.subr.mxu0 0.0
    %3545 = vmatpush1.msra.mxu0 0.0
    %3546 = vmatprep.subr.mxu0 0.0
    %3547 = vmatpush1.msra.mxu0 0.0
    %3548 = vmatprep.subr.mxu0 0.0
    %3549 = vmatpush1.msra.mxu0 0.0
    %3550 = vmatprep.mubr.f32.mxu0 0.0
    %3551 = vmatmul.mubr.f32.gmra.mrb[0].mxu0 %v3463
    %v3552 = vpop.f32.mrb[0].mxu0
    %v3553 = vadd.f32 0.0, %v3552
    %v3554 = vpop.f32.mrb[0].mxu0
    %3555 = vmatprep.mubr.f32.mxu0 0.0
    %3556 = vmatmul.mubr.f32.gmra.mrb[0].mxu0 %v3466
    %v3557 = vpop.f32.mrb[0].mxu0
    %v3558 = vadd.f32 0.0, %v3557
    %v3559 = vpop.f32.mrb[0].mxu0
    %3560 = vmatprep.mubr.f32.mxu0 0.0
    %3561 = vmatmul.mubr.f32.gmra.mrb[0].mxu0 %v3469
    %v3562 = vpop.f32.mrb[0].mxu0
    %v3563 = vadd.f32 0.0, %v3562
    %v3564 = vpop.f32.mrb[0].mxu0
    %3565 = vmatprep.mubr.f32.mxu0 0.0
    %3566 = vmatmul.mubr.f32.gmra.mrb[0].mxu0 %v3472
    %v3567 = vpop.f32.mrb[0].mxu0
    %v3568 = vadd.f32 0.0, %v3567
    %v3569 = vpop.f32.mrb[0].mxu0
    %3570 = vmatprep.mubr.f32.mxu0 0.0
    %3571 = vmatmul.mubr.f32.gmra.mrb[0].mxu0 %v3475
    %v3572 = vpop.f32.mrb[0].mxu0
    %v3573 = vadd.f32 0.0, %v3572
    %v3574 = vpop.f32.mrb[0].mxu0
    %3575 = vmatprep.mubr.f32.mxu0 0.0
    %3576 = vmatmul.mubr.f32.gmra.mrb[0].mxu0 %v3478
    %v3577 = vpop.f32.mrb[0].mxu0
    %v3578 = vadd.f32 0.0, %v3577
    %v3579 = vpop.f32.mrb[0].mxu0
    %3580 = vmatprep.mubr.f32.mxu0 0.0
    %3581 = vmatmul.mubr.f32.gmra.mrb[0].mxu0 %v3481
    %v3582 = vpop.f32.mrb[0].mxu0
    %v3583 = vadd.f32 0.0, %v3582
    %v3584 = vpop.f32.mrb[0].mxu0
    %3585 = vmatprep.mubr.f32.mxu0 0.0
    %3586 = vmatmul.mubr.f32.gmra.mrb[0].mxu0 %v3484
    %v3587 = vpop.f32.mrb[0].mxu0
    %v3588 = vadd.f32 0.0, %v3587
    %v3589 = vpop.f32.mrb[0].mxu0
    %3590 = vdwg.mxu0
    %v3591 = vadd.f32 %v3442, %v3553
    %v3592 = vadd.f32 %v3443, %v3558
    %v3593 = vadd.f32 %v3444, %v3563
    %v3594 = vadd.f32 %v3445, %v3568
    %v3595 = vadd.f32 %v3446, %v3573
    %v3596 = vadd.f32 %v3447, %v3578
    %v3597 = vadd.f32 %v3448, %v3583
    %v3598 = vadd.f32 %v3449, %v3588
    %v3599 = vld [vmem:[#allocation3 + $0x6] sm:$0xff]
    %v3600 = vld [vmem:[#allocation3 + $0xe] sm:$0xff]
    %v3601 = vld [vmem:[#allocation3 + $0x16] sm:$0xff]
    %v3602 = vld [vmem:[#allocation3 + $0x1e] sm:$0xff]
    %v3603 = vld [vmem:[#allocation3 + $0x36] sm:$0xff]
    %v3604 = vld [vmem:[#allocation3 + $0x3e] sm:$0xff]
    %v3605 = vld [vmem:[#allocation3 + $0x46] sm:$0xff]
    %v3606 = vld [vmem:[#allocation3 + $0x4e] sm:$0xff]
    %s3607 = scalar_lea.vmem [#allocation6], 120
    %v3608 = vld [vmem:[%s3607] sm:$0xff]
    %v3609 = vld [vmem:[%s3607 + $0x8] sm:$0xff]
    %v3610 = vld [vmem:[%s3607 + $0x10] sm:$0xff]
    %v3612 = vsel %vm2552, %v3599, 0
    %v3615 = vsel %vm2552, %v3600, 0
    %v3618 = vsel %vm2552, %v3601, 0
    %v3621 = vsel %vm2552, %v3602, 0
    %v3624 = vsel %vm2552, %v3603, 0
    %v3627 = vsel %vm2552, %v3604, 0
    %v3630 = vsel %vm2552, %v3605, 0
    %v3633 = vsel %vm2552, %v3606, 0
    %3635 = vmatprep.subr.mxu0 0.0
    %3636 = vmatpush1.msra.mxu0 %v3608
    %3637 = vmatprep.subr.mxu0 0.0
    %3638 = vmatpush1.msra.mxu0 %v3609
    %3639 = vmatprep.subr.mxu0 0.0
    %3640 = vmatpush1.msra.mxu0 %v3610
    %3641 = vmatprep.subr.mxu0 0.0
    %3642 = vmatpush1.msra.mxu0 0.0
    %3643 = vmatprep.subr.mxu0 0.0
    %3644 = vmatpush1.msra.mxu0 0.0
    %3645 = vmatprep.subr.mxu0 0.0
    %3646 = vmatpush1.msra.mxu0 0.0
    %3647 = vmatprep.subr.mxu0 0.0
    %3648 = vmatpush1.msra.mxu0 0.0
    %3649 = vmatprep.subr.mxu0 0.0
    %3650 = vmatpush1.msra.mxu0 0.0
    %3651 = vmatprep.subr.mxu0 0.0
    %3652 = vmatpush1.msra.mxu0 0.0
    %3653 = vmatprep.subr.mxu0 0.0
    %3654 = vmatpush1.msra.mxu0 0.0
    %3655 = vmatprep.subr.mxu0 0.0
    %3656 = vmatpush1.msra.mxu0 0.0
    %3657 = vmatprep.subr.mxu0 0.0
    %3658 = vmatpush1.msra.mxu0 0.0
    %3659 = vmatprep.subr.mxu0 0.0
    %3660 = vmatpush1.msra.mxu0 0.0
    %3661 = vmatprep.subr.mxu0 0.0
    %3662 = vmatpush1.msra.mxu0 0.0
    %3663 = vmatprep.subr.mxu0 0.0
    %3664 = vmatpush1.msra.mxu0 0.0
    %3665 = vmatprep.subr.mxu0 0.0
    %3666 = vmatpush1.msra.mxu0 0.0
    %3667 = vmatprep.subr.mxu0 0.0
    %3668 = vmatpush1.msra.mxu0 0.0
    %3669 = vmatprep.subr.mxu0 0.0
    %3670 = vmatpush1.msra.mxu0 0.0
    %3671 = vmatprep.subr.mxu0 0.0
    %3672 = vmatpush1.msra.mxu0 0.0
    %3673 = vmatprep.subr.mxu0 0.0
    %3674 = vmatpush1.msra.mxu0 0.0
    %3675 = vmatprep.subr.mxu0 0.0
    %3676 = vmatpush1.msra.mxu0 0.0
    %3677 = vmatprep.subr.mxu0 0.0
    %3678 = vmatpush1.msra.mxu0 0.0
    %3679 = vmatprep.subr.mxu0 0.0
    %3680 = vmatpush1.msra.mxu0 0.0
    %3681 = vmatprep.subr.mxu0 0.0
    %3682 = vmatpush1.msra.mxu0 0.0
    %3683 = vmatprep.subr.mxu0 0.0
    %3684 = vmatpush1.msra.mxu0 0.0
    %3685 = vmatprep.subr.mxu0 0.0
    %3686 = vmatpush1.msra.mxu0 0.0
    %3687 = vmatprep.subr.mxu0 0.0
    %3688 = vmatpush1.msra.mxu0 0.0
    %3689 = vmatprep.subr.mxu0 0.0
    %3690 = vmatpush1.msra.mxu0 0.0
    %3691 = vmatprep.subr.mxu0 0.0
    %3692 = vmatpush1.msra.mxu0 0.0
    %3693 = vmatprep.subr.mxu0 0.0
    %3694 = vmatpush1.msra.mxu0 0.0
    %3695 = vmatprep.subr.mxu0 0.0
    %3696 = vmatpush1.msra.mxu0 0.0
    %3697 = vmatprep.subr.mxu0 0.0
    %3698 = vmatpush1.msra.mxu0 0.0
    %3699 = vmatprep.mubr.f32.mxu0 0.0
    %3700 = vmatmul.mubr.f32.gmra.mrb[0].mxu0 %v3612
    %v3701 = vpop.f32.mrb[0].mxu0
    %v3702 = vadd.f32 0.0, %v3701
    %v3703 = vpop.f32.mrb[0].mxu0
    %3704 = vmatprep.mubr.f32.mxu0 0.0
    %3705 = vmatmul.mubr.f32.gmra.mrb[0].mxu0 %v3615
    %v3706 = vpop.f32.mrb[0].mxu0
    %v3707 = vadd.f32 0.0, %v3706
    %v3708 = vpop.f32.mrb[0].mxu0
    %3709 = vmatprep.mubr.f32.mxu0 0.0
    %3710 = vmatmul.mubr.f32.gmra.mrb[0].mxu0 %v3618
    %v3711 = vpop.f32.mrb[0].mxu0
    %v3712 = vadd.f32 0.0, %v3711
    %v3713 = vpop.f32.mrb[0].mxu0
    %3714 = vmatprep.mubr.f32.mxu0 0.0
    %3715 = vmatmul.mubr.f32.gmra.mrb[0].mxu0 %v3621
    %v3716 = vpop.f32.mrb[0].mxu0
    %v3717 = vadd.f32 0.0, %v3716
    %v3718 = vpop.f32.mrb[0].mxu0
    %3719 = vmatprep.mubr.f32.mxu0 0.0
    %3720 = vmatmul.mubr.f32.gmra.mrb[0].mxu0 %v3624
    %v3721 = vpop.f32.mrb[0].mxu0
    %v3722 = vadd.f32 0.0, %v3721
    %v3723 = vpop.f32.mrb[0].mxu0
    %3724 = vmatprep.mubr.f32.mxu0 0.0
    %3725 = vmatmul.mubr.f32.gmra.mrb[0].mxu0 %v3627
    %v3726 = vpop.f32.mrb[0].mxu0
    %v3727 = vadd.f32 0.0, %v3726
    %v3728 = vpop.f32.mrb[0].mxu0
    %3729 = vmatprep.mubr.f32.mxu0 0.0
    %3730 = vmatmul.mubr.f32.gmra.mrb[0].mxu0 %v3630
    %v3731 = vpop.f32.mrb[0].mxu0
    %v3732 = vadd.f32 0.0, %v3731
    %v3733 = vpop.f32.mrb[0].mxu0
    %3734 = vmatprep.mubr.f32.mxu0 0.0
    %3735 = vmatmul.mubr.f32.gmra.mrb[0].mxu0 %v3633
    %v3736 = vpop.f32.mrb[0].mxu0
    %v3737 = vadd.f32 0.0, %v3736
    %v3738 = vpop.f32.mrb[0].mxu0
    %3739 = vdwg.mxu0
    %v3740 = vadd.f32 %v3591, %v3702
    %v3741 = vadd.f32 %v3592, %v3707
    %v3742 = vadd.f32 %v3593, %v3712
    %v3743 = vadd.f32 %v3594, %v3717
    %v3744 = vadd.f32 %v3595, %v3722
    %v3745 = vadd.f32 %v3596, %v3727
    %v3746 = vadd.f32 %v3597, %v3732
    %v3747 = vadd.f32 %v3598, %v3737
    %v3748 = vld [vmem:[#allocation3 + $0x7] sm:$0xff]
    %v3749 = vld [vmem:[#allocation3 + $0xf] sm:$0xff]
    %v3750 = vld [vmem:[#allocation3 + $0x17] sm:$0xff]
    %v3751 = vld [vmem:[#allocation3 + $0x1f] sm:$0xff]
    %v3752 = vld [vmem:[#allocation3 + $0x37] sm:$0xff]
    %v3753 = vld [vmem:[#allocation3 + $0x3f] sm:$0xff]
    %v3754 = vld [vmem:[#allocation3 + $0x47] sm:$0xff]
    %v3755 = vld [vmem:[#allocation3 + $0x4f] sm:$0xff]
    %s3756 = scalar_lea.vmem [#allocation6], 144
    %v3757 = vld [vmem:[%s3756] sm:$0xff]
    %v3758 = vld [vmem:[%s3756 + $0x8] sm:$0xff]
    %v3759 = vld [vmem:[%s3756 + $0x10] sm:$0xff]
    %v3761 = vsel %vm2552, %v3748, 0
    %v3764 = vsel %vm2552, %v3749, 0
    %v3767 = vsel %vm2552, %v3750, 0
    %v3770 = vsel %vm2552, %v3751, 0
    %v3773 = vsel %vm2552, %v3752, 0
    %v3776 = vsel %vm2552, %v3753, 0
    %v3779 = vsel %vm2552, %v3754, 0
    %v3782 = vsel %vm2552, %v3755, 0
    %3784 = vmatprep.subr.mxu0 0.0
    %3785 = vmatpush1.msra.mxu0 %v3757
    %3786 = vmatprep.subr.mxu0 0.0
    %3787 = vmatpush1.msra.mxu0 %v3758
    %3788 = vmatprep.subr.mxu0 0.0
    %3789 = vmatpush1.msra.mxu0 %v3759
    %3790 = vmatprep.subr.mxu0 0.0
    %3791 = vmatpush1.msra.mxu0 0.0
    %3792 = vmatprep.subr.mxu0 0.0
    %3793 = vmatpush1.msra.mxu0 0.0
    %3794 = vmatprep.subr.mxu0 0.0
    %3795 = vmatpush1.msra.mxu0 0.0
    %3796 = vmatprep.subr.mxu0 0.0
    %3797 = vmatpush1.msra.mxu0 0.0
    %3798 = vmatprep.subr.mxu0 0.0
    %3799 = vmatpush1.msra.mxu0 0.0
    %3800 = vmatprep.subr.mxu0 0.0
    %3801 = vmatpush1.msra.mxu0 0.0
    %3802 = vmatprep.subr.mxu0 0.0
    %3803 = vmatpush1.msra.mxu0 0.0
    %3804 = vmatprep.subr.mxu0 0.0
    %3805 = vmatpush1.msra.mxu0 0.0
    %3806 = vmatprep.subr.mxu0 0.0
    %3807 = vmatpush1.msra.mxu0 0.0
    %3808 = vmatprep.subr.mxu0 0.0
    %3809 = vmatpush1.msra.mxu0 0.0
    %3810 = vmatprep.subr.mxu0 0.0
    %3811 = vmatpush1.msra.mxu0 0.0
    %3812 = vmatprep.subr.mxu0 0.0
    %3813 = vmatpush1.msra.mxu0 0.0
    %3814 = vmatprep.subr.mxu0 0.0
    %3815 = vmatpush1.msra.mxu0 0.0
    %3816 = vmatprep.subr.mxu0 0.0
    %3817 = vmatpush1.msra.mxu0 0.0
    %3818 = vmatprep.subr.mxu0 0.0
    %3819 = vmatpush1.msra.mxu0 0.0
    %3820 = vmatprep.subr.mxu0 0.0
    %3821 = vmatpush1.msra.mxu0 0.0
    %3822 = vmatprep.subr.mxu0 0.0
    %3823 = vmatpush1.msra.mxu0 0.0
    %3824 = vmatprep.subr.mxu0 0.0
    %3825 = vmatpush1.msra.mxu0 0.0
    %3826 = vmatprep.subr.mxu0 0.0
    %3827 = vmatpush1.msra.mxu0 0.0
    %3828 = vmatprep.subr.mxu0 0.0
    %3829 = vmatpush1.msra.mxu0 0.0
    %3830 = vmatprep.subr.mxu0 0.0
    %3831 = vmatpush1.msra.mxu0 0.0
    %3832 = vmatprep.subr.mxu0 0.0
    %3833 = vmatpush1.msra.mxu0 0.0
    %3834 = vmatprep.subr.mxu0 0.0
    %3835 = vmatpush1.msra.mxu0 0.0
    %3836 = vmatprep.subr.mxu0 0.0
    %3837 = vmatpush1.msra.mxu0 0.0
    %3838 = vmatprep.subr.mxu0 0.0
    %3839 = vmatpush1.msra.mxu0 0.0
    %3840 = vmatprep.subr.mxu0 0.0
    %3841 = vmatpush1.msra.mxu0 0.0
    %3842 = vmatprep.subr.mxu0 0.0
    %3843 = vmatpush1.msra.mxu0 0.0
    %3844 = vmatprep.subr.mxu0 0.0
    %3845 = vmatpush1.msra.mxu0 0.0
    %3846 = vmatprep.subr.mxu0 0.0
    %3847 = vmatpush1.msra.mxu0 0.0
    %3848 = vmatprep.mubr.f32.mxu0 0.0
    %3849 = vmatmul.mubr.f32.gmra.mrb[0].mxu0 %v3761
    %v3850 = vpop.f32.mrb[0].mxu0
    %v3851 = vadd.f32 0.0, %v3850
    %v3852 = vpop.f32.mrb[0].mxu0
    %3853 = vmatprep.mubr.f32.mxu0 0.0
    %3854 = vmatmul.mubr.f32.gmra.mrb[0].mxu0 %v3764
    %v3855 = vpop.f32.mrb[0].mxu0
    %v3856 = vadd.f32 0.0, %v3855
    %v3857 = vpop.f32.mrb[0].mxu0
    %3858 = vmatprep.mubr.f32.mxu0 0.0
    %3859 = vmatmul.mubr.f32.gmra.mrb[0].mxu0 %v3767
    %v3860 = vpop.f32.mrb[0].mxu0
    %v3861 = vadd.f32 0.0, %v3860
    %v3862 = vpop.f32.mrb[0].mxu0
    %3863 = vmatprep.mubr.f32.mxu0 0.0
    %3864 = vmatmul.mubr.f32.gmra.mrb[0].mxu0 %v3770
    %v3865 = vpop.f32.mrb[0].mxu0
    %v3866 = vadd.f32 0.0, %v3865
    %v3867 = vpop.f32.mrb[0].mxu0
    %3868 = vmatprep.mubr.f32.mxu0 0.0
    %3869 = vmatmul.mubr.f32.gmra.mrb[0].mxu0 %v3773
    %v3870 = vpop.f32.mrb[0].mxu0
    %v3871 = vadd.f32 0.0, %v3870
    %v3872 = vpop.f32.mrb[0].mxu0
    %3873 = vmatprep.mubr.f32.mxu0 0.0
    %3874 = vmatmul.mubr.f32.gmra.mrb[0].mxu0 %v3776
    %v3875 = vpop.f32.mrb[0].mxu0
    %v3876 = vadd.f32 0.0, %v3875
    %v3877 = vpop.f32.mrb[0].mxu0
    %3878 = vmatprep.mubr.f32.mxu0 0.0
    %3879 = vmatmul.mubr.f32.gmra.mrb[0].mxu0 %v3779
    %v3880 = vpop.f32.mrb[0].mxu0
    %v3881 = vadd.f32 0.0, %v3880
    %v3882 = vpop.f32.mrb[0].mxu0
    %3883 = vmatprep.mubr.f32.mxu0 0.0
    %3884 = vmatmul.mubr.f32.gmra.mrb[0].mxu0 %v3782
    %v3885 = vpop.f32.mrb[0].mxu0
    %v3886 = vadd.f32 0.0, %v3885
    %v3887 = vpop.f32.mrb[0].mxu0
    %3888 = vdwg.mxu0
    %v3889 = vadd.f32 %v3740, %v3851
    %v3890 = vadd.f32 %v3741, %v3856
    %v3891 = vadd.f32 %v3742, %v3861
    %v3892 = vadd.f32 %v3743, %v3866
    %v3893 = vadd.f32 %v3744, %v3871
    %v3894 = vadd.f32 %v3745, %v3876
    %v3895 = vadd.f32 %v3746, %v3881
    %v3896 = vadd.f32 %v3747, %v3886
    %v3897 = vld [vmem:[#allocation3 + $0x8] sm:$0xff]
    %v3898 = vld [vmem:[#allocation3 + $0x10] sm:$0xff]
    %v3899 = vld [vmem:[#allocation3 + $0x18] sm:$0xff]
    %v3900 = vld [vmem:[#allocation3 + $0x20] sm:$0xff]
    %v3901 = vld [vmem:[#allocation3 + $0x38] sm:$0xff]
    %v3902 = vld [vmem:[#allocation3 + $0x40] sm:$0xff]
    %v3903 = vld [vmem:[#allocation3 + $0x48] sm:$0xff]
    %v3904 = vld [vmem:[#allocation3 + $0x50] sm:$0xff]
    %s3905 = scalar_lea.vmem [#allocation6], 168
    %v3906 = vld [vmem:[%s3905] sm:$0xff]
    %v3907 = vld [vmem:[%s3905 + $0x8] sm:$0xff]
    %v3908 = vld [vmem:[%s3905 + $0x10] sm:$0xff]
    %v3910 = vsel %vm2552, %v3897, 0
    %v3913 = vsel %vm2552, %v3898, 0
    %v3916 = vsel %vm2552, %v3899, 0
    %v3919 = vsel %vm2552, %v3900, 0
    %v3922 = vsel %vm2552, %v3901, 0
    %v3925 = vsel %vm2552, %v3902, 0
    %v3928 = vsel %vm2552, %v3903, 0
    %v3931 = vsel %vm2552, %v3904, 0
    %3933 = vmatprep.subr.mxu0 0.0
    %3934 = vmatpush1.msra.mxu0 %v3906
    %3935 = vmatprep.subr.mxu0 0.0
    %3936 = vmatpush1.msra.mxu0 %v3907
    %3937 = vmatprep.subr.mxu0 0.0
    %3938 = vmatpush1.msra.mxu0 %v3908
    %3939 = vmatprep.subr.mxu0 0.0
    %3940 = vmatpush1.msra.mxu0 0.0
    %3941 = vmatprep.subr.mxu0 0.0
    %3942 = vmatpush1.msra.mxu0 0.0
    %3943 = vmatprep.subr.mxu0 0.0
    %3944 = vmatpush1.msra.mxu0 0.0
    %3945 = vmatprep.subr.mxu0 0.0
    %3946 = vmatpush1.msra.mxu0 0.0
    %3947 = vmatprep.subr.mxu0 0.0
    %3948 = vmatpush1.msra.mxu0 0.0
    %3949 = vmatprep.subr.mxu0 0.0
    %3950 = vmatpush1.msra.mxu0 0.0
    %3951 = vmatprep.subr.mxu0 0.0
    %3952 = vmatpush1.msra.mxu0 0.0
    %3953 = vmatprep.subr.mxu0 0.0
    %3954 = vmatpush1.msra.mxu0 0.0
    %3955 = vmatprep.subr.mxu0 0.0
    %3956 = vmatpush1.msra.mxu0 0.0
    %3957 = vmatprep.subr.mxu0 0.0
    %3958 = vmatpush1.msra.mxu0 0.0
    %3959 = vmatprep.subr.mxu0 0.0
    %3960 = vmatpush1.msra.mxu0 0.0
    %3961 = vmatprep.subr.mxu0 0.0
    %3962 = vmatpush1.msra.mxu0 0.0
    %3963 = vmatprep.subr.mxu0 0.0
    %3964 = vmatpush1.msra.mxu0 0.0
    %3965 = vmatprep.subr.mxu0 0.0
    %3966 = vmatpush1.msra.mxu0 0.0
    %3967 = vmatprep.subr.mxu0 0.0
    %3968 = vmatpush1.msra.mxu0 0.0
    %3969 = vmatprep.subr.mxu0 0.0
    %3970 = vmatpush1.msra.mxu0 0.0
    %3971 = vmatprep.subr.mxu0 0.0
    %3972 = vmatpush1.msra.mxu0 0.0
    %3973 = vmatprep.subr.mxu0 0.0
    %3974 = vmatpush1.msra.mxu0 0.0
    %3975 = vmatprep.subr.mxu0 0.0
    %3976 = vmatpush1.msra.mxu0 0.0
    %3977 = vmatprep.subr.mxu0 0.0
    %3978 = vmatpush1.msra.mxu0 0.0
    %3979 = vmatprep.subr.mxu0 0.0
    %3980 = vmatpush1.msra.mxu0 0.0
    %3981 = vmatprep.subr.mxu0 0.0
    %3982 = vmatpush1.msra.mxu0 0.0
    %3983 = vmatprep.subr.mxu0 0.0
    %3984 = vmatpush1.msra.mxu0 0.0
    %3985 = vmatprep.subr.mxu0 0.0
    %3986 = vmatpush1.msra.mxu0 0.0
    %3987 = vmatprep.subr.mxu0 0.0
    %3988 = vmatpush1.msra.mxu0 0.0
    %3989 = vmatprep.subr.mxu0 0.0
    %3990 = vmatpush1.msra.mxu0 0.0
    %3991 = vmatprep.subr.mxu0 0.0
    %3992 = vmatpush1.msra.mxu0 0.0
    %3993 = vmatprep.subr.mxu0 0.0
    %3994 = vmatpush1.msra.mxu0 0.0
    %3995 = vmatprep.subr.mxu0 0.0
    %3996 = vmatpush1.msra.mxu0 0.0
    %3997 = vmatprep.mubr.f32.mxu0 0.0
    %3998 = vmatmul.mubr.f32.gmra.mrb[0].mxu0 %v3910
    %v3999 = vpop.f32.mrb[0].mxu0
    %v4000 = vadd.f32 0.0, %v3999
    %v4001 = vpop.f32.mrb[0].mxu0
    %4002 = vmatprep.mubr.f32.mxu0 0.0
    %4003 = vmatmul.mubr.f32.gmra.mrb[0].mxu0 %v3913
    %v4004 = vpop.f32.mrb[0].mxu0
    %v4005 = vadd.f32 0.0, %v4004
    %v4006 = vpop.f32.mrb[0].mxu0
    %4007 = vmatprep.mubr.f32.mxu0 0.0
    %4008 = vmatmul.mubr.f32.gmra.mrb[0].mxu0 %v3916
    %v4009 = vpop.f32.mrb[0].mxu0
    %v4010 = vadd.f32 0.0, %v4009
    %v4011 = vpop.f32.mrb[0].mxu0
    %4012 = vmatprep.mubr.f32.mxu0 0.0
    %4013 = vmatmul.mubr.f32.gmra.mrb[0].mxu0 %v3919
    %v4014 = vpop.f32.mrb[0].mxu0
    %v4015 = vadd.f32 0.0, %v4014
    %v4016 = vpop.f32.mrb[0].mxu0
    %4017 = vmatprep.mubr.f32.mxu0 0.0
    %4018 = vmatmul.mubr.f32.gmra.mrb[0].mxu0 %v3922
    %v4019 = vpop.f32.mrb[0].mxu0
    %v4020 = vadd.f32 0.0, %v4019
    %v4021 = vpop.f32.mrb[0].mxu0
    %4022 = vmatprep.mubr.f32.mxu0 0.0
    %4023 = vmatmul.mubr.f32.gmra.mrb[0].mxu0 %v3925
    %v4024 = vpop.f32.mrb[0].mxu0
    %v4025 = vadd.f32 0.0, %v4024
    %v4026 = vpop.f32.mrb[0].mxu0
    %4027 = vmatprep.mubr.f32.mxu0 0.0
    %4028 = vmatmul.mubr.f32.gmra.mrb[0].mxu0 %v3928
    %v4029 = vpop.f32.mrb[0].mxu0
    %v4030 = vadd.f32 0.0, %v4029
    %v4031 = vpop.f32.mrb[0].mxu0
    %4032 = vmatprep.mubr.f32.mxu0 0.0
    %4033 = vmatmul.mubr.f32.gmra.mrb[0].mxu0 %v3931
    %v4034 = vpop.f32.mrb[0].mxu0
    %v4035 = vadd.f32 0.0, %v4034
    %v4036 = vpop.f32.mrb[0].mxu0
    %4037 = vdwg.mxu0
    %v4038 = vadd.f32 %v3889, %v4000
    %v4039 = vadd.f32 %v3890, %v4005
    %v4040 = vadd.f32 %v3891, %v4010
    %v4041 = vadd.f32 %v3892, %v4015
    %v4042 = vadd.f32 %v3893, %v4020
    %v4043 = vadd.f32 %v3894, %v4025
    %v4044 = vadd.f32 %v3895, %v4030
    %v4045 = vadd.f32 %v3896, %v4035
    %v4046 = vld [vmem:[#allocation3 + $0x9] sm:$0xff]
    %v4047 = vld [vmem:[#allocation3 + $0x11] sm:$0xff]
    %v4048 = vld [vmem:[#allocation3 + $0x19] sm:$0xff]
    %v4049 = vld [vmem:[#allocation3 + $0x21] sm:$0xff]
    %v4050 = vld [vmem:[#allocation3 + $0x39] sm:$0xff]
    %v4051 = vld [vmem:[#allocation3 + $0x41] sm:$0xff]
    %v4052 = vld [vmem:[#allocation3 + $0x49] sm:$0xff]
    %v4053 = vld [vmem:[#allocation3 + $0x51] sm:$0xff]
    %s4054 = scalar_lea.vmem [#allocation6], 192
    %v4055 = vld [vmem:[%s4054] sm:$0xff]
    %v4056 = vld [vmem:[%s4054 + $0x8] sm:$0xff]
    %v4057 = vld [vmem:[%s4054 + $0x10] sm:$0xff]
    %v4059 = vsel %vm2552, %v4046, 0
    %v4062 = vsel %vm2552, %v4047, 0
    %v4065 = vsel %vm2552, %v4048, 0
    %v4068 = vsel %vm2552, %v4049, 0
    %v4071 = vsel %vm2552, %v4050, 0
    %v4074 = vsel %vm2552, %v4051, 0
    %v4077 = vsel %vm2552, %v4052, 0
    %v4080 = vsel %vm2552, %v4053, 0
    %4082 = vmatprep.subr.mxu0 0.0
    %4083 = vmatpush1.msra.mxu0 %v4055
    %4084 = vmatprep.subr.mxu0 0.0
    %4085 = vmatpush1.msra.mxu0 %v4056
    %4086 = vmatprep.subr.mxu0 0.0
    %4087 = vmatpush1.msra.mxu0 %v4057
    %4088 = vmatprep.subr.mxu0 0.0
    %4089 = vmatpush1.msra.mxu0 0.0
    %4090 = vmatprep.subr.mxu0 0.0
    %4091 = vmatpush1.msra.mxu0 0.0
    %4092 = vmatprep.subr.mxu0 0.0
    %4093 = vmatpush1.msra.mxu0 0.0
    %4094 = vmatprep.subr.mxu0 0.0
    %4095 = vmatpush1.msra.mxu0 0.0
    %4096 = vmatprep.subr.mxu0 0.0
    %4097 = vmatpush1.msra.mxu0 0.0
    %4098 = vmatprep.subr.mxu0 0.0
    %4099 = vmatpush1.msra.mxu0 0.0
    %4100 = vmatprep.subr.mxu0 0.0
    %4101 = vmatpush1.msra.mxu0 0.0
    %4102 = vmatprep.subr.mxu0 0.0
    %4103 = vmatpush1.msra.mxu0 0.0
    %4104 = vmatprep.subr.mxu0 0.0
    %4105 = vmatpush1.msra.mxu0 0.0
    %4106 = vmatprep.subr.mxu0 0.0
    %4107 = vmatpush1.msra.mxu0 0.0
    %4108 = vmatprep.subr.mxu0 0.0
    %4109 = vmatpush1.msra.mxu0 0.0
    %4110 = vmatprep.subr.mxu0 0.0
    %4111 = vmatpush1.msra.mxu0 0.0
    %4112 = vmatprep.subr.mxu0 0.0
    %4113 = vmatpush1.msra.mxu0 0.0
    %4114 = vmatprep.subr.mxu0 0.0
    %4115 = vmatpush1.msra.mxu0 0.0
    %4116 = vmatprep.subr.mxu0 0.0
    %4117 = vmatpush1.msra.mxu0 0.0
    %4118 = vmatprep.subr.mxu0 0.0
    %4119 = vmatpush1.msra.mxu0 0.0
    %4120 = vmatprep.subr.mxu0 0.0
    %4121 = vmatpush1.msra.mxu0 0.0
    %4122 = vmatprep.subr.mxu0 0.0
    %4123 = vmatpush1.msra.mxu0 0.0
    %4124 = vmatprep.subr.mxu0 0.0
    %4125 = vmatpush1.msra.mxu0 0.0
    %4126 = vmatprep.subr.mxu0 0.0
    %4127 = vmatpush1.msra.mxu0 0.0
    %4128 = vmatprep.subr.mxu0 0.0
    %4129 = vmatpush1.msra.mxu0 0.0
    %4130 = vmatprep.subr.mxu0 0.0
    %4131 = vmatpush1.msra.mxu0 0.0
    %4132 = vmatprep.subr.mxu0 0.0
    %4133 = vmatpush1.msra.mxu0 0.0
    %4134 = vmatprep.subr.mxu0 0.0
    %4135 = vmatpush1.msra.mxu0 0.0
    %4136 = vmatprep.subr.mxu0 0.0
    %4137 = vmatpush1.msra.mxu0 0.0
    %4138 = vmatprep.subr.mxu0 0.0
    %4139 = vmatpush1.msra.mxu0 0.0
    %4140 = vmatprep.subr.mxu0 0.0
    %4141 = vmatpush1.msra.mxu0 0.0
    %4142 = vmatprep.subr.mxu0 0.0
    %4143 = vmatpush1.msra.mxu0 0.0
    %4144 = vmatprep.subr.mxu0 0.0
    %4145 = vmatpush1.msra.mxu0 0.0
    %4146 = vmatprep.mubr.f32.mxu0 0.0
    %4147 = vmatmul.mubr.f32.gmra.mrb[0].mxu0 %v4059
    %v4148 = vpop.f32.mrb[0].mxu0
    %v4149 = vadd.f32 0.0, %v4148
    %v4150 = vpop.f32.mrb[0].mxu0
    %4151 = vmatprep.mubr.f32.mxu0 0.0
    %4152 = vmatmul.mubr.f32.gmra.mrb[0].mxu0 %v4062
    %v4153 = vpop.f32.mrb[0].mxu0
    %v4154 = vadd.f32 0.0, %v4153
    %v4155 = vpop.f32.mrb[0].mxu0
    %4156 = vmatprep.mubr.f32.mxu0 0.0
    %4157 = vmatmul.mubr.f32.gmra.mrb[0].mxu0 %v4065
    %v4158 = vpop.f32.mrb[0].mxu0
    %v4159 = vadd.f32 0.0, %v4158
    %v4160 = vpop.f32.mrb[0].mxu0
    %4161 = vmatprep.mubr.f32.mxu0 0.0
    %4162 = vmatmul.mubr.f32.gmra.mrb[0].mxu0 %v4068
    %v4163 = vpop.f32.mrb[0].mxu0
    %v4164 = vadd.f32 0.0, %v4163
    %v4165 = vpop.f32.mrb[0].mxu0
    %4166 = vmatprep.mubr.f32.mxu0 0.0
    %4167 = vmatmul.mubr.f32.gmra.mrb[0].mxu0 %v4071
    %v4168 = vpop.f32.mrb[0].mxu0
    %v4169 = vadd.f32 0.0, %v4168
    %v4170 = vpop.f32.mrb[0].mxu0
    %4171 = vmatprep.mubr.f32.mxu0 0.0
    %4172 = vmatmul.mubr.f32.gmra.mrb[0].mxu0 %v4074
    %v4173 = vpop.f32.mrb[0].mxu0
    %v4174 = vadd.f32 0.0, %v4173
    %v4175 = vpop.f32.mrb[0].mxu0
    %4176 = vmatprep.mubr.f32.mxu0 0.0
    %4177 = vmatmul.mubr.f32.gmra.mrb[0].mxu0 %v4077
    %v4178 = vpop.f32.mrb[0].mxu0
    %v4179 = vadd.f32 0.0, %v4178
    %v4180 = vpop.f32.mrb[0].mxu0
    %4181 = vmatprep.mubr.f32.mxu0 0.0
    %4182 = vmatmul.mubr.f32.gmra.mrb[0].mxu0 %v4080
    %v4183 = vpop.f32.mrb[0].mxu0
    %v4184 = vadd.f32 0.0, %v4183
    %v4185 = vpop.f32.mrb[0].mxu0
    %4186 = vdwg.mxu0
    %v4187 = vadd.f32 %v4038, %v4149
    %v4188 = vadd.f32 %v4039, %v4154
    %v4189 = vadd.f32 %v4040, %v4159
    %v4190 = vadd.f32 %v4041, %v4164
    %v4191 = vadd.f32 %v4042, %v4169
    %v4192 = vadd.f32 %v4043, %v4174
    %v4193 = vadd.f32 %v4044, %v4179
    %v4194 = vadd.f32 %v4045, %v4184
    %v4195 = vld [vmem:[#allocation3 + $0xa] sm:$0xff]
    %v4196 = vld [vmem:[#allocation3 + $0x12] sm:$0xff]
    %v4197 = vld [vmem:[#allocation3 + $0x1a] sm:$0xff]
    %v4198 = vld [vmem:[#allocation3 + $0x22] sm:$0xff]
    %v4199 = vld [vmem:[#allocation3 + $0x3a] sm:$0xff]
    %v4200 = vld [vmem:[#allocation3 + $0x42] sm:$0xff]
    %v4201 = vld [vmem:[#allocation3 + $0x4a] sm:$0xff]
    %v4202 = vld [vmem:[#allocation3 + $0x52] sm:$0xff]
    %s4203 = scalar_lea.vmem [#allocation6], 216
    %v4204 = vld [vmem:[%s4203] sm:$0xff]
    %v4205 = vld [vmem:[%s4203 + $0x8] sm:$0xff]
    %v4206 = vld [vmem:[%s4203 + $0x10] sm:$0xff]
    %v4208 = vsel %vm2552, %v4195, 0
    %v4211 = vsel %vm2552, %v4196, 0
    %v4214 = vsel %vm2552, %v4197, 0
    %v4217 = vsel %vm2552, %v4198, 0
    %v4220 = vsel %vm2552, %v4199, 0
    %v4223 = vsel %vm2552, %v4200, 0
    %v4226 = vsel %vm2552, %v4201, 0
    %v4229 = vsel %vm2552, %v4202, 0
    %4231 = vmatprep.subr.mxu0 0.0
    %4232 = vmatpush1.msra.mxu0 %v4204
    %4233 = vmatprep.subr.mxu0 0.0
    %4234 = vmatpush1.msra.mxu0 %v4205
    %4235 = vmatprep.subr.mxu0 0.0
    %4236 = vmatpush1.msra.mxu0 %v4206
    %4237 = vmatprep.subr.mxu0 0.0
    %4238 = vmatpush1.msra.mxu0 0.0
    %4239 = vmatprep.subr.mxu0 0.0
    %4240 = vmatpush1.msra.mxu0 0.0
    %4241 = vmatprep.subr.mxu0 0.0
    %4242 = vmatpush1.msra.mxu0 0.0
    %4243 = vmatprep.subr.mxu0 0.0
    %4244 = vmatpush1.msra.mxu0 0.0
    %4245 = vmatprep.subr.mxu0 0.0
    %4246 = vmatpush1.msra.mxu0 0.0
    %4247 = vmatprep.subr.mxu0 0.0
    %4248 = vmatpush1.msra.mxu0 0.0
    %4249 = vmatprep.subr.mxu0 0.0
    %4250 = vmatpush1.msra.mxu0 0.0
    %4251 = vmatprep.subr.mxu0 0.0
    %4252 = vmatpush1.msra.mxu0 0.0
    %4253 = vmatprep.subr.mxu0 0.0
    %4254 = vmatpush1.msra.mxu0 0.0
    %4255 = vmatprep.subr.mxu0 0.0
    %4256 = vmatpush1.msra.mxu0 0.0
    %4257 = vmatprep.subr.mxu0 0.0
    %4258 = vmatpush1.msra.mxu0 0.0
    %4259 = vmatprep.subr.mxu0 0.0
    %4260 = vmatpush1.msra.mxu0 0.0
    %4261 = vmatprep.subr.mxu0 0.0
    %4262 = vmatpush1.msra.mxu0 0.0
    %4263 = vmatprep.subr.mxu0 0.0
    %4264 = vmatpush1.msra.mxu0 0.0
    %4265 = vmatprep.subr.mxu0 0.0
    %4266 = vmatpush1.msra.mxu0 0.0
    %4267 = vmatprep.subr.mxu0 0.0
    %4268 = vmatpush1.msra.mxu0 0.0
    %4269 = vmatprep.subr.mxu0 0.0
    %4270 = vmatpush1.msra.mxu0 0.0
    %4271 = vmatprep.subr.mxu0 0.0
    %4272 = vmatpush1.msra.mxu0 0.0
    %4273 = vmatprep.subr.mxu0 0.0
    %4274 = vmatpush1.msra.mxu0 0.0
    %4275 = vmatprep.subr.mxu0 0.0
    %4276 = vmatpush1.msra.mxu0 0.0
    %4277 = vmatprep.subr.mxu0 0.0
    %4278 = vmatpush1.msra.mxu0 0.0
    %4279 = vmatprep.subr.mxu0 0.0
    %4280 = vmatpush1.msra.mxu0 0.0
    %4281 = vmatprep.subr.mxu0 0.0
    %4282 = vmatpush1.msra.mxu0 0.0
    %4283 = vmatprep.subr.mxu0 0.0
    %4284 = vmatpush1.msra.mxu0 0.0
    %4285 = vmatprep.subr.mxu0 0.0
    %4286 = vmatpush1.msra.mxu0 0.0
    %4287 = vmatprep.subr.mxu0 0.0
    %4288 = vmatpush1.msra.mxu0 0.0
    %4289 = vmatprep.subr.mxu0 0.0
    %4290 = vmatpush1.msra.mxu0 0.0
    %4291 = vmatprep.subr.mxu0 0.0
    %4292 = vmatpush1.msra.mxu0 0.0
    %4293 = vmatprep.subr.mxu0 0.0
    %4294 = vmatpush1.msra.mxu0 0.0
    %4295 = vmatprep.mubr.f32.mxu0 0.0
    %4296 = vmatmul.mubr.f32.gmra.mrb[0].mxu0 %v4208
    %v4297 = vpop.f32.mrb[0].mxu0
    %v4298 = vadd.f32 0.0, %v4297
    %v4299 = vpop.f32.mrb[0].mxu0
    %4300 = vmatprep.mubr.f32.mxu0 0.0
    %4301 = vmatmul.mubr.f32.gmra.mrb[0].mxu0 %v4211
    %v4302 = vpop.f32.mrb[0].mxu0
    %v4303 = vadd.f32 0.0, %v4302
    %v4304 = vpop.f32.mrb[0].mxu0
    %4305 = vmatprep.mubr.f32.mxu0 0.0
    %4306 = vmatmul.mubr.f32.gmra.mrb[0].mxu0 %v4214
    %v4307 = vpop.f32.mrb[0].mxu0
    %v4308 = vadd.f32 0.0, %v4307
    %v4309 = vpop.f32.mrb[0].mxu0
    %4310 = vmatprep.mubr.f32.mxu0 0.0
    %4311 = vmatmul.mubr.f32.gmra.mrb[0].mxu0 %v4217
    %v4312 = vpop.f32.mrb[0].mxu0
    %v4313 = vadd.f32 0.0, %v4312
    %v4314 = vpop.f32.mrb[0].mxu0
    %4315 = vmatprep.mubr.f32.mxu0 0.0
    %4316 = vmatmul.mubr.f32.gmra.mrb[0].mxu0 %v4220
    %v4317 = vpop.f32.mrb[0].mxu0
    %v4318 = vadd.f32 0.0, %v4317
    %v4319 = vpop.f32.mrb[0].mxu0
    %4320 = vmatprep.mubr.f32.mxu0 0.0
    %4321 = vmatmul.mubr.f32.gmra.mrb[0].mxu0 %v4223
    %v4322 = vpop.f32.mrb[0].mxu0
    %v4323 = vadd.f32 0.0, %v4322
    %v4324 = vpop.f32.mrb[0].mxu0
    %4325 = vmatprep.mubr.f32.mxu0 0.0
    %4326 = vmatmul.mubr.f32.gmra.mrb[0].mxu0 %v4226
    %v4327 = vpop.f32.mrb[0].mxu0
    %v4328 = vadd.f32 0.0, %v4327
    %v4329 = vpop.f32.mrb[0].mxu0
    %4330 = vmatprep.mubr.f32.mxu0 0.0
    %4331 = vmatmul.mubr.f32.gmra.mrb[0].mxu0 %v4229
    %v4332 = vpop.f32.mrb[0].mxu0
    %v4333 = vadd.f32 0.0, %v4332
    %v4334 = vpop.f32.mrb[0].mxu0
    %4335 = vdwg.mxu0
    %v4336 = vadd.f32 %v4187, %v4298
    %v4337 = vadd.f32 %v4188, %v4303
    %v4338 = vadd.f32 %v4189, %v4308
    %v4339 = vadd.f32 %v4190, %v4313
    %v4340 = vadd.f32 %v4191, %v4318
    %v4341 = vadd.f32 %v4192, %v4323
    %v4342 = vadd.f32 %v4193, %v4328
    %v4343 = vadd.f32 %v4194, %v4333
    %v4344 = vld [vmem:[#allocation3 + $0xb] sm:$0xff]
    %v4345 = vld [vmem:[#allocation3 + $0x13] sm:$0xff]
    %v4346 = vld [vmem:[#allocation3 + $0x1b] sm:$0xff]
    %v4347 = vld [vmem:[#allocation3 + $0x23] sm:$0xff]
    %v4348 = vld [vmem:[#allocation3 + $0x3b] sm:$0xff]
    %v4349 = vld [vmem:[#allocation3 + $0x43] sm:$0xff]
    %v4350 = vld [vmem:[#allocation3 + $0x4b] sm:$0xff]
    %v4351 = vld [vmem:[#allocation3 + $0x53] sm:$0xff]
    %s4352 = scalar_lea.vmem [#allocation6], 240
    %v4353 = vld [vmem:[%s4352] sm:$0xff]
    %v4354 = vld [vmem:[%s4352 + $0x8] sm:$0xff]
    %v4355 = vld [vmem:[%s4352 + $0x10] sm:$0xff]
    %v4357 = vsel %vm2552, %v4344, 0
    %v4360 = vsel %vm2552, %v4345, 0
    %v4363 = vsel %vm2552, %v4346, 0
    %v4366 = vsel %vm2552, %v4347, 0
    %v4369 = vsel %vm2552, %v4348, 0
    %v4372 = vsel %vm2552, %v4349, 0
    %v4375 = vsel %vm2552, %v4350, 0
    %v4378 = vsel %vm2552, %v4351, 0
    %4380 = vmatprep.subr.mxu0 0.0
    %4381 = vmatpush1.msra.mxu0 %v4353
    %4382 = vmatprep.subr.mxu0 0.0
    %4383 = vmatpush1.msra.mxu0 %v4354
    %4384 = vmatprep.subr.mxu0 0.0
    %4385 = vmatpush1.msra.mxu0 %v4355
    %4386 = vmatprep.subr.mxu0 0.0
    %4387 = vmatpush1.msra.mxu0 0.0
    %4388 = vmatprep.subr.mxu0 0.0
    %4389 = vmatpush1.msra.mxu0 0.0
    %4390 = vmatprep.subr.mxu0 0.0
    %4391 = vmatpush1.msra.mxu0 0.0
    %4392 = vmatprep.subr.mxu0 0.0
    %4393 = vmatpush1.msra.mxu0 0.0
    %4394 = vmatprep.subr.mxu0 0.0
    %4395 = vmatpush1.msra.mxu0 0.0
    %4396 = vmatprep.subr.mxu0 0.0
    %4397 = vmatpush1.msra.mxu0 0.0
    %4398 = vmatprep.subr.mxu0 0.0
    %4399 = vmatpush1.msra.mxu0 0.0
    %4400 = vmatprep.subr.mxu0 0.0
    %4401 = vmatpush1.msra.mxu0 0.0
    %4402 = vmatprep.subr.mxu0 0.0
    %4403 = vmatpush1.msra.mxu0 0.0
    %4404 = vmatprep.subr.mxu0 0.0
    %4405 = vmatpush1.msra.mxu0 0.0
    %4406 = vmatprep.subr.mxu0 0.0
    %4407 = vmatpush1.msra.mxu0 0.0
    %4408 = vmatprep.subr.mxu0 0.0
    %4409 = vmatpush1.msra.mxu0 0.0
    %4410 = vmatprep.subr.mxu0 0.0
    %4411 = vmatpush1.msra.mxu0 0.0
    %4412 = vmatprep.subr.mxu0 0.0
    %4413 = vmatpush1.msra.mxu0 0.0
    %4414 = vmatprep.subr.mxu0 0.0
    %4415 = vmatpush1.msra.mxu0 0.0
    %4416 = vmatprep.subr.mxu0 0.0
    %4417 = vmatpush1.msra.mxu0 0.0
    %4418 = vmatprep.subr.mxu0 0.0
    %4419 = vmatpush1.msra.mxu0 0.0
    %4420 = vmatprep.subr.mxu0 0.0
    %4421 = vmatpush1.msra.mxu0 0.0
    %4422 = vmatprep.subr.mxu0 0.0
    %4423 = vmatpush1.msra.mxu0 0.0
    %4424 = vmatprep.subr.mxu0 0.0
    %4425 = vmatpush1.msra.mxu0 0.0
    %4426 = vmatprep.subr.mxu0 0.0
    %4427 = vmatpush1.msra.mxu0 0.0
    %4428 = vmatprep.subr.mxu0 0.0
    %4429 = vmatpush1.msra.mxu0 0.0
    %4430 = vmatprep.subr.mxu0 0.0
    %4431 = vmatpush1.msra.mxu0 0.0
    %4432 = vmatprep.subr.mxu0 0.0
    %4433 = vmatpush1.msra.mxu0 0.0
    %4434 = vmatprep.subr.mxu0 0.0
    %4435 = vmatpush1.msra.mxu0 0.0
    %4436 = vmatprep.subr.mxu0 0.0
    %4437 = vmatpush1.msra.mxu0 0.0
    %4438 = vmatprep.subr.mxu0 0.0
    %4439 = vmatpush1.msra.mxu0 0.0
    %4440 = vmatprep.subr.mxu0 0.0
    %4441 = vmatpush1.msra.mxu0 0.0
    %4442 = vmatprep.subr.mxu0 0.0
    %4443 = vmatpush1.msra.mxu0 0.0
    %4444 = vmatprep.mubr.f32.mxu0 0.0
    %4445 = vmatmul.mubr.f32.gmra.mrb[0].mxu0 %v4357
    %v4446 = vpop.f32.mrb[0].mxu0
    %v4447 = vadd.f32 0.0, %v4446
    %v4448 = vpop.f32.mrb[0].mxu0
    %4449 = vmatprep.mubr.f32.mxu0 0.0
    %4450 = vmatmul.mubr.f32.gmra.mrb[0].mxu0 %v4360
    %v4451 = vpop.f32.mrb[0].mxu0
    %v4452 = vadd.f32 0.0, %v4451
    %v4453 = vpop.f32.mrb[0].mxu0
    %4454 = vmatprep.mubr.f32.mxu0 0.0
    %4455 = vmatmul.mubr.f32.gmra.mrb[0].mxu0 %v4363
    %v4456 = vpop.f32.mrb[0].mxu0
    %v4457 = vadd.f32 0.0, %v4456
    %v4458 = vpop.f32.mrb[0].mxu0
    %4459 = vmatprep.mubr.f32.mxu0 0.0
    %4460 = vmatmul.mubr.f32.gmra.mrb[0].mxu0 %v4366
    %v4461 = vpop.f32.mrb[0].mxu0
    %v4462 = vadd.f32 0.0, %v4461
    %v4463 = vpop.f32.mrb[0].mxu0
    %4464 = vmatprep.mubr.f32.mxu0 0.0
    %4465 = vmatmul.mubr.f32.gmra.mrb[0].mxu0 %v4369
    %v4466 = vpop.f32.mrb[0].mxu0
    %v4467 = vadd.f32 0.0, %v4466
    %v4468 = vpop.f32.mrb[0].mxu0
    %4469 = vmatprep.mubr.f32.mxu0 0.0
    %4470 = vmatmul.mubr.f32.gmra.mrb[0].mxu0 %v4372
    %v4471 = vpop.f32.mrb[0].mxu0
    %v4472 = vadd.f32 0.0, %v4471
    %v4473 = vpop.f32.mrb[0].mxu0
    %4474 = vmatprep.mubr.f32.mxu0 0.0
    %4475 = vmatmul.mubr.f32.gmra.mrb[0].mxu0 %v4375
    %v4476 = vpop.f32.mrb[0].mxu0
    %v4477 = vadd.f32 0.0, %v4476
    %v4478 = vpop.f32.mrb[0].mxu0
    %4479 = vmatprep.mubr.f32.mxu0 0.0
    %4480 = vmatmul.mubr.f32.gmra.mrb[0].mxu0 %v4378
    %v4481 = vpop.f32.mrb[0].mxu0
    %v4482 = vadd.f32 0.0, %v4481
    %v4483 = vpop.f32.mrb[0].mxu0
    %4484 = vdwg.mxu0
    %v4485 = vadd.f32 %v4336, %v4447
    %v4486 = vadd.f32 %v4337, %v4452
    %v4487 = vadd.f32 %v4338, %v4457
    %v4488 = vadd.f32 %v4339, %v4462
    %v4489 = vadd.f32 %v4340, %v4467
    %v4490 = vadd.f32 %v4341, %v4472
    %v4491 = vadd.f32 %v4342, %v4477
    %v4492 = vadd.f32 %v4343, %v4482
    %v4493 = vld [vmem:[#allocation3 + $0xc] sm:$0xff]
    %v4494 = vld [vmem:[#allocation3 + $0x14] sm:$0xff]
    %v4495 = vld [vmem:[#allocation3 + $0x1c] sm:$0xff]
    %v4496 = vld [vmem:[#allocation3 + $0x24] sm:$0xff]
    %v4497 = vld [vmem:[#allocation3 + $0x3c] sm:$0xff]
    %v4498 = vld [vmem:[#allocation3 + $0x44] sm:$0xff]
    %v4499 = vld [vmem:[#allocation3 + $0x4c] sm:$0xff]
    %v4500 = vld [vmem:[#allocation3 + $0x54] sm:$0xff]
    %s4501 = scalar_lea.vmem [#allocation6], 264
    %v4502 = vld [vmem:[%s4501] sm:$0xff]
    %v4503 = vld [vmem:[%s4501 + $0x8] sm:$0xff]
    %v4504 = vld [vmem:[%s4501 + $0x10] sm:$0xff]
    %v4506 = vsel %vm2552, %v4493, 0
    %v4509 = vsel %vm2552, %v4494, 0
    %v4512 = vsel %vm2552, %v4495, 0
    %v4515 = vsel %vm2552, %v4496, 0
    %v4518 = vsel %vm2552, %v4497, 0
    %v4521 = vsel %vm2552, %v4498, 0
    %v4524 = vsel %vm2552, %v4499, 0
    %v4527 = vsel %vm2552, %v4500, 0
    %4529 = vmatprep.subr.mxu0 0.0
    %4530 = vmatpush1.msra.mxu0 %v4502
    %4531 = vmatprep.subr.mxu0 0.0
    %4532 = vmatpush1.msra.mxu0 %v4503
    %4533 = vmatprep.subr.mxu0 0.0
    %4534 = vmatpush1.msra.mxu0 %v4504
    %4535 = vmatprep.subr.mxu0 0.0
    %4536 = vmatpush1.msra.mxu0 0.0
    %4537 = vmatprep.subr.mxu0 0.0
    %4538 = vmatpush1.msra.mxu0 0.0
    %4539 = vmatprep.subr.mxu0 0.0
    %4540 = vmatpush1.msra.mxu0 0.0
    %4541 = vmatprep.subr.mxu0 0.0
    %4542 = vmatpush1.msra.mxu0 0.0
    %4543 = vmatprep.subr.mxu0 0.0
    %4544 = vmatpush1.msra.mxu0 0.0
    %4545 = vmatprep.subr.mxu0 0.0
    %4546 = vmatpush1.msra.mxu0 0.0
    %4547 = vmatprep.subr.mxu0 0.0
    %4548 = vmatpush1.msra.mxu0 0.0
    %4549 = vmatprep.subr.mxu0 0.0
    %4550 = vmatpush1.msra.mxu0 0.0
    %4551 = vmatprep.subr.mxu0 0.0
    %4552 = vmatpush1.msra.mxu0 0.0
    %4553 = vmatprep.subr.mxu0 0.0
    %4554 = vmatpush1.msra.mxu0 0.0
    %4555 = vmatprep.subr.mxu0 0.0
    %4556 = vmatpush1.msra.mxu0 0.0
    %4557 = vmatprep.subr.mxu0 0.0
    %4558 = vmatpush1.msra.mxu0 0.0
    %4559 = vmatprep.subr.mxu0 0.0
    %4560 = vmatpush1.msra.mxu0 0.0
    %4561 = vmatprep.subr.mxu0 0.0
    %4562 = vmatpush1.msra.mxu0 0.0
    %4563 = vmatprep.subr.mxu0 0.0
    %4564 = vmatpush1.msra.mxu0 0.0
    %4565 = vmatprep.subr.mxu0 0.0
    %4566 = vmatpush1.msra.mxu0 0.0
    %4567 = vmatprep.subr.mxu0 0.0
    %4568 = vmatpush1.msra.mxu0 0.0
    %4569 = vmatprep.subr.mxu0 0.0
    %4570 = vmatpush1.msra.mxu0 0.0
    %4571 = vmatprep.subr.mxu0 0.0
    %4572 = vmatpush1.msra.mxu0 0.0
    %4573 = vmatprep.subr.mxu0 0.0
    %4574 = vmatpush1.msra.mxu0 0.0
    %4575 = vmatprep.subr.mxu0 0.0
    %4576 = vmatpush1.msra.mxu0 0.0
    %4577 = vmatprep.subr.mxu0 0.0
    %4578 = vmatpush1.msra.mxu0 0.0
    %4579 = vmatprep.subr.mxu0 0.0
    %4580 = vmatpush1.msra.mxu0 0.0
    %4581 = vmatprep.subr.mxu0 0.0
    %4582 = vmatpush1.msra.mxu0 0.0
    %4583 = vmatprep.subr.mxu0 0.0
    %4584 = vmatpush1.msra.mxu0 0.0
    %4585 = vmatprep.subr.mxu0 0.0
    %4586 = vmatpush1.msra.mxu0 0.0
    %4587 = vmatprep.subr.mxu0 0.0
    %4588 = vmatpush1.msra.mxu0 0.0
    %4589 = vmatprep.subr.mxu0 0.0
    %4590 = vmatpush1.msra.mxu0 0.0
    %4591 = vmatprep.subr.mxu0 0.0
    %4592 = vmatpush1.msra.mxu0 0.0
    %4593 = vmatprep.mubr.f32.mxu0 0.0
    %4594 = vmatmul.mubr.f32.gmra.mrb[0].mxu0 %v4506
    %v4595 = vpop.f32.mrb[0].mxu0
    %v4596 = vadd.f32 0.0, %v4595
    %v4597 = vpop.f32.mrb[0].mxu0
    %4598 = vmatprep.mubr.f32.mxu0 0.0
    %4599 = vmatmul.mubr.f32.gmra.mrb[0].mxu0 %v4509
    %v4600 = vpop.f32.mrb[0].mxu0
    %v4601 = vadd.f32 0.0, %v4600
    %v4602 = vpop.f32.mrb[0].mxu0
    %4603 = vmatprep.mubr.f32.mxu0 0.0
    %4604 = vmatmul.mubr.f32.gmra.mrb[0].mxu0 %v4512
    %v4605 = vpop.f32.mrb[0].mxu0
    %v4606 = vadd.f32 0.0, %v4605
    %v4607 = vpop.f32.mrb[0].mxu0
    %4608 = vmatprep.mubr.f32.mxu0 0.0
    %4609 = vmatmul.mubr.f32.gmra.mrb[0].mxu0 %v4515
    %v4610 = vpop.f32.mrb[0].mxu0
    %v4611 = vadd.f32 0.0, %v4610
    %v4612 = vpop.f32.mrb[0].mxu0
    %4613 = vmatprep.mubr.f32.mxu0 0.0
    %4614 = vmatmul.mubr.f32.gmra.mrb[0].mxu0 %v4518
    %v4615 = vpop.f32.mrb[0].mxu0
    %v4616 = vadd.f32 0.0, %v4615
    %v4617 = vpop.f32.mrb[0].mxu0
    %4618 = vmatprep.mubr.f32.mxu0 0.0
    %4619 = vmatmul.mubr.f32.gmra.mrb[0].mxu0 %v4521
    %v4620 = vpop.f32.mrb[0].mxu0
    %v4621 = vadd.f32 0.0, %v4620
    %v4622 = vpop.f32.mrb[0].mxu0
    %4623 = vmatprep.mubr.f32.mxu0 0.0
    %4624 = vmatmul.mubr.f32.gmra.mrb[0].mxu0 %v4524
    %v4625 = vpop.f32.mrb[0].mxu0
    %v4626 = vadd.f32 0.0, %v4625
    %v4627 = vpop.f32.mrb[0].mxu0
    %4628 = vmatprep.mubr.f32.mxu0 0.0
    %4629 = vmatmul.mubr.f32.gmra.mrb[0].mxu0 %v4527
    %v4630 = vpop.f32.mrb[0].mxu0
    %v4631 = vadd.f32 0.0, %v4630
    %v4632 = vpop.f32.mrb[0].mxu0
    %4633 = vdwg.mxu0
    %v4634 = vadd.f32 %v4485, %v4596
    %v4635 = vadd.f32 %v4486, %v4601
    %v4636 = vadd.f32 %v4487, %v4606
    %v4637 = vadd.f32 %v4488, %v4611
    %v4638 = vadd.f32 %v4489, %v4616
    %v4639 = vadd.f32 %v4490, %v4621
    %v4640 = vadd.f32 %v4491, %v4626
    %v4641 = vadd.f32 %v4492, %v4631
    %v4642 = vld [vmem:[#allocation3 + $0xd] sm:$0xff]
    %v4643 = vld [vmem:[#allocation3 + $0x15] sm:$0xff]
    %v4644 = vld [vmem:[#allocation3 + $0x1d] sm:$0xff]
    %v4645 = vld [vmem:[#allocation3 + $0x25] sm:$0xff]
    %v4646 = vld [vmem:[#allocation3 + $0x3d] sm:$0xff]
    %v4647 = vld [vmem:[#allocation3 + $0x45] sm:$0xff]
    %v4648 = vld [vmem:[#allocation3 + $0x4d] sm:$0xff]
    %v4649 = vld [vmem:[#allocation3 + $0x55] sm:$0xff]
    %s4650 = scalar_lea.vmem [#allocation6], 288
    %v4651 = vld [vmem:[%s4650] sm:$0xff]
    %v4652 = vld [vmem:[%s4650 + $0x8] sm:$0xff]
    %v4653 = vld [vmem:[%s4650 + $0x10] sm:$0xff]
    %v4655 = vsel %vm2552, %v4642, 0
    %v4658 = vsel %vm2552, %v4643, 0
    %v4661 = vsel %vm2552, %v4644, 0
    %v4664 = vsel %vm2552, %v4645, 0
    %v4667 = vsel %vm2552, %v4646, 0
    %v4670 = vsel %vm2552, %v4647, 0
    %v4673 = vsel %vm2552, %v4648, 0
    %v4676 = vsel %vm2552, %v4649, 0
    %4678 = vmatprep.subr.mxu0 0.0
    %4679 = vmatpush1.msra.mxu0 %v4651
    %4680 = vmatprep.subr.mxu0 0.0
    %4681 = vmatpush1.msra.mxu0 %v4652
    %4682 = vmatprep.subr.mxu0 0.0
    %4683 = vmatpush1.msra.mxu0 %v4653
    %4684 = vmatprep.subr.mxu0 0.0
    %4685 = vmatpush1.msra.mxu0 0.0
    %4686 = vmatprep.subr.mxu0 0.0
    %4687 = vmatpush1.msra.mxu0 0.0
    %4688 = vmatprep.subr.mxu0 0.0
    %4689 = vmatpush1.msra.mxu0 0.0
    %4690 = vmatprep.subr.mxu0 0.0
    %4691 = vmatpush1.msra.mxu0 0.0
    %4692 = vmatprep.subr.mxu0 0.0
    %4693 = vmatpush1.msra.mxu0 0.0
    %4694 = vmatprep.subr.mxu0 0.0
    %4695 = vmatpush1.msra.mxu0 0.0
    %4696 = vmatprep.subr.mxu0 0.0
    %4697 = vmatpush1.msra.mxu0 0.0
    %4698 = vmatprep.subr.mxu0 0.0
    %4699 = vmatpush1.msra.mxu0 0.0
    %4700 = vmatprep.subr.mxu0 0.0
    %4701 = vmatpush1.msra.mxu0 0.0
    %4702 = vmatprep.subr.mxu0 0.0
    %4703 = vmatpush1.msra.mxu0 0.0
    %4704 = vmatprep.subr.mxu0 0.0
    %4705 = vmatpush1.msra.mxu0 0.0
    %4706 = vmatprep.subr.mxu0 0.0
    %4707 = vmatpush1.msra.mxu0 0.0
    %4708 = vmatprep.subr.mxu0 0.0
    %4709 = vmatpush1.msra.mxu0 0.0
    %4710 = vmatprep.subr.mxu0 0.0
    %4711 = vmatpush1.msra.mxu0 0.0
    %4712 = vmatprep.subr.mxu0 0.0
    %4713 = vmatpush1.msra.mxu0 0.0
    %4714 = vmatprep.subr.mxu0 0.0
    %4715 = vmatpush1.msra.mxu0 0.0
    %4716 = vmatprep.subr.mxu0 0.0
    %4717 = vmatpush1.msra.mxu0 0.0
    %4718 = vmatprep.subr.mxu0 0.0
    %4719 = vmatpush1.msra.mxu0 0.0
    %4720 = vmatprep.subr.mxu0 0.0
    %4721 = vmatpush1.msra.mxu0 0.0
    %4722 = vmatprep.subr.mxu0 0.0
    %4723 = vmatpush1.msra.mxu0 0.0
    %4724 = vmatprep.subr.mxu0 0.0
    %4725 = vmatpush1.msra.mxu0 0.0
    %4726 = vmatprep.subr.mxu0 0.0
    %4727 = vmatpush1.msra.mxu0 0.0
    %4728 = vmatprep.subr.mxu0 0.0
    %4729 = vmatpush1.msra.mxu0 0.0
    %4730 = vmatprep.subr.mxu0 0.0
    %4731 = vmatpush1.msra.mxu0 0.0
    %4732 = vmatprep.subr.mxu0 0.0
    %4733 = vmatpush1.msra.mxu0 0.0
    %4734 = vmatprep.subr.mxu0 0.0
    %4735 = vmatpush1.msra.mxu0 0.0
    %4736 = vmatprep.subr.mxu0 0.0
    %4737 = vmatpush1.msra.mxu0 0.0
    %4738 = vmatprep.subr.mxu0 0.0
    %4739 = vmatpush1.msra.mxu0 0.0
    %4740 = vmatprep.subr.mxu0 0.0
    %4741 = vmatpush1.msra.mxu0 0.0
    %4742 = vmatprep.mubr.f32.mxu0 0.0
    %4743 = vmatmul.mubr.f32.gmra.mrb[0].mxu0 %v4655
    %v4744 = vpop.f32.mrb[0].mxu0
    %v4745 = vadd.f32 0.0, %v4744
    %v4746 = vpop.f32.mrb[0].mxu0
    %4747 = vmatprep.mubr.f32.mxu0 0.0
    %4748 = vmatmul.mubr.f32.gmra.mrb[0].mxu0 %v4658
    %v4749 = vpop.f32.mrb[0].mxu0
    %v4750 = vadd.f32 0.0, %v4749
    %v4751 = vpop.f32.mrb[0].mxu0
    %4752 = vmatprep.mubr.f32.mxu0 0.0
    %4753 = vmatmul.mubr.f32.gmra.mrb[0].mxu0 %v4661
    %v4754 = vpop.f32.mrb[0].mxu0
    %v4755 = vadd.f32 0.0, %v4754
    %v4756 = vpop.f32.mrb[0].mxu0
    %4757 = vmatprep.mubr.f32.mxu0 0.0
    %4758 = vmatmul.mubr.f32.gmra.mrb[0].mxu0 %v4664
    %v4759 = vpop.f32.mrb[0].mxu0
    %v4760 = vadd.f32 0.0, %v4759
    %v4761 = vpop.f32.mrb[0].mxu0
    %4762 = vmatprep.mubr.f32.mxu0 0.0
    %4763 = vmatmul.mubr.f32.gmra.mrb[0].mxu0 %v4667
    %v4764 = vpop.f32.mrb[0].mxu0
    %v4765 = vadd.f32 0.0, %v4764
    %v4766 = vpop.f32.mrb[0].mxu0
    %4767 = vmatprep.mubr.f32.mxu0 0.0
    %4768 = vmatmul.mubr.f32.gmra.mrb[0].mxu0 %v4670
    %v4769 = vpop.f32.mrb[0].mxu0
    %v4770 = vadd.f32 0.0, %v4769
    %v4771 = vpop.f32.mrb[0].mxu0
    %4772 = vmatprep.mubr.f32.mxu0 0.0
    %4773 = vmatmul.mubr.f32.gmra.mrb[0].mxu0 %v4673
    %v4774 = vpop.f32.mrb[0].mxu0
    %v4775 = vadd.f32 0.0, %v4774
    %v4776 = vpop.f32.mrb[0].mxu0
    %4777 = vmatprep.mubr.f32.mxu0 0.0
    %4778 = vmatmul.mubr.f32.gmra.mrb[0].mxu0 %v4676
    %v4779 = vpop.f32.mrb[0].mxu0
    %v4780 = vadd.f32 0.0, %v4779
    %v4781 = vpop.f32.mrb[0].mxu0
    %4782 = vdwg.mxu0
    %v4783 = vadd.f32 %v4634, %v4745
    %v4784 = vadd.f32 %v4635, %v4750
    %v4785 = vadd.f32 %v4636, %v4755
    %v4786 = vadd.f32 %v4637, %v4760
    %v4787 = vadd.f32 %v4638, %v4765
    %v4788 = vadd.f32 %v4639, %v4770
    %v4789 = vadd.f32 %v4640, %v4775
    %v4790 = vadd.f32 %v4641, %v4780
    %v4791 = vld [vmem:[#allocation3 + $0xe] sm:$0xff]
    %v4792 = vld [vmem:[#allocation3 + $0x16] sm:$0xff]
    %v4793 = vld [vmem:[#allocation3 + $0x1e] sm:$0xff]
    %v4794 = vld [vmem:[#allocation3 + $0x26] sm:$0xff]
    %v4795 = vld [vmem:[#allocation3 + $0x3e] sm:$0xff]
    %v4796 = vld [vmem:[#allocation3 + $0x46] sm:$0xff]
    %v4797 = vld [vmem:[#allocation3 + $0x4e] sm:$0xff]
    %v4798 = vld [vmem:[#allocation3 + $0x56] sm:$0xff]
    %s4799 = scalar_lea.vmem [#allocation6], 312
    %v4800 = vld [vmem:[%s4799] sm:$0xff]
    %v4801 = vld [vmem:[%s4799 + $0x8] sm:$0xff]
    %v4802 = vld [vmem:[%s4799 + $0x10] sm:$0xff]
    %v4804 = vsel %vm2552, %v4791, 0
    %v4807 = vsel %vm2552, %v4792, 0
    %v4810 = vsel %vm2552, %v4793, 0
    %v4813 = vsel %vm2552, %v4794, 0
    %v4816 = vsel %vm2552, %v4795, 0
    %v4819 = vsel %vm2552, %v4796, 0
    %v4822 = vsel %vm2552, %v4797, 0
    %v4825 = vsel %vm2552, %v4798, 0
    %4827 = vmatprep.subr.mxu0 0.0
    %4828 = vmatpush1.msra.mxu0 %v4800
    %4829 = vmatprep.subr.mxu0 0.0
    %4830 = vmatpush1.msra.mxu0 %v4801
    %4831 = vmatprep.subr.mxu0 0.0
    %4832 = vmatpush1.msra.mxu0 %v4802
    %4833 = vmatprep.subr.mxu0 0.0
    %4834 = vmatpush1.msra.mxu0 0.0
    %4835 = vmatprep.subr.mxu0 0.0
    %4836 = vmatpush1.msra.mxu0 0.0
    %4837 = vmatprep.subr.mxu0 0.0
    %4838 = vmatpush1.msra.mxu0 0.0
    %4839 = vmatprep.subr.mxu0 0.0
    %4840 = vmatpush1.msra.mxu0 0.0
    %4841 = vmatprep.subr.mxu0 0.0
    %4842 = vmatpush1.msra.mxu0 0.0
    %4843 = vmatprep.subr.mxu0 0.0
    %4844 = vmatpush1.msra.mxu0 0.0
    %4845 = vmatprep.subr.mxu0 0.0
    %4846 = vmatpush1.msra.mxu0 0.0
    %4847 = vmatprep.subr.mxu0 0.0
    %4848 = vmatpush1.msra.mxu0 0.0
    %4849 = vmatprep.subr.mxu0 0.0
    %4850 = vmatpush1.msra.mxu0 0.0
    %4851 = vmatprep.subr.mxu0 0.0
    %4852 = vmatpush1.msra.mxu0 0.0
    %4853 = vmatprep.subr.mxu0 0.0
    %4854 = vmatpush1.msra.mxu0 0.0
    %4855 = vmatprep.subr.mxu0 0.0
    %4856 = vmatpush1.msra.mxu0 0.0
    %4857 = vmatprep.subr.mxu0 0.0
    %4858 = vmatpush1.msra.mxu0 0.0
    %4859 = vmatprep.subr.mxu0 0.0
    %4860 = vmatpush1.msra.mxu0 0.0
    %4861 = vmatprep.subr.mxu0 0.0
    %4862 = vmatpush1.msra.mxu0 0.0
    %4863 = vmatprep.subr.mxu0 0.0
    %4864 = vmatpush1.msra.mxu0 0.0
    %4865 = vmatprep.subr.mxu0 0.0
    %4866 = vmatpush1.msra.mxu0 0.0
    %4867 = vmatprep.subr.mxu0 0.0
    %4868 = vmatpush1.msra.mxu0 0.0
    %4869 = vmatprep.subr.mxu0 0.0
    %4870 = vmatpush1.msra.mxu0 0.0
    %4871 = vmatprep.subr.mxu0 0.0
    %4872 = vmatpush1.msra.mxu0 0.0
    %4873 = vmatprep.subr.mxu0 0.0
    %4874 = vmatpush1.msra.mxu0 0.0
    %4875 = vmatprep.subr.mxu0 0.0
    %4876 = vmatpush1.msra.mxu0 0.0
    %4877 = vmatprep.subr.mxu0 0.0
    %4878 = vmatpush1.msra.mxu0 0.0
    %4879 = vmatprep.subr.mxu0 0.0
    %4880 = vmatpush1.msra.mxu0 0.0
    %4881 = vmatprep.subr.mxu0 0.0
    %4882 = vmatpush1.msra.mxu0 0.0
    %4883 = vmatprep.subr.mxu0 0.0
    %4884 = vmatpush1.msra.mxu0 0.0
    %4885 = vmatprep.subr.mxu0 0.0
    %4886 = vmatpush1.msra.mxu0 0.0
    %4887 = vmatprep.subr.mxu0 0.0
    %4888 = vmatpush1.msra.mxu0 0.0
    %4889 = vmatprep.subr.mxu0 0.0
    %4890 = vmatpush1.msra.mxu0 0.0
    %4891 = vmatprep.mubr.f32.mxu0 0.0
    %4892 = vmatmul.mubr.f32.gmra.mrb[0].mxu0 %v4804
    %v4893 = vpop.f32.mrb[0].mxu0
    %v4894 = vadd.f32 0.0, %v4893
    %v4895 = vpop.f32.mrb[0].mxu0
    %4896 = vmatprep.mubr.f32.mxu0 0.0
    %4897 = vmatmul.mubr.f32.gmra.mrb[0].mxu0 %v4807
    %v4898 = vpop.f32.mrb[0].mxu0
    %v4899 = vadd.f32 0.0, %v4898
    %v4900 = vpop.f32.mrb[0].mxu0
    %4901 = vmatprep.mubr.f32.mxu0 0.0
    %4902 = vmatmul.mubr.f32.gmra.mrb[0].mxu0 %v4810
    %v4903 = vpop.f32.mrb[0].mxu0
    %v4904 = vadd.f32 0.0, %v4903
    %v4905 = vpop.f32.mrb[0].mxu0
    %4906 = vmatprep.mubr.f32.mxu0 0.0
    %4907 = vmatmul.mubr.f32.gmra.mrb[0].mxu0 %v4813
    %v4908 = vpop.f32.mrb[0].mxu0
    %v4909 = vadd.f32 0.0, %v4908
    %v4910 = vpop.f32.mrb[0].mxu0
    %4911 = vmatprep.mubr.f32.mxu0 0.0
    %4912 = vmatmul.mubr.f32.gmra.mrb[0].mxu0 %v4816
    %v4913 = vpop.f32.mrb[0].mxu0
    %v4914 = vadd.f32 0.0, %v4913
    %v4915 = vpop.f32.mrb[0].mxu0
    %4916 = vmatprep.mubr.f32.mxu0 0.0
    %4917 = vmatmul.mubr.f32.gmra.mrb[0].mxu0 %v4819
    %v4918 = vpop.f32.mrb[0].mxu0
    %v4919 = vadd.f32 0.0, %v4918
    %v4920 = vpop.f32.mrb[0].mxu0
    %4921 = vmatprep.mubr.f32.mxu0 0.0
    %4922 = vmatmul.mubr.f32.gmra.mrb[0].mxu0 %v4822
    %v4923 = vpop.f32.mrb[0].mxu0
    %v4924 = vadd.f32 0.0, %v4923
    %v4925 = vpop.f32.mrb[0].mxu0
    %4926 = vmatprep.mubr.f32.mxu0 0.0
    %4927 = vmatmul.mubr.f32.gmra.mrb[0].mxu0 %v4825
    %v4928 = vpop.f32.mrb[0].mxu0
    %v4929 = vadd.f32 0.0, %v4928
    %v4930 = vpop.f32.mrb[0].mxu0
    %4931 = vdwg.mxu0
    %v4932 = vadd.f32 %v4783, %v4894
    %v4933 = vadd.f32 %v4784, %v4899
    %v4934 = vadd.f32 %v4785, %v4904
    %v4935 = vadd.f32 %v4786, %v4909
    %v4936 = vadd.f32 %v4787, %v4914
    %v4937 = vadd.f32 %v4788, %v4919
    %v4938 = vadd.f32 %v4789, %v4924
    %v4939 = vadd.f32 %v4790, %v4929
    %v4940 = vld [vmem:[#allocation3 + $0xf] sm:$0xff]
    %v4941 = vld [vmem:[#allocation3 + $0x17] sm:$0xff]
    %v4942 = vld [vmem:[#allocation3 + $0x1f] sm:$0xff]
    %v4943 = vld [vmem:[#allocation3 + $0x27] sm:$0xff]
    %v4944 = vld [vmem:[#allocation3 + $0x3f] sm:$0xff]
    %v4945 = vld [vmem:[#allocation3 + $0x47] sm:$0xff]
    %v4946 = vld [vmem:[#allocation3 + $0x4f] sm:$0xff]
    %v4947 = vld [vmem:[#allocation3 + $0x57] sm:$0xff]
    %s4948 = scalar_lea.vmem [#allocation6], 336
    %v4949 = vld [vmem:[%s4948] sm:$0xff]
    %v4950 = vld [vmem:[%s4948 + $0x8] sm:$0xff]
    %v4951 = vld [vmem:[%s4948 + $0x10] sm:$0xff]
    %v4953 = vsel %vm2552, %v4940, 0
    %v4956 = vsel %vm2552, %v4941, 0
    %v4959 = vsel %vm2552, %v4942, 0
    %v4962 = vsel %vm2552, %v4943, 0
    %v4965 = vsel %vm2552, %v4944, 0
    %v4968 = vsel %vm2552, %v4945, 0
    %v4971 = vsel %vm2552, %v4946, 0
    %v4974 = vsel %vm2552, %v4947, 0
    %4976 = vmatprep.subr.mxu0 0.0
    %4977 = vmatpush1.msra.mxu0 %v4949
    %4978 = vmatprep.subr.mxu0 0.0
    %4979 = vmatpush1.msra.mxu0 %v4950
    %4980 = vmatprep.subr.mxu0 0.0
    %4981 = vmatpush1.msra.mxu0 %v4951
    %4982 = vmatprep.subr.mxu0 0.0
    %4983 = vmatpush1.msra.mxu0 0.0
    %4984 = vmatprep.subr.mxu0 0.0
    %4985 = vmatpush1.msra.mxu0 0.0
    %4986 = vmatprep.subr.mxu0 0.0
    %4987 = vmatpush1.msra.mxu0 0.0
    %4988 = vmatprep.subr.mxu0 0.0
    %4989 = vmatpush1.msra.mxu0 0.0
    %4990 = vmatprep.subr.mxu0 0.0
    %4991 = vmatpush1.msra.mxu0 0.0
    %4992 = vmatprep.subr.mxu0 0.0
    %4993 = vmatpush1.msra.mxu0 0.0
    %4994 = vmatprep.subr.mxu0 0.0
    %4995 = vmatpush1.msra.mxu0 0.0
    %4996 = vmatprep.subr.mxu0 0.0
    %4997 = vmatpush1.msra.mxu0 0.0
    %4998 = vmatprep.subr.mxu0 0.0
    %4999 = vmatpush1.msra.mxu0 0.0
    %5000 = vmatprep.subr.mxu0 0.0
    %5001 = vmatpush1.msra.mxu0 0.0
    %5002 = vmatprep.subr.mxu0 0.0
    %5003 = vmatpush1.msra.mxu0 0.0
    %5004 = vmatprep.subr.mxu0 0.0
    %5005 = vmatpush1.msra.mxu0 0.0
    %5006 = vmatprep.subr.mxu0 0.0
    %5007 = vmatpush1.msra.mxu0 0.0
    %5008 = vmatprep.subr.mxu0 0.0
    %5009 = vmatpush1.msra.mxu0 0.0
    %5010 = vmatprep.subr.mxu0 0.0
    %5011 = vmatpush1.msra.mxu0 0.0
    %5012 = vmatprep.subr.mxu0 0.0
    %5013 = vmatpush1.msra.mxu0 0.0
    %5014 = vmatprep.subr.mxu0 0.0
    %5015 = vmatpush1.msra.mxu0 0.0
    %5016 = vmatprep.subr.mxu0 0.0
    %5017 = vmatpush1.msra.mxu0 0.0
    %5018 = vmatprep.subr.mxu0 0.0
    %5019 = vmatpush1.msra.mxu0 0.0
    %5020 = vmatprep.subr.mxu0 0.0
    %5021 = vmatpush1.msra.mxu0 0.0
    %5022 = vmatprep.subr.mxu0 0.0
    %5023 = vmatpush1.msra.mxu0 0.0
    %5024 = vmatprep.subr.mxu0 0.0
    %5025 = vmatpush1.msra.mxu0 0.0
    %5026 = vmatprep.subr.mxu0 0.0
    %5027 = vmatpush1.msra.mxu0 0.0
    %5028 = vmatprep.subr.mxu0 0.0
    %5029 = vmatpush1.msra.mxu0 0.0
    %5030 = vmatprep.subr.mxu0 0.0
    %5031 = vmatpush1.msra.mxu0 0.0
    %5032 = vmatprep.subr.mxu0 0.0
    %5033 = vmatpush1.msra.mxu0 0.0
    %5034 = vmatprep.subr.mxu0 0.0
    %5035 = vmatpush1.msra.mxu0 0.0
    %5036 = vmatprep.subr.mxu0 0.0
    %5037 = vmatpush1.msra.mxu0 0.0
    %5038 = vmatprep.subr.mxu0 0.0
    %5039 = vmatpush1.msra.mxu0 0.0
    %5040 = vmatprep.mubr.f32.mxu0 0.0
    %5041 = vmatmul.mubr.f32.gmra.mrb[0].mxu0 %v4953
    %v5042 = vpop.f32.mrb[0].mxu0
    %v5043 = vadd.f32 0.0, %v5042
    %v5044 = vpop.f32.mrb[0].mxu0
    %5045 = vmatprep.mubr.f32.mxu0 0.0
    %5046 = vmatmul.mubr.f32.gmra.mrb[0].mxu0 %v4956
    %v5047 = vpop.f32.mrb[0].mxu0
    %v5048 = vadd.f32 0.0, %v5047
    %v5049 = vpop.f32.mrb[0].mxu0
    %5050 = vmatprep.mubr.f32.mxu0 0.0
    %5051 = vmatmul.mubr.f32.gmra.mrb[0].mxu0 %v4959
    %v5052 = vpop.f32.mrb[0].mxu0
    %v5053 = vadd.f32 0.0, %v5052
    %v5054 = vpop.f32.mrb[0].mxu0
    %5055 = vmatprep.mubr.f32.mxu0 0.0
    %5056 = vmatmul.mubr.f32.gmra.mrb[0].mxu0 %v4962
    %v5057 = vpop.f32.mrb[0].mxu0
    %v5058 = vadd.f32 0.0, %v5057
    %v5059 = vpop.f32.mrb[0].mxu0
    %5060 = vmatprep.mubr.f32.mxu0 0.0
    %5061 = vmatmul.mubr.f32.gmra.mrb[0].mxu0 %v4965
    %v5062 = vpop.f32.mrb[0].mxu0
    %v5063 = vadd.f32 0.0, %v5062
    %v5064 = vpop.f32.mrb[0].mxu0
    %5065 = vmatprep.mubr.f32.mxu0 0.0
    %5066 = vmatmul.mubr.f32.gmra.mrb[0].mxu0 %v4968
    %v5067 = vpop.f32.mrb[0].mxu0
    %v5068 = vadd.f32 0.0, %v5067
    %v5069 = vpop.f32.mrb[0].mxu0
    %5070 = vmatprep.mubr.f32.mxu0 0.0
    %5071 = vmatmul.mubr.f32.gmra.mrb[0].mxu0 %v4971
    %v5072 = vpop.f32.mrb[0].mxu0
    %v5073 = vadd.f32 0.0, %v5072
    %v5074 = vpop.f32.mrb[0].mxu0
    %5075 = vmatprep.mubr.f32.mxu0 0.0
    %5076 = vmatmul.mubr.f32.gmra.mrb[0].mxu0 %v4974
    %v5077 = vpop.f32.mrb[0].mxu0
    %v5078 = vadd.f32 0.0, %v5077
    %v5079 = vpop.f32.mrb[0].mxu0
    %5080 = vdwg.mxu0
    %v5081 = vadd.f32 %v4932, %v5043
    %v5082 = vadd.f32 %v4933, %v5048
    %v5083 = vadd.f32 %v4934, %v5053
    %v5084 = vadd.f32 %v4935, %v5058
    %v5085 = vadd.f32 %v4936, %v5063
    %v5086 = vadd.f32 %v4937, %v5068
    %v5087 = vadd.f32 %v4938, %v5073
    %v5088 = vadd.f32 %v4939, %v5078
    %v5089 = vld [vmem:[%s6] sm:$0x1]
    %v5091 = vlaneseq
    %v5092 = vshrl.u32 %v5091, 7
    %v5093 = vsub.s32 0, %v5092
    %v5094 = vrot.slane %v5089, %v5093
    %v5096 = vadd.f32 %v5081, %v5094
    %v5097 = vadd.f32 %v5082, %v5094
    %v5098 = vadd.f32 %v5083, %v5094
    %v5099 = vadd.f32 %v5084, %v5094
    %v5100 = vadd.f32 %v5085, %v5094
    %v5101 = vadd.f32 %v5086, %v5094
    %v5102 = vadd.f32 %v5087, %v5094
    %v5103 = vadd.f32 %v5088, %v5094
    %vm5104 = vcmp.gt.f32.partialorder %v5096, 0.0
    %vm5105 = vcmp.gt.f32.partialorder %v5097, 0.0
    %vm5106 = vcmp.gt.f32.partialorder %v5098, 0.0
    %vm5107 = vcmp.gt.f32.partialorder %v5099, 0.0
    %vm5108 = vcmp.gt.f32.partialorder %v5100, 0.0
    %vm5109 = vcmp.gt.f32.partialorder %v5101, 0.0
    %vm5110 = vcmp.gt.f32.partialorder %v5102, 0.0
    %vm5111 = vcmp.gt.f32.partialorder %v5103, 0.0
    %v5112 = vmul.f32 %v5096, 0.01
    %v5113 = vmul.f32 %v5097, 0.01
    %v5114 = vmul.f32 %v5098, 0.01
    %v5115 = vmul.f32 %v5099, 0.01
    %v5116 = vmul.f32 %v5100, 0.01
    %v5117 = vmul.f32 %v5101, 0.01
    %v5118 = vmul.f32 %v5102, 0.01
    %v5119 = vmul.f32 %v5103, 0.01
    %v5120 = vsel %vm5104, %v5096, %v5112
    %v5121 = vsel %vm5105, %v5097, %v5113
    %v5122 = vsel %vm5106, %v5098, %v5114
    %v5123 = vsel %vm5107, %v5099, %v5115
    %v5124 = vsel %vm5108, %v5100, %v5116
    %v5125 = vsel %vm5109, %v5101, %v5117
    %v5126 = vsel %vm5110, %v5102, %v5118
    %v5127 = vsel %vm5111, %v5103, %v5119
    %vm5128 = vcmask 523264
    %v5130 = vsel %vm5128, %v2295, 0
    %v5133 = vsel %vm5128, %v2296, 0
    %v5136 = vsel %vm5128, %v2297, 0
    %v5139 = vsel %vm5128, %v2298, 0
    %5141 = vmatprep.subr.mxu0 0.0
    %5142 = vmatpush1.msra.mxu0 %v5120
    %5143 = vmatprep.subr.mxu0 0.0
    %5144 = vmatpush1.msra.mxu0 %v5121
    %5145 = vmatprep.subr.mxu0 0.0
    %5146 = vmatpush1.msra.mxu0 %v5122
    %5147 = vmatprep.subr.mxu0 0.0
    %5148 = vmatpush1.msra.mxu0 %v5123
    %5149 = vmatprep.subr.mxu0 0.0
    %5150 = vmatpush1.msra.mxu0 %v5124
    %5151 = vmatprep.subr.mxu0 0.0
    %5152 = vmatpush1.msra.mxu0 %v5125
    %5153 = vmatprep.subr.mxu0 0.0
    %5154 = vmatpush1.msra.mxu0 %v5126
    %5155 = vmatprep.subr.mxu0 0.0
    %5156 = vmatpush1.msra.mxu0 %v5127
    %5157 = vmatprep.subr.mxu0 0.0
    %5158 = vmatpush1.msra.mxu0 0.0
    %5159 = vmatprep.subr.mxu0 0.0
    %5160 = vmatpush1.msra.mxu0 0.0
    %5161 = vmatprep.subr.mxu0 0.0
    %5162 = vmatpush1.msra.mxu0 0.0
    %5163 = vmatprep.subr.mxu0 0.0
    %5164 = vmatpush1.msra.mxu0 0.0
    %5165 = vmatprep.subr.mxu0 0.0
    %5166 = vmatpush1.msra.mxu0 0.0
    %5167 = vmatprep.subr.mxu0 0.0
    %5168 = vmatpush1.msra.mxu0 0.0
    %5169 = vmatprep.subr.mxu0 0.0
    %5170 = vmatpush1.msra.mxu0 0.0
    %5171 = vmatprep.subr.mxu0 0.0
    %5172 = vmatpush1.msra.mxu0 0.0
    %5173 = vmatprep.subr.mxu0 0.0
    %5174 = vmatpush1.msra.mxu0 0.0
    %5175 = vmatprep.subr.mxu0 0.0
    %5176 = vmatpush1.msra.mxu0 0.0
    %5177 = vmatprep.subr.mxu0 0.0
    %5178 = vmatpush1.msra.mxu0 0.0
    %5179 = vmatprep.subr.mxu0 0.0
    %5180 = vmatpush1.msra.mxu0 0.0
    %5181 = vmatprep.subr.mxu0 0.0
    %5182 = vmatpush1.msra.mxu0 0.0
    %5183 = vmatprep.subr.mxu0 0.0
    %5184 = vmatpush1.msra.mxu0 0.0
    %5185 = vmatprep.subr.mxu0 0.0
    %5186 = vmatpush1.msra.mxu0 0.0
    %5187 = vmatprep.subr.mxu0 0.0
    %5188 = vmatpush1.msra.mxu0 0.0
    %5189 = vmatprep.subr.mxu0 0.0
    %5190 = vmatpush1.msra.mxu0 0.0
    %5191 = vmatprep.subr.mxu0 0.0
    %5192 = vmatpush1.msra.mxu0 0.0
    %5193 = vmatprep.subr.mxu0 0.0
    %5194 = vmatpush1.msra.mxu0 0.0
    %5195 = vmatprep.subr.mxu0 0.0
    %5196 = vmatpush1.msra.mxu0 0.0
    %5197 = vmatprep.subr.mxu0 0.0
    %5198 = vmatpush1.msra.mxu0 0.0
    %5199 = vmatprep.subr.mxu0 0.0
    %5200 = vmatpush1.msra.mxu0 0.0
    %5201 = vmatprep.subr.mxu0 0.0
    %5202 = vmatpush1.msra.mxu0 0.0
    %5203 = vmatprep.subr.mxu0 0.0
    %5204 = vmatpush1.msra.mxu0 0.0
    %5205 = vmatprep.mubr.f32.mxu0 0.0
    %5206 = vmatmul.mubr.f32.gmra.mrb[0].mxu0 %v5130
    %v5207 = vpop.f32.mrb[0].mxu0
    %v5208 = vadd.f32 0.0, %v5207
    %v5209 = vpop.f32.mrb[0].mxu0
    %5210 = vmatprep.mubr.f32.mxu0 0.0
    %5211 = vmatmul.mubr.f32.gmra.mrb[0].mxu0 %v5133
    %v5212 = vpop.f32.mrb[0].mxu0
    %v5213 = vadd.f32 0.0, %v5212
    %v5214 = vpop.f32.mrb[0].mxu0
    %5215 = vmatprep.mubr.f32.mxu0 0.0
    %5216 = vmatmul.mubr.f32.gmra.mrb[0].mxu0 %v5136
    %v5217 = vpop.f32.mrb[0].mxu0
    %v5218 = vadd.f32 0.0, %v5217
    %v5219 = vpop.f32.mrb[0].mxu0
    %5220 = vmatprep.mubr.f32.mxu0 0.0
    %5221 = vmatmul.mubr.f32.gmra.mrb[0].mxu0 %v5139
    %v5222 = vpop.f32.mrb[0].mxu0
    %v5223 = vadd.f32 0.0, %v5222
    %v5224 = vpop.f32.mrb[0].mxu0
    %5225 = vdwg.mxu0
    %v5227 = vsel %vm5128, %v2327, 0
    %v5230 = vsel %vm5128, %v2328, 0
    %v5233 = vsel %vm5128, %v2329, 0
    %v5236 = vsel %vm5128, %v2330, 0
    %5238 = vmatprep.subr.mxu0 0.0
    %5239 = vmatpush1.msra.mxu0 %v5120
    %5240 = vmatprep.subr.mxu0 0.0
    %5241 = vmatpush1.msra.mxu0 %v5121
    %5242 = vmatprep.subr.mxu0 0.0
    %5243 = vmatpush1.msra.mxu0 %v5122
    %5244 = vmatprep.subr.mxu0 0.0
    %5245 = vmatpush1.msra.mxu0 %v5123
    %5246 = vmatprep.subr.mxu0 0.0
    %5247 = vmatpush1.msra.mxu0 %v5124
    %5248 = vmatprep.subr.mxu0 0.0
    %5249 = vmatpush1.msra.mxu0 %v5125
    %5250 = vmatprep.subr.mxu0 0.0
    %5251 = vmatpush1.msra.mxu0 %v5126
    %5252 = vmatprep.subr.mxu0 0.0
    %5253 = vmatpush1.msra.mxu0 %v5127
    %5254 = vmatprep.subr.mxu0 0.0
    %5255 = vmatpush1.msra.mxu0 0.0
    %5256 = vmatprep.subr.mxu0 0.0
    %5257 = vmatpush1.msra.mxu0 0.0
    %5258 = vmatprep.subr.mxu0 0.0
    %5259 = vmatpush1.msra.mxu0 0.0
    %5260 = vmatprep.subr.mxu0 0.0
    %5261 = vmatpush1.msra.mxu0 0.0
    %5262 = vmatprep.subr.mxu0 0.0
    %5263 = vmatpush1.msra.mxu0 0.0
    %5264 = vmatprep.subr.mxu0 0.0
    %5265 = vmatpush1.msra.mxu0 0.0
    %5266 = vmatprep.subr.mxu0 0.0
    %5267 = vmatpush1.msra.mxu0 0.0
    %5268 = vmatprep.subr.mxu0 0.0
    %5269 = vmatpush1.msra.mxu0 0.0
    %5270 = vmatprep.subr.mxu0 0.0
    %5271 = vmatpush1.msra.mxu0 0.0
    %5272 = vmatprep.subr.mxu0 0.0
    %5273 = vmatpush1.msra.mxu0 0.0
    %5274 = vmatprep.subr.mxu0 0.0
    %5275 = vmatpush1.msra.mxu0 0.0
    %5276 = vmatprep.subr.mxu0 0.0
    %5277 = vmatpush1.msra.mxu0 0.0
    %5278 = vmatprep.subr.mxu0 0.0
    %5279 = vmatpush1.msra.mxu0 0.0
    %5280 = vmatprep.subr.mxu0 0.0
    %5281 = vmatpush1.msra.mxu0 0.0
    %5282 = vmatprep.subr.mxu0 0.0
    %5283 = vmatpush1.msra.mxu0 0.0
    %5284 = vmatprep.subr.mxu0 0.0
    %5285 = vmatpush1.msra.mxu0 0.0
    %5286 = vmatprep.subr.mxu0 0.0
    %5287 = vmatpush1.msra.mxu0 0.0
    %5288 = vmatprep.subr.mxu0 0.0
    %5289 = vmatpush1.msra.mxu0 0.0
    %5290 = vmatprep.subr.mxu0 0.0
    %5291 = vmatpush1.msra.mxu0 0.0
    %5292 = vmatprep.subr.mxu0 0.0
    %5293 = vmatpush1.msra.mxu0 0.0
    %5294 = vmatprep.subr.mxu0 0.0
    %5295 = vmatpush1.msra.mxu0 0.0
    %5296 = vmatprep.subr.mxu0 0.0
    %5297 = vmatpush1.msra.mxu0 0.0
    %5298 = vmatprep.subr.mxu0 0.0
    %5299 = vmatpush1.msra.mxu0 0.0
    %5300 = vmatprep.subr.mxu0 0.0
    %5301 = vmatpush1.msra.mxu0 0.0
    %5302 = vmatprep.mubr.f32.mxu0 0.0
    %5303 = vmatmul.mubr.f32.gmra.mrb[0].mxu0 %v5227
    %v5304 = vpop.f32.mrb[0].mxu0
    %v5305 = vadd.f32 0.0, %v5304
    %v5306 = vpop.f32.mrb[0].mxu0
    %5307 = vmatprep.mubr.f32.mxu0 0.0
    %5308 = vmatmul.mubr.f32.gmra.mrb[0].mxu0 %v5230
    %v5309 = vpop.f32.mrb[0].mxu0
    %v5310 = vadd.f32 0.0, %v5309
    %v5311 = vpop.f32.mrb[0].mxu0
    %5312 = vmatprep.mubr.f32.mxu0 0.0
    %5313 = vmatmul.mubr.f32.gmra.mrb[0].mxu0 %v5233
    %v5314 = vpop.f32.mrb[0].mxu0
    %v5315 = vadd.f32 0.0, %v5314
    %v5316 = vpop.f32.mrb[0].mxu0
    %5317 = vmatprep.mubr.f32.mxu0 0.0
    %5318 = vmatmul.mubr.f32.gmra.mrb[0].mxu0 %v5236
    %v5319 = vpop.f32.mrb[0].mxu0
    %v5320 = vadd.f32 0.0, %v5319
    %v5321 = vpop.f32.mrb[0].mxu0
    %5322 = vdwg.mxu0
    %v5323 = vld [vmem:[#allocation8] sm:$0xff]
    %v5324 = vld [vmem:[#allocation8 + $0x8] sm:$0xff]
    %v5325 = vld [vmem:[#allocation8 + $0x10] sm:$0xff]
    %v5326 = vld [vmem:[#allocation8 + $0x18] sm:$0xff]
    %v5327 = vld [vmem:[#allocation8 + $0x20] sm:$0xff]
    %v5328 = vld [vmem:[#allocation8 + $0x28] sm:$0xff]
    %s5329 = scalar_lea.vmem [#allocation8], 48
    %v5330 = vld [vmem:[%s5329] sm:$0xff]
    %v5331 = vld [vmem:[%s5329 + $0x8] sm:$0xff]
    %v5332 = vld [vmem:[%s5329 + $0x10] sm:$0xff]
    %v5333 = vld [vmem:[%s5329 + $0x18] sm:$0xff]
    %v5334 = vld [vmem:[%s5329 + $0x20] sm:$0xff]
    %v5335 = vld [vmem:[%s5329 + $0x28] sm:$0xff]
    %vm5336 = vcmask 392192
    %v5338 = vsel %vm5336, %v5305, 0
    %v5341 = vsel %vm5336, %v5310, 0
    %v5344 = vsel %vm5336, %v5315, 0
    %v5347 = vsel %vm5336, %v5320, 0
    %5349 = vmatprep.subr.mxu0 0.0
    %5350 = vmatpush1.msra.mxu0 %v5330
    %5351 = vmatprep.subr.mxu0 0.0
    %5352 = vmatpush1.msra.mxu0 %v5331
    %5353 = vmatprep.subr.mxu0 0.0
    %5354 = vmatpush1.msra.mxu0 %v5332
    %5355 = vmatprep.subr.mxu0 0.0
    %5356 = vmatpush1.msra.mxu0 %v5333
    %5357 = vmatprep.subr.mxu0 0.0
    %5358 = vmatpush1.msra.mxu0 %v5334
    %5359 = vmatprep.subr.mxu0 0.0
    %5360 = vmatpush1.msra.mxu0 %v5335
    %5361 = vmatprep.subr.mxu0 0.0
    %5362 = vmatpush1.msra.mxu0 0.0
    %5363 = vmatprep.subr.mxu0 0.0
    %5364 = vmatpush1.msra.mxu0 0.0
    %5365 = vmatprep.subr.mxu0 0.0
    %5366 = vmatpush1.msra.mxu0 0.0
    %5367 = vmatprep.subr.mxu0 0.0
    %5368 = vmatpush1.msra.mxu0 0.0
    %5369 = vmatprep.subr.mxu0 0.0
    %5370 = vmatpush1.msra.mxu0 0.0
    %5371 = vmatprep.subr.mxu0 0.0
    %5372 = vmatpush1.msra.mxu0 0.0
    %5373 = vmatprep.subr.mxu0 0.0
    %5374 = vmatpush1.msra.mxu0 0.0
    %5375 = vmatprep.subr.mxu0 0.0
    %5376 = vmatpush1.msra.mxu0 0.0
    %5377 = vmatprep.subr.mxu0 0.0
    %5378 = vmatpush1.msra.mxu0 0.0
    %5379 = vmatprep.subr.mxu0 0.0
    %5380 = vmatpush1.msra.mxu0 0.0
    %5381 = vmatprep.subr.mxu0 0.0
    %5382 = vmatpush1.msra.mxu0 0.0
    %5383 = vmatprep.subr.mxu0 0.0
    %5384 = vmatpush1.msra.mxu0 0.0
    %5385 = vmatprep.subr.mxu0 0.0
    %5386 = vmatpush1.msra.mxu0 0.0
    %5387 = vmatprep.subr.mxu0 0.0
    %5388 = vmatpush1.msra.mxu0 0.0
    %5389 = vmatprep.subr.mxu0 0.0
    %5390 = vmatpush1.msra.mxu0 0.0
    %5391 = vmatprep.subr.mxu0 0.0
    %5392 = vmatpush1.msra.mxu0 0.0
    %5393 = vmatprep.subr.mxu0 0.0
    %5394 = vmatpush1.msra.mxu0 0.0
    %5395 = vmatprep.subr.mxu0 0.0
    %5396 = vmatpush1.msra.mxu0 0.0
    %5397 = vmatprep.subr.mxu0 0.0
    %5398 = vmatpush1.msra.mxu0 0.0
    %5399 = vmatprep.subr.mxu0 0.0
    %5400 = vmatpush1.msra.mxu0 0.0
    %5401 = vmatprep.subr.mxu0 0.0
    %5402 = vmatpush1.msra.mxu0 0.0
    %5403 = vmatprep.subr.mxu0 0.0
    %5404 = vmatpush1.msra.mxu0 0.0
    %5405 = vmatprep.subr.mxu0 0.0
    %5406 = vmatpush1.msra.mxu0 0.0
    %5407 = vmatprep.subr.mxu0 0.0
    %5408 = vmatpush1.msra.mxu0 0.0
    %5409 = vmatprep.subr.mxu0 0.0
    %5410 = vmatpush1.msra.mxu0 0.0
    %5411 = vmatprep.subr.mxu0 0.0
    %5412 = vmatpush1.msra.mxu0 0.0
    %5413 = vmatprep.mubr.f32.mxu0 0.0
    %5414 = vmatmul.mubr.f32.gmra.mrb[0].mxu0 %v5338
    %v5415 = vpop.f32.mrb[0].mxu0
    %v5416 = vadd.f32 0.0, %v5415
    %v5417 = vpop.f32.mrb[0].mxu0
    %5418 = vmatprep.mubr.f32.mxu0 0.0
    %5419 = vmatmul.mubr.f32.gmra.mrb[0].mxu0 %v5341
    %v5420 = vpop.f32.mrb[0].mxu0
    %v5421 = vadd.f32 0.0, %v5420
    %v5422 = vpop.f32.mrb[0].mxu0
    %5423 = vmatprep.mubr.f32.mxu0 0.0
    %5424 = vmatmul.mubr.f32.gmra.mrb[0].mxu0 %v5344
    %v5425 = vpop.f32.mrb[0].mxu0
    %v5426 = vadd.f32 0.0, %v5425
    %v5427 = vpop.f32.mrb[0].mxu0
    %5428 = vmatprep.mubr.f32.mxu0 0.0
    %5429 = vmatmul.mubr.f32.gmra.mrb[0].mxu0 %v5347
    %v5430 = vpop.f32.mrb[0].mxu0
    %v5431 = vadd.f32 0.0, %v5430
    %v5432 = vpop.f32.mrb[0].mxu0
    %5433 = vdwg.mxu0
    %v5435 = vsel %vm5336, %v5208, 0
    %v5438 = vsel %vm5336, %v5213, 0
    %v5441 = vsel %vm5336, %v5218, 0
    %v5444 = vsel %vm5336, %v5223, 0
    %5446 = vmatprep.subr.mxu0 0.0
    %5447 = vmatpush1.msra.mxu0 %v5323
    %5448 = vmatprep.subr.mxu0 0.0
    %5449 = vmatpush1.msra.mxu0 %v5324
    %5450 = vmatprep.subr.mxu0 0.0
    %5451 = vmatpush1.msra.mxu0 %v5325
    %5452 = vmatprep.subr.mxu0 0.0
    %5453 = vmatpush1.msra.mxu0 %v5326
    %5454 = vmatprep.subr.mxu0 0.0
    %5455 = vmatpush1.msra.mxu0 %v5327
    %5456 = vmatprep.subr.mxu0 0.0
    %5457 = vmatpush1.msra.mxu0 %v5328
    %5458 = vmatprep.subr.mxu0 0.0
    %5459 = vmatpush1.msra.mxu0 0.0
    %5460 = vmatprep.subr.mxu0 0.0
    %5461 = vmatpush1.msra.mxu0 0.0
    %5462 = vmatprep.subr.mxu0 0.0
    %5463 = vmatpush1.msra.mxu0 0.0
    %5464 = vmatprep.subr.mxu0 0.0
    %5465 = vmatpush1.msra.mxu0 0.0
    %5466 = vmatprep.subr.mxu0 0.0
    %5467 = vmatpush1.msra.mxu0 0.0
    %5468 = vmatprep.subr.mxu0 0.0
    %5469 = vmatpush1.msra.mxu0 0.0
    %5470 = vmatprep.subr.mxu0 0.0
    %5471 = vmatpush1.msra.mxu0 0.0
    %5472 = vmatprep.subr.mxu0 0.0
    %5473 = vmatpush1.msra.mxu0 0.0
    %5474 = vmatprep.subr.mxu0 0.0
    %5475 = vmatpush1.msra.mxu0 0.0
    %5476 = vmatprep.subr.mxu0 0.0
    %5477 = vmatpush1.msra.mxu0 0.0
    %5478 = vmatprep.subr.mxu0 0.0
    %5479 = vmatpush1.msra.mxu0 0.0
    %5480 = vmatprep.subr.mxu0 0.0
    %5481 = vmatpush1.msra.mxu0 0.0
    %5482 = vmatprep.subr.mxu0 0.0
    %5483 = vmatpush1.msra.mxu0 0.0
    %5484 = vmatprep.subr.mxu0 0.0
    %5485 = vmatpush1.msra.mxu0 0.0
    %5486 = vmatprep.subr.mxu0 0.0
    %5487 = vmatpush1.msra.mxu0 0.0
    %5488 = vmatprep.subr.mxu0 0.0
    %5489 = vmatpush1.msra.mxu0 0.0
    %5490 = vmatprep.subr.mxu0 0.0
    %5491 = vmatpush1.msra.mxu0 0.0
    %5492 = vmatprep.subr.mxu0 0.0
    %5493 = vmatpush1.msra.mxu0 0.0
    %5494 = vmatprep.subr.mxu0 0.0
    %5495 = vmatpush1.msra.mxu0 0.0
    %5496 = vmatprep.subr.mxu0 0.0
    %5497 = vmatpush1.msra.mxu0 0.0
    %5498 = vmatprep.subr.mxu0 0.0
    %5499 = vmatpush1.msra.mxu0 0.0
    %5500 = vmatprep.subr.mxu0 0.0
    %5501 = vmatpush1.msra.mxu0 0.0
    %5502 = vmatprep.subr.mxu0 0.0
    %5503 = vmatpush1.msra.mxu0 0.0
    %5504 = vmatprep.subr.mxu0 0.0
    %5505 = vmatpush1.msra.mxu0 0.0
    %5506 = vmatprep.subr.mxu0 0.0
    %5507 = vmatpush1.msra.mxu0 0.0
    %5508 = vmatprep.subr.mxu0 0.0
    %5509 = vmatpush1.msra.mxu0 0.0
    %5510 = vmatprep.mubr.f32.mxu0 0.0
    %5511 = vmatmul.mubr.f32.gmra.mrb[0].mxu0 %v5435
    %v5512 = vpop.f32.mrb[0].mxu0
    %v5513 = vadd.f32 %v5416, %v5512
    %v5514 = vpop.f32.mrb[0].mxu0
    %5515 = vmatprep.mubr.f32.mxu0 0.0
    %5516 = vmatmul.mubr.f32.gmra.mrb[0].mxu0 %v5438
    %v5517 = vpop.f32.mrb[0].mxu0
    %v5518 = vadd.f32 %v5421, %v5517
    %v5519 = vpop.f32.mrb[0].mxu0
    %5520 = vmatprep.mubr.f32.mxu0 0.0
    %5521 = vmatmul.mubr.f32.gmra.mrb[0].mxu0 %v5441
    %v5522 = vpop.f32.mrb[0].mxu0
    %v5523 = vadd.f32 %v5426, %v5522
    %v5524 = vpop.f32.mrb[0].mxu0
    %5525 = vmatprep.mubr.f32.mxu0 0.0
    %5526 = vmatmul.mubr.f32.gmra.mrb[0].mxu0 %v5444
    %v5527 = vpop.f32.mrb[0].mxu0
    %v5528 = vadd.f32 %v5431, %v5527
    %v5529 = vpop.f32.mrb[0].mxu0
    %5530 = vdwg.mxu0
    %v5531 = vld [vmem:[%s8] sm:$0x1]
    %v5533 = vlaneseq
    %v5534 = vshrl.u32 %v5533, 7
    %v5535 = vsub.s32 0, %v5534
    %v5536 = vrot.slane %v5531, %v5535
    %v5538 = vadd.f32 %v5513, %v5536
    %v5539 = vadd.f32 %v5518, %v5536
    %v5540 = vadd.f32 %v5523, %v5536
    %v5541 = vadd.f32 %v5528, %v5536
    %vm5542 = vcmp.gt.f32.partialorder %v5538, 0.0
    %vm5543 = vcmp.gt.f32.partialorder %v5539, 0.0
    %vm5544 = vcmp.gt.f32.partialorder %v5540, 0.0
    %vm5545 = vcmp.gt.f32.partialorder %v5541, 0.0
    %v5546 = vmul.f32 %v5538, 0.01
    %v5547 = vmul.f32 %v5539, 0.01
    %v5548 = vmul.f32 %v5540, 0.01
    %v5549 = vmul.f32 %v5541, 0.01
    %v5550 = vsel %vm5542, %v5538, %v5546
    %v5551 = vsel %vm5543, %v5539, %v5547
    %v5552 = vsel %vm5544, %v5540, %v5548
    %v5553 = vsel %vm5545, %v5541, %v5549
    %5554 = vst.msk [vmem:[#allocation4] sm:$0xff] %vm5336, 0.0
    %5555 = vst.msk [vmem:[#allocation4 + $0x8] sm:$0xff] %vm5336, 0.0
    %5556 = vst.msk [vmem:[#allocation4 + $0x10] sm:$0xff] %vm5336, 0.0
    %5557 = vst.msk [vmem:[#allocation4 + $0x18] sm:$0xff] %vm5336, 0.0
    %5558 = vst.msk [vmem:[#allocation4 + $0x20] sm:$0xff] %vm5336, 0.0
    %5559 = vst.msk [vmem:[#allocation4 + $0x28] sm:$0xff] %vm5336, 0.0
    %5560 = vst.msk [vmem:[#allocation4 + $0x30] sm:$0xff] %vm5336, 0.0
    %5561 = vst.msk [vmem:[#allocation4 + $0x38] sm:$0xff] %vm5336, 0.0
    %5562 = vst.msk [vmem:[#allocation4 + $0x8] sm:$0xff] %vm5336, %v5550
    %5563 = vst.msk [vmem:[#allocation4 + $0x10] sm:$0xff] %vm5336, %v5551
    %s5564 = scalar_lea.vmem [#allocation4], 32
    %5565 = vst.msk [vmem:[%s5564 + $0x8] sm:$0xff] %vm5336, %v5552
    %5566 = vst.msk [vmem:[%s5564 + $0x10] sm:$0xff] %vm5336, %v5553
    %v5567 = vld [vmem:[#allocation4 + $0x1] sm:$0xff]
    %v5568 = vld [vmem:[#allocation4 + $0x9] sm:$0xff]
    %v5569 = vld [vmem:[#allocation4 + $0x21] sm:$0xff]
    %v5570 = vld [vmem:[#allocation4 + $0x29] sm:$0xff]
    %v5571 = vld [vmem:[#allocation10] sm:$0xff]
    %v5572 = vld [vmem:[#allocation10 + $0x8] sm:$0xff]
    %v5573 = vld [vmem:[#allocation10 + $0x10] sm:$0xff]
    %v5574 = vld [vmem:[#allocation10 + $0x18] sm:$0xff]
    %v5575 = vld [vmem:[#allocation10 + $0x20] sm:$0xff]
    %v5576 = vld [vmem:[#allocation10 + $0x28] sm:$0xff]
    %v5577 = vld [vmem:[#allocation4 + $0x2] sm:$0xff]
    %v5578 = vld [vmem:[#allocation4 + $0xa] sm:$0xff]
    %v5579 = vld [vmem:[#allocation4 + $0x22] sm:$0xff]
    %v5580 = vld [vmem:[#allocation4 + $0x2a] sm:$0xff]
    %s5581 = scalar_lea.vmem [#allocation10], 48
    %v5582 = vld [vmem:[%s5581] sm:$0xff]
    %v5583 = vld [vmem:[%s5581 + $0x8] sm:$0xff]
    %v5584 = vld [vmem:[%s5581 + $0x10] sm:$0xff]
    %v5585 = vld [vmem:[%s5581 + $0x18] sm:$0xff]
    %v5586 = vld [vmem:[%s5581 + $0x20] sm:$0xff]
    %v5587 = vld [vmem:[%s5581 + $0x28] sm:$0xff]
    %v5589 = vsel %vm5336, %v5577, 0
    %v5592 = vsel %vm5336, %v5578, 0
    %v5595 = vsel %vm5336, %v5579, 0
    %v5598 = vsel %vm5336, %v5580, 0
    %5600 = vmatprep.subr.mxu0 0.0
    %5601 = vmatpush1.msra.mxu0 %v5582
    %5602 = vmatprep.subr.mxu0 0.0
    %5603 = vmatpush1.msra.mxu0 %v5583
    %5604 = vmatprep.subr.mxu0 0.0
    %5605 = vmatpush1.msra.mxu0 %v5584
    %5606 = vmatprep.subr.mxu0 0.0
    %5607 = vmatpush1.msra.mxu0 %v5585
    %5608 = vmatprep.subr.mxu0 0.0
    %5609 = vmatpush1.msra.mxu0 %v5586
    %5610 = vmatprep.subr.mxu0 0.0
    %5611 = vmatpush1.msra.mxu0 %v5587
    %5612 = vmatprep.subr.mxu0 0.0
    %5613 = vmatpush1.msra.mxu0 0.0
    %5614 = vmatprep.subr.mxu0 0.0
    %5615 = vmatpush1.msra.mxu0 0.0
    %5616 = vmatprep.subr.mxu0 0.0
    %5617 = vmatpush1.msra.mxu0 0.0
    %5618 = vmatprep.subr.mxu0 0.0
    %5619 = vmatpush1.msra.mxu0 0.0
    %5620 = vmatprep.subr.mxu0 0.0
    %5621 = vmatpush1.msra.mxu0 0.0
    %5622 = vmatprep.subr.mxu0 0.0
    %5623 = vmatpush1.msra.mxu0 0.0
    %5624 = vmatprep.subr.mxu0 0.0
    %5625 = vmatpush1.msra.mxu0 0.0
    %5626 = vmatprep.subr.mxu0 0.0
    %5627 = vmatpush1.msra.mxu0 0.0
    %5628 = vmatprep.subr.mxu0 0.0
    %5629 = vmatpush1.msra.mxu0 0.0
    %5630 = vmatprep.subr.mxu0 0.0
    %5631 = vmatpush1.msra.mxu0 0.0
    %5632 = vmatprep.subr.mxu0 0.0
    %5633 = vmatpush1.msra.mxu0 0.0
    %5634 = vmatprep.subr.mxu0 0.0
    %5635 = vmatpush1.msra.mxu0 0.0
    %5636 = vmatprep.subr.mxu0 0.0
    %5637 = vmatpush1.msra.mxu0 0.0
    %5638 = vmatprep.subr.mxu0 0.0
    %5639 = vmatpush1.msra.mxu0 0.0
    %5640 = vmatprep.subr.mxu0 0.0
    %5641 = vmatpush1.msra.mxu0 0.0
    %5642 = vmatprep.subr.mxu0 0.0
    %5643 = vmatpush1.msra.mxu0 0.0
    %5644 = vmatprep.subr.mxu0 0.0
    %5645 = vmatpush1.msra.mxu0 0.0
    %5646 = vmatprep.subr.mxu0 0.0
    %5647 = vmatpush1.msra.mxu0 0.0
    %5648 = vmatprep.subr.mxu0 0.0
    %5649 = vmatpush1.msra.mxu0 0.0
    %5650 = vmatprep.subr.mxu0 0.0
    %5651 = vmatpush1.msra.mxu0 0.0
    %5652 = vmatprep.subr.mxu0 0.0
    %5653 = vmatpush1.msra.mxu0 0.0
    %5654 = vmatprep.subr.mxu0 0.0
    %5655 = vmatpush1.msra.mxu0 0.0
    %5656 = vmatprep.subr.mxu0 0.0
    %5657 = vmatpush1.msra.mxu0 0.0
    %5658 = vmatprep.subr.mxu0 0.0
    %5659 = vmatpush1.msra.mxu0 0.0
    %5660 = vmatprep.subr.mxu0 0.0
    %5661 = vmatpush1.msra.mxu0 0.0
    %5662 = vmatprep.subr.mxu0 0.0
    %5663 = vmatpush1.msra.mxu0 0.0
    %5664 = vmatprep.mubr.f32.mxu0 0.0
    %5665 = vmatmul.mubr.f32.gmra.mrb[0].mxu0 %v5589
    %v5666 = vpop.f32.mrb[0].mxu0
    %v5667 = vadd.f32 0.0, %v5666
    %v5668 = vpop.f32.mrb[0].mxu0
    %5669 = vmatprep.mubr.f32.mxu0 0.0
    %5670 = vmatmul.mubr.f32.gmra.mrb[0].mxu0 %v5592
    %v5671 = vpop.f32.mrb[0].mxu0
    %v5672 = vadd.f32 0.0, %v5671
    %v5673 = vpop.f32.mrb[0].mxu0
    %5674 = vmatprep.mubr.f32.mxu0 0.0
    %5675 = vmatmul.mubr.f32.gmra.mrb[0].mxu0 %v5595
    %v5676 = vpop.f32.mrb[0].mxu0
    %v5677 = vadd.f32 0.0, %v5676
    %v5678 = vpop.f32.mrb[0].mxu0
    %5679 = vmatprep.mubr.f32.mxu0 0.0
    %5680 = vmatmul.mubr.f32.gmra.mrb[0].mxu0 %v5598
    %v5681 = vpop.f32.mrb[0].mxu0
    %v5682 = vadd.f32 0.0, %v5681
    %v5683 = vpop.f32.mrb[0].mxu0
    %5684 = vdwg.mxu0
    %v5686 = vsel %vm5336, %v5567, 0
    %v5689 = vsel %vm5336, %v5568, 0
    %v5692 = vsel %vm5336, %v5569, 0
    %v5695 = vsel %vm5336, %v5570, 0
    %5697 = vmatprep.subr.mxu0 0.0
    %5698 = vmatpush1.msra.mxu0 %v5571
    %5699 = vmatprep.subr.mxu0 0.0
    %5700 = vmatpush1.msra.mxu0 %v5572
    %5701 = vmatprep.subr.mxu0 0.0
    %5702 = vmatpush1.msra.mxu0 %v5573
    %5703 = vmatprep.subr.mxu0 0.0
    %5704 = vmatpush1.msra.mxu0 %v5574
    %5705 = vmatprep.subr.mxu0 0.0
    %5706 = vmatpush1.msra.mxu0 %v5575
    %5707 = vmatprep.subr.mxu0 0.0
    %5708 = vmatpush1.msra.mxu0 %v5576
    %5709 = vmatprep.subr.mxu0 0.0
    %5710 = vmatpush1.msra.mxu0 0.0
    %5711 = vmatprep.subr.mxu0 0.0
    %5712 = vmatpush1.msra.mxu0 0.0
    %5713 = vmatprep.subr.mxu0 0.0
    %5714 = vmatpush1.msra.mxu0 0.0
    %5715 = vmatprep.subr.mxu0 0.0
    %5716 = vmatpush1.msra.mxu0 0.0
    %5717 = vmatprep.subr.mxu0 0.0
    %5718 = vmatpush1.msra.mxu0 0.0
    %5719 = vmatprep.subr.mxu0 0.0
    %5720 = vmatpush1.msra.mxu0 0.0
    %5721 = vmatprep.subr.mxu0 0.0
    %5722 = vmatpush1.msra.mxu0 0.0
    %5723 = vmatprep.subr.mxu0 0.0
    %5724 = vmatpush1.msra.mxu0 0.0
    %5725 = vmatprep.subr.mxu0 0.0
    %5726 = vmatpush1.msra.mxu0 0.0
    %5727 = vmatprep.subr.mxu0 0.0
    %5728 = vmatpush1.msra.mxu0 0.0
    %5729 = vmatprep.subr.mxu0 0.0
    %5730 = vmatpush1.msra.mxu0 0.0
    %5731 = vmatprep.subr.mxu0 0.0
    %5732 = vmatpush1.msra.mxu0 0.0
    %5733 = vmatprep.subr.mxu0 0.0
    %5734 = vmatpush1.msra.mxu0 0.0
    %5735 = vmatprep.subr.mxu0 0.0
    %5736 = vmatpush1.msra.mxu0 0.0
    %5737 = vmatprep.subr.mxu0 0.0
    %5738 = vmatpush1.msra.mxu0 0.0
    %5739 = vmatprep.subr.mxu0 0.0
    %5740 = vmatpush1.msra.mxu0 0.0
    %5741 = vmatprep.subr.mxu0 0.0
    %5742 = vmatpush1.msra.mxu0 0.0
    %5743 = vmatprep.subr.mxu0 0.0
    %5744 = vmatpush1.msra.mxu0 0.0
    %5745 = vmatprep.subr.mxu0 0.0
    %5746 = vmatpush1.msra.mxu0 0.0
    %5747 = vmatprep.subr.mxu0 0.0
    %5748 = vmatpush1.msra.mxu0 0.0
    %5749 = vmatprep.subr.mxu0 0.0
    %5750 = vmatpush1.msra.mxu0 0.0
    %5751 = vmatprep.subr.mxu0 0.0
    %5752 = vmatpush1.msra.mxu0 0.0
    %5753 = vmatprep.subr.mxu0 0.0
    %5754 = vmatpush1.msra.mxu0 0.0
    %5755 = vmatprep.subr.mxu0 0.0
    %5756 = vmatpush1.msra.mxu0 0.0
    %5757 = vmatprep.subr.mxu0 0.0
    %5758 = vmatpush1.msra.mxu0 0.0
    %5759 = vmatprep.subr.mxu0 0.0
    %5760 = vmatpush1.msra.mxu0 0.0
    %5761 = vmatprep.mubr.f32.mxu0 0.0
    %5762 = vmatmul.mubr.f32.gmra.mrb[0].mxu0 %v5686
    %v5763 = vpop.f32.mrb[0].mxu0
    %v5764 = vadd.f32 %v5667, %v5763
    %v5765 = vpop.f32.mrb[0].mxu0
    %5766 = vmatprep.mubr.f32.mxu0 0.0
    %5767 = vmatmul.mubr.f32.gmra.mrb[0].mxu0 %v5689
    %v5768 = vpop.f32.mrb[0].mxu0
    %v5769 = vadd.f32 %v5672, %v5768
    %v5770 = vpop.f32.mrb[0].mxu0
    %5771 = vmatprep.mubr.f32.mxu0 0.0
    %5772 = vmatmul.mubr.f32.gmra.mrb[0].mxu0 %v5692
    %v5773 = vpop.f32.mrb[0].mxu0
    %v5774 = vadd.f32 %v5677, %v5773
    %v5775 = vpop.f32.mrb[0].mxu0
    %5776 = vmatprep.mubr.f32.mxu0 0.0
    %5777 = vmatmul.mubr.f32.gmra.mrb[0].mxu0 %v5695
    %v5778 = vpop.f32.mrb[0].mxu0
    %v5779 = vadd.f32 %v5682, %v5778
    %v5780 = vpop.f32.mrb[0].mxu0
    %5781 = vdwg.mxu0
    %v5782 = vld [vmem:[#allocation4 + $0x3] sm:$0xff]
    %v5783 = vld [vmem:[#allocation4 + $0xb] sm:$0xff]
    %v5784 = vld [vmem:[#allocation4 + $0x23] sm:$0xff]
    %v5785 = vld [vmem:[#allocation4 + $0x2b] sm:$0xff]
    %s5786 = scalar_lea.vmem [#allocation10], 96
    %v5787 = vld [vmem:[%s5786] sm:$0xff]
    %v5788 = vld [vmem:[%s5786 + $0x8] sm:$0xff]
    %v5789 = vld [vmem:[%s5786 + $0x10] sm:$0xff]
    %v5790 = vld [vmem:[%s5786 + $0x18] sm:$0xff]
    %v5791 = vld [vmem:[%s5786 + $0x20] sm:$0xff]
    %v5792 = vld [vmem:[%s5786 + $0x28] sm:$0xff]
    %v5794 = vsel %vm5336, %v5782, 0
    %v5797 = vsel %vm5336, %v5783, 0
    %v5800 = vsel %vm5336, %v5784, 0
    %v5803 = vsel %vm5336, %v5785, 0
    %5805 = vmatprep.subr.mxu0 0.0
    %5806 = vmatpush1.msra.mxu0 %v5787
    %5807 = vmatprep.subr.mxu0 0.0
    %5808 = vmatpush1.msra.mxu0 %v5788
    %5809 = vmatprep.subr.mxu0 0.0
    %5810 = vmatpush1.msra.mxu0 %v5789
    %5811 = vmatprep.subr.mxu0 0.0
    %5812 = vmatpush1.msra.mxu0 %v5790
    %5813 = vmatprep.subr.mxu0 0.0
    %5814 = vmatpush1.msra.mxu0 %v5791
    %5815 = vmatprep.subr.mxu0 0.0
    %5816 = vmatpush1.msra.mxu0 %v5792
    %5817 = vmatprep.subr.mxu0 0.0
    %5818 = vmatpush1.msra.mxu0 0.0
    %5819 = vmatprep.subr.mxu0 0.0
    %5820 = vmatpush1.msra.mxu0 0.0
    %5821 = vmatprep.subr.mxu0 0.0
    %5822 = vmatpush1.msra.mxu0 0.0
    %5823 = vmatprep.subr.mxu0 0.0
    %5824 = vmatpush1.msra.mxu0 0.0
    %5825 = vmatprep.subr.mxu0 0.0
    %5826 = vmatpush1.msra.mxu0 0.0
    %5827 = vmatprep.subr.mxu0 0.0
    %5828 = vmatpush1.msra.mxu0 0.0
    %5829 = vmatprep.subr.mxu0 0.0
    %5830 = vmatpush1.msra.mxu0 0.0
    %5831 = vmatprep.subr.mxu0 0.0
    %5832 = vmatpush1.msra.mxu0 0.0
    %5833 = vmatprep.subr.mxu0 0.0
    %5834 = vmatpush1.msra.mxu0 0.0
    %5835 = vmatprep.subr.mxu0 0.0
    %5836 = vmatpush1.msra.mxu0 0.0
    %5837 = vmatprep.subr.mxu0 0.0
    %5838 = vmatpush1.msra.mxu0 0.0
    %5839 = vmatprep.subr.mxu0 0.0
    %5840 = vmatpush1.msra.mxu0 0.0
    %5841 = vmatprep.subr.mxu0 0.0
    %5842 = vmatpush1.msra.mxu0 0.0
    %5843 = vmatprep.subr.mxu0 0.0
    %5844 = vmatpush1.msra.mxu0 0.0
    %5845 = vmatprep.subr.mxu0 0.0
    %5846 = vmatpush1.msra.mxu0 0.0
    %5847 = vmatprep.subr.mxu0 0.0
    %5848 = vmatpush1.msra.mxu0 0.0
    %5849 = vmatprep.subr.mxu0 0.0
    %5850 = vmatpush1.msra.mxu0 0.0
    %5851 = vmatprep.subr.mxu0 0.0
    %5852 = vmatpush1.msra.mxu0 0.0
    %5853 = vmatprep.subr.mxu0 0.0
    %5854 = vmatpush1.msra.mxu0 0.0
    %5855 = vmatprep.subr.mxu0 0.0
    %5856 = vmatpush1.msra.mxu0 0.0
    %5857 = vmatprep.subr.mxu0 0.0
    %5858 = vmatpush1.msra.mxu0 0.0
    %5859 = vmatprep.subr.mxu0 0.0
    %5860 = vmatpush1.msra.mxu0 0.0
    %5861 = vmatprep.subr.mxu0 0.0
    %5862 = vmatpush1.msra.mxu0 0.0
    %5863 = vmatprep.subr.mxu0 0.0
    %5864 = vmatpush1.msra.mxu0 0.0
    %5865 = vmatprep.subr.mxu0 0.0
    %5866 = vmatpush1.msra.mxu0 0.0
    %5867 = vmatprep.subr.mxu0 0.0
    %5868 = vmatpush1.msra.mxu0 0.0
    %5869 = vmatprep.mubr.f32.mxu0 0.0
    %5870 = vmatmul.mubr.f32.gmra.mrb[0].mxu0 %v5794
    %v5871 = vpop.f32.mrb[0].mxu0
    %v5872 = vadd.f32 0.0, %v5871
    %v5873 = vpop.f32.mrb[0].mxu0
    %5874 = vmatprep.mubr.f32.mxu0 0.0
    %5875 = vmatmul.mubr.f32.gmra.mrb[0].mxu0 %v5797
    %v5876 = vpop.f32.mrb[0].mxu0
    %v5877 = vadd.f32 0.0, %v5876
    %v5878 = vpop.f32.mrb[0].mxu0
    %5879 = vmatprep.mubr.f32.mxu0 0.0
    %5880 = vmatmul.mubr.f32.gmra.mrb[0].mxu0 %v5800
    %v5881 = vpop.f32.mrb[0].mxu0
    %v5882 = vadd.f32 0.0, %v5881
    %v5883 = vpop.f32.mrb[0].mxu0
    %5884 = vmatprep.mubr.f32.mxu0 0.0
    %5885 = vmatmul.mubr.f32.gmra.mrb[0].mxu0 %v5803
    %v5886 = vpop.f32.mrb[0].mxu0
    %v5887 = vadd.f32 0.0, %v5886
    %v5888 = vpop.f32.mrb[0].mxu0
    %5889 = vdwg.mxu0
    %v5890 = vadd.f32 %v5764, %v5872
    %v5891 = vadd.f32 %v5769, %v5877
    %v5892 = vadd.f32 %v5774, %v5882
    %v5893 = vadd.f32 %v5779, %v5887
    %v5894 = vld [vmem:[#allocation4 + $0x4] sm:$0xff]
    %v5895 = vld [vmem:[#allocation4 + $0xc] sm:$0xff]
    %v5896 = vld [vmem:[#allocation4 + $0x24] sm:$0xff]
    %v5897 = vld [vmem:[#allocation4 + $0x2c] sm:$0xff]
    %s5898 = scalar_lea.vmem [#allocation10], 144
    %v5899 = vld [vmem:[%s5898] sm:$0xff]
    %v5900 = vld [vmem:[%s5898 + $0x8] sm:$0xff]
    %v5901 = vld [vmem:[%s5898 + $0x10] sm:$0xff]
    %v5902 = vld [vmem:[%s5898 + $0x18] sm:$0xff]
    %v5903 = vld [vmem:[%s5898 + $0x20] sm:$0xff]
    %v5904 = vld [vmem:[%s5898 + $0x28] sm:$0xff]
    %v5906 = vsel %vm5336, %v5894, 0
    %v5909 = vsel %vm5336, %v5895, 0
    %v5912 = vsel %vm5336, %v5896, 0
    %v5915 = vsel %vm5336, %v5897, 0
    %5917 = vmatprep.subr.mxu0 0.0
    %5918 = vmatpush1.msra.mxu0 %v5899
    %5919 = vmatprep.subr.mxu0 0.0
    %5920 = vmatpush1.msra.mxu0 %v5900
    %5921 = vmatprep.subr.mxu0 0.0
    %5922 = vmatpush1.msra.mxu0 %v5901
    %5923 = vmatprep.subr.mxu0 0.0
    %5924 = vmatpush1.msra.mxu0 %v5902
    %5925 = vmatprep.subr.mxu0 0.0
    %5926 = vmatpush1.msra.mxu0 %v5903
    %5927 = vmatprep.subr.mxu0 0.0
    %5928 = vmatpush1.msra.mxu0 %v5904
    %5929 = vmatprep.subr.mxu0 0.0
    %5930 = vmatpush1.msra.mxu0 0.0
    %5931 = vmatprep.subr.mxu0 0.0
    %5932 = vmatpush1.msra.mxu0 0.0
    %5933 = vmatprep.subr.mxu0 0.0
    %5934 = vmatpush1.msra.mxu0 0.0
    %5935 = vmatprep.subr.mxu0 0.0
    %5936 = vmatpush1.msra.mxu0 0.0
    %5937 = vmatprep.subr.mxu0 0.0
    %5938 = vmatpush1.msra.mxu0 0.0
    %5939 = vmatprep.subr.mxu0 0.0
    %5940 = vmatpush1.msra.mxu0 0.0
    %5941 = vmatprep.subr.mxu0 0.0
    %5942 = vmatpush1.msra.mxu0 0.0
    %5943 = vmatprep.subr.mxu0 0.0
    %5944 = vmatpush1.msra.mxu0 0.0
    %5945 = vmatprep.subr.mxu0 0.0
    %5946 = vmatpush1.msra.mxu0 0.0
    %5947 = vmatprep.subr.mxu0 0.0
    %5948 = vmatpush1.msra.mxu0 0.0
    %5949 = vmatprep.subr.mxu0 0.0
    %5950 = vmatpush1.msra.mxu0 0.0
    %5951 = vmatprep.subr.mxu0 0.0
    %5952 = vmatpush1.msra.mxu0 0.0
    %5953 = vmatprep.subr.mxu0 0.0
    %5954 = vmatpush1.msra.mxu0 0.0
    %5955 = vmatprep.subr.mxu0 0.0
    %5956 = vmatpush1.msra.mxu0 0.0
    %5957 = vmatprep.subr.mxu0 0.0
    %5958 = vmatpush1.msra.mxu0 0.0
    %5959 = vmatprep.subr.mxu0 0.0
    %5960 = vmatpush1.msra.mxu0 0.0
    %5961 = vmatprep.subr.mxu0 0.0
    %5962 = vmatpush1.msra.mxu0 0.0
    %5963 = vmatprep.subr.mxu0 0.0
    %5964 = vmatpush1.msra.mxu0 0.0
    %5965 = vmatprep.subr.mxu0 0.0
    %5966 = vmatpush1.msra.mxu0 0.0
    %5967 = vmatprep.subr.mxu0 0.0
    %5968 = vmatpush1.msra.mxu0 0.0
    %5969 = vmatprep.subr.mxu0 0.0
    %5970 = vmatpush1.msra.mxu0 0.0
    %5971 = vmatprep.subr.mxu0 0.0
    %5972 = vmatpush1.msra.mxu0 0.0
    %5973 = vmatprep.subr.mxu0 0.0
    %5974 = vmatpush1.msra.mxu0 0.0
    %5975 = vmatprep.subr.mxu0 0.0
    %5976 = vmatpush1.msra.mxu0 0.0
    %5977 = vmatprep.subr.mxu0 0.0
    %5978 = vmatpush1.msra.mxu0 0.0
    %5979 = vmatprep.subr.mxu0 0.0
    %5980 = vmatpush1.msra.mxu0 0.0
    %5981 = vmatprep.mubr.f32.mxu0 0.0
    %5982 = vmatmul.mubr.f32.gmra.mrb[0].mxu0 %v5906
    %v5983 = vpop.f32.mrb[0].mxu0
    %v5984 = vadd.f32 0.0, %v5983
    %v5985 = vpop.f32.mrb[0].mxu0
    %5986 = vmatprep.mubr.f32.mxu0 0.0
    %5987 = vmatmul.mubr.f32.gmra.mrb[0].mxu0 %v5909
    %v5988 = vpop.f32.mrb[0].mxu0
    %v5989 = vadd.f32 0.0, %v5988
    %v5990 = vpop.f32.mrb[0].mxu0
    %5991 = vmatprep.mubr.f32.mxu0 0.0
    %5992 = vmatmul.mubr.f32.gmra.mrb[0].mxu0 %v5912
    %v5993 = vpop.f32.mrb[0].mxu0
    %v5994 = vadd.f32 0.0, %v5993
    %v5995 = vpop.f32.mrb[0].mxu0
    %5996 = vmatprep.mubr.f32.mxu0 0.0
    %5997 = vmatmul.mubr.f32.gmra.mrb[0].mxu0 %v5915
    %v5998 = vpop.f32.mrb[0].mxu0
    %v5999 = vadd.f32 0.0, %v5998
    %v6000 = vpop.f32.mrb[0].mxu0
    %6001 = vdwg.mxu0
    %v6002 = vadd.f32 %v5890, %v5984
    %v6003 = vadd.f32 %v5891, %v5989
    %v6004 = vadd.f32 %v5892, %v5994
    %v6005 = vadd.f32 %v5893, %v5999
    %v6006 = vld [vmem:[#allocation4 + $0x5] sm:$0xff]
    %v6007 = vld [vmem:[#allocation4 + $0xd] sm:$0xff]
    %v6008 = vld [vmem:[#allocation4 + $0x25] sm:$0xff]
    %v6009 = vld [vmem:[#allocation4 + $0x2d] sm:$0xff]
    %s6010 = scalar_lea.vmem [#allocation10], 192
    %v6011 = vld [vmem:[%s6010] sm:$0xff]
    %v6012 = vld [vmem:[%s6010 + $0x8] sm:$0xff]
    %v6013 = vld [vmem:[%s6010 + $0x10] sm:$0xff]
    %v6014 = vld [vmem:[%s6010 + $0x18] sm:$0xff]
    %v6015 = vld [vmem:[%s6010 + $0x20] sm:$0xff]
    %v6016 = vld [vmem:[%s6010 + $0x28] sm:$0xff]
    %v6018 = vsel %vm5336, %v6006, 0
    %v6021 = vsel %vm5336, %v6007, 0
    %v6024 = vsel %vm5336, %v6008, 0
    %v6027 = vsel %vm5336, %v6009, 0
    %6029 = vmatprep.subr.mxu0 0.0
    %6030 = vmatpush1.msra.mxu0 %v6011
    %6031 = vmatprep.subr.mxu0 0.0
    %6032 = vmatpush1.msra.mxu0 %v6012
    %6033 = vmatprep.subr.mxu0 0.0
    %6034 = vmatpush1.msra.mxu0 %v6013
    %6035 = vmatprep.subr.mxu0 0.0
    %6036 = vmatpush1.msra.mxu0 %v6014
    %6037 = vmatprep.subr.mxu0 0.0
    %6038 = vmatpush1.msra.mxu0 %v6015
    %6039 = vmatprep.subr.mxu0 0.0
    %6040 = vmatpush1.msra.mxu0 %v6016
    %6041 = vmatprep.subr.mxu0 0.0
    %6042 = vmatpush1.msra.mxu0 0.0
    %6043 = vmatprep.subr.mxu0 0.0
    %6044 = vmatpush1.msra.mxu0 0.0
    %6045 = vmatprep.subr.mxu0 0.0
    %6046 = vmatpush1.msra.mxu0 0.0
    %6047 = vmatprep.subr.mxu0 0.0
    %6048 = vmatpush1.msra.mxu0 0.0
    %6049 = vmatprep.subr.mxu0 0.0
    %6050 = vmatpush1.msra.mxu0 0.0
    %6051 = vmatprep.subr.mxu0 0.0
    %6052 = vmatpush1.msra.mxu0 0.0
    %6053 = vmatprep.subr.mxu0 0.0
    %6054 = vmatpush1.msra.mxu0 0.0
    %6055 = vmatprep.subr.mxu0 0.0
    %6056 = vmatpush1.msra.mxu0 0.0
    %6057 = vmatprep.subr.mxu0 0.0
    %6058 = vmatpush1.msra.mxu0 0.0
    %6059 = vmatprep.subr.mxu0 0.0
    %6060 = vmatpush1.msra.mxu0 0.0
    %6061 = vmatprep.subr.mxu0 0.0
    %6062 = vmatpush1.msra.mxu0 0.0
    %6063 = vmatprep.subr.mxu0 0.0
    %6064 = vmatpush1.msra.mxu0 0.0
    %6065 = vmatprep.subr.mxu0 0.0
    %6066 = vmatpush1.msra.mxu0 0.0
    %6067 = vmatprep.subr.mxu0 0.0
    %6068 = vmatpush1.msra.mxu0 0.0
    %6069 = vmatprep.subr.mxu0 0.0
    %6070 = vmatpush1.msra.mxu0 0.0
    %6071 = vmatprep.subr.mxu0 0.0
    %6072 = vmatpush1.msra.mxu0 0.0
    %6073 = vmatprep.subr.mxu0 0.0
    %6074 = vmatpush1.msra.mxu0 0.0
    %6075 = vmatprep.subr.mxu0 0.0
    %6076 = vmatpush1.msra.mxu0 0.0
    %6077 = vmatprep.subr.mxu0 0.0
    %6078 = vmatpush1.msra.mxu0 0.0
    %6079 = vmatprep.subr.mxu0 0.0
    %6080 = vmatpush1.msra.mxu0 0.0
    %6081 = vmatprep.subr.mxu0 0.0
    %6082 = vmatpush1.msra.mxu0 0.0
    %6083 = vmatprep.subr.mxu0 0.0
    %6084 = vmatpush1.msra.mxu0 0.0
    %6085 = vmatprep.subr.mxu0 0.0
    %6086 = vmatpush1.msra.mxu0 0.0
    %6087 = vmatprep.subr.mxu0 0.0
    %6088 = vmatpush1.msra.mxu0 0.0
    %6089 = vmatprep.subr.mxu0 0.0
    %6090 = vmatpush1.msra.mxu0 0.0
    %6091 = vmatprep.subr.mxu0 0.0
    %6092 = vmatpush1.msra.mxu0 0.0
    %6093 = vmatprep.mubr.f32.mxu0 0.0
    %6094 = vmatmul.mubr.f32.gmra.mrb[0].mxu0 %v6018
    %v6095 = vpop.f32.mrb[0].mxu0
    %v6096 = vadd.f32 0.0, %v6095
    %v6097 = vpop.f32.mrb[0].mxu0
    %6098 = vmatprep.mubr.f32.mxu0 0.0
    %6099 = vmatmul.mubr.f32.gmra.mrb[0].mxu0 %v6021
    %v6100 = vpop.f32.mrb[0].mxu0
    %v6101 = vadd.f32 0.0, %v6100
    %v6102 = vpop.f32.mrb[0].mxu0
    %6103 = vmatprep.mubr.f32.mxu0 0.0
    %6104 = vmatmul.mubr.f32.gmra.mrb[0].mxu0 %v6024
    %v6105 = vpop.f32.mrb[0].mxu0
    %v6106 = vadd.f32 0.0, %v6105
    %v6107 = vpop.f32.mrb[0].mxu0
    %6108 = vmatprep.mubr.f32.mxu0 0.0
    %6109 = vmatmul.mubr.f32.gmra.mrb[0].mxu0 %v6027
    %v6110 = vpop.f32.mrb[0].mxu0
    %v6111 = vadd.f32 0.0, %v6110
    %v6112 = vpop.f32.mrb[0].mxu0
    %6113 = vdwg.mxu0
    %v6114 = vadd.f32 %v6002, %v6096
    %v6115 = vadd.f32 %v6003, %v6101
    %v6116 = vadd.f32 %v6004, %v6106
    %v6117 = vadd.f32 %v6005, %v6111
    %v6118 = vld [vmem:[#allocation4 + $0x6] sm:$0xff]
    %v6119 = vld [vmem:[#allocation4 + $0xe] sm:$0xff]
    %v6120 = vld [vmem:[#allocation4 + $0x26] sm:$0xff]
    %v6121 = vld [vmem:[#allocation4 + $0x2e] sm:$0xff]
    %s6122 = scalar_lea.vmem [#allocation10], 240
    %v6123 = vld [vmem:[%s6122] sm:$0xff]
    %v6124 = vld [vmem:[%s6122 + $0x8] sm:$0xff]
    %v6125 = vld [vmem:[%s6122 + $0x10] sm:$0xff]
    %v6126 = vld [vmem:[%s6122 + $0x18] sm:$0xff]
    %v6127 = vld [vmem:[%s6122 + $0x20] sm:$0xff]
    %v6128 = vld [vmem:[%s6122 + $0x28] sm:$0xff]
    %v6130 = vsel %vm5336, %v6118, 0
    %v6133 = vsel %vm5336, %v6119, 0
    %v6136 = vsel %vm5336, %v6120, 0
    %v6139 = vsel %vm5336, %v6121, 0
    %6141 = vmatprep.subr.mxu0 0.0
    %6142 = vmatpush1.msra.mxu0 %v6123
    %6143 = vmatprep.subr.mxu0 0.0
    %6144 = vmatpush1.msra.mxu0 %v6124
    %6145 = vmatprep.subr.mxu0 0.0
    %6146 = vmatpush1.msra.mxu0 %v6125
    %6147 = vmatprep.subr.mxu0 0.0
    %6148 = vmatpush1.msra.mxu0 %v6126
    %6149 = vmatprep.subr.mxu0 0.0
    %6150 = vmatpush1.msra.mxu0 %v6127
    %6151 = vmatprep.subr.mxu0 0.0
    %6152 = vmatpush1.msra.mxu0 %v6128
    %6153 = vmatprep.subr.mxu0 0.0
    %6154 = vmatpush1.msra.mxu0 0.0
    %6155 = vmatprep.subr.mxu0 0.0
    %6156 = vmatpush1.msra.mxu0 0.0
    %6157 = vmatprep.subr.mxu0 0.0
    %6158 = vmatpush1.msra.mxu0 0.0
    %6159 = vmatprep.subr.mxu0 0.0
    %6160 = vmatpush1.msra.mxu0 0.0
    %6161 = vmatprep.subr.mxu0 0.0
    %6162 = vmatpush1.msra.mxu0 0.0
    %6163 = vmatprep.subr.mxu0 0.0
    %6164 = vmatpush1.msra.mxu0 0.0
    %6165 = vmatprep.subr.mxu0 0.0
    %6166 = vmatpush1.msra.mxu0 0.0
    %6167 = vmatprep.subr.mxu0 0.0
    %6168 = vmatpush1.msra.mxu0 0.0
    %6169 = vmatprep.subr.mxu0 0.0
    %6170 = vmatpush1.msra.mxu0 0.0
    %6171 = vmatprep.subr.mxu0 0.0
    %6172 = vmatpush1.msra.mxu0 0.0
    %6173 = vmatprep.subr.mxu0 0.0
    %6174 = vmatpush1.msra.mxu0 0.0
    %6175 = vmatprep.subr.mxu0 0.0
    %6176 = vmatpush1.msra.mxu0 0.0
    %6177 = vmatprep.subr.mxu0 0.0
    %6178 = vmatpush1.msra.mxu0 0.0
    %6179 = vmatprep.subr.mxu0 0.0
    %6180 = vmatpush1.msra.mxu0 0.0
    %6181 = vmatprep.subr.mxu0 0.0
    %6182 = vmatpush1.msra.mxu0 0.0
    %6183 = vmatprep.subr.mxu0 0.0
    %6184 = vmatpush1.msra.mxu0 0.0
    %6185 = vmatprep.subr.mxu0 0.0
    %6186 = vmatpush1.msra.mxu0 0.0
    %6187 = vmatprep.subr.mxu0 0.0
    %6188 = vmatpush1.msra.mxu0 0.0
    %6189 = vmatprep.subr.mxu0 0.0
    %6190 = vmatpush1.msra.mxu0 0.0
    %6191 = vmatprep.subr.mxu0 0.0
    %6192 = vmatpush1.msra.mxu0 0.0
    %6193 = vmatprep.subr.mxu0 0.0
    %6194 = vmatpush1.msra.mxu0 0.0
    %6195 = vmatprep.subr.mxu0 0.0
    %6196 = vmatpush1.msra.mxu0 0.0
    %6197 = vmatprep.subr.mxu0 0.0
    %6198 = vmatpush1.msra.mxu0 0.0
    %6199 = vmatprep.subr.mxu0 0.0
    %6200 = vmatpush1.msra.mxu0 0.0
    %6201 = vmatprep.subr.mxu0 0.0
    %6202 = vmatpush1.msra.mxu0 0.0
    %6203 = vmatprep.subr.mxu0 0.0
    %6204 = vmatpush1.msra.mxu0 0.0
    %6205 = vmatprep.mubr.f32.mxu0 0.0
    %6206 = vmatmul.mubr.f32.gmra.mrb[0].mxu0 %v6130
    %v6207 = vpop.f32.mrb[0].mxu0
    %v6208 = vadd.f32 0.0, %v6207
    %v6209 = vpop.f32.mrb[0].mxu0
    %6210 = vmatprep.mubr.f32.mxu0 0.0
    %6211 = vmatmul.mubr.f32.gmra.mrb[0].mxu0 %v6133
    %v6212 = vpop.f32.mrb[0].mxu0
    %v6213 = vadd.f32 0.0, %v6212
    %v6214 = vpop.f32.mrb[0].mxu0
    %6215 = vmatprep.mubr.f32.mxu0 0.0
    %6216 = vmatmul.mubr.f32.gmra.mrb[0].mxu0 %v6136
    %v6217 = vpop.f32.mrb[0].mxu0
    %v6218 = vadd.f32 0.0, %v6217
    %v6219 = vpop.f32.mrb[0].mxu0
    %6220 = vmatprep.mubr.f32.mxu0 0.0
    %6221 = vmatmul.mubr.f32.gmra.mrb[0].mxu0 %v6139
    %v6222 = vpop.f32.mrb[0].mxu0
    %v6223 = vadd.f32 0.0, %v6222
    %v6224 = vpop.f32.mrb[0].mxu0
    %6225 = vdwg.mxu0
    %v6226 = vadd.f32 %v6114, %v6208
    %v6227 = vadd.f32 %v6115, %v6213
    %v6228 = vadd.f32 %v6116, %v6218
    %v6229 = vadd.f32 %v6117, %v6223
    %v6230 = vld [vmem:[#allocation4 + $0x7] sm:$0xff]
    %v6231 = vld [vmem:[#allocation4 + $0xf] sm:$0xff]
    %v6232 = vld [vmem:[#allocation4 + $0x27] sm:$0xff]
    %v6233 = vld [vmem:[#allocation4 + $0x2f] sm:$0xff]
    %s6234 = scalar_lea.vmem [#allocation10], 288
    %v6235 = vld [vmem:[%s6234] sm:$0xff]
    %v6236 = vld [vmem:[%s6234 + $0x8] sm:$0xff]
    %v6237 = vld [vmem:[%s6234 + $0x10] sm:$0xff]
    %v6238 = vld [vmem:[%s6234 + $0x18] sm:$0xff]
    %v6239 = vld [vmem:[%s6234 + $0x20] sm:$0xff]
    %v6240 = vld [vmem:[%s6234 + $0x28] sm:$0xff]
    %v6242 = vsel %vm5336, %v6230, 0
    %v6245 = vsel %vm5336, %v6231, 0
    %v6248 = vsel %vm5336, %v6232, 0
    %v6251 = vsel %vm5336, %v6233, 0
    %6253 = vmatprep.subr.mxu0 0.0
    %6254 = vmatpush1.msra.mxu0 %v6235
    %6255 = vmatprep.subr.mxu0 0.0
    %6256 = vmatpush1.msra.mxu0 %v6236
    %6257 = vmatprep.subr.mxu0 0.0
    %6258 = vmatpush1.msra.mxu0 %v6237
    %6259 = vmatprep.subr.mxu0 0.0
    %6260 = vmatpush1.msra.mxu0 %v6238
    %6261 = vmatprep.subr.mxu0 0.0
    %6262 = vmatpush1.msra.mxu0 %v6239
    %6263 = vmatprep.subr.mxu0 0.0
    %6264 = vmatpush1.msra.mxu0 %v6240
    %6265 = vmatprep.subr.mxu0 0.0
    %6266 = vmatpush1.msra.mxu0 0.0
    %6267 = vmatprep.subr.mxu0 0.0
    %6268 = vmatpush1.msra.mxu0 0.0
    %6269 = vmatprep.subr.mxu0 0.0
    %6270 = vmatpush1.msra.mxu0 0.0
    %6271 = vmatprep.subr.mxu0 0.0
    %6272 = vmatpush1.msra.mxu0 0.0
    %6273 = vmatprep.subr.mxu0 0.0
    %6274 = vmatpush1.msra.mxu0 0.0
    %6275 = vmatprep.subr.mxu0 0.0
    %6276 = vmatpush1.msra.mxu0 0.0
    %6277 = vmatprep.subr.mxu0 0.0
    %6278 = vmatpush1.msra.mxu0 0.0
    %6279 = vmatprep.subr.mxu0 0.0
    %6280 = vmatpush1.msra.mxu0 0.0
    %6281 = vmatprep.subr.mxu0 0.0
    %6282 = vmatpush1.msra.mxu0 0.0
    %6283 = vmatprep.subr.mxu0 0.0
    %6284 = vmatpush1.msra.mxu0 0.0
    %6285 = vmatprep.subr.mxu0 0.0
    %6286 = vmatpush1.msra.mxu0 0.0
    %6287 = vmatprep.subr.mxu0 0.0
    %6288 = vmatpush1.msra.mxu0 0.0
    %6289 = vmatprep.subr.mxu0 0.0
    %6290 = vmatpush1.msra.mxu0 0.0
    %6291 = vmatprep.subr.mxu0 0.0
    %6292 = vmatpush1.msra.mxu0 0.0
    %6293 = vmatprep.subr.mxu0 0.0
    %6294 = vmatpush1.msra.mxu0 0.0
    %6295 = vmatprep.subr.mxu0 0.0
    %6296 = vmatpush1.msra.mxu0 0.0
    %6297 = vmatprep.subr.mxu0 0.0
    %6298 = vmatpush1.msra.mxu0 0.0
    %6299 = vmatprep.subr.mxu0 0.0
    %6300 = vmatpush1.msra.mxu0 0.0
    %6301 = vmatprep.subr.mxu0 0.0
    %6302 = vmatpush1.msra.mxu0 0.0
    %6303 = vmatprep.subr.mxu0 0.0
    %6304 = vmatpush1.msra.mxu0 0.0
    %6305 = vmatprep.subr.mxu0 0.0
    %6306 = vmatpush1.msra.mxu0 0.0
    %6307 = vmatprep.subr.mxu0 0.0
    %6308 = vmatpush1.msra.mxu0 0.0
    %6309 = vmatprep.subr.mxu0 0.0
    %6310 = vmatpush1.msra.mxu0 0.0
    %6311 = vmatprep.subr.mxu0 0.0
    %6312 = vmatpush1.msra.mxu0 0.0
    %6313 = vmatprep.subr.mxu0 0.0
    %6314 = vmatpush1.msra.mxu0 0.0
    %6315 = vmatprep.subr.mxu0 0.0
    %6316 = vmatpush1.msra.mxu0 0.0
    %6317 = vmatprep.mubr.f32.mxu0 0.0
    %6318 = vmatmul.mubr.f32.gmra.mrb[0].mxu0 %v6242
    %v6319 = vpop.f32.mrb[0].mxu0
    %v6320 = vadd.f32 0.0, %v6319
    %v6321 = vpop.f32.mrb[0].mxu0
    %6322 = vmatprep.mubr.f32.mxu0 0.0
    %6323 = vmatmul.mubr.f32.gmra.mrb[0].mxu0 %v6245
    %v6324 = vpop.f32.mrb[0].mxu0
    %v6325 = vadd.f32 0.0, %v6324
    %v6326 = vpop.f32.mrb[0].mxu0
    %6327 = vmatprep.mubr.f32.mxu0 0.0
    %6328 = vmatmul.mubr.f32.gmra.mrb[0].mxu0 %v6248
    %v6329 = vpop.f32.mrb[0].mxu0
    %v6330 = vadd.f32 0.0, %v6329
    %v6331 = vpop.f32.mrb[0].mxu0
    %6332 = vmatprep.mubr.f32.mxu0 0.0
    %6333 = vmatmul.mubr.f32.gmra.mrb[0].mxu0 %v6251
    %v6334 = vpop.f32.mrb[0].mxu0
    %v6335 = vadd.f32 0.0, %v6334
    %v6336 = vpop.f32.mrb[0].mxu0
    %6337 = vdwg.mxu0
    %v6338 = vadd.f32 %v6226, %v6320
    %v6339 = vadd.f32 %v6227, %v6325
    %v6340 = vadd.f32 %v6228, %v6330
    %v6341 = vadd.f32 %v6229, %v6335
    %v6342 = vld [vmem:[#allocation4 + $0x8] sm:$0xff]
    %v6343 = vld [vmem:[#allocation4 + $0x10] sm:$0xff]
    %v6344 = vld [vmem:[#allocation4 + $0x28] sm:$0xff]
    %v6345 = vld [vmem:[#allocation4 + $0x30] sm:$0xff]
    %s6346 = scalar_lea.vmem [#allocation10], 336
    %v6347 = vld [vmem:[%s6346] sm:$0xff]
    %v6348 = vld [vmem:[%s6346 + $0x8] sm:$0xff]
    %v6349 = vld [vmem:[%s6346 + $0x10] sm:$0xff]
    %v6350 = vld [vmem:[%s6346 + $0x18] sm:$0xff]
    %v6351 = vld [vmem:[%s6346 + $0x20] sm:$0xff]
    %v6352 = vld [vmem:[%s6346 + $0x28] sm:$0xff]
    %v6354 = vsel %vm5336, %v6342, 0
    %v6357 = vsel %vm5336, %v6343, 0
    %v6360 = vsel %vm5336, %v6344, 0
    %v6363 = vsel %vm5336, %v6345, 0
    %6365 = vmatprep.subr.mxu0 0.0
    %6366 = vmatpush1.msra.mxu0 %v6347
    %6367 = vmatprep.subr.mxu0 0.0
    %6368 = vmatpush1.msra.mxu0 %v6348
    %6369 = vmatprep.subr.mxu0 0.0
    %6370 = vmatpush1.msra.mxu0 %v6349
    %6371 = vmatprep.subr.mxu0 0.0
    %6372 = vmatpush1.msra.mxu0 %v6350
    %6373 = vmatprep.subr.mxu0 0.0
    %6374 = vmatpush1.msra.mxu0 %v6351
    %6375 = vmatprep.subr.mxu0 0.0
    %6376 = vmatpush1.msra.mxu0 %v6352
    %6377 = vmatprep.subr.mxu0 0.0
    %6378 = vmatpush1.msra.mxu0 0.0
    %6379 = vmatprep.subr.mxu0 0.0
    %6380 = vmatpush1.msra.mxu0 0.0
    %6381 = vmatprep.subr.mxu0 0.0
    %6382 = vmatpush1.msra.mxu0 0.0
    %6383 = vmatprep.subr.mxu0 0.0
    %6384 = vmatpush1.msra.mxu0 0.0
    %6385 = vmatprep.subr.mxu0 0.0
    %6386 = vmatpush1.msra.mxu0 0.0
    %6387 = vmatprep.subr.mxu0 0.0
    %6388 = vmatpush1.msra.mxu0 0.0
    %6389 = vmatprep.subr.mxu0 0.0
    %6390 = vmatpush1.msra.mxu0 0.0
    %6391 = vmatprep.subr.mxu0 0.0
    %6392 = vmatpush1.msra.mxu0 0.0
    %6393 = vmatprep.subr.mxu0 0.0
    %6394 = vmatpush1.msra.mxu0 0.0
    %6395 = vmatprep.subr.mxu0 0.0
    %6396 = vmatpush1.msra.mxu0 0.0
    %6397 = vmatprep.subr.mxu0 0.0
    %6398 = vmatpush1.msra.mxu0 0.0
    %6399 = vmatprep.subr.mxu0 0.0
    %6400 = vmatpush1.msra.mxu0 0.0
    %6401 = vmatprep.subr.mxu0 0.0
    %6402 = vmatpush1.msra.mxu0 0.0
    %6403 = vmatprep.subr.mxu0 0.0
    %6404 = vmatpush1.msra.mxu0 0.0
    %6405 = vmatprep.subr.mxu0 0.0
    %6406 = vmatpush1.msra.mxu0 0.0
    %6407 = vmatprep.subr.mxu0 0.0
    %6408 = vmatpush1.msra.mxu0 0.0
    %6409 = vmatprep.subr.mxu0 0.0
    %6410 = vmatpush1.msra.mxu0 0.0
    %6411 = vmatprep.subr.mxu0 0.0
    %6412 = vmatpush1.msra.mxu0 0.0
    %6413 = vmatprep.subr.mxu0 0.0
    %6414 = vmatpush1.msra.mxu0 0.0
    %6415 = vmatprep.subr.mxu0 0.0
    %6416 = vmatpush1.msra.mxu0 0.0
    %6417 = vmatprep.subr.mxu0 0.0
    %6418 = vmatpush1.msra.mxu0 0.0
    %6419 = vmatprep.subr.mxu0 0.0
    %6420 = vmatpush1.msra.mxu0 0.0
    %6421 = vmatprep.subr.mxu0 0.0
    %6422 = vmatpush1.msra.mxu0 0.0
    %6423 = vmatprep.subr.mxu0 0.0
    %6424 = vmatpush1.msra.mxu0 0.0
    %6425 = vmatprep.subr.mxu0 0.0
    %6426 = vmatpush1.msra.mxu0 0.0
    %6427 = vmatprep.subr.mxu0 0.0
    %6428 = vmatpush1.msra.mxu0 0.0
    %6429 = vmatprep.mubr.f32.mxu0 0.0
    %6430 = vmatmul.mubr.f32.gmra.mrb[0].mxu0 %v6354
    %v6431 = vpop.f32.mrb[0].mxu0
    %v6432 = vadd.f32 0.0, %v6431
    %v6433 = vpop.f32.mrb[0].mxu0
    %6434 = vmatprep.mubr.f32.mxu0 0.0
    %6435 = vmatmul.mubr.f32.gmra.mrb[0].mxu0 %v6357
    %v6436 = vpop.f32.mrb[0].mxu0
    %v6437 = vadd.f32 0.0, %v6436
    %v6438 = vpop.f32.mrb[0].mxu0
    %6439 = vmatprep.mubr.f32.mxu0 0.0
    %6440 = vmatmul.mubr.f32.gmra.mrb[0].mxu0 %v6360
    %v6441 = vpop.f32.mrb[0].mxu0
    %v6442 = vadd.f32 0.0, %v6441
    %v6443 = vpop.f32.mrb[0].mxu0
    %6444 = vmatprep.mubr.f32.mxu0 0.0
    %6445 = vmatmul.mubr.f32.gmra.mrb[0].mxu0 %v6363
    %v6446 = vpop.f32.mrb[0].mxu0
    %v6447 = vadd.f32 0.0, %v6446
    %v6448 = vpop.f32.mrb[0].mxu0
    %6449 = vdwg.mxu0
    %v6450 = vadd.f32 %v6338, %v6432
    %v6451 = vadd.f32 %v6339, %v6437
    %v6452 = vadd.f32 %v6340, %v6442
    %v6453 = vadd.f32 %v6341, %v6447
    %v6454 = vld [vmem:[#allocation4 + $0x9] sm:$0xff]
    %v6455 = vld [vmem:[#allocation4 + $0x11] sm:$0xff]
    %v6456 = vld [vmem:[#allocation4 + $0x29] sm:$0xff]
    %v6457 = vld [vmem:[#allocation4 + $0x31] sm:$0xff]
    %s6458 = scalar_lea.vmem [#allocation10], 384
    %v6459 = vld [vmem:[%s6458] sm:$0xff]
    %v6460 = vld [vmem:[%s6458 + $0x8] sm:$0xff]
    %v6461 = vld [vmem:[%s6458 + $0x10] sm:$0xff]
    %v6462 = vld [vmem:[%s6458 + $0x18] sm:$0xff]
    %v6463 = vld [vmem:[%s6458 + $0x20] sm:$0xff]
    %v6464 = vld [vmem:[%s6458 + $0x28] sm:$0xff]
    %v6466 = vsel %vm5336, %v6454, 0
    %v6469 = vsel %vm5336, %v6455, 0
    %v6472 = vsel %vm5336, %v6456, 0
    %v6475 = vsel %vm5336, %v6457, 0
    %6477 = vmatprep.subr.mxu0 0.0
    %6478 = vmatpush1.msra.mxu0 %v6459
    %6479 = vmatprep.subr.mxu0 0.0
    %6480 = vmatpush1.msra.mxu0 %v6460
    %6481 = vmatprep.subr.mxu0 0.0
    %6482 = vmatpush1.msra.mxu0 %v6461
    %6483 = vmatprep.subr.mxu0 0.0
    %6484 = vmatpush1.msra.mxu0 %v6462
    %6485 = vmatprep.subr.mxu0 0.0
    %6486 = vmatpush1.msra.mxu0 %v6463
    %6487 = vmatprep.subr.mxu0 0.0
    %6488 = vmatpush1.msra.mxu0 %v6464
    %6489 = vmatprep.subr.mxu0 0.0
    %6490 = vmatpush1.msra.mxu0 0.0
    %6491 = vmatprep.subr.mxu0 0.0
    %6492 = vmatpush1.msra.mxu0 0.0
    %6493 = vmatprep.subr.mxu0 0.0
    %6494 = vmatpush1.msra.mxu0 0.0
    %6495 = vmatprep.subr.mxu0 0.0
    %6496 = vmatpush1.msra.mxu0 0.0
    %6497 = vmatprep.subr.mxu0 0.0
    %6498 = vmatpush1.msra.mxu0 0.0
    %6499 = vmatprep.subr.mxu0 0.0
    %6500 = vmatpush1.msra.mxu0 0.0
    %6501 = vmatprep.subr.mxu0 0.0
    %6502 = vmatpush1.msra.mxu0 0.0
    %6503 = vmatprep.subr.mxu0 0.0
    %6504 = vmatpush1.msra.mxu0 0.0
    %6505 = vmatprep.subr.mxu0 0.0
    %6506 = vmatpush1.msra.mxu0 0.0
    %6507 = vmatprep.subr.mxu0 0.0
    %6508 = vmatpush1.msra.mxu0 0.0
    %6509 = vmatprep.subr.mxu0 0.0
    %6510 = vmatpush1.msra.mxu0 0.0
    %6511 = vmatprep.subr.mxu0 0.0
    %6512 = vmatpush1.msra.mxu0 0.0
    %6513 = vmatprep.subr.mxu0 0.0
    %6514 = vmatpush1.msra.mxu0 0.0
    %6515 = vmatprep.subr.mxu0 0.0
    %6516 = vmatpush1.msra.mxu0 0.0
    %6517 = vmatprep.subr.mxu0 0.0
    %6518 = vmatpush1.msra.mxu0 0.0
    %6519 = vmatprep.subr.mxu0 0.0
    %6520 = vmatpush1.msra.mxu0 0.0
    %6521 = vmatprep.subr.mxu0 0.0
    %6522 = vmatpush1.msra.mxu0 0.0
    %6523 = vmatprep.subr.mxu0 0.0
    %6524 = vmatpush1.msra.mxu0 0.0
    %6525 = vmatprep.subr.mxu0 0.0
    %6526 = vmatpush1.msra.mxu0 0.0
    %6527 = vmatprep.subr.mxu0 0.0
    %6528 = vmatpush1.msra.mxu0 0.0
    %6529 = vmatprep.subr.mxu0 0.0
    %6530 = vmatpush1.msra.mxu0 0.0
    %6531 = vmatprep.subr.mxu0 0.0
    %6532 = vmatpush1.msra.mxu0 0.0
    %6533 = vmatprep.subr.mxu0 0.0
    %6534 = vmatpush1.msra.mxu0 0.0
    %6535 = vmatprep.subr.mxu0 0.0
    %6536 = vmatpush1.msra.mxu0 0.0
    %6537 = vmatprep.subr.mxu0 0.0
    %6538 = vmatpush1.msra.mxu0 0.0
    %6539 = vmatprep.subr.mxu0 0.0
    %6540 = vmatpush1.msra.mxu0 0.0
    %6541 = vmatprep.mubr.f32.mxu0 0.0
    %6542 = vmatmul.mubr.f32.gmra.mrb[0].mxu0 %v6466
    %v6543 = vpop.f32.mrb[0].mxu0
    %v6544 = vadd.f32 0.0, %v6543
    %v6545 = vpop.f32.mrb[0].mxu0
    %6546 = vmatprep.mubr.f32.mxu0 0.0
    %6547 = vmatmul.mubr.f32.gmra.mrb[0].mxu0 %v6469
    %v6548 = vpop.f32.mrb[0].mxu0
    %v6549 = vadd.f32 0.0, %v6548
    %v6550 = vpop.f32.mrb[0].mxu0
    %6551 = vmatprep.mubr.f32.mxu0 0.0
    %6552 = vmatmul.mubr.f32.gmra.mrb[0].mxu0 %v6472
    %v6553 = vpop.f32.mrb[0].mxu0
    %v6554 = vadd.f32 0.0, %v6553
    %v6555 = vpop.f32.mrb[0].mxu0
    %6556 = vmatprep.mubr.f32.mxu0 0.0
    %6557 = vmatmul.mubr.f32.gmra.mrb[0].mxu0 %v6475
    %v6558 = vpop.f32.mrb[0].mxu0
    %v6559 = vadd.f32 0.0, %v6558
    %v6560 = vpop.f32.mrb[0].mxu0
    %6561 = vdwg.mxu0
    %v6562 = vadd.f32 %v6450, %v6544
    %v6563 = vadd.f32 %v6451, %v6549
    %v6564 = vadd.f32 %v6452, %v6554
    %v6565 = vadd.f32 %v6453, %v6559
    %v6566 = vld [vmem:[#allocation4 + $0xa] sm:$0xff]
    %v6567 = vld [vmem:[#allocation4 + $0x12] sm:$0xff]
    %v6568 = vld [vmem:[#allocation4 + $0x2a] sm:$0xff]
    %v6569 = vld [vmem:[#allocation4 + $0x32] sm:$0xff]
    %s6570 = scalar_lea.vmem [#allocation10], 432
    %v6571 = vld [vmem:[%s6570] sm:$0xff]
    %v6572 = vld [vmem:[%s6570 + $0x8] sm:$0xff]
    %v6573 = vld [vmem:[%s6570 + $0x10] sm:$0xff]
    %v6574 = vld [vmem:[%s6570 + $0x18] sm:$0xff]
    %v6575 = vld [vmem:[%s6570 + $0x20] sm:$0xff]
    %v6576 = vld [vmem:[%s6570 + $0x28] sm:$0xff]
    %v6578 = vsel %vm5336, %v6566, 0
    %v6581 = vsel %vm5336, %v6567, 0
    %v6584 = vsel %vm5336, %v6568, 0
    %v6587 = vsel %vm5336, %v6569, 0
    %6589 = vmatprep.subr.mxu0 0.0
    %6590 = vmatpush1.msra.mxu0 %v6571
    %6591 = vmatprep.subr.mxu0 0.0
    %6592 = vmatpush1.msra.mxu0 %v6572
    %6593 = vmatprep.subr.mxu0 0.0
    %6594 = vmatpush1.msra.mxu0 %v6573
    %6595 = vmatprep.subr.mxu0 0.0
    %6596 = vmatpush1.msra.mxu0 %v6574
    %6597 = vmatprep.subr.mxu0 0.0
    %6598 = vmatpush1.msra.mxu0 %v6575
    %6599 = vmatprep.subr.mxu0 0.0
    %6600 = vmatpush1.msra.mxu0 %v6576
    %6601 = vmatprep.subr.mxu0 0.0
    %6602 = vmatpush1.msra.mxu0 0.0
    %6603 = vmatprep.subr.mxu0 0.0
    %6604 = vmatpush1.msra.mxu0 0.0
    %6605 = vmatprep.subr.mxu0 0.0
    %6606 = vmatpush1.msra.mxu0 0.0
    %6607 = vmatprep.subr.mxu0 0.0
    %6608 = vmatpush1.msra.mxu0 0.0
    %6609 = vmatprep.subr.mxu0 0.0
    %6610 = vmatpush1.msra.mxu0 0.0
    %6611 = vmatprep.subr.mxu0 0.0
    %6612 = vmatpush1.msra.mxu0 0.0
    %6613 = vmatprep.subr.mxu0 0.0
    %6614 = vmatpush1.msra.mxu0 0.0
    %6615 = vmatprep.subr.mxu0 0.0
    %6616 = vmatpush1.msra.mxu0 0.0
    %6617 = vmatprep.subr.mxu0 0.0
    %6618 = vmatpush1.msra.mxu0 0.0
    %6619 = vmatprep.subr.mxu0 0.0
    %6620 = vmatpush1.msra.mxu0 0.0
    %6621 = vmatprep.subr.mxu0 0.0
    %6622 = vmatpush1.msra.mxu0 0.0
    %6623 = vmatprep.subr.mxu0 0.0
    %6624 = vmatpush1.msra.mxu0 0.0
    %6625 = vmatprep.subr.mxu0 0.0
    %6626 = vmatpush1.msra.mxu0 0.0
    %6627 = vmatprep.subr.mxu0 0.0
    %6628 = vmatpush1.msra.mxu0 0.0
    %6629 = vmatprep.subr.mxu0 0.0
    %6630 = vmatpush1.msra.mxu0 0.0
    %6631 = vmatprep.subr.mxu0 0.0
    %6632 = vmatpush1.msra.mxu0 0.0
    %6633 = vmatprep.subr.mxu0 0.0
    %6634 = vmatpush1.msra.mxu0 0.0
    %6635 = vmatprep.subr.mxu0 0.0
    %6636 = vmatpush1.msra.mxu0 0.0
    %6637 = vmatprep.subr.mxu0 0.0
    %6638 = vmatpush1.msra.mxu0 0.0
    %6639 = vmatprep.subr.mxu0 0.0
    %6640 = vmatpush1.msra.mxu0 0.0
    %6641 = vmatprep.subr.mxu0 0.0
    %6642 = vmatpush1.msra.mxu0 0.0
    %6643 = vmatprep.subr.mxu0 0.0
    %6644 = vmatpush1.msra.mxu0 0.0
    %6645 = vmatprep.subr.mxu0 0.0
    %6646 = vmatpush1.msra.mxu0 0.0
    %6647 = vmatprep.subr.mxu0 0.0
    %6648 = vmatpush1.msra.mxu0 0.0
    %6649 = vmatprep.subr.mxu0 0.0
    %6650 = vmatpush1.msra.mxu0 0.0
    %6651 = vmatprep.subr.mxu0 0.0
    %6652 = vmatpush1.msra.mxu0 0.0
    %6653 = vmatprep.mubr.f32.mxu0 0.0
    %6654 = vmatmul.mubr.f32.gmra.mrb[0].mxu0 %v6578
    %v6655 = vpop.f32.mrb[0].mxu0
    %v6656 = vadd.f32 0.0, %v6655
    %v6657 = vpop.f32.mrb[0].mxu0
    %6658 = vmatprep.mubr.f32.mxu0 0.0
    %6659 = vmatmul.mubr.f32.gmra.mrb[0].mxu0 %v6581
    %v6660 = vpop.f32.mrb[0].mxu0
    %v6661 = vadd.f32 0.0, %v6660
    %v6662 = vpop.f32.mrb[0].mxu0
    %6663 = vmatprep.mubr.f32.mxu0 0.0
    %6664 = vmatmul.mubr.f32.gmra.mrb[0].mxu0 %v6584
    %v6665 = vpop.f32.mrb[0].mxu0
    %v6666 = vadd.f32 0.0, %v6665
    %v6667 = vpop.f32.mrb[0].mxu0
    %6668 = vmatprep.mubr.f32.mxu0 0.0
    %6669 = vmatmul.mubr.f32.gmra.mrb[0].mxu0 %v6587
    %v6670 = vpop.f32.mrb[0].mxu0
    %v6671 = vadd.f32 0.0, %v6670
    %v6672 = vpop.f32.mrb[0].mxu0
    %6673 = vdwg.mxu0
    %v6674 = vadd.f32 %v6562, %v6656
    %v6675 = vadd.f32 %v6563, %v6661
    %v6676 = vadd.f32 %v6564, %v6666
    %v6677 = vadd.f32 %v6565, %v6671
    %v6678 = vld [vmem:[#allocation4 + $0xb] sm:$0xff]
    %v6679 = vld [vmem:[#allocation4 + $0x13] sm:$0xff]
    %v6680 = vld [vmem:[#allocation4 + $0x2b] sm:$0xff]
    %v6681 = vld [vmem:[#allocation4 + $0x33] sm:$0xff]
    %s6682 = scalar_lea.vmem [#allocation10], 480
    %v6683 = vld [vmem:[%s6682] sm:$0xff]
    %v6684 = vld [vmem:[%s6682 + $0x8] sm:$0xff]
    %v6685 = vld [vmem:[%s6682 + $0x10] sm:$0xff]
    %v6686 = vld [vmem:[%s6682 + $0x18] sm:$0xff]
    %v6687 = vld [vmem:[%s6682 + $0x20] sm:$0xff]
    %v6688 = vld [vmem:[%s6682 + $0x28] sm:$0xff]
    %v6690 = vsel %vm5336, %v6678, 0
    %v6693 = vsel %vm5336, %v6679, 0
    %v6696 = vsel %vm5336, %v6680, 0
    %v6699 = vsel %vm5336, %v6681, 0
    %6701 = vmatprep.subr.mxu0 0.0
    %6702 = vmatpush1.msra.mxu0 %v6683
    %6703 = vmatprep.subr.mxu0 0.0
    %6704 = vmatpush1.msra.mxu0 %v6684
    %6705 = vmatprep.subr.mxu0 0.0
    %6706 = vmatpush1.msra.mxu0 %v6685
    %6707 = vmatprep.subr.mxu0 0.0
    %6708 = vmatpush1.msra.mxu0 %v6686
    %6709 = vmatprep.subr.mxu0 0.0
    %6710 = vmatpush1.msra.mxu0 %v6687
    %6711 = vmatprep.subr.mxu0 0.0
    %6712 = vmatpush1.msra.mxu0 %v6688
    %6713 = vmatprep.subr.mxu0 0.0
    %6714 = vmatpush1.msra.mxu0 0.0
    %6715 = vmatprep.subr.mxu0 0.0
    %6716 = vmatpush1.msra.mxu0 0.0
    %6717 = vmatprep.subr.mxu0 0.0
    %6718 = vmatpush1.msra.mxu0 0.0
    %6719 = vmatprep.subr.mxu0 0.0
    %6720 = vmatpush1.msra.mxu0 0.0
    %6721 = vmatprep.subr.mxu0 0.0
    %6722 = vmatpush1.msra.mxu0 0.0
    %6723 = vmatprep.subr.mxu0 0.0
    %6724 = vmatpush1.msra.mxu0 0.0
    %6725 = vmatprep.subr.mxu0 0.0
    %6726 = vmatpush1.msra.mxu0 0.0
    %6727 = vmatprep.subr.mxu0 0.0
    %6728 = vmatpush1.msra.mxu0 0.0
    %6729 = vmatprep.subr.mxu0 0.0
    %6730 = vmatpush1.msra.mxu0 0.0
    %6731 = vmatprep.subr.mxu0 0.0
    %6732 = vmatpush1.msra.mxu0 0.0
    %6733 = vmatprep.subr.mxu0 0.0
    %6734 = vmatpush1.msra.mxu0 0.0
    %6735 = vmatprep.subr.mxu0 0.0
    %6736 = vmatpush1.msra.mxu0 0.0
    %6737 = vmatprep.subr.mxu0 0.0
    %6738 = vmatpush1.msra.mxu0 0.0
    %6739 = vmatprep.subr.mxu0 0.0
    %6740 = vmatpush1.msra.mxu0 0.0
    %6741 = vmatprep.subr.mxu0 0.0
    %6742 = vmatpush1.msra.mxu0 0.0
    %6743 = vmatprep.subr.mxu0 0.0
    %6744 = vmatpush1.msra.mxu0 0.0
    %6745 = vmatprep.subr.mxu0 0.0
    %6746 = vmatpush1.msra.mxu0 0.0
    %6747 = vmatprep.subr.mxu0 0.0
    %6748 = vmatpush1.msra.mxu0 0.0
    %6749 = vmatprep.subr.mxu0 0.0
    %6750 = vmatpush1.msra.mxu0 0.0
    %6751 = vmatprep.subr.mxu0 0.0
    %6752 = vmatpush1.msra.mxu0 0.0
    %6753 = vmatprep.subr.mxu0 0.0
    %6754 = vmatpush1.msra.mxu0 0.0
    %6755 = vmatprep.subr.mxu0 0.0
    %6756 = vmatpush1.msra.mxu0 0.0
    %6757 = vmatprep.subr.mxu0 0.0
    %6758 = vmatpush1.msra.mxu0 0.0
    %6759 = vmatprep.subr.mxu0 0.0
    %6760 = vmatpush1.msra.mxu0 0.0
    %6761 = vmatprep.subr.mxu0 0.0
    %6762 = vmatpush1.msra.mxu0 0.0
    %6763 = vmatprep.subr.mxu0 0.0
    %6764 = vmatpush1.msra.mxu0 0.0
    %6765 = vmatprep.mubr.f32.mxu0 0.0
    %6766 = vmatmul.mubr.f32.gmra.mrb[0].mxu0 %v6690
    %v6767 = vpop.f32.mrb[0].mxu0
    %v6768 = vadd.f32 0.0, %v6767
    %v6769 = vpop.f32.mrb[0].mxu0
    %6770 = vmatprep.mubr.f32.mxu0 0.0
    %6771 = vmatmul.mubr.f32.gmra.mrb[0].mxu0 %v6693
    %v6772 = vpop.f32.mrb[0].mxu0
    %v6773 = vadd.f32 0.0, %v6772
    %v6774 = vpop.f32.mrb[0].mxu0
    %6775 = vmatprep.mubr.f32.mxu0 0.0
    %6776 = vmatmul.mubr.f32.gmra.mrb[0].mxu0 %v6696
    %v6777 = vpop.f32.mrb[0].mxu0
    %v6778 = vadd.f32 0.0, %v6777
    %v6779 = vpop.f32.mrb[0].mxu0
    %6780 = vmatprep.mubr.f32.mxu0 0.0
    %6781 = vmatmul.mubr.f32.gmra.mrb[0].mxu0 %v6699
    %v6782 = vpop.f32.mrb[0].mxu0
    %v6783 = vadd.f32 0.0, %v6782
    %v6784 = vpop.f32.mrb[0].mxu0
    %6785 = vdwg.mxu0
    %v6786 = vadd.f32 %v6674, %v6768
    %v6787 = vadd.f32 %v6675, %v6773
    %v6788 = vadd.f32 %v6676, %v6778
    %v6789 = vadd.f32 %v6677, %v6783
    %v6790 = vld [vmem:[#allocation4 + $0xc] sm:$0xff]
    %v6791 = vld [vmem:[#allocation4 + $0x14] sm:$0xff]
    %v6792 = vld [vmem:[#allocation4 + $0x2c] sm:$0xff]
    %v6793 = vld [vmem:[#allocation4 + $0x34] sm:$0xff]
    %s6794 = scalar_lea.vmem [#allocation10], 528
    %v6795 = vld [vmem:[%s6794] sm:$0xff]
    %v6796 = vld [vmem:[%s6794 + $0x8] sm:$0xff]
    %v6797 = vld [vmem:[%s6794 + $0x10] sm:$0xff]
    %v6798 = vld [vmem:[%s6794 + $0x18] sm:$0xff]
    %v6799 = vld [vmem:[%s6794 + $0x20] sm:$0xff]
    %v6800 = vld [vmem:[%s6794 + $0x28] sm:$0xff]
    %v6802 = vsel %vm5336, %v6790, 0
    %v6805 = vsel %vm5336, %v6791, 0
    %v6808 = vsel %vm5336, %v6792, 0
    %v6811 = vsel %vm5336, %v6793, 0
    %6813 = vmatprep.subr.mxu0 0.0
    %6814 = vmatpush1.msra.mxu0 %v6795
    %6815 = vmatprep.subr.mxu0 0.0
    %6816 = vmatpush1.msra.mxu0 %v6796
    %6817 = vmatprep.subr.mxu0 0.0
    %6818 = vmatpush1.msra.mxu0 %v6797
    %6819 = vmatprep.subr.mxu0 0.0
    %6820 = vmatpush1.msra.mxu0 %v6798
    %6821 = vmatprep.subr.mxu0 0.0
    %6822 = vmatpush1.msra.mxu0 %v6799
    %6823 = vmatprep.subr.mxu0 0.0
    %6824 = vmatpush1.msra.mxu0 %v6800
    %6825 = vmatprep.subr.mxu0 0.0
    %6826 = vmatpush1.msra.mxu0 0.0
    %6827 = vmatprep.subr.mxu0 0.0
    %6828 = vmatpush1.msra.mxu0 0.0
    %6829 = vmatprep.subr.mxu0 0.0
    %6830 = vmatpush1.msra.mxu0 0.0
    %6831 = vmatprep.subr.mxu0 0.0
    %6832 = vmatpush1.msra.mxu0 0.0
    %6833 = vmatprep.subr.mxu0 0.0
    %6834 = vmatpush1.msra.mxu0 0.0
    %6835 = vmatprep.subr.mxu0 0.0
    %6836 = vmatpush1.msra.mxu0 0.0
    %6837 = vmatprep.subr.mxu0 0.0
    %6838 = vmatpush1.msra.mxu0 0.0
    %6839 = vmatprep.subr.mxu0 0.0
    %6840 = vmatpush1.msra.mxu0 0.0
    %6841 = vmatprep.subr.mxu0 0.0
    %6842 = vmatpush1.msra.mxu0 0.0
    %6843 = vmatprep.subr.mxu0 0.0
    %6844 = vmatpush1.msra.mxu0 0.0
    %6845 = vmatprep.subr.mxu0 0.0
    %6846 = vmatpush1.msra.mxu0 0.0
    %6847 = vmatprep.subr.mxu0 0.0
    %6848 = vmatpush1.msra.mxu0 0.0
    %6849 = vmatprep.subr.mxu0 0.0
    %6850 = vmatpush1.msra.mxu0 0.0
    %6851 = vmatprep.subr.mxu0 0.0
    %6852 = vmatpush1.msra.mxu0 0.0
    %6853 = vmatprep.subr.mxu0 0.0
    %6854 = vmatpush1.msra.mxu0 0.0
    %6855 = vmatprep.subr.mxu0 0.0
    %6856 = vmatpush1.msra.mxu0 0.0
    %6857 = vmatprep.subr.mxu0 0.0
    %6858 = vmatpush1.msra.mxu0 0.0
    %6859 = vmatprep.subr.mxu0 0.0
    %6860 = vmatpush1.msra.mxu0 0.0
    %6861 = vmatprep.subr.mxu0 0.0
    %6862 = vmatpush1.msra.mxu0 0.0
    %6863 = vmatprep.subr.mxu0 0.0
    %6864 = vmatpush1.msra.mxu0 0.0
    %6865 = vmatprep.subr.mxu0 0.0
    %6866 = vmatpush1.msra.mxu0 0.0
    %6867 = vmatprep.subr.mxu0 0.0
    %6868 = vmatpush1.msra.mxu0 0.0
    %6869 = vmatprep.subr.mxu0 0.0
    %6870 = vmatpush1.msra.mxu0 0.0
    %6871 = vmatprep.subr.mxu0 0.0
    %6872 = vmatpush1.msra.mxu0 0.0
    %6873 = vmatprep.subr.mxu0 0.0
    %6874 = vmatpush1.msra.mxu0 0.0
    %6875 = vmatprep.subr.mxu0 0.0
    %6876 = vmatpush1.msra.mxu0 0.0
    %6877 = vmatprep.mubr.f32.mxu0 0.0
    %6878 = vmatmul.mubr.f32.gmra.mrb[0].mxu0 %v6802
    %v6879 = vpop.f32.mrb[0].mxu0
    %v6880 = vadd.f32 0.0, %v6879
    %v6881 = vpop.f32.mrb[0].mxu0
    %6882 = vmatprep.mubr.f32.mxu0 0.0
    %6883 = vmatmul.mubr.f32.gmra.mrb[0].mxu0 %v6805
    %v6884 = vpop.f32.mrb[0].mxu0
    %v6885 = vadd.f32 0.0, %v6884
    %v6886 = vpop.f32.mrb[0].mxu0
    %6887 = vmatprep.mubr.f32.mxu0 0.0
    %6888 = vmatmul.mubr.f32.gmra.mrb[0].mxu0 %v6808
    %v6889 = vpop.f32.mrb[0].mxu0
    %v6890 = vadd.f32 0.0, %v6889
    %v6891 = vpop.f32.mrb[0].mxu0
    %6892 = vmatprep.mubr.f32.mxu0 0.0
    %6893 = vmatmul.mubr.f32.gmra.mrb[0].mxu0 %v6811
    %v6894 = vpop.f32.mrb[0].mxu0
    %v6895 = vadd.f32 0.0, %v6894
    %v6896 = vpop.f32.mrb[0].mxu0
    %6897 = vdwg.mxu0
    %v6898 = vadd.f32 %v6786, %v6880
    %v6899 = vadd.f32 %v6787, %v6885
    %v6900 = vadd.f32 %v6788, %v6890
    %v6901 = vadd.f32 %v6789, %v6895
    %v6902 = vld [vmem:[#allocation4 + $0xd] sm:$0xff]
    %v6903 = vld [vmem:[#allocation4 + $0x15] sm:$0xff]
    %v6904 = vld [vmem:[#allocation4 + $0x2d] sm:$0xff]
    %v6905 = vld [vmem:[#allocation4 + $0x35] sm:$0xff]
    %s6906 = scalar_lea.vmem [#allocation10], 576
    %v6907 = vld [vmem:[%s6906] sm:$0xff]
    %v6908 = vld [vmem:[%s6906 + $0x8] sm:$0xff]
    %v6909 = vld [vmem:[%s6906 + $0x10] sm:$0xff]
    %v6910 = vld [vmem:[%s6906 + $0x18] sm:$0xff]
    %v6911 = vld [vmem:[%s6906 + $0x20] sm:$0xff]
    %v6912 = vld [vmem:[%s6906 + $0x28] sm:$0xff]
    %v6914 = vsel %vm5336, %v6902, 0
    %v6917 = vsel %vm5336, %v6903, 0
    %v6920 = vsel %vm5336, %v6904, 0
    %v6923 = vsel %vm5336, %v6905, 0
    %6925 = vmatprep.subr.mxu0 0.0
    %6926 = vmatpush1.msra.mxu0 %v6907
    %6927 = vmatprep.subr.mxu0 0.0
    %6928 = vmatpush1.msra.mxu0 %v6908
    %6929 = vmatprep.subr.mxu0 0.0
    %6930 = vmatpush1.msra.mxu0 %v6909
    %6931 = vmatprep.subr.mxu0 0.0
    %6932 = vmatpush1.msra.mxu0 %v6910
    %6933 = vmatprep.subr.mxu0 0.0
    %6934 = vmatpush1.msra.mxu0 %v6911
    %6935 = vmatprep.subr.mxu0 0.0
    %6936 = vmatpush1.msra.mxu0 %v6912
    %6937 = vmatprep.subr.mxu0 0.0
    %6938 = vmatpush1.msra.mxu0 0.0
    %6939 = vmatprep.subr.mxu0 0.0
    %6940 = vmatpush1.msra.mxu0 0.0
    %6941 = vmatprep.subr.mxu0 0.0
    %6942 = vmatpush1.msra.mxu0 0.0
    %6943 = vmatprep.subr.mxu0 0.0
    %6944 = vmatpush1.msra.mxu0 0.0
    %6945 = vmatprep.subr.mxu0 0.0
    %6946 = vmatpush1.msra.mxu0 0.0
    %6947 = vmatprep.subr.mxu0 0.0
    %6948 = vmatpush1.msra.mxu0 0.0
    %6949 = vmatprep.subr.mxu0 0.0
    %6950 = vmatpush1.msra.mxu0 0.0
    %6951 = vmatprep.subr.mxu0 0.0
    %6952 = vmatpush1.msra.mxu0 0.0
    %6953 = vmatprep.subr.mxu0 0.0
    %6954 = vmatpush1.msra.mxu0 0.0
    %6955 = vmatprep.subr.mxu0 0.0
    %6956 = vmatpush1.msra.mxu0 0.0
    %6957 = vmatprep.subr.mxu0 0.0
    %6958 = vmatpush1.msra.mxu0 0.0
    %6959 = vmatprep.subr.mxu0 0.0
    %6960 = vmatpush1.msra.mxu0 0.0
    %6961 = vmatprep.subr.mxu0 0.0
    %6962 = vmatpush1.msra.mxu0 0.0
    %6963 = vmatprep.subr.mxu0 0.0
    %6964 = vmatpush1.msra.mxu0 0.0
    %6965 = vmatprep.subr.mxu0 0.0
    %6966 = vmatpush1.msra.mxu0 0.0
    %6967 = vmatprep.subr.mxu0 0.0
    %6968 = vmatpush1.msra.mxu0 0.0
    %6969 = vmatprep.subr.mxu0 0.0
    %6970 = vmatpush1.msra.mxu0 0.0
    %6971 = vmatprep.subr.mxu0 0.0
    %6972 = vmatpush1.msra.mxu0 0.0
    %6973 = vmatprep.subr.mxu0 0.0
    %6974 = vmatpush1.msra.mxu0 0.0
    %6975 = vmatprep.subr.mxu0 0.0
    %6976 = vmatpush1.msra.mxu0 0.0
    %6977 = vmatprep.subr.mxu0 0.0
    %6978 = vmatpush1.msra.mxu0 0.0
    %6979 = vmatprep.subr.mxu0 0.0
    %6980 = vmatpush1.msra.mxu0 0.0
    %6981 = vmatprep.subr.mxu0 0.0
    %6982 = vmatpush1.msra.mxu0 0.0
    %6983 = vmatprep.subr.mxu0 0.0
    %6984 = vmatpush1.msra.mxu0 0.0
    %6985 = vmatprep.subr.mxu0 0.0
    %6986 = vmatpush1.msra.mxu0 0.0
    %6987 = vmatprep.subr.mxu0 0.0
    %6988 = vmatpush1.msra.mxu0 0.0
    %6989 = vmatprep.mubr.f32.mxu0 0.0
    %6990 = vmatmul.mubr.f32.gmra.mrb[0].mxu0 %v6914
    %v6991 = vpop.f32.mrb[0].mxu0
    %v6992 = vadd.f32 0.0, %v6991
    %v6993 = vpop.f32.mrb[0].mxu0
    %6994 = vmatprep.mubr.f32.mxu0 0.0
    %6995 = vmatmul.mubr.f32.gmra.mrb[0].mxu0 %v6917
    %v6996 = vpop.f32.mrb[0].mxu0
    %v6997 = vadd.f32 0.0, %v6996
    %v6998 = vpop.f32.mrb[0].mxu0
    %6999 = vmatprep.mubr.f32.mxu0 0.0
    %7000 = vmatmul.mubr.f32.gmra.mrb[0].mxu0 %v6920
    %v7001 = vpop.f32.mrb[0].mxu0
    %v7002 = vadd.f32 0.0, %v7001
    %v7003 = vpop.f32.mrb[0].mxu0
    %7004 = vmatprep.mubr.f32.mxu0 0.0
    %7005 = vmatmul.mubr.f32.gmra.mrb[0].mxu0 %v6923
    %v7006 = vpop.f32.mrb[0].mxu0
    %v7007 = vadd.f32 0.0, %v7006
    %v7008 = vpop.f32.mrb[0].mxu0
    %7009 = vdwg.mxu0
    %v7010 = vadd.f32 %v6898, %v6992
    %v7011 = vadd.f32 %v6899, %v6997
    %v7012 = vadd.f32 %v6900, %v7002
    %v7013 = vadd.f32 %v6901, %v7007
    %v7014 = vld [vmem:[#allocation4 + $0xe] sm:$0xff]
    %v7015 = vld [vmem:[#allocation4 + $0x16] sm:$0xff]
    %v7016 = vld [vmem:[#allocation4 + $0x2e] sm:$0xff]
    %v7017 = vld [vmem:[#allocation4 + $0x36] sm:$0xff]
    %s7018 = scalar_lea.vmem [#allocation10], 624
    %v7019 = vld [vmem:[%s7018] sm:$0xff]
    %v7020 = vld [vmem:[%s7018 + $0x8] sm:$0xff]
    %v7021 = vld [vmem:[%s7018 + $0x10] sm:$0xff]
    %v7022 = vld [vmem:[%s7018 + $0x18] sm:$0xff]
    %v7023 = vld [vmem:[%s7018 + $0x20] sm:$0xff]
    %v7024 = vld [vmem:[%s7018 + $0x28] sm:$0xff]
    %v7026 = vsel %vm5336, %v7014, 0
    %v7029 = vsel %vm5336, %v7015, 0
    %v7032 = vsel %vm5336, %v7016, 0
    %v7035 = vsel %vm5336, %v7017, 0
    %7037 = vmatprep.subr.mxu0 0.0
    %7038 = vmatpush1.msra.mxu0 %v7019
    %7039 = vmatprep.subr.mxu0 0.0
    %7040 = vmatpush1.msra.mxu0 %v7020
    %7041 = vmatprep.subr.mxu0 0.0
    %7042 = vmatpush1.msra.mxu0 %v7021
    %7043 = vmatprep.subr.mxu0 0.0
    %7044 = vmatpush1.msra.mxu0 %v7022
    %7045 = vmatprep.subr.mxu0 0.0
    %7046 = vmatpush1.msra.mxu0 %v7023
    %7047 = vmatprep.subr.mxu0 0.0
    %7048 = vmatpush1.msra.mxu0 %v7024
    %7049 = vmatprep.subr.mxu0 0.0
    %7050 = vmatpush1.msra.mxu0 0.0
    %7051 = vmatprep.subr.mxu0 0.0
    %7052 = vmatpush1.msra.mxu0 0.0
    %7053 = vmatprep.subr.mxu0 0.0
    %7054 = vmatpush1.msra.mxu0 0.0
    %7055 = vmatprep.subr.mxu0 0.0
    %7056 = vmatpush1.msra.mxu0 0.0
    %7057 = vmatprep.subr.mxu0 0.0
    %7058 = vmatpush1.msra.mxu0 0.0
    %7059 = vmatprep.subr.mxu0 0.0
    %7060 = vmatpush1.msra.mxu0 0.0
    %7061 = vmatprep.subr.mxu0 0.0
    %7062 = vmatpush1.msra.mxu0 0.0
    %7063 = vmatprep.subr.mxu0 0.0
    %7064 = vmatpush1.msra.mxu0 0.0
    %7065 = vmatprep.subr.mxu0 0.0
    %7066 = vmatpush1.msra.mxu0 0.0
    %7067 = vmatprep.subr.mxu0 0.0
    %7068 = vmatpush1.msra.mxu0 0.0
    %7069 = vmatprep.subr.mxu0 0.0
    %7070 = vmatpush1.msra.mxu0 0.0
    %7071 = vmatprep.subr.mxu0 0.0
    %7072 = vmatpush1.msra.mxu0 0.0
    %7073 = vmatprep.subr.mxu0 0.0
    %7074 = vmatpush1.msra.mxu0 0.0
    %7075 = vmatprep.subr.mxu0 0.0
    %7076 = vmatpush1.msra.mxu0 0.0
    %7077 = vmatprep.subr.mxu0 0.0
    %7078 = vmatpush1.msra.mxu0 0.0
    %7079 = vmatprep.subr.mxu0 0.0
    %7080 = vmatpush1.msra.mxu0 0.0
    %7081 = vmatprep.subr.mxu0 0.0
    %7082 = vmatpush1.msra.mxu0 0.0
    %7083 = vmatprep.subr.mxu0 0.0
    %7084 = vmatpush1.msra.mxu0 0.0
    %7085 = vmatprep.subr.mxu0 0.0
    %7086 = vmatpush1.msra.mxu0 0.0
    %7087 = vmatprep.subr.mxu0 0.0
    %7088 = vmatpush1.msra.mxu0 0.0
    %7089 = vmatprep.subr.mxu0 0.0
    %7090 = vmatpush1.msra.mxu0 0.0
    %7091 = vmatprep.subr.mxu0 0.0
    %7092 = vmatpush1.msra.mxu0 0.0
    %7093 = vmatprep.subr.mxu0 0.0
    %7094 = vmatpush1.msra.mxu0 0.0
    %7095 = vmatprep.subr.mxu0 0.0
    %7096 = vmatpush1.msra.mxu0 0.0
    %7097 = vmatprep.subr.mxu0 0.0
    %7098 = vmatpush1.msra.mxu0 0.0
    %7099 = vmatprep.subr.mxu0 0.0
    %7100 = vmatpush1.msra.mxu0 0.0
    %7101 = vmatprep.mubr.f32.mxu0 0.0
    %7102 = vmatmul.mubr.f32.gmra.mrb[0].mxu0 %v7026
    %v7103 = vpop.f32.mrb[0].mxu0
    %v7104 = vadd.f32 0.0, %v7103
    %v7105 = vpop.f32.mrb[0].mxu0
    %7106 = vmatprep.mubr.f32.mxu0 0.0
    %7107 = vmatmul.mubr.f32.gmra.mrb[0].mxu0 %v7029
    %v7108 = vpop.f32.mrb[0].mxu0
    %v7109 = vadd.f32 0.0, %v7108
    %v7110 = vpop.f32.mrb[0].mxu0
    %7111 = vmatprep.mubr.f32.mxu0 0.0
    %7112 = vmatmul.mubr.f32.gmra.mrb[0].mxu0 %v7032
    %v7113 = vpop.f32.mrb[0].mxu0
    %v7114 = vadd.f32 0.0, %v7113
    %v7115 = vpop.f32.mrb[0].mxu0
    %7116 = vmatprep.mubr.f32.mxu0 0.0
    %7117 = vmatmul.mubr.f32.gmra.mrb[0].mxu0 %v7035
    %v7118 = vpop.f32.mrb[0].mxu0
    %v7119 = vadd.f32 0.0, %v7118
    %v7120 = vpop.f32.mrb[0].mxu0
    %7121 = vdwg.mxu0
    %v7122 = vadd.f32 %v7010, %v7104
    %v7123 = vadd.f32 %v7011, %v7109
    %v7124 = vadd.f32 %v7012, %v7114
    %v7125 = vadd.f32 %v7013, %v7119
    %v7126 = vld [vmem:[#allocation4 + $0xf] sm:$0xff]
    %v7127 = vld [vmem:[#allocation4 + $0x17] sm:$0xff]
    %v7128 = vld [vmem:[#allocation4 + $0x2f] sm:$0xff]
    %v7129 = vld [vmem:[#allocation4 + $0x37] sm:$0xff]
    %s7130 = scalar_lea.vmem [#allocation10], 672
    %v7131 = vld [vmem:[%s7130] sm:$0xff]
    %v7132 = vld [vmem:[%s7130 + $0x8] sm:$0xff]
    %v7133 = vld [vmem:[%s7130 + $0x10] sm:$0xff]
    %v7134 = vld [vmem:[%s7130 + $0x18] sm:$0xff]
    %v7135 = vld [vmem:[%s7130 + $0x20] sm:$0xff]
    %v7136 = vld [vmem:[%s7130 + $0x28] sm:$0xff]
    %v7138 = vsel %vm5336, %v7126, 0
    %v7141 = vsel %vm5336, %v7127, 0
    %v7144 = vsel %vm5336, %v7128, 0
    %v7147 = vsel %vm5336, %v7129, 0
    %7149 = vmatprep.subr.mxu0 0.0
    %7150 = vmatpush1.msra.mxu0 %v7131
    %7151 = vmatprep.subr.mxu0 0.0
    %7152 = vmatpush1.msra.mxu0 %v7132
    %7153 = vmatprep.subr.mxu0 0.0
    %7154 = vmatpush1.msra.mxu0 %v7133
    %7155 = vmatprep.subr.mxu0 0.0
    %7156 = vmatpush1.msra.mxu0 %v7134
    %7157 = vmatprep.subr.mxu0 0.0
    %7158 = vmatpush1.msra.mxu0 %v7135
    %7159 = vmatprep.subr.mxu0 0.0
    %7160 = vmatpush1.msra.mxu0 %v7136
    %7161 = vmatprep.subr.mxu0 0.0
    %7162 = vmatpush1.msra.mxu0 0.0
    %7163 = vmatprep.subr.mxu0 0.0
    %7164 = vmatpush1.msra.mxu0 0.0
    %7165 = vmatprep.subr.mxu0 0.0
    %7166 = vmatpush1.msra.mxu0 0.0
    %7167 = vmatprep.subr.mxu0 0.0
    %7168 = vmatpush1.msra.mxu0 0.0
    %7169 = vmatprep.subr.mxu0 0.0
    %7170 = vmatpush1.msra.mxu0 0.0
    %7171 = vmatprep.subr.mxu0 0.0
    %7172 = vmatpush1.msra.mxu0 0.0
    %7173 = vmatprep.subr.mxu0 0.0
    %7174 = vmatpush1.msra.mxu0 0.0
    %7175 = vmatprep.subr.mxu0 0.0
    %7176 = vmatpush1.msra.mxu0 0.0
    %7177 = vmatprep.subr.mxu0 0.0
    %7178 = vmatpush1.msra.mxu0 0.0
    %7179 = vmatprep.subr.mxu0 0.0
    %7180 = vmatpush1.msra.mxu0 0.0
    %7181 = vmatprep.subr.mxu0 0.0
    %7182 = vmatpush1.msra.mxu0 0.0
    %7183 = vmatprep.subr.mxu0 0.0
    %7184 = vmatpush1.msra.mxu0 0.0
    %7185 = vmatprep.subr.mxu0 0.0
    %7186 = vmatpush1.msra.mxu0 0.0
    %7187 = vmatprep.subr.mxu0 0.0
    %7188 = vmatpush1.msra.mxu0 0.0
    %7189 = vmatprep.subr.mxu0 0.0
    %7190 = vmatpush1.msra.mxu0 0.0
    %7191 = vmatprep.subr.mxu0 0.0
    %7192 = vmatpush1.msra.mxu0 0.0
    %7193 = vmatprep.subr.mxu0 0.0
    %7194 = vmatpush1.msra.mxu0 0.0
    %7195 = vmatprep.subr.mxu0 0.0
    %7196 = vmatpush1.msra.mxu0 0.0
    %7197 = vmatprep.subr.mxu0 0.0
    %7198 = vmatpush1.msra.mxu0 0.0
    %7199 = vmatprep.subr.mxu0 0.0
    %7200 = vmatpush1.msra.mxu0 0.0
    %7201 = vmatprep.subr.mxu0 0.0
    %7202 = vmatpush1.msra.mxu0 0.0
    %7203 = vmatprep.subr.mxu0 0.0
    %7204 = vmatpush1.msra.mxu0 0.0
    %7205 = vmatprep.subr.mxu0 0.0
    %7206 = vmatpush1.msra.mxu0 0.0
    %7207 = vmatprep.subr.mxu0 0.0
    %7208 = vmatpush1.msra.mxu0 0.0
    %7209 = vmatprep.subr.mxu0 0.0
    %7210 = vmatpush1.msra.mxu0 0.0
    %7211 = vmatprep.subr.mxu0 0.0
    %7212 = vmatpush1.msra.mxu0 0.0
    %7213 = vmatprep.mubr.f32.mxu0 0.0
    %7214 = vmatmul.mubr.f32.gmra.mrb[0].mxu0 %v7138
    %v7215 = vpop.f32.mrb[0].mxu0
    %v7216 = vadd.f32 0.0, %v7215
    %v7217 = vpop.f32.mrb[0].mxu0
    %7218 = vmatprep.mubr.f32.mxu0 0.0
    %7219 = vmatmul.mubr.f32.gmra.mrb[0].mxu0 %v7141
    %v7220 = vpop.f32.mrb[0].mxu0
    %v7221 = vadd.f32 0.0, %v7220
    %v7222 = vpop.f32.mrb[0].mxu0
    %7223 = vmatprep.mubr.f32.mxu0 0.0
    %7224 = vmatmul.mubr.f32.gmra.mrb[0].mxu0 %v7144
    %v7225 = vpop.f32.mrb[0].mxu0
    %v7226 = vadd.f32 0.0, %v7225
    %v7227 = vpop.f32.mrb[0].mxu0
    %7228 = vmatprep.mubr.f32.mxu0 0.0
    %7229 = vmatmul.mubr.f32.gmra.mrb[0].mxu0 %v7147
    %v7230 = vpop.f32.mrb[0].mxu0
    %v7231 = vadd.f32 0.0, %v7230
    %v7232 = vpop.f32.mrb[0].mxu0
    %7233 = vdwg.mxu0
    %v7234 = vadd.f32 %v7122, %v7216
    %v7235 = vadd.f32 %v7123, %v7221
    %v7236 = vadd.f32 %v7124, %v7226
    %v7237 = vadd.f32 %v7125, %v7231
    %v7238 = vld [vmem:[%s10] sm:$0x1]
    %v7240 = vlaneseq
    %v7241 = vshrl.u32 %v7240, 7
    %v7242 = vsub.s32 0, %v7241
    %v7243 = vrot.slane %v7238, %v7242
    %v7245 = vadd.f32 %v7234, %v7243
    %v7246 = vadd.f32 %v7235, %v7243
    %v7247 = vadd.f32 %v7236, %v7243
    %v7248 = vadd.f32 %v7237, %v7243
    %vm7249 = vcmp.gt.f32.partialorder %v7245, 0.0
    %vm7250 = vcmp.gt.f32.partialorder %v7246, 0.0
    %vm7251 = vcmp.gt.f32.partialorder %v7247, 0.0
    %vm7252 = vcmp.gt.f32.partialorder %v7248, 0.0
    %v7253 = vmul.f32 %v7245, 0.01
    %v7254 = vmul.f32 %v7246, 0.01
    %v7255 = vmul.f32 %v7247, 0.01
    %v7256 = vmul.f32 %v7248, 0.01
    %v7257 = vsel %vm7249, %v7245, %v7253
    %v7258 = vsel %vm7250, %v7246, %v7254
    %v7259 = vsel %vm7251, %v7247, %v7255
    %v7260 = vsel %vm7252, %v7248, %v7256
    %vm7261 = vcmask 261120
    %v7262 = vsel %vm7261, %v2295, 0
    %v7264 = vsel %vm7261, %v2296, 0
    %7266 = vmatprep.subr.mxu0 0.0
    %7267 = vmatpush1.msra.mxu0 %v7257
    %7268 = vmatprep.subr.mxu0 0.0
    %7269 = vmatpush1.msra.mxu0 %v7258
    %7270 = vmatprep.subr.mxu0 0.0
    %7271 = vmatpush1.msra.mxu0 %v7259
    %7272 = vmatprep.subr.mxu0 0.0
    %7273 = vmatpush1.msra.mxu0 %v7260
    %7274 = vmatprep.subr.mxu0 0.0
    %7275 = vmatpush1.msra.mxu0 0.0
    %7276 = vmatprep.subr.mxu0 0.0
    %7277 = vmatpush1.msra.mxu0 0.0
    %7278 = vmatprep.subr.mxu0 0.0
    %7279 = vmatpush1.msra.mxu0 0.0
    %7280 = vmatprep.subr.mxu0 0.0
    %7281 = vmatpush1.msra.mxu0 0.0
    %7282 = vmatprep.subr.mxu0 0.0
    %7283 = vmatpush1.msra.mxu0 0.0
    %7284 = vmatprep.subr.mxu0 0.0
    %7285 = vmatpush1.msra.mxu0 0.0
    %7286 = vmatprep.subr.mxu0 0.0
    %7287 = vmatpush1.msra.mxu0 0.0
    %7288 = vmatprep.subr.mxu0 0.0
    %7289 = vmatpush1.msra.mxu0 0.0
    %7290 = vmatprep.subr.mxu0 0.0
    %7291 = vmatpush1.msra.mxu0 0.0
    %7292 = vmatprep.subr.mxu0 0.0
    %7293 = vmatpush1.msra.mxu0 0.0
    %7294 = vmatprep.subr.mxu0 0.0
    %7295 = vmatpush1.msra.mxu0 0.0
    %7296 = vmatprep.subr.mxu0 0.0
    %7297 = vmatpush1.msra.mxu0 0.0
    %7298 = vmatprep.subr.mxu0 0.0
    %7299 = vmatpush1.msra.mxu0 0.0
    %7300 = vmatprep.subr.mxu0 0.0
    %7301 = vmatpush1.msra.mxu0 0.0
    %7302 = vmatprep.subr.mxu0 0.0
    %7303 = vmatpush1.msra.mxu0 0.0
    %7304 = vmatprep.subr.mxu0 0.0
    %7305 = vmatpush1.msra.mxu0 0.0
    %7306 = vmatprep.subr.mxu0 0.0
    %7307 = vmatpush1.msra.mxu0 0.0
    %7308 = vmatprep.subr.mxu0 0.0
    %7309 = vmatpush1.msra.mxu0 0.0
    %7310 = vmatprep.subr.mxu0 0.0
    %7311 = vmatpush1.msra.mxu0 0.0
    %7312 = vmatprep.subr.mxu0 0.0
    %7313 = vmatpush1.msra.mxu0 0.0
    %7314 = vmatprep.subr.mxu0 0.0
    %7315 = vmatpush1.msra.mxu0 0.0
    %7316 = vmatprep.subr.mxu0 0.0
    %7317 = vmatpush1.msra.mxu0 0.0
    %7318 = vmatprep.subr.mxu0 0.0
    %7319 = vmatpush1.msra.mxu0 0.0
    %7320 = vmatprep.subr.mxu0 0.0
    %7321 = vmatpush1.msra.mxu0 0.0
    %7322 = vmatprep.subr.mxu0 0.0
    %7323 = vmatpush1.msra.mxu0 0.0
    %7324 = vmatprep.subr.mxu0 0.0
    %7325 = vmatpush1.msra.mxu0 0.0
    %7326 = vmatprep.subr.mxu0 0.0
    %7327 = vmatpush1.msra.mxu0 0.0
    %7328 = vmatprep.subr.mxu0 0.0
    %7329 = vmatpush1.msra.mxu0 0.0
    %7330 = vmatprep.mubr.f32.mxu0 0.0
    %7331 = vmatmul.mubr.f32.gmra.mrb[0].mxu0 %v7262
    %v7332 = vpop.f32.mrb[0].mxu0
    %v7333 = vadd.f32 0.0, %v7332
    %v7334 = vpop.f32.mrb[0].mxu0
    %7335 = vmatprep.mubr.f32.mxu0 0.0
    %7336 = vmatmul.mubr.f32.gmra.mrb[0].mxu0 %v7264
    %v7337 = vpop.f32.mrb[0].mxu0
    %v7338 = vadd.f32 0.0, %v7337
    %v7339 = vpop.f32.mrb[0].mxu0
    %7340 = vdwg.mxu0
    %v7341 = vsel %vm7261, %v2327, 0
    %v7343 = vsel %vm7261, %v2328, 0
    %7345 = vmatprep.subr.mxu0 0.0
    %7346 = vmatpush1.msra.mxu0 %v7257
    %7347 = vmatprep.subr.mxu0 0.0
    %7348 = vmatpush1.msra.mxu0 %v7258
    %7349 = vmatprep.subr.mxu0 0.0
    %7350 = vmatpush1.msra.mxu0 %v7259
    %7351 = vmatprep.subr.mxu0 0.0
    %7352 = vmatpush1.msra.mxu0 %v7260
    %7353 = vmatprep.subr.mxu0 0.0
    %7354 = vmatpush1.msra.mxu0 0.0
    %7355 = vmatprep.subr.mxu0 0.0
    %7356 = vmatpush1.msra.mxu0 0.0
    %7357 = vmatprep.subr.mxu0 0.0
    %7358 = vmatpush1.msra.mxu0 0.0
    %7359 = vmatprep.subr.mxu0 0.0
    %7360 = vmatpush1.msra.mxu0 0.0
    %7361 = vmatprep.subr.mxu0 0.0
    %7362 = vmatpush1.msra.mxu0 0.0
    %7363 = vmatprep.subr.mxu0 0.0
    %7364 = vmatpush1.msra.mxu0 0.0
    %7365 = vmatprep.subr.mxu0 0.0
    %7366 = vmatpush1.msra.mxu0 0.0
    %7367 = vmatprep.subr.mxu0 0.0
    %7368 = vmatpush1.msra.mxu0 0.0
    %7369 = vmatprep.subr.mxu0 0.0
    %7370 = vmatpush1.msra.mxu0 0.0
    %7371 = vmatprep.subr.mxu0 0.0
    %7372 = vmatpush1.msra.mxu0 0.0
    %7373 = vmatprep.subr.mxu0 0.0
    %7374 = vmatpush1.msra.mxu0 0.0
    %7375 = vmatprep.subr.mxu0 0.0
    %7376 = vmatpush1.msra.mxu0 0.0
    %7377 = vmatprep.subr.mxu0 0.0
    %7378 = vmatpush1.msra.mxu0 0.0
    %7379 = vmatprep.subr.mxu0 0.0
    %7380 = vmatpush1.msra.mxu0 0.0
    %7381 = vmatprep.subr.mxu0 0.0
    %7382 = vmatpush1.msra.mxu0 0.0
    %7383 = vmatprep.subr.mxu0 0.0
    %7384 = vmatpush1.msra.mxu0 0.0
    %7385 = vmatprep.subr.mxu0 0.0
    %7386 = vmatpush1.msra.mxu0 0.0
    %7387 = vmatprep.subr.mxu0 0.0
    %7388 = vmatpush1.msra.mxu0 0.0
    %7389 = vmatprep.subr.mxu0 0.0
    %7390 = vmatpush1.msra.mxu0 0.0
    %7391 = vmatprep.subr.mxu0 0.0
    %7392 = vmatpush1.msra.mxu0 0.0
    %7393 = vmatprep.subr.mxu0 0.0
    %7394 = vmatpush1.msra.mxu0 0.0
    %7395 = vmatprep.subr.mxu0 0.0
    %7396 = vmatpush1.msra.mxu0 0.0
    %7397 = vmatprep.subr.mxu0 0.0
    %7398 = vmatpush1.msra.mxu0 0.0
    %7399 = vmatprep.subr.mxu0 0.0
    %7400 = vmatpush1.msra.mxu0 0.0
    %7401 = vmatprep.subr.mxu0 0.0
    %7402 = vmatpush1.msra.mxu0 0.0
    %7403 = vmatprep.subr.mxu0 0.0
    %7404 = vmatpush1.msra.mxu0 0.0
    %7405 = vmatprep.subr.mxu0 0.0
    %7406 = vmatpush1.msra.mxu0 0.0
    %7407 = vmatprep.subr.mxu0 0.0
    %7408 = vmatpush1.msra.mxu0 0.0
    %7409 = vmatprep.mubr.f32.mxu0 0.0
    %7410 = vmatmul.mubr.f32.gmra.mrb[0].mxu0 %v7341
    %v7411 = vpop.f32.mrb[0].mxu0
    %v7412 = vadd.f32 0.0, %v7411
    %v7413 = vpop.f32.mrb[0].mxu0
    %7414 = vmatprep.mubr.f32.mxu0 0.0
    %7415 = vmatmul.mubr.f32.gmra.mrb[0].mxu0 %v7343
    %v7416 = vpop.f32.mrb[0].mxu0
    %v7417 = vadd.f32 0.0, %v7416
    %v7418 = vpop.f32.mrb[0].mxu0
    %7419 = vdwg.mxu0
    %v7420 = vld [vmem:[%s11] sm:$0xff]
    %v7421 = vld [vmem:[%s11 + $0x8] sm:$0xff]
    %v7422 = vld [vmem:[%s11 + $0x10] sm:$0xff]
    %v7423 = vld [vmem:[%s11 + $0x18] sm:$0xff]
    %v7424 = vld [vmem:[%s11 + $0x20] sm:$0xff]
    %v7425 = vld [vmem:[%s11 + $0x28] sm:$0xff]
    %v7426 = vld [vmem:[%s11 + $0x30] sm:$0xff]
    %v7427 = vld [vmem:[%s11 + $0x38] sm:$0xff]
    %v7428 = vld [vmem:[%s11 + $0x40] sm:$0xff]
    %v7429 = vld [vmem:[%s11 + $0x48] sm:$0xff]
    %v7430 = vld [vmem:[%s11 + $0x50] sm:$0xff]
    %v7431 = vld [vmem:[%s11 + $0x58] sm:$0xff]
    %s7432 = scalar_lea.vmem %s11, 96
    %v7433 = vld [vmem:[%s7432] sm:$0xff]
    %v7434 = vld [vmem:[%s7432 + $0x8] sm:$0xff]
    %v7435 = vld [vmem:[%s7432 + $0x10] sm:$0xff]
    %v7436 = vld [vmem:[%s7432 + $0x18] sm:$0xff]
    %v7437 = vld [vmem:[%s7432 + $0x20] sm:$0xff]
    %v7438 = vld [vmem:[%s7432 + $0x28] sm:$0xff]
    %v7439 = vld [vmem:[%s7432 + $0x30] sm:$0xff]
    %v7440 = vld [vmem:[%s7432 + $0x38] sm:$0xff]
    %v7441 = vld [vmem:[%s7432 + $0x40] sm:$0xff]
    %v7442 = vld [vmem:[%s7432 + $0x48] sm:$0xff]
    %v7443 = vld [vmem:[%s7432 + $0x50] sm:$0xff]
    %v7444 = vld [vmem:[%s7432 + $0x58] sm:$0xff]
    %vm7445 = vcmask 785408
    %v7447 = vsel %vm7445, %v7412, 0
    %v7450 = vsel %vm7445, %v7417, 0
    %7452 = vmatprep.subr.mxu0 0.0
    %7453 = vmatpush1.msra.mxu0 %v7433
    %7454 = vmatprep.subr.mxu0 0.0
    %7455 = vmatpush1.msra.mxu0 %v7434
    %7456 = vmatprep.subr.mxu0 0.0
    %7457 = vmatpush1.msra.mxu0 %v7435
    %7458 = vmatprep.subr.mxu0 0.0
    %7459 = vmatpush1.msra.mxu0 %v7436
    %7460 = vmatprep.subr.mxu0 0.0
    %7461 = vmatpush1.msra.mxu0 %v7437
    %7462 = vmatprep.subr.mxu0 0.0
    %7463 = vmatpush1.msra.mxu0 %v7438
    %7464 = vmatprep.subr.mxu0 0.0
    %7465 = vmatpush1.msra.mxu0 %v7439
    %7466 = vmatprep.subr.mxu0 0.0
    %7467 = vmatpush1.msra.mxu0 %v7440
    %7468 = vmatprep.subr.mxu0 0.0
    %7469 = vmatpush1.msra.mxu0 %v7441
    %7470 = vmatprep.subr.mxu0 0.0
    %7471 = vmatpush1.msra.mxu0 %v7442
    %7472 = vmatprep.subr.mxu0 0.0
    %7473 = vmatpush1.msra.mxu0 %v7443
    %7474 = vmatprep.subr.mxu0 0.0
    %7475 = vmatpush1.msra.mxu0 %v7444
    %7476 = vmatprep.subr.mxu0 0.0
    %7477 = vmatpush1.msra.mxu0 0.0
    %7478 = vmatprep.subr.mxu0 0.0
    %7479 = vmatpush1.msra.mxu0 0.0
    %7480 = vmatprep.subr.mxu0 0.0
    %7481 = vmatpush1.msra.mxu0 0.0
    %7482 = vmatprep.subr.mxu0 0.0
    %7483 = vmatpush1.msra.mxu0 0.0
    %7484 = vmatprep.subr.mxu0 0.0
    %7485 = vmatpush1.msra.mxu0 0.0
    %7486 = vmatprep.subr.mxu0 0.0
    %7487 = vmatpush1.msra.mxu0 0.0
    %7488 = vmatprep.subr.mxu0 0.0
    %7489 = vmatpush1.msra.mxu0 0.0
    %7490 = vmatprep.subr.mxu0 0.0
    %7491 = vmatpush1.msra.mxu0 0.0
    %7492 = vmatprep.subr.mxu0 0.0
    %7493 = vmatpush1.msra.mxu0 0.0
    %7494 = vmatprep.subr.mxu0 0.0
    %7495 = vmatpush1.msra.mxu0 0.0
    %7496 = vmatprep.subr.mxu0 0.0
    %7497 = vmatpush1.msra.mxu0 0.0
    %7498 = vmatprep.subr.mxu0 0.0
    %7499 = vmatpush1.msra.mxu0 0.0
    %7500 = vmatprep.subr.mxu0 0.0
    %7501 = vmatpush1.msra.mxu0 0.0
    %7502 = vmatprep.subr.mxu0 0.0
    %7503 = vmatpush1.msra.mxu0 0.0
    %7504 = vmatprep.subr.mxu0 0.0
    %7505 = vmatpush1.msra.mxu0 0.0
    %7506 = vmatprep.subr.mxu0 0.0
    %7507 = vmatpush1.msra.mxu0 0.0
    %7508 = vmatprep.subr.mxu0 0.0
    %7509 = vmatpush1.msra.mxu0 0.0
    %7510 = vmatprep.subr.mxu0 0.0
    %7511 = vmatpush1.msra.mxu0 0.0
    %7512 = vmatprep.subr.mxu0 0.0
    %7513 = vmatpush1.msra.mxu0 0.0
    %7514 = vmatprep.subr.mxu0 0.0
    %7515 = vmatpush1.msra.mxu0 0.0
    %7516 = vmatprep.mubr.f32.mxu0 0.0
    %7517 = vmatmul.mubr.f32.gmra.mrb[0].mxu0 %v7447
    %v7518 = vpop.f32.mrb[0].mxu0
    %v7519 = vadd.f32 0.0, %v7518
    %v7520 = vpop.f32.mrb[0].mxu0
    %7521 = vmatprep.mubr.f32.mxu0 0.0
    %7522 = vmatmul.mubr.f32.gmra.mrb[0].mxu0 %v7450
    %v7523 = vpop.f32.mrb[0].mxu0
    %v7524 = vadd.f32 0.0, %v7523
    %v7525 = vpop.f32.mrb[0].mxu0
    %7526 = vdwg.mxu0
    %v7528 = vsel %vm7445, %v7333, 0
    %v7531 = vsel %vm7445, %v7338, 0
    %7533 = vmatprep.subr.mxu0 0.0
    %7534 = vmatpush1.msra.mxu0 %v7420
    %7535 = vmatprep.subr.mxu0 0.0
    %7536 = vmatpush1.msra.mxu0 %v7421
    %7537 = vmatprep.subr.mxu0 0.0
    %7538 = vmatpush1.msra.mxu0 %v7422
    %7539 = vmatprep.subr.mxu0 0.0
    %7540 = vmatpush1.msra.mxu0 %v7423
    %7541 = vmatprep.subr.mxu0 0.0
    %7542 = vmatpush1.msra.mxu0 %v7424
    %7543 = vmatprep.subr.mxu0 0.0
    %7544 = vmatpush1.msra.mxu0 %v7425
    %7545 = vmatprep.subr.mxu0 0.0
    %7546 = vmatpush1.msra.mxu0 %v7426
    %7547 = vmatprep.subr.mxu0 0.0
    %7548 = vmatpush1.msra.mxu0 %v7427
    %7549 = vmatprep.subr.mxu0 0.0
    %7550 = vmatpush1.msra.mxu0 %v7428
    %7551 = vmatprep.subr.mxu0 0.0
    %7552 = vmatpush1.msra.mxu0 %v7429
    %7553 = vmatprep.subr.mxu0 0.0
    %7554 = vmatpush1.msra.mxu0 %v7430
    %7555 = vmatprep.subr.mxu0 0.0
    %7556 = vmatpush1.msra.mxu0 %v7431
    %7557 = vmatprep.subr.mxu0 0.0
    %7558 = vmatpush1.msra.mxu0 0.0
    %7559 = vmatprep.subr.mxu0 0.0
    %7560 = vmatpush1.msra.mxu0 0.0
    %7561 = vmatprep.subr.mxu0 0.0
    %7562 = vmatpush1.msra.mxu0 0.0
    %7563 = vmatprep.subr.mxu0 0.0
    %7564 = vmatpush1.msra.mxu0 0.0
    %7565 = vmatprep.subr.mxu0 0.0
    %7566 = vmatpush1.msra.mxu0 0.0
    %7567 = vmatprep.subr.mxu0 0.0
    %7568 = vmatpush1.msra.mxu0 0.0
    %7569 = vmatprep.subr.mxu0 0.0
    %7570 = vmatpush1.msra.mxu0 0.0
    %7571 = vmatprep.subr.mxu0 0.0
    %7572 = vmatpush1.msra.mxu0 0.0
    %7573 = vmatprep.subr.mxu0 0.0
    %7574 = vmatpush1.msra.mxu0 0.0
    %7575 = vmatprep.subr.mxu0 0.0
    %7576 = vmatpush1.msra.mxu0 0.0
    %7577 = vmatprep.subr.mxu0 0.0
    %7578 = vmatpush1.msra.mxu0 0.0
    %7579 = vmatprep.subr.mxu0 0.0
    %7580 = vmatpush1.msra.mxu0 0.0
    %7581 = vmatprep.subr.mxu0 0.0
    %7582 = vmatpush1.msra.mxu0 0.0
    %7583 = vmatprep.subr.mxu0 0.0
    %7584 = vmatpush1.msra.mxu0 0.0
    %7585 = vmatprep.subr.mxu0 0.0
    %7586 = vmatpush1.msra.mxu0 0.0
    %7587 = vmatprep.subr.mxu0 0.0
    %7588 = vmatpush1.msra.mxu0 0.0
    %7589 = vmatprep.subr.mxu0 0.0
    %7590 = vmatpush1.msra.mxu0 0.0
    %7591 = vmatprep.subr.mxu0 0.0
    %7592 = vmatpush1.msra.mxu0 0.0
    %7593 = vmatprep.subr.mxu0 0.0
    %7594 = vmatpush1.msra.mxu0 0.0
    %7595 = vmatprep.subr.mxu0 0.0
    %7596 = vmatpush1.msra.mxu0 0.0
    %7597 = vmatprep.mubr.f32.mxu0 0.0
    %7598 = vmatmul.mubr.f32.gmra.mrb[0].mxu0 %v7528
    %v7599 = vpop.f32.mrb[0].mxu0
    %v7600 = vadd.f32 %v7519, %v7599
    %v7601 = vpop.f32.mrb[0].mxu0
    %7602 = vmatprep.mubr.f32.mxu0 0.0
    %7603 = vmatmul.mubr.f32.gmra.mrb[0].mxu0 %v7531
    %v7604 = vpop.f32.mrb[0].mxu0
    %v7605 = vadd.f32 %v7524, %v7604
    %v7606 = vpop.f32.mrb[0].mxu0
    %7607 = vdwg.mxu0
    %v7608 = vld [vmem:[%s12] sm:$0x1]
    %v7610 = vlaneseq
    %v7611 = vshrl.u32 %v7610, 7
    %v7612 = vsub.s32 0, %v7611
    %v7613 = vrot.slane %v7608, %v7612
    %v7615 = vadd.f32 %v7600, %v7613
    %v7616 = vadd.f32 %v7605, %v7613
    %vm7617 = vcmp.gt.f32.partialorder %v7615, 0.0
    %vm7618 = vcmp.gt.f32.partialorder %v7616, 0.0
    %v7619 = vmul.f32 %v7615, 0.01
    %v7620 = vmul.f32 %v7616, 0.01
    %v7621 = vsel %vm7617, %v7615, %v7619
    %v7622 = vsel %vm7618, %v7616, %v7620
    %v7623 = vmul.u32 %v2261, 8
    %vm7624 = vcmp.ge.s32.totalorder %v2270, %v7623
    %v7625 = vadd.s32 %v2261, 1
    %v7626 = vmul.u32 %v7625, 8
    %vm7627 = vcmp.lt.s32.totalorder %v2270, %v7626
    %vm7628 = vmand %vm7624, %vm7627
    %v7629 = vsel %vm7628, 1, 0
    %v7630 = vcvt.s32.f32 %v7629
    %v7631 = vmul.f32 %v7630, 0.125
    %vm7632 = vcmask 130048
    %v7634 = vsel %vm7632, %v7631, 0
    %7636 = vmatprep.subr.mxu0 0.0
    %7637 = vmatpush1.msra.mxu0 %v7621
    %7638 = vmatprep.subr.mxu0 0.0
    %7639 = vmatpush1.msra.mxu0 %v7622
    %7640 = vmatprep.subr.mxu0 0.0
    %7641 = vmatpush1.msra.mxu0 0.0
    %7642 = vmatprep.subr.mxu0 0.0
    %7643 = vmatpush1.msra.mxu0 0.0
    %7644 = vmatprep.subr.mxu0 0.0
    %7645 = vmatpush1.msra.mxu0 0.0
    %7646 = vmatprep.subr.mxu0 0.0
    %7647 = vmatpush1.msra.mxu0 0.0
    %7648 = vmatprep.subr.mxu0 0.0
    %7649 = vmatpush1.msra.mxu0 0.0
    %7650 = vmatprep.subr.mxu0 0.0
    %7651 = vmatpush1.msra.mxu0 0.0
    %7652 = vmatprep.subr.mxu0 0.0
    %7653 = vmatpush1.msra.mxu0 0.0
    %7654 = vmatprep.subr.mxu0 0.0
    %7655 = vmatpush1.msra.mxu0 0.0
    %7656 = vmatprep.subr.mxu0 0.0
    %7657 = vmatpush1.msra.mxu0 0.0
    %7658 = vmatprep.subr.mxu0 0.0
    %7659 = vmatpush1.msra.mxu0 0.0
    %7660 = vmatprep.subr.mxu0 0.0
    %7661 = vmatpush1.msra.mxu0 0.0
    %7662 = vmatprep.subr.mxu0 0.0
    %7663 = vmatpush1.msra.mxu0 0.0
    %7664 = vmatprep.subr.mxu0 0.0
    %7665 = vmatpush1.msra.mxu0 0.0
    %7666 = vmatprep.subr.mxu0 0.0
    %7667 = vmatpush1.msra.mxu0 0.0
    %7668 = vmatprep.subr.mxu0 0.0
    %7669 = vmatpush1.msra.mxu0 0.0
    %7670 = vmatprep.subr.mxu0 0.0
    %7671 = vmatpush1.msra.mxu0 0.0
    %7672 = vmatprep.subr.mxu0 0.0
    %7673 = vmatpush1.msra.mxu0 0.0
    %7674 = vmatprep.subr.mxu0 0.0
    %7675 = vmatpush1.msra.mxu0 0.0
    %7676 = vmatprep.subr.mxu0 0.0
    %7677 = vmatpush1.msra.mxu0 0.0
    %7678 = vmatprep.subr.mxu0 0.0
    %7679 = vmatpush1.msra.mxu0 0.0
    %7680 = vmatprep.subr.mxu0 0.0
    %7681 = vmatpush1.msra.mxu0 0.0
    %7682 = vmatprep.subr.mxu0 0.0
    %7683 = vmatpush1.msra.mxu0 0.0
    %7684 = vmatprep.subr.mxu0 0.0
    %7685 = vmatpush1.msra.mxu0 0.0
    %7686 = vmatprep.subr.mxu0 0.0
    %7687 = vmatpush1.msra.mxu0 0.0
    %7688 = vmatprep.subr.mxu0 0.0
    %7689 = vmatpush1.msra.mxu0 0.0
    %7690 = vmatprep.subr.mxu0 0.0
    %7691 = vmatpush1.msra.mxu0 0.0
    %7692 = vmatprep.subr.mxu0 0.0
    %7693 = vmatpush1.msra.mxu0 0.0
    %7694 = vmatprep.subr.mxu0 0.0
    %7695 = vmatpush1.msra.mxu0 0.0
    %7696 = vmatprep.subr.mxu0 0.0
    %7697 = vmatpush1.msra.mxu0 0.0
    %7698 = vmatprep.subr.mxu0 0.0
    %7699 = vmatpush1.msra.mxu0 0.0
    %7700 = vmatprep.mubr.f32.mxu0 0.0
    %7701 = vmatmul.mubr.f32.gmra.mrb[0].mxu0 %v7634
    %v7702 = vpop.f32.mrb[0].mxu0
    %v7703 = vadd.f32 0.0, %v7702
    %v7704 = vpop.f32.mrb[0].mxu0
    %7705 = vdwg.mxu0
    %v7706 = vld [vmem:[#allocation11] sm:$0xff]
    %v7707 = vld [vmem:[#allocation11 + $0x8] sm:$0xff]
    %v7708 = vld [vmem:[#allocation11 + $0x10] sm:$0xff]
    %v7709 = vld [vmem:[#allocation11 + $0x18] sm:$0xff]
    %v7710 = vld [vmem:[#allocation11 + $0x20] sm:$0xff]
    %v7711 = vld [vmem:[#allocation11 + $0x28] sm:$0xff]
    %v7712 = vld [vmem:[#allocation11 + $0x30] sm:$0xff]
    %v7713 = vld [vmem:[#allocation11 + $0x38] sm:$0xff]
    %v7714 = vld [vmem:[#allocation11 + $0x40] sm:$0xff]
    %v7715 = vld [vmem:[#allocation11 + $0x48] sm:$0xff]
    %v7716 = vld [vmem:[#allocation11 + $0x50] sm:$0xff]
    %v7717 = vld [vmem:[#allocation11 + $0x58] sm:$0xff]
    %v7718 = vld [vmem:[%s14] sm:$0x1]
    %v7720 = vlaneseq
    %v7721 = vshrl.u32 %v7720, 7
    %v7722 = vsub.s32 0, %v7721
    %v7723 = vrot.slane %v7718, %v7722
    %v7726 = vsel %vm7445, %v7703, 0
    %7728 = vmatprep.subr.mxu0 0.0
    %7729 = vmatpush1.msra.mxu0 %v7706
    %7730 = vmatprep.subr.mxu0 0.0
    %7731 = vmatpush1.msra.mxu0 %v7707
    %7732 = vmatprep.subr.mxu0 0.0
    %7733 = vmatpush1.msra.mxu0 %v7708
    %7734 = vmatprep.subr.mxu0 0.0
    %7735 = vmatpush1.msra.mxu0 %v7709
    %7736 = vmatprep.subr.mxu0 0.0
    %7737 = vmatpush1.msra.mxu0 %v7710
    %7738 = vmatprep.subr.mxu0 0.0
    %7739 = vmatpush1.msra.mxu0 %v7711
    %7740 = vmatprep.subr.mxu0 0.0
    %7741 = vmatpush1.msra.mxu0 %v7712
    %7742 = vmatprep.subr.mxu0 0.0
    %7743 = vmatpush1.msra.mxu0 %v7713
    %7744 = vmatprep.subr.mxu0 0.0
    %7745 = vmatpush1.msra.mxu0 %v7714
    %7746 = vmatprep.subr.mxu0 0.0
    %7747 = vmatpush1.msra.mxu0 %v7715
    %7748 = vmatprep.subr.mxu0 0.0
    %7749 = vmatpush1.msra.mxu0 %v7716
    %7750 = vmatprep.subr.mxu0 0.0
    %7751 = vmatpush1.msra.mxu0 %v7717
    %7752 = vmatprep.subr.mxu0 0.0
    %7753 = vmatpush1.msra.mxu0 0.0
    %7754 = vmatprep.subr.mxu0 0.0
    %7755 = vmatpush1.msra.mxu0 0.0
    %7756 = vmatprep.subr.mxu0 0.0
    %7757 = vmatpush1.msra.mxu0 0.0
    %7758 = vmatprep.subr.mxu0 0.0
    %7759 = vmatpush1.msra.mxu0 0.0
    %7760 = vmatprep.subr.mxu0 0.0
    %7761 = vmatpush1.msra.mxu0 0.0
    %7762 = vmatprep.subr.mxu0 0.0
    %7763 = vmatpush1.msra.mxu0 0.0
    %7764 = vmatprep.subr.mxu0 0.0
    %7765 = vmatpush1.msra.mxu0 0.0
    %7766 = vmatprep.subr.mxu0 0.0
    %7767 = vmatpush1.msra.mxu0 0.0
    %7768 = vmatprep.subr.mxu0 0.0
    %7769 = vmatpush1.msra.mxu0 0.0
    %7770 = vmatprep.subr.mxu0 0.0
    %7771 = vmatpush1.msra.mxu0 0.0
    %7772 = vmatprep.subr.mxu0 0.0
    %7773 = vmatpush1.msra.mxu0 0.0
    %7774 = vmatprep.subr.mxu0 0.0
    %7775 = vmatpush1.msra.mxu0 0.0
    %7776 = vmatprep.subr.mxu0 0.0
    %7777 = vmatpush1.msra.mxu0 0.0
    %7778 = vmatprep.subr.mxu0 0.0
    %7779 = vmatpush1.msra.mxu0 0.0
    %7780 = vmatprep.subr.mxu0 0.0
    %7781 = vmatpush1.msra.mxu0 0.0
    %7782 = vmatprep.subr.mxu0 0.0
    %7783 = vmatpush1.msra.mxu0 0.0
    %7784 = vmatprep.subr.mxu0 0.0
    %7785 = vmatpush1.msra.mxu0 0.0
    %7786 = vmatprep.subr.mxu0 0.0
    %7787 = vmatpush1.msra.mxu0 0.0
    %7788 = vmatprep.subr.mxu0 0.0
    %7789 = vmatpush1.msra.mxu0 0.0
    %7790 = vmatprep.subr.mxu0 0.0
    %7791 = vmatpush1.msra.mxu0 0.0
    %7792 = vmatprep.mubr.f32.mxu0 0.0
    %7793 = vmatmul.mubr.f32.gmra.mrb[0].mxu0 %v7726
    %v7794 = vpop.f32.mrb[0].mxu0
    %v7795 = vadd.f32 %v7723, %v7794
    %v7796 = vpop.f32.mrb[0].mxu0
    %7797 = vdwg.mxu0
    %v7798 = vld [vmem:[%s15] sm:$0xff]
    %v7799 = vld [vmem:[%s15 + $0x8] sm:$0xff]
    %v7800 = vld [vmem:[%s15 + $0x10] sm:$0xff]
    %v7801 = vld [vmem:[%s15 + $0x18] sm:$0xff]
    %v7802 = vld [vmem:[%s15 + $0x20] sm:$0xff]
    %v7803 = vld [vmem:[%s15 + $0x28] sm:$0xff]
    %v7804 = vld [vmem:[%s15 + $0x30] sm:$0xff]
    %v7805 = vld [vmem:[%s15 + $0x38] sm:$0xff]
    %v7806 = vld [vmem:[%s15 + $0x40] sm:$0xff]
    %v7807 = vld [vmem:[%s15 + $0x48] sm:$0xff]
    %v7808 = vld [vmem:[%s15 + $0x50] sm:$0xff]
    %v7809 = vld [vmem:[%s15 + $0x58] sm:$0xff]
    %v7810 = vld [vmem:[#allocation5] sm:$0x1]
    %v7812 = vlaneseq
    %v7813 = vshrl.u32 %v7812, 7
    %v7814 = vsub.s32 0, %v7813
    %v7815 = vrot.slane %v7810, %v7814
    %v7818 = vsel %vm7445, %v7795, 0
    %7820 = vmatprep.subr.mxu0 0.0
    %7821 = vmatpush1.msra.mxu0 %v7798
    %7822 = vmatprep.subr.mxu0 0.0
    %7823 = vmatpush1.msra.mxu0 %v7799
    %7824 = vmatprep.subr.mxu0 0.0
    %7825 = vmatpush1.msra.mxu0 %v7800
    %7826 = vmatprep.subr.mxu0 0.0
    %7827 = vmatpush1.msra.mxu0 %v7801
    %7828 = vmatprep.subr.mxu0 0.0
    %7829 = vmatpush1.msra.mxu0 %v7802
    %7830 = vmatprep.subr.mxu0 0.0
    %7831 = vmatpush1.msra.mxu0 %v7803
    %7832 = vmatprep.subr.mxu0 0.0
    %7833 = vmatpush1.msra.mxu0 %v7804
    %7834 = vmatprep.subr.mxu0 0.0
    %7835 = vmatpush1.msra.mxu0 %v7805
    %7836 = vmatprep.subr.mxu0 0.0
    %7837 = vmatpush1.msra.mxu0 %v7806
    %7838 = vmatprep.subr.mxu0 0.0
    %7839 = vmatpush1.msra.mxu0 %v7807
    %7840 = vmatprep.subr.mxu0 0.0
    %7841 = vmatpush1.msra.mxu0 %v7808
    %7842 = vmatprep.subr.mxu0 0.0
    %7843 = vmatpush1.msra.mxu0 %v7809
    %7844 = vmatprep.subr.mxu0 0.0
    %7845 = vmatpush1.msra.mxu0 0.0
    %7846 = vmatprep.subr.mxu0 0.0
    %7847 = vmatpush1.msra.mxu0 0.0
    %7848 = vmatprep.subr.mxu0 0.0
    %7849 = vmatpush1.msra.mxu0 0.0
    %7850 = vmatprep.subr.mxu0 0.0
    %7851 = vmatpush1.msra.mxu0 0.0
    %7852 = vmatprep.subr.mxu0 0.0
    %7853 = vmatpush1.msra.mxu0 0.0
    %7854 = vmatprep.subr.mxu0 0.0
    %7855 = vmatpush1.msra.mxu0 0.0
    %7856 = vmatprep.subr.mxu0 0.0
    %7857 = vmatpush1.msra.mxu0 0.0
    %7858 = vmatprep.subr.mxu0 0.0
    %7859 = vmatpush1.msra.mxu0 0.0
    %7860 = vmatprep.subr.mxu0 0.0
    %7861 = vmatpush1.msra.mxu0 0.0
    %7862 = vmatprep.subr.mxu0 0.0
    %7863 = vmatpush1.msra.mxu0 0.0
    %7864 = vmatprep.subr.mxu0 0.0
    %7865 = vmatpush1.msra.mxu0 0.0
    %7866 = vmatprep.subr.mxu0 0.0
    %7867 = vmatpush1.msra.mxu0 0.0
    %7868 = vmatprep.subr.mxu0 0.0
    %7869 = vmatpush1.msra.mxu0 0.0
    %7870 = vmatprep.subr.mxu0 0.0
    %7871 = vmatpush1.msra.mxu0 0.0
    %7872 = vmatprep.subr.mxu0 0.0
    %7873 = vmatpush1.msra.mxu0 0.0
    %7874 = vmatprep.subr.mxu0 0.0
    %7875 = vmatpush1.msra.mxu0 0.0
    %7876 = vmatprep.subr.mxu0 0.0
    %7877 = vmatpush1.msra.mxu0 0.0
    %7878 = vmatprep.subr.mxu0 0.0
    %7879 = vmatpush1.msra.mxu0 0.0
    %7880 = vmatprep.subr.mxu0 0.0
    %7881 = vmatpush1.msra.mxu0 0.0
    %7882 = vmatprep.subr.mxu0 0.0
    %7883 = vmatpush1.msra.mxu0 0.0
    %7884 = vmatprep.mubr.f32.mxu0 0.0
    %7885 = vmatmul.mubr.f32.gmra.mrb[0].mxu0 %v7818
    %v7886 = vpop.f32.mrb[0].mxu0
    %v7887 = vadd.f32 %v7815, %v7886
    %v7888 = vpop.f32.mrb[0].mxu0
    %7889 = vdwg.mxu0
    %vm7890 = vcmask 1024
    %7891 = vst.msk [vmem:[%s17] sm:$0x3] %vm7890, %v7887
    // Predicated region
    $region86: #{cnn_forward.1} parent=1 // pred_check
      _
    $region87: #{cnn_forward.1} parent=1 // pred_check_branch
      %7893 = sbr.rel (0) target = $region89
    $region88: #{cnn_forward.1} parent=1 // pred_region
      _
    $region89: #{cnn_forward.1} parent=1 // pred_fallthru
      _
    // Predicated region
    $region90: #{cnn_forward.1} parent=1 // pred_check
      _
    $region91: #{cnn_forward.1} parent=1 // pred_check_branch
      %7895 = sbr.rel (0) target = $region93
    $region92: #{cnn_forward.1} parent=1 // pred_region
      _
    $region93: #{cnn_forward.1} parent=1 // pred_fallthru
      _
    %7896 = vsyncpa [#allocation7], 1
    %7897 = vsyncpa [#allocation9], 1
    %7898 = vsyncpa [#allocation12], 1

</llo_original>
